<compile_context>
chip_gen: v7x
topology: tpu7x:2x2x1
jax: 0.10.0
libtpu: 0.0.40
codegen_flags: <defaults>
</compile_context>

<pallas_src>
import functools

import jax
import jax.numpy as jnp
from jax.experimental import pallas as pl
from jax.experimental.pallas import tpu as pltpu

# ----------------------------- config ---------------------------------------
B = 2                      # batch
C = 3                      # image channels
IMG = 28                   # image height/width
PATCH = 14                 # ViT patch size (processor patch_size=14)
GRID = IMG // PATCH        # 2
NUM_PATCHES = GRID * GRID  # 4 image tokens per image
PATCH_DIM = C * PATCH * PATCH  # 588
S_VIS = NUM_PATCHES + 1    # vision seq len (CLS + patches)

DV = 32                    # vision hidden size
V_HEADS = 4
DHV = DV // V_HEADS
V_INTER = 64
V_LAYERS = 2

D = 32                     # text (LLM) hidden size
HEADS = 4
DH = D // HEADS
INTER = 64
T_LAYERS = 2
VOCAB = 128
IMAGE_TOKEN_ID = VOCAB - 1

T_TEXT = 12                # total text sequence length (4 prefix + 4 image + 4 suffix)
IMG_SLOT_START = 4         # contiguous image-placeholder block built by the "processor"

DTYPE = jnp.float32        # CPU / no-CUDA branch of the PyTorch module uses float32
NEG_INF = -1e9


# ------------------------- single fused forward kernel -----------------------
def _fused_forward_kernel(patches_ref, ids_ref, rope_ref,
                          v_patch_w_ref, v_const_ref,
                          v_wqkv_ref, v_wo_ref, v_fc1_ref, v_fc2_ref, v_vec_ref,
                          proj_w_ref, proj_b_ref,
                          embed_ref,
                          t_wqkv_ref, t_wo_ref, t_wgu_ref, t_wd_ref, t_vec_ref,
                          final_norm_ref, lm_head_ref,
                          o_ref, *,
                          v_layers, v_heads, dhv, t_layers, heads, dh,
                          s_vis, n_patches, t_len, vocab, inter, v_inter,
                          image_token_id, ln_eps, rms_eps):
    f32 = jnp.float32
    dv = v_patch_w_ref.shape[1]
    d = embed_ref.shape[1]
    half = dh // 2

    def layer_norm(x, w, bvec):
        mu = jnp.mean(x, axis=-1, keepdims=True)
        xc = x - mu
        var = jnp.mean(xc * xc, axis=-1, keepdims=True)
        return xc * jax.lax.rsqrt(var + ln_eps) * w + bvec

    def rms_norm(x, w):
        var = jnp.mean(x * x, axis=-1, keepdims=True)
        return x * jax.lax.rsqrt(var + rms_eps) * w

    def softmax(s):
        s = s - jnp.max(s, axis=-1, keepdims=True)
        p = jnp.exp(s)
        return p / jnp.sum(p, axis=-1, keepdims=True)

    # =================== vision tower (CLIP-ViT style) =======================
    patches = patches_ref[...].astype(f32)                  # (NP, PATCH_DIM)
    pe = jnp.dot(patches, v_patch_w_ref[...], preferred_element_type=f32)  # (NP, DV)

    vc = v_const_ref[...].astype(f32)                        # (S+2, DV)
    base = vc[:s_vis, :]                                     # CLS embed + pos table
    pre_w = vc[s_vis:s_vis + 1, :]
    pre_b = vc[s_vis + 1:s_vis + 2, :]

    # place patch embeddings on rows 1..S-1 via a selection matmul (row i <- patch i-1)
    r = jax.lax.broadcasted_iota(jnp.int32, (s_vis, n_patches), 0)
    c = jax.lax.broadcasted_iota(jnp.int32, (s_vis, n_patches), 1)
    shift = (r == c + 1).astype(f32)                         # (S, NP)
    h = base + jnp.dot(shift, pe, preferred_element_type=f32)

    h = layer_norm(h, pre_w, pre_b)                          # pre-LN

    v_scale = 1.0 / (dhv ** 0.5)
    for l in range(v_layers):
        wqkv = v_wqkv_ref[l]
        wo = v_wo_ref[l]
        fc1 = v_fc1_ref[l]
        fc2 = v_fc2_ref[l]
        vec = v_vec_ref[l].astype(f32)                       # (8, 3*DV) packed vectors
        ln1_w = vec[0:1, :dv]
        ln1_b = vec[1:2, :dv]
        bqkv = vec[2:3, :]
        bo = vec[3:4, :dv]
        ln2_w = vec[4:5, :dv]
        ln2_b = vec[5:6, :dv]
        fc1_b = vec[6:7, :v_inter]
        fc2_b = vec[7:8, :dv]

        # ---- bidirectional self-attention (fused QKV, per-head unrolled) ----
        xn = layer_norm(h, ln1_w, ln1_b)
        qkv = jnp.dot(xn, wqkv, preferred_element_type=f32) + bqkv
        attn = jnp.zeros_like(h)
        for hh in range(v_heads):
            q_h = qkv[:, hh * dhv:(hh + 1) * dhv]
            k_h = qkv[:, dv + hh * dhv: dv + (hh + 1) * dhv]
            v_h = qkv[:, 2 * dv + hh * dhv: 2 * dv + (hh + 1) * dhv]
            s = jax.lax.dot_general(q_h, k_h, (((1,), (1,)), ((), ())),
                                    preferred_element_type=f32) * v_scale
            p = softmax(s)
            o_h = jnp.dot(p, v_h, preferred_element_type=f32)
            attn = attn + jnp.dot(o_h, wo[hh * dhv:(hh + 1) * dhv, :],
                                  preferred_element_type=f32)
        h = h + attn + bo                                    # residual + out-proj bias

        # ---- MLP (quick-GELU, CLIP-style) + residual ----
        xn2 = layer_norm(h, ln2_w, ln2_b)
        m = jnp.dot(xn2, fc1, preferred_element_type=f32) + fc1_b
        m = m * jax.nn.sigmoid(1.702 * m)
        h = h + jnp.dot(m, fc2, preferred_element_type=f32) + fc2_b

    # =================== multimodal projector =================================
    img = h[1:, :]                                           # drop CLS -> (NP, DV)
    pb = proj_b_ref[...].astype(f32)                         # (2, D)
    y = jnp.dot(img, proj_w_ref[0], preferred_element_type=f32) + pb[0:1, :]
    # TODO(synk): HF LLaVA projector uses exact (erf) GELU; tanh approximation used here.
    y = jax.nn.gelu(y, approximate=True)
    img_feats = jnp.dot(y, proj_w_ref[1], preferred_element_type=f32) + pb[1:2, :]  # (NP, D)

    # =================== embedding lookup + masked_scatter ====================
    ids = ids_ref[...]                                       # (T, 1) int32
    vocab_iota = jax.lax.broadcasted_iota(jnp.int32, (t_len, vocab), 1)
    onehot = (vocab_iota == ids).astype(f32)                 # (T, vocab)
    text_emb = jnp.dot(onehot, embed_ref[...].astype(f32), preferred_element_type=f32)

    img_mask = (ids == image_token_id)                       # (T, 1) bool
    maskf = img_mask.astype(f32)
    rr = jax.lax.broadcasted_iota(jnp.int32, (t_len, t_len), 0)
    cc = jax.lax.broadcasted_iota(jnp.int32, (t_len, t_len), 1)
    tril = (rr >= cc).astype(f32)                            # (T, T) incl. diag
    cnt = jnp.dot(tril, maskf, preferred_element_type=f32)   # running count of <image> tokens
    slot = jnp.clip(cnt - 1.0, 0.0, float(n_patches - 1))    # feature index per position
    np_iota = jax.lax.broadcasted_iota(jnp.int32, (t_len, n_patches), 1).astype(f32)
    sel = (np_iota == slot).astype(f32)                      # (T, NP) one-hot gather
    gathered = jnp.dot(sel, img_feats, preferred_element_type=f32)
    x = jnp.where(img_mask, gathered, text_emb)              # (T, D) inputs_embeds

    # =================== LLaMA-style decoder stack ============================
    rope = rope_ref[...].astype(f32)                         # (T, dh) = [cos | sin]
    cos = rope[:, :half]
    sin = rope[:, half:]
    causal = rr >= cc                                        # reuse (T, T) iota
    t_scale = 1.0 / (dh ** 0.5)

    for l in range(t_layers):
        wqkv = t_wqkv_ref[l]
        wo = t_wo_ref[l]
        wgu = t_wgu_ref[l]                                   # fused [gate | up] (D, 2*INTER)
        wd = t_wd_ref[l]
        tv = t_vec_ref[l].astype(f32)                        # (2, D)
        in_norm = tv[0:1, :]
        post_norm = tv[1:2, :]

        # ---- causal self-attention: fused QKV, in-kernel RoPE, iota mask ----
        xn = rms_norm(x, in_norm)
        qkv = jnp.dot(xn, wqkv, preferred_element_type=f32)  # (T, 3D)
        attn = jnp.zeros_like(x)
        for hh in range(heads):
            q_h = qkv[:, hh * dh:(hh + 1) * dh]
            k_h = qkv[:, d + hh * dh: d + (hh + 1) * dh]
            v_h = qkv[:, 2 * d + hh * dh: 2 * d + (hh + 1) * dh]
            q1, q2 = q_h[:, :half], q_h[:, half:]
            k1, k2 = k_h[:, :half], k_h[:, half:]
            qr1, qr2 = q1 * cos - q2 * sin, q2 * cos + q1 * sin
            kr1, kr2 = k1 * cos - k2 * sin, k2 * cos + k1 * sin
            s = (jax.lax.dot_general(qr1, kr1, (((1,), (1,)), ((), ())),
                                     preferred_element_type=f32)
                 + jax.lax.dot_general(qr2, kr2, (((1,), (1,)), ((), ())),
                                       preferred_element_type=f32)) * t_scale
            s = jnp.where(causal, s, NEG_INF)
            p = softmax(s)
            o_h = jnp.dot(p, v_h, preferred_element_type=f32)
            attn = attn + jnp.dot(o_h, wo[hh * dh:(hh + 1) * dh, :],
                                  preferred_element_type=f32)
        x = x + attn

        # ---- SwiGLU MLP (fused gate/up matmul, lane-dense 128-wide) ----
        xn2 = rms_norm(x, post_norm)
        gu = jnp.dot(xn2, wgu, preferred_element_type=f32)   # (T, 2*INTER)
        g = gu[:, :inter]
        u = gu[:, inter:]
        x = x + jnp.dot((g * jax.nn.sigmoid(g)) * u, wd, preferred_element_type=f32)

    # =================== final RMSNorm + lm_head ==============================
    xn = rms_norm(x, final_norm_ref[...].astype(f32))
    # TODO(synk): at real LLaVA dims (D=4096, vocab~32k) the vocab axis should be a
    # tiled grid dimension; whole-slab lm_head is only valid at these toy shapes.
    o_ref[...] = jnp.dot(xn, lm_head_ref[...],
                         preferred_element_type=f32).astype(o_ref.dtype)


# --------------------------- parameter init ---------------------------------
def init_params(key):
    keys = iter(jax.random.split(key, 128))

    def rnd(shape, scale=0.02):
        return (scale * jax.random.normal(next(keys), shape, jnp.float32)).astype(DTYPE)

    def padrow(v, width):
        return jnp.pad(v, (0, width - v.shape[0]))

    p = {}
    # ---- vision tower (CLIP-ViT-like) ----
    p["v_patch_w"] = rnd((PATCH_DIM, DV))
    cls = rnd((1, DV))
    pos = rnd((S_VIS, DV))
    pre_ln_w = jnp.ones((DV,), DTYPE)
    pre_ln_b = jnp.zeros((DV,), DTYPE)
    base = jnp.concatenate([cls, jnp.zeros((NUM_PATCHES, DV), DTYPE)], axis=0) + pos
    # packed constants: rows 0..S-1 = CLS/pos base, row S = pre-LN weight, S+1 = bias
    p["v_const"] = jnp.concatenate([base, pre_ln_w[None, :], pre_ln_b[None, :]], axis=0)

    v_wqkv, v_wo, v_fc1, v_fc2, v_vec = [], [], [], [], []
    for _ in range(V_LAYERS):
        ln1_w = jnp.ones((DV,), DTYPE)
        ln1_b = rnd((DV,))
        bqkv = rnd((3 * DV,))
        bo = rnd((DV,))
        ln2_w = jnp.ones((DV,), DTYPE)
        ln2_b = rnd((DV,))
        fc1_b = rnd((V_INTER,))
        fc2_b = rnd((DV,))
        v_wqkv.append(rnd((DV, 3 * DV)))
        v_wo.append(rnd((DV, DV)))
        v_fc1.append(rnd((DV, V_INTER)))
        v_fc2.append(rnd((V_INTER, DV)))
        # pack all per-layer bias/norm vectors into one (8, 3*DV) slab (one DMA)
        v_vec.append(jnp.stack([padrow(ln1_w, 3 * DV), padrow(ln1_b, 3 * DV),
                                bqkv, padrow(bo, 3 * DV),
                                padrow(ln2_w, 3 * DV), padrow(ln2_b, 3 * DV),
                                padrow(fc1_b, 3 * DV), padrow(fc2_b, 3 * DV)], axis=0))
    p["v_wqkv"] = jnp.stack(v_wqkv)
    p["v_wo"] = jnp.stack(v_wo)
    p["v_fc1"] = jnp.stack(v_fc1)
    p["v_fc2"] = jnp.stack(v_fc2)
    p["v_vec"] = jnp.stack(v_vec)

    # ---- multimodal projector ----
    p["proj_w"] = jnp.stack([rnd((DV, D)), rnd((D, D))])     # DV == D
    p["proj_b"] = jnp.stack([rnd((D,)), rnd((D,))])

    # ---- language model (LLaMA-like), fused QKV / fused gate-up ----
    p["embed"] = rnd((VOCAB, D))
    t_wqkv, t_wo, t_wgu, t_wd, t_vec = [], [], [], [], []
    for _ in range(T_LAYERS):
        t_wqkv.append(rnd((D, 3 * D)))
        t_wo.append(rnd((D, D)))
        t_wgu.append(jnp.concatenate([rnd((D, INTER)), rnd((D, INTER))], axis=1))
        t_wd.append(rnd((INTER, D)))
        t_vec.append(jnp.stack([jnp.ones((D,), DTYPE), jnp.ones((D,), DTYPE)], axis=0))
    p["t_wqkv"] = jnp.stack(t_wqkv)
    p["t_wo"] = jnp.stack(t_wo)
    p["t_wgu"] = jnp.stack(t_wgu)
    p["t_wd"] = jnp.stack(t_wd)
    p["t_vec"] = jnp.stack(t_vec)
    p["final_norm"] = jnp.ones((1, D), DTYPE)
    p["lm_head"] = rnd((D, VOCAB))
    return p


# ------------------------------ model ---------------------------------------
def rope_table(t, dh):
    half = dh // 2
    positions = jnp.arange(t, dtype=jnp.float32)
    freqs = 1.0 / (10000.0 ** (jnp.arange(half, dtype=jnp.float32) / half))
    ang = positions[:, None] * freqs[None, :]
    return jnp.concatenate([jnp.cos(ang), jnp.sin(ang)], axis=-1).astype(DTYPE)  # (T, dh)


def forward(p, pixel_values, input_ids):
    """Equivalent of self.LLM(**batched_inputs) -> logits (B, T, vocab); ONE pallas_call."""
    b = pixel_values.shape[0]
    t = input_ids.shape[1]

    # NCHW -> (B, nP, C*ph*pw): Conv2d(stride=patch) patch extraction (single XLA op of glue;
    # everything downstream runs in the fused kernel with activations resident in VMEM).
    x = pixel_values.reshape(b, C, GRID, PATCH, GRID, PATCH)
    patches = x.transpose(0, 2, 4, 1, 3, 5).reshape(b, NUM_PATCHES, PATCH_DIM).astype(DTYPE)
    ids_3d = input_ids.astype(jnp.int32)[..., None]          # (B, T, 1) column layout
    rope = rope_table(t, DH)                                 # packed [cos | sin] table

    kern = functools.partial(
        _fused_forward_kernel,
        v_layers=V_LAYERS, v_heads=V_HEADS, dhv=DHV,
        t_layers=T_LAYERS, heads=HEADS, dh=DH,
        s_vis=S_VIS, n_patches=NUM_PATCHES, t_len=t,
        vocab=VOCAB, inter=INTER, v_inter=V_INTER,
        image_token_id=IMAGE_TOKEN_ID, ln_eps=1e-5, rms_eps=1e-6)

    logits = pl.pallas_call(
        kern,
        out_shape=jax.ShapeDtypeStruct((b, t, VOCAB), DTYPE),
        grid=(b,),
        in_specs=[
            pl.BlockSpec((None, NUM_PATCHES, PATCH_DIM), lambda i: (i, 0, 0)),  # patches
            pl.BlockSpec((None, t, 1), lambda i: (i, 0, 0)),                    # input_ids
            pl.BlockSpec((t, DH), lambda i: (0, 0)),                            # rope table
            pl.BlockSpec((PATCH_DIM, DV), lambda i: (0, 0)),                    # v_patch_w
            pl.BlockSpec((S_VIS + 2, DV), lambda i: (0, 0)),                    # v_const
            pl.BlockSpec((V_LAYERS, DV, 3 * DV), lambda i: (0, 0, 0)),          # v_wqkv
            pl.BlockSpec((V_LAYERS, DV, DV), lambda i: (0, 0, 0)),              # v_wo
            pl.BlockSpec((V_LAYERS, DV, V_INTER), lambda i: (0, 0, 0)),         # v_fc1
            pl.BlockSpec((V_LAYERS, V_INTER, DV), lambda i: (0, 0, 0)),         # v_fc2
            pl.BlockSpec((V_LAYERS, 8, 3 * DV), lambda i: (0, 0, 0)),           # v_vec pack
            pl.BlockSpec((2, DV, D), lambda i: (0, 0, 0)),                      # proj_w
            pl.BlockSpec((2, D), lambda i: (0, 0)),                             # proj_b
            pl.BlockSpec((VOCAB, D), lambda i: (0, 0)),                         # embed
            pl.BlockSpec((T_LAYERS, D, 3 * D), lambda i: (0, 0, 0)),            # t_wqkv
            pl.BlockSpec((T_LAYERS, D, D), lambda i: (0, 0, 0)),                # t_wo
            pl.BlockSpec((T_LAYERS, D, 2 * INTER), lambda i: (0, 0, 0)),        # t_wgu
            pl.BlockSpec((T_LAYERS, INTER, D), lambda i: (0, 0, 0)),            # t_wd
            pl.BlockSpec((T_LAYERS, 2, D), lambda i: (0, 0, 0)),                # t_vec pack
            pl.BlockSpec((1, D), lambda i: (0, 0)),                             # final_norm
            pl.BlockSpec((D, VOCAB), lambda i: (0, 0)),                         # lm_head
        ],
        out_specs=pl.BlockSpec((None, t, VOCAB), lambda i: (i, 0, 0)),
        compiler_params=pltpu.CompilerParams(dimension_semantics=("parallel",)),
    )(patches, ids_3d, rope,
      p["v_patch_w"], p["v_const"],
      p["v_wqkv"], p["v_wo"], p["v_fc1"], p["v_fc2"], p["v_vec"],
      p["proj_w"], p["proj_b"],
      p["embed"],
      p["t_wqkv"], p["t_wo"], p["t_wgu"], p["t_wd"], p["t_vec"],
      p["final_norm"], p["lm_head"])
    # TODO(synk): LLaVA-NeXT-Video anyres spatial unpadding / newline tokens and the
    # video frame-pooling resampler are omitted (single-image path only).
    return logits


# ------------------------------- main ----------------------------------------
if __name__ == "__main__":
    key = jax.random.PRNGKey(0)
    k_param, k_pix, k_ids = jax.random.split(key, 3)

    params = init_params(k_param)
    pixel_values = jax.random.normal(k_pix, (B, C, IMG, IMG), jnp.float32)  # NCHW
    input_ids = jax.random.randint(k_ids, (B, T_TEXT), 0, VOCAB - 1, jnp.int32)
    input_ids = input_ids.at[:, IMG_SLOT_START:IMG_SLOT_START + NUM_PATCHES].set(IMAGE_TOKEN_ID)

    logits = jax.jit(forward)(params, pixel_values, input_ids)
    logits = jax.block_until_ready(logits)

    assert logits.shape == (B, T_TEXT, VOCAB), logits.shape
    assert bool(jnp.all(jnp.isfinite(logits)))
    print("KERNEL_OK")
</pallas_src>

<mosaic_0001>
module attributes {stable_mosaic.version = 11 : i64} {
  func.func @_fused_forward_kernel(%arg0: i32, %arg1: memref<1x4x588xf32, #tpu.memory_space<vmem>>, %arg2: memref<1x12x1xi32, #tpu.memory_space<vmem>>, %arg3: memref<12x8xf32, #tpu.memory_space<vmem>>, %arg4: memref<588x32xf32, #tpu.memory_space<vmem>>, %arg5: memref<7x32xf32, #tpu.memory_space<vmem>>, %arg6: memref<2x32x96xf32, #tpu.memory_space<vmem>>, %arg7: memref<2x32x32xf32, #tpu.memory_space<vmem>>, %arg8: memref<2x32x64xf32, #tpu.memory_space<vmem>>, %arg9: memref<2x64x32xf32, #tpu.memory_space<vmem>>, %arg10: memref<2x8x96xf32, #tpu.memory_space<vmem>>, %arg11: memref<2x32x32xf32, #tpu.memory_space<vmem>>, %arg12: memref<2x32xf32, #tpu.memory_space<vmem>>, %arg13: memref<128x32xf32, #tpu.memory_space<vmem>>, %arg14: memref<2x32x96xf32, #tpu.memory_space<vmem>>, %arg15: memref<2x32x32xf32, #tpu.memory_space<vmem>>, %arg16: memref<2x32x128xf32, #tpu.memory_space<vmem>>, %arg17: memref<2x64x32xf32, #tpu.memory_space<vmem>>, %arg18: memref<2x2x32xf32, #tpu.memory_space<vmem>>, %arg19: memref<1x32xf32, #tpu.memory_space<vmem>>, %arg20: memref<32x128xf32, #tpu.memory_space<vmem>>, %arg21: memref<1x12x128xf32, #tpu.memory_space<vmem>>) attributes {dimension_semantics = [#tpu.dimension_semantics<parallel>], iteration_bounds = array<i64: 2>, scalar_prefetch = 0 : i64, scratch_operands = 0 : i64, tpu.core_type = #tpu.core_type<tc>, window_params = [{transform_indices = @transform_0, window_bounds = array<i64: 1, 4, 588>}, {transform_indices = @transform_1, window_bounds = array<i64: 1, 12, 1>}, {pipeline_mode = #tpu.pipeline_mode<synchronous>, transform_indices = @transform_2, window_bounds = array<i64: 12, 8>}, {pipeline_mode = #tpu.pipeline_mode<synchronous>, transform_indices = @transform_3, window_bounds = array<i64: 588, 32>}, {pipeline_mode = #tpu.pipeline_mode<synchronous>, transform_indices = @transform_4, window_bounds = array<i64: 7, 32>}, {pipeline_mode = #tpu.pipeline_mode<synchronous>, transform_indices = @transform_5, window_bounds = array<i64: 2, 32, 96>}, {pipeline_mode = #tpu.pipeline_mode<synchronous>, transform_indices = @transform_6, window_bounds = array<i64: 2, 32, 32>}, {pipeline_mode = #tpu.pipeline_mode<synchronous>, transform_indices = @transform_7, window_bounds = array<i64: 2, 32, 64>}, {pipeline_mode = #tpu.pipeline_mode<synchronous>, transform_indices = @transform_8, window_bounds = array<i64: 2, 64, 32>}, {pipeline_mode = #tpu.pipeline_mode<synchronous>, transform_indices = @transform_9, window_bounds = array<i64: 2, 8, 96>}, {pipeline_mode = #tpu.pipeline_mode<synchronous>, transform_indices = @transform_10, window_bounds = array<i64: 2, 32, 32>}, {pipeline_mode = #tpu.pipeline_mode<synchronous>, transform_indices = @transform_11, window_bounds = array<i64: 2, 32>}, {pipeline_mode = #tpu.pipeline_mode<synchronous>, transform_indices = @transform_12, window_bounds = array<i64: 128, 32>}, {pipeline_mode = #tpu.pipeline_mode<synchronous>, transform_indices = @transform_13, window_bounds = array<i64: 2, 32, 96>}, {pipeline_mode = #tpu.pipeline_mode<synchronous>, transform_indices = @transform_14, window_bounds = array<i64: 2, 32, 32>}, {pipeline_mode = #tpu.pipeline_mode<synchronous>, transform_indices = @transform_15, window_bounds = array<i64: 2, 32, 128>}, {pipeline_mode = #tpu.pipeline_mode<synchronous>, transform_indices = @transform_16, window_bounds = array<i64: 2, 64, 32>}, {pipeline_mode = #tpu.pipeline_mode<synchronous>, transform_indices = @transform_17, window_bounds = array<i64: 2, 2, 32>}, {pipeline_mode = #tpu.pipeline_mode<synchronous>, transform_indices = @transform_18, window_bounds = array<i64: 1, 32>}, {pipeline_mode = #tpu.pipeline_mode<synchronous>, transform_indices = @transform_19, window_bounds = array<i64: 32, 128>}, {transform_indices = @transform_20, window_bounds = array<i64: 1, 12, 128>}]} {
    %c0 = arith.constant 0 : index
    %c0_0 = arith.constant 0 : index
    %c0_1 = arith.constant 0 : index
    %0 = vector.load %arg1[%c0, %c0_0, %c0_1] : memref<1x4x588xf32, #tpu.memory_space<vmem>>, vector<1x4x588xf32>
    %1 = vector.shape_cast %0 : vector<1x4x588xf32> to vector<4x588xf32>
    %c0_2 = arith.constant 0 : index
    %c0_3 = arith.constant 0 : index
    %2 = vector.load %arg4[%c0_2, %c0_3] : memref<588x32xf32, #tpu.memory_space<vmem>>, vector<588x32xf32>
    %cst = arith.constant dense<0.000000e+00> : vector<4x32xf32>
    %3 = tpu.matmul %1, %2, %cst {dimension_numbers = #tpu.dot_dimension_numbers<[1], [0], [0], [1], [0, 0, 1, 1], [], []>} : vector<4x588xf32>, vector<588x32xf32>, vector<4x32xf32> -> vector<4x32xf32>
    %c0_4 = arith.constant 0 : index
    %c0_5 = arith.constant 0 : index
    %4 = vector.load %arg5[%c0_4, %c0_5] : memref<7x32xf32, #tpu.memory_space<vmem>>, vector<7x32xf32>
    %5 = vector.extract_strided_slice %4 {offsets = [0, 0], sizes = [5, 32], strides = [1, 1]} : vector<7x32xf32> to vector<5x32xf32>
    %6 = vector.extract_strided_slice %4 {offsets = [5, 0], sizes = [1, 32], strides = [1, 1]} : vector<7x32xf32> to vector<1x32xf32>
    %7 = vector.extract_strided_slice %4 {offsets = [6, 0], sizes = [1, 32], strides = [1, 1]} : vector<7x32xf32> to vector<1x32xf32>
    %8 = tpu.iota {dimensions = array<i32: 0>} : vector<5x4xi32>
    %9 = tpu.iota {dimensions = array<i32: 1>} : vector<5x4xi32>
    %c1_i32 = arith.constant 1 : i32
    %10 = vector.broadcast %c1_i32 : i32 to vector<5x4xi32>
    %11 = arith.addi %9, %10 : vector<5x4xi32>
    %12 = arith.cmpi eq, %8, %11 : vector<5x4xi32>
    %13 = arith.extui %12 : vector<5x4xi1> to vector<5x4xi32>
    %14 = arith.sitofp %13 : vector<5x4xi32> to vector<5x4xf32>
    %cst_6 = arith.constant dense<0.000000e+00> : vector<5x32xf32>
    %15 = tpu.matmul %14, %3, %cst_6 {dimension_numbers = #tpu.dot_dimension_numbers<[1], [0], [0], [1], [0, 0, 1, 1], [], []>} : vector<5x4xf32>, vector<4x32xf32>, vector<5x32xf32> -> vector<5x32xf32>
    %16 = arith.addf %5, %15 : vector<5x32xf32>
    %cst_7 = arith.constant dense<0.000000e+00> : vector<5xf32>
    %17 = vector.multi_reduction <add>, %16, %cst_7 [1] : vector<5x32xf32> to vector<5xf32>
    %18 = vector.shape_cast %17 : vector<5xf32> to vector<5x1xf32>
    %cst_8 = arith.constant 3.200000e+01 : f32
    %19 = vector.broadcast %cst_8 : f32 to vector<5x1xf32>
    %20 = arith.divf %18, %19 : vector<5x1xf32>
    %21 = vector.broadcast %20 : vector<5x1xf32> to vector<5x32xf32>
    %22 = arith.subf %16, %21 : vector<5x32xf32>
    %23 = arith.mulf %22, %22 : vector<5x32xf32>
    %cst_9 = arith.constant dense<0.000000e+00> : vector<5xf32>
    %24 = vector.multi_reduction <add>, %23, %cst_9 [1] : vector<5x32xf32> to vector<5xf32>
    %25 = vector.shape_cast %24 : vector<5xf32> to vector<5x1xf32>
    %cst_10 = arith.constant 3.200000e+01 : f32
    %26 = vector.broadcast %cst_10 : f32 to vector<5x1xf32>
    %27 = arith.divf %25, %26 : vector<5x1xf32>
    %cst_11 = arith.constant 9.99999974E-6 : f32
    %28 = vector.broadcast %cst_11 : f32 to vector<5x1xf32>
    %29 = arith.addf %27, %28 : vector<5x1xf32>
    %30 = math.rsqrt %29 : vector<5x1xf32>
    %31 = vector.broadcast %30 : vector<5x1xf32> to vector<5x32xf32>
    %32 = arith.mulf %22, %31 : vector<5x32xf32>
    %33 = vector.broadcast %6 : vector<1x32xf32> to vector<5x32xf32>
    %34 = arith.mulf %32, %33 : vector<5x32xf32>
    %35 = vector.broadcast %7 : vector<1x32xf32> to vector<5x32xf32>
    %36 = arith.addf %34, %35 : vector<5x32xf32>
    %c0_12 = arith.constant 0 : index
    %c0_13 = arith.constant 0 : index
    %c0_14 = arith.constant 0 : index
    %37 = vector.load %arg6[%c0_12, %c0_13, %c0_14] : memref<2x32x96xf32, #tpu.memory_space<vmem>>, vector<1x32x96xf32>
    %38 = vector.shape_cast %37 : vector<1x32x96xf32> to vector<32x96xf32>
    %c0_15 = arith.constant 0 : index
    %c0_16 = arith.constant 0 : index
    %c0_17 = arith.constant 0 : index
    %39 = vector.load %arg7[%c0_15, %c0_16, %c0_17] : memref<2x32x32xf32, #tpu.memory_space<vmem>>, vector<1x32x32xf32>
    %40 = vector.shape_cast %39 : vector<1x32x32xf32> to vector<32x32xf32>
    %c0_18 = arith.constant 0 : index
    %c0_19 = arith.constant 0 : index
    %c0_20 = arith.constant 0 : index
    %41 = vector.load %arg8[%c0_18, %c0_19, %c0_20] : memref<2x32x64xf32, #tpu.memory_space<vmem>>, vector<1x32x64xf32>
    %42 = vector.shape_cast %41 : vector<1x32x64xf32> to vector<32x64xf32>
    %c0_21 = arith.constant 0 : index
    %c0_22 = arith.constant 0 : index
    %c0_23 = arith.constant 0 : index
    %43 = vector.load %arg9[%c0_21, %c0_22, %c0_23] : memref<2x64x32xf32, #tpu.memory_space<vmem>>, vector<1x64x32xf32>
    %44 = vector.shape_cast %43 : vector<1x64x32xf32> to vector<64x32xf32>
    %c0_24 = arith.constant 0 : index
    %c0_25 = arith.constant 0 : index
    %c0_26 = arith.constant 0 : index
    %45 = vector.load %arg10[%c0_24, %c0_25, %c0_26] : memref<2x8x96xf32, #tpu.memory_space<vmem>>, vector<1x8x96xf32>
    %46 = vector.shape_cast %45 : vector<1x8x96xf32> to vector<8x96xf32>
    %47 = vector.extract_strided_slice %46 {offsets = [0, 0], sizes = [1, 32], strides = [1, 1]} : vector<8x96xf32> to vector<1x32xf32>
    %48 = vector.extract_strided_slice %46 {offsets = [1, 0], sizes = [1, 32], strides = [1, 1]} : vector<8x96xf32> to vector<1x32xf32>
    %49 = vector.extract_strided_slice %46 {offsets = [2, 0], sizes = [1, 96], strides = [1, 1]} : vector<8x96xf32> to vector<1x96xf32>
    %50 = vector.extract_strided_slice %46 {offsets = [3, 0], sizes = [1, 32], strides = [1, 1]} : vector<8x96xf32> to vector<1x32xf32>
    %51 = vector.extract_strided_slice %46 {offsets = [4, 0], sizes = [1, 32], strides = [1, 1]} : vector<8x96xf32> to vector<1x32xf32>
    %52 = vector.extract_strided_slice %46 {offsets = [5, 0], sizes = [1, 32], strides = [1, 1]} : vector<8x96xf32> to vector<1x32xf32>
    %53 = vector.extract_strided_slice %46 {offsets = [6, 0], sizes = [1, 64], strides = [1, 1]} : vector<8x96xf32> to vector<1x64xf32>
    %54 = vector.extract_strided_slice %46 {offsets = [7, 0], sizes = [1, 32], strides = [1, 1]} : vector<8x96xf32> to vector<1x32xf32>
    %cst_27 = arith.constant dense<0.000000e+00> : vector<5xf32>
    %55 = vector.multi_reduction <add>, %36, %cst_27 [1] : vector<5x32xf32> to vector<5xf32>
    %56 = vector.shape_cast %55 : vector<5xf32> to vector<5x1xf32>
    %cst_28 = arith.constant 3.200000e+01 : f32
    %57 = vector.broadcast %cst_28 : f32 to vector<5x1xf32>
    %58 = arith.divf %56, %57 : vector<5x1xf32>
    %59 = vector.broadcast %58 : vector<5x1xf32> to vector<5x32xf32>
    %60 = arith.subf %36, %59 : vector<5x32xf32>
    %61 = arith.mulf %60, %60 : vector<5x32xf32>
    %cst_29 = arith.constant dense<0.000000e+00> : vector<5xf32>
    %62 = vector.multi_reduction <add>, %61, %cst_29 [1] : vector<5x32xf32> to vector<5xf32>
    %63 = vector.shape_cast %62 : vector<5xf32> to vector<5x1xf32>
    %cst_30 = arith.constant 3.200000e+01 : f32
    %64 = vector.broadcast %cst_30 : f32 to vector<5x1xf32>
    %65 = arith.divf %63, %64 : vector<5x1xf32>
    %cst_31 = arith.constant 9.99999974E-6 : f32
    %66 = vector.broadcast %cst_31 : f32 to vector<5x1xf32>
    %67 = arith.addf %65, %66 : vector<5x1xf32>
    %68 = math.rsqrt %67 : vector<5x1xf32>
    %69 = vector.broadcast %68 : vector<5x1xf32> to vector<5x32xf32>
    %70 = arith.mulf %60, %69 : vector<5x32xf32>
    %71 = vector.broadcast %47 : vector<1x32xf32> to vector<5x32xf32>
    %72 = arith.mulf %70, %71 : vector<5x32xf32>
    %73 = vector.broadcast %48 : vector<1x32xf32> to vector<5x32xf32>
    %74 = arith.addf %72, %73 : vector<5x32xf32>
    %cst_32 = arith.constant dense<0.000000e+00> : vector<5x96xf32>
    %75 = tpu.matmul %74, %38, %cst_32 {dimension_numbers = #tpu.dot_dimension_numbers<[1], [0], [0], [1], [0, 0, 1, 1], [], []>} : vector<5x32xf32>, vector<32x96xf32>, vector<5x96xf32> -> vector<5x96xf32>
    %76 = vector.broadcast %49 : vector<1x96xf32> to vector<5x96xf32>
    %77 = arith.addf %75, %76 : vector<5x96xf32>
    %cst_33 = arith.constant 0.000000e+00 : f32
    %78 = vector.broadcast %cst_33 : f32 to vector<5x32xf32>
    %79 = vector.extract_strided_slice %77 {offsets = [0, 0], sizes = [5, 8], strides = [1, 1]} : vector<5x96xf32> to vector<5x8xf32>
    %80 = vector.extract_strided_slice %77 {offsets = [0, 32], sizes = [5, 8], strides = [1, 1]} : vector<5x96xf32> to vector<5x8xf32>
    %81 = vector.extract_strided_slice %77 {offsets = [0, 64], sizes = [5, 8], strides = [1, 1]} : vector<5x96xf32> to vector<5x8xf32>
    %cst_34 = arith.constant dense<0.000000e+00> : vector<5x5xf32>
    %82 = tpu.matmul %79, %80, %cst_34 {dimension_numbers = #tpu.dot_dimension_numbers<[1], [1], [0], [0], [0, 0, 1, 0], [], []>} : vector<5x8xf32>, vector<5x8xf32>, vector<5x5xf32> -> vector<5x5xf32>
    %cst_35 = arith.constant 0.353553385 : f32
    %83 = vector.broadcast %cst_35 : f32 to vector<5x5xf32>
    %84 = arith.mulf %82, %83 : vector<5x5xf32>
    %cst_36 = arith.constant dense<0xFF800000> : vector<5xf32>
    %85 = vector.multi_reduction <maximumf>, %84, %cst_36 [1] : vector<5x5xf32> to vector<5xf32>
    %86 = vector.shape_cast %85 : vector<5xf32> to vector<5x1xf32>
    %87 = vector.broadcast %86 : vector<5x1xf32> to vector<5x5xf32>
    %88 = arith.subf %84, %87 : vector<5x5xf32>
    %89 = math.exp %88 : vector<5x5xf32>
    %cst_37 = arith.constant dense<0.000000e+00> : vector<5xf32>
    %90 = vector.multi_reduction <add>, %89, %cst_37 [1] : vector<5x5xf32> to vector<5xf32>
    %91 = vector.shape_cast %90 : vector<5xf32> to vector<5x1xf32>
    %92 = vector.broadcast %91 : vector<5x1xf32> to vector<5x5xf32>
    %93 = arith.divf %89, %92 : vector<5x5xf32>
    %cst_38 = arith.constant dense<0.000000e+00> : vector<5x8xf32>
    %94 = tpu.matmul %93, %81, %cst_38 {dimension_numbers = #tpu.dot_dimension_numbers<[1], [0], [0], [1], [0, 0, 1, 1], [], []>} : vector<5x5xf32>, vector<5x8xf32>, vector<5x8xf32> -> vector<5x8xf32>
    %95 = vector.extract_strided_slice %40 {offsets = [0, 0], sizes = [8, 32], strides = [1, 1]} : vector<32x32xf32> to vector<8x32xf32>
    %cst_39 = arith.constant dense<0.000000e+00> : vector<5x32xf32>
    %96 = tpu.matmul %94, %95, %cst_39 {dimension_numbers = #tpu.dot_dimension_numbers<[1], [0], [0], [1], [0, 0, 1, 1], [], []>} : vector<5x8xf32>, vector<8x32xf32>, vector<5x32xf32> -> vector<5x32xf32>
    %97 = arith.addf %78, %96 : vector<5x32xf32>
    %98 = vector.extract_strided_slice %77 {offsets = [0, 8], sizes = [5, 8], strides = [1, 1]} : vector<5x96xf32> to vector<5x8xf32>
    %99 = vector.extract_strided_slice %77 {offsets = [0, 40], sizes = [5, 8], strides = [1, 1]} : vector<5x96xf32> to vector<5x8xf32>
    %100 = vector.extract_strided_slice %77 {offsets = [0, 72], sizes = [5, 8], strides = [1, 1]} : vector<5x96xf32> to vector<5x8xf32>
    %cst_40 = arith.constant dense<0.000000e+00> : vector<5x5xf32>
    %101 = tpu.matmul %98, %99, %cst_40 {dimension_numbers = #tpu.dot_dimension_numbers<[1], [1], [0], [0], [0, 0, 1, 0], [], []>} : vector<5x8xf32>, vector<5x8xf32>, vector<5x5xf32> -> vector<5x5xf32>
    %cst_41 = arith.constant 0.353553385 : f32
    %102 = vector.broadcast %cst_41 : f32 to vector<5x5xf32>
    %103 = arith.mulf %101, %102 : vector<5x5xf32>
    %cst_42 = arith.constant dense<0xFF800000> : vector<5xf32>
    %104 = vector.multi_reduction <maximumf>, %103, %cst_42 [1] : vector<5x5xf32> to vector<5xf32>
    %105 = vector.shape_cast %104 : vector<5xf32> to vector<5x1xf32>
    %106 = vector.broadcast %105 : vector<5x1xf32> to vector<5x5xf32>
    %107 = arith.subf %103, %106 : vector<5x5xf32>
    %108 = math.exp %107 : vector<5x5xf32>
    %cst_43 = arith.constant dense<0.000000e+00> : vector<5xf32>
    %109 = vector.multi_reduction <add>, %108, %cst_43 [1] : vector<5x5xf32> to vector<5xf32>
    %110 = vector.shape_cast %109 : vector<5xf32> to vector<5x1xf32>
    %111 = vector.broadcast %110 : vector<5x1xf32> to vector<5x5xf32>
    %112 = arith.divf %108, %111 : vector<5x5xf32>
    %cst_44 = arith.constant dense<0.000000e+00> : vector<5x8xf32>
    %113 = tpu.matmul %112, %100, %cst_44 {dimension_numbers = #tpu.dot_dimension_numbers<[1], [0], [0], [1], [0, 0, 1, 1], [], []>} : vector<5x5xf32>, vector<5x8xf32>, vector<5x8xf32> -> vector<5x8xf32>
    %114 = vector.extract_strided_slice %40 {offsets = [8, 0], sizes = [8, 32], strides = [1, 1]} : vector<32x32xf32> to vector<8x32xf32>
    %cst_45 = arith.constant dense<0.000000e+00> : vector<5x32xf32>
    %115 = tpu.matmul %113, %114, %cst_45 {dimension_numbers = #tpu.dot_dimension_numbers<[1], [0], [0], [1], [0, 0, 1, 1], [], []>} : vector<5x8xf32>, vector<8x32xf32>, vector<5x32xf32> -> vector<5x32xf32>
    %116 = arith.addf %97, %115 : vector<5x32xf32>
    %117 = vector.extract_strided_slice %77 {offsets = [0, 16], sizes = [5, 8], strides = [1, 1]} : vector<5x96xf32> to vector<5x8xf32>
    %118 = vector.extract_strided_slice %77 {offsets = [0, 48], sizes = [5, 8], strides = [1, 1]} : vector<5x96xf32> to vector<5x8xf32>
    %119 = vector.extract_strided_slice %77 {offsets = [0, 80], sizes = [5, 8], strides = [1, 1]} : vector<5x96xf32> to vector<5x8xf32>
    %cst_46 = arith.constant dense<0.000000e+00> : vector<5x5xf32>
    %120 = tpu.matmul %117, %118, %cst_46 {dimension_numbers = #tpu.dot_dimension_numbers<[1], [1], [0], [0], [0, 0, 1, 0], [], []>} : vector<5x8xf32>, vector<5x8xf32>, vector<5x5xf32> -> vector<5x5xf32>
    %cst_47 = arith.constant 0.353553385 : f32
    %121 = vector.broadcast %cst_47 : f32 to vector<5x5xf32>
    %122 = arith.mulf %120, %121 : vector<5x5xf32>
    %cst_48 = arith.constant dense<0xFF800000> : vector<5xf32>
    %123 = vector.multi_reduction <maximumf>, %122, %cst_48 [1] : vector<5x5xf32> to vector<5xf32>
    %124 = vector.shape_cast %123 : vector<5xf32> to vector<5x1xf32>
    %125 = vector.broadcast %124 : vector<5x1xf32> to vector<5x5xf32>
    %126 = arith.subf %122, %125 : vector<5x5xf32>
    %127 = math.exp %126 : vector<5x5xf32>
    %cst_49 = arith.constant dense<0.000000e+00> : vector<5xf32>
    %128 = vector.multi_reduction <add>, %127, %cst_49 [1] : vector<5x5xf32> to vector<5xf32>
    %129 = vector.shape_cast %128 : vector<5xf32> to vector<5x1xf32>
    %130 = vector.broadcast %129 : vector<5x1xf32> to vector<5x5xf32>
    %131 = arith.divf %127, %130 : vector<5x5xf32>
    %cst_50 = arith.constant dense<0.000000e+00> : vector<5x8xf32>
    %132 = tpu.matmul %131, %119, %cst_50 {dimension_numbers = #tpu.dot_dimension_numbers<[1], [0], [0], [1], [0, 0, 1, 1], [], []>} : vector<5x5xf32>, vector<5x8xf32>, vector<5x8xf32> -> vector<5x8xf32>
    %133 = vector.extract_strided_slice %40 {offsets = [16, 0], sizes = [8, 32], strides = [1, 1]} : vector<32x32xf32> to vector<8x32xf32>
    %cst_51 = arith.constant dense<0.000000e+00> : vector<5x32xf32>
    %134 = tpu.matmul %132, %133, %cst_51 {dimension_numbers = #tpu.dot_dimension_numbers<[1], [0], [0], [1], [0, 0, 1, 1], [], []>} : vector<5x8xf32>, vector<8x32xf32>, vector<5x32xf32> -> vector<5x32xf32>
    %135 = arith.addf %116, %134 : vector<5x32xf32>
    %136 = vector.extract_strided_slice %77 {offsets = [0, 24], sizes = [5, 8], strides = [1, 1]} : vector<5x96xf32> to vector<5x8xf32>
    %137 = vector.extract_strided_slice %77 {offsets = [0, 56], sizes = [5, 8], strides = [1, 1]} : vector<5x96xf32> to vector<5x8xf32>
    %138 = vector.extract_strided_slice %77 {offsets = [0, 88], sizes = [5, 8], strides = [1, 1]} : vector<5x96xf32> to vector<5x8xf32>
    %cst_52 = arith.constant dense<0.000000e+00> : vector<5x5xf32>
    %139 = tpu.matmul %136, %137, %cst_52 {dimension_numbers = #tpu.dot_dimension_numbers<[1], [1], [0], [0], [0, 0, 1, 0], [], []>} : vector<5x8xf32>, vector<5x8xf32>, vector<5x5xf32> -> vector<5x5xf32>
    %cst_53 = arith.constant 0.353553385 : f32
    %140 = vector.broadcast %cst_53 : f32 to vector<5x5xf32>
    %141 = arith.mulf %139, %140 : vector<5x5xf32>
    %cst_54 = arith.constant dense<0xFF800000> : vector<5xf32>
    %142 = vector.multi_reduction <maximumf>, %141, %cst_54 [1] : vector<5x5xf32> to vector<5xf32>
    %143 = vector.shape_cast %142 : vector<5xf32> to vector<5x1xf32>
    %144 = vector.broadcast %143 : vector<5x1xf32> to vector<5x5xf32>
    %145 = arith.subf %141, %144 : vector<5x5xf32>
    %146 = math.exp %145 : vector<5x5xf32>
    %cst_55 = arith.constant dense<0.000000e+00> : vector<5xf32>
    %147 = vector.multi_reduction <add>, %146, %cst_55 [1] : vector<5x5xf32> to vector<5xf32>
    %148 = vector.shape_cast %147 : vector<5xf32> to vector<5x1xf32>
    %149 = vector.broadcast %148 : vector<5x1xf32> to vector<5x5xf32>
    %150 = arith.divf %146, %149 : vector<5x5xf32>
    %cst_56 = arith.constant dense<0.000000e+00> : vector<5x8xf32>
    %151 = tpu.matmul %150, %138, %cst_56 {dimension_numbers = #tpu.dot_dimension_numbers<[1], [0], [0], [1], [0, 0, 1, 1], [], []>} : vector<5x5xf32>, vector<5x8xf32>, vector<5x8xf32> -> vector<5x8xf32>
    %152 = vector.extract_strided_slice %40 {offsets = [24, 0], sizes = [8, 32], strides = [1, 1]} : vector<32x32xf32> to vector<8x32xf32>
    %cst_57 = arith.constant dense<0.000000e+00> : vector<5x32xf32>
    %153 = tpu.matmul %151, %152, %cst_57 {dimension_numbers = #tpu.dot_dimension_numbers<[1], [0], [0], [1], [0, 0, 1, 1], [], []>} : vector<5x8xf32>, vector<8x32xf32>, vector<5x32xf32> -> vector<5x32xf32>
    %154 = arith.addf %135, %153 : vector<5x32xf32>
    %155 = arith.addf %36, %154 : vector<5x32xf32>
    %156 = vector.broadcast %50 : vector<1x32xf32> to vector<5x32xf32>
    %157 = arith.addf %155, %156 : vector<5x32xf32>
    %cst_58 = arith.constant dense<0.000000e+00> : vector<5xf32>
    %158 = vector.multi_reduction <add>, %157, %cst_58 [1] : vector<5x32xf32> to vector<5xf32>
    %159 = vector.shape_cast %158 : vector<5xf32> to vector<5x1xf32>
    %cst_59 = arith.constant 3.200000e+01 : f32
    %160 = vector.broadcast %cst_59 : f32 to vector<5x1xf32>
    %161 = arith.divf %159, %160 : vector<5x1xf32>
    %162 = vector.broadcast %161 : vector<5x1xf32> to vector<5x32xf32>
    %163 = arith.subf %157, %162 : vector<5x32xf32>
    %164 = arith.mulf %163, %163 : vector<5x32xf32>
    %cst_60 = arith.constant dense<0.000000e+00> : vector<5xf32>
    %165 = vector.multi_reduction <add>, %164, %cst_60 [1] : vector<5x32xf32> to vector<5xf32>
    %166 = vector.shape_cast %165 : vector<5xf32> to vector<5x1xf32>
    %cst_61 = arith.constant 3.200000e+01 : f32
    %167 = vector.broadcast %cst_61 : f32 to vector<5x1xf32>
    %168 = arith.divf %166, %167 : vector<5x1xf32>
    %cst_62 = arith.constant 9.99999974E-6 : f32
    %169 = vector.broadcast %cst_62 : f32 to vector<5x1xf32>
    %170 = arith.addf %168, %169 : vector<5x1xf32>
    %171 = math.rsqrt %170 : vector<5x1xf32>
    %172 = vector.broadcast %171 : vector<5x1xf32> to vector<5x32xf32>
    %173 = arith.mulf %163, %172 : vector<5x32xf32>
    %174 = vector.broadcast %51 : vector<1x32xf32> to vector<5x32xf32>
    %175 = arith.mulf %173, %174 : vector<5x32xf32>
    %176 = vector.broadcast %52 : vector<1x32xf32> to vector<5x32xf32>
    %177 = arith.addf %175, %176 : vector<5x32xf32>
    %cst_63 = arith.constant dense<0.000000e+00> : vector<5x64xf32>
    %178 = tpu.matmul %177, %42, %cst_63 {dimension_numbers = #tpu.dot_dimension_numbers<[1], [0], [0], [1], [0, 0, 1, 1], [], []>} : vector<5x32xf32>, vector<32x64xf32>, vector<5x64xf32> -> vector<5x64xf32>
    %179 = vector.broadcast %53 : vector<1x64xf32> to vector<5x64xf32>
    %180 = arith.addf %178, %179 : vector<5x64xf32>
    %cst_64 = arith.constant 1.702000e+00 : f32
    %181 = vector.broadcast %cst_64 : f32 to vector<5x64xf32>
    %182 = arith.mulf %181, %180 : vector<5x64xf32>
    %183 = arith.negf %182 : vector<5x64xf32>
    %184 = math.exp %183 : vector<5x64xf32>
    %cst_65 = arith.constant 1.000000e+00 : f32
    %185 = vector.broadcast %cst_65 : f32 to vector<5x64xf32>
    %186 = arith.addf %185, %184 : vector<5x64xf32>
    %187 = arith.divf %185, %186 : vector<5x64xf32>
    %188 = arith.mulf %180, %187 : vector<5x64xf32>
    %cst_66 = arith.constant dense<0.000000e+00> : vector<5x32xf32>
    %189 = tpu.matmul %188, %44, %cst_66 {dimension_numbers = #tpu.dot_dimension_numbers<[1], [0], [0], [1], [0, 0, 1, 1], [], []>} : vector<5x64xf32>, vector<64x32xf32>, vector<5x32xf32> -> vector<5x32xf32>
    %190 = arith.addf %157, %189 : vector<5x32xf32>
    %191 = vector.broadcast %54 : vector<1x32xf32> to vector<5x32xf32>
    %192 = arith.addf %190, %191 : vector<5x32xf32>
    %c1 = arith.constant 1 : index
    %c0_67 = arith.constant 0 : index
    %c0_68 = arith.constant 0 : index
    %193 = vector.load %arg6[%c1, %c0_67, %c0_68] : memref<2x32x96xf32, #tpu.memory_space<vmem>>, vector<1x32x96xf32>
    %194 = vector.shape_cast %193 : vector<1x32x96xf32> to vector<32x96xf32>
    %c1_69 = arith.constant 1 : index
    %c0_70 = arith.constant 0 : index
    %c0_71 = arith.constant 0 : index
    %195 = vector.load %arg7[%c1_69, %c0_70, %c0_71] : memref<2x32x32xf32, #tpu.memory_space<vmem>>, vector<1x32x32xf32>
    %196 = vector.shape_cast %195 : vector<1x32x32xf32> to vector<32x32xf32>
    %c1_72 = arith.constant 1 : index
    %c0_73 = arith.constant 0 : index
    %c0_74 = arith.constant 0 : index
    %197 = vector.load %arg8[%c1_72, %c0_73, %c0_74] : memref<2x32x64xf32, #tpu.memory_space<vmem>>, vector<1x32x64xf32>
    %198 = vector.shape_cast %197 : vector<1x32x64xf32> to vector<32x64xf32>
    %c1_75 = arith.constant 1 : index
    %c0_76 = arith.constant 0 : index
    %c0_77 = arith.constant 0 : index
    %199 = vector.load %arg9[%c1_75, %c0_76, %c0_77] : memref<2x64x32xf32, #tpu.memory_space<vmem>>, vector<1x64x32xf32>
    %200 = vector.shape_cast %199 : vector<1x64x32xf32> to vector<64x32xf32>
    %c1_78 = arith.constant 1 : index
    %c0_79 = arith.constant 0 : index
    %c0_80 = arith.constant 0 : index
    %201 = vector.load %arg10[%c1_78, %c0_79, %c0_80] : memref<2x8x96xf32, #tpu.memory_space<vmem>>, vector<1x8x96xf32>
    %202 = vector.shape_cast %201 : vector<1x8x96xf32> to vector<8x96xf32>
    %203 = vector.extract_strided_slice %202 {offsets = [0, 0], sizes = [1, 32], strides = [1, 1]} : vector<8x96xf32> to vector<1x32xf32>
    %204 = vector.extract_strided_slice %202 {offsets = [1, 0], sizes = [1, 32], strides = [1, 1]} : vector<8x96xf32> to vector<1x32xf32>
    %205 = vector.extract_strided_slice %202 {offsets = [2, 0], sizes = [1, 96], strides = [1, 1]} : vector<8x96xf32> to vector<1x96xf32>
    %206 = vector.extract_strided_slice %202 {offsets = [3, 0], sizes = [1, 32], strides = [1, 1]} : vector<8x96xf32> to vector<1x32xf32>
    %207 = vector.extract_strided_slice %202 {offsets = [4, 0], sizes = [1, 32], strides = [1, 1]} : vector<8x96xf32> to vector<1x32xf32>
    %208 = vector.extract_strided_slice %202 {offsets = [5, 0], sizes = [1, 32], strides = [1, 1]} : vector<8x96xf32> to vector<1x32xf32>
    %209 = vector.extract_strided_slice %202 {offsets = [6, 0], sizes = [1, 64], strides = [1, 1]} : vector<8x96xf32> to vector<1x64xf32>
    %210 = vector.extract_strided_slice %202 {offsets = [7, 0], sizes = [1, 32], strides = [1, 1]} : vector<8x96xf32> to vector<1x32xf32>
    %cst_81 = arith.constant dense<0.000000e+00> : vector<5xf32>
    %211 = vector.multi_reduction <add>, %192, %cst_81 [1] : vector<5x32xf32> to vector<5xf32>
    %212 = vector.shape_cast %211 : vector<5xf32> to vector<5x1xf32>
    %cst_82 = arith.constant 3.200000e+01 : f32
    %213 = vector.broadcast %cst_82 : f32 to vector<5x1xf32>
    %214 = arith.divf %212, %213 : vector<5x1xf32>
    %215 = vector.broadcast %214 : vector<5x1xf32> to vector<5x32xf32>
    %216 = arith.subf %192, %215 : vector<5x32xf32>
    %217 = arith.mulf %216, %216 : vector<5x32xf32>
    %cst_83 = arith.constant dense<0.000000e+00> : vector<5xf32>
    %218 = vector.multi_reduction <add>, %217, %cst_83 [1] : vector<5x32xf32> to vector<5xf32>
    %219 = vector.shape_cast %218 : vector<5xf32> to vector<5x1xf32>
    %cst_84 = arith.constant 3.200000e+01 : f32
    %220 = vector.broadcast %cst_84 : f32 to vector<5x1xf32>
    %221 = arith.divf %219, %220 : vector<5x1xf32>
    %cst_85 = arith.constant 9.99999974E-6 : f32
    %222 = vector.broadcast %cst_85 : f32 to vector<5x1xf32>
    %223 = arith.addf %221, %222 : vector<5x1xf32>
    %224 = math.rsqrt %223 : vector<5x1xf32>
    %225 = vector.broadcast %224 : vector<5x1xf32> to vector<5x32xf32>
    %226 = arith.mulf %216, %225 : vector<5x32xf32>
    %227 = vector.broadcast %203 : vector<1x32xf32> to vector<5x32xf32>
    %228 = arith.mulf %226, %227 : vector<5x32xf32>
    %229 = vector.broadcast %204 : vector<1x32xf32> to vector<5x32xf32>
    %230 = arith.addf %228, %229 : vector<5x32xf32>
    %cst_86 = arith.constant dense<0.000000e+00> : vector<5x96xf32>
    %231 = tpu.matmul %230, %194, %cst_86 {dimension_numbers = #tpu.dot_dimension_numbers<[1], [0], [0], [1], [0, 0, 1, 1], [], []>} : vector<5x32xf32>, vector<32x96xf32>, vector<5x96xf32> -> vector<5x96xf32>
    %232 = vector.broadcast %205 : vector<1x96xf32> to vector<5x96xf32>
    %233 = arith.addf %231, %232 : vector<5x96xf32>
    %cst_87 = arith.constant 0.000000e+00 : f32
    %234 = vector.broadcast %cst_87 : f32 to vector<5x32xf32>
    %235 = vector.extract_strided_slice %233 {offsets = [0, 0], sizes = [5, 8], strides = [1, 1]} : vector<5x96xf32> to vector<5x8xf32>
    %236 = vector.extract_strided_slice %233 {offsets = [0, 32], sizes = [5, 8], strides = [1, 1]} : vector<5x96xf32> to vector<5x8xf32>
    %237 = vector.extract_strided_slice %233 {offsets = [0, 64], sizes = [5, 8], strides = [1, 1]} : vector<5x96xf32> to vector<5x8xf32>
    %cst_88 = arith.constant dense<0.000000e+00> : vector<5x5xf32>
    %238 = tpu.matmul %235, %236, %cst_88 {dimension_numbers = #tpu.dot_dimension_numbers<[1], [1], [0], [0], [0, 0, 1, 0], [], []>} : vector<5x8xf32>, vector<5x8xf32>, vector<5x5xf32> -> vector<5x5xf32>
    %cst_89 = arith.constant 0.353553385 : f32
    %239 = vector.broadcast %cst_89 : f32 to vector<5x5xf32>
    %240 = arith.mulf %238, %239 : vector<5x5xf32>
    %cst_90 = arith.constant dense<0xFF800000> : vector<5xf32>
    %241 = vector.multi_reduction <maximumf>, %240, %cst_90 [1] : vector<5x5xf32> to vector<5xf32>
    %242 = vector.shape_cast %241 : vector<5xf32> to vector<5x1xf32>
    %243 = vector.broadcast %242 : vector<5x1xf32> to vector<5x5xf32>
    %244 = arith.subf %240, %243 : vector<5x5xf32>
    %245 = math.exp %244 : vector<5x5xf32>
    %cst_91 = arith.constant dense<0.000000e+00> : vector<5xf32>
    %246 = vector.multi_reduction <add>, %245, %cst_91 [1] : vector<5x5xf32> to vector<5xf32>
    %247 = vector.shape_cast %246 : vector<5xf32> to vector<5x1xf32>
    %248 = vector.broadcast %247 : vector<5x1xf32> to vector<5x5xf32>
    %249 = arith.divf %245, %248 : vector<5x5xf32>
    %cst_92 = arith.constant dense<0.000000e+00> : vector<5x8xf32>
    %250 = tpu.matmul %249, %237, %cst_92 {dimension_numbers = #tpu.dot_dimension_numbers<[1], [0], [0], [1], [0, 0, 1, 1], [], []>} : vector<5x5xf32>, vector<5x8xf32>, vector<5x8xf32> -> vector<5x8xf32>
    %251 = vector.extract_strided_slice %196 {offsets = [0, 0], sizes = [8, 32], strides = [1, 1]} : vector<32x32xf32> to vector<8x32xf32>
    %cst_93 = arith.constant dense<0.000000e+00> : vector<5x32xf32>
    %252 = tpu.matmul %250, %251, %cst_93 {dimension_numbers = #tpu.dot_dimension_numbers<[1], [0], [0], [1], [0, 0, 1, 1], [], []>} : vector<5x8xf32>, vector<8x32xf32>, vector<5x32xf32> -> vector<5x32xf32>
    %253 = arith.addf %234, %252 : vector<5x32xf32>
    %254 = vector.extract_strided_slice %233 {offsets = [0, 8], sizes = [5, 8], strides = [1, 1]} : vector<5x96xf32> to vector<5x8xf32>
    %255 = vector.extract_strided_slice %233 {offsets = [0, 40], sizes = [5, 8], strides = [1, 1]} : vector<5x96xf32> to vector<5x8xf32>
    %256 = vector.extract_strided_slice %233 {offsets = [0, 72], sizes = [5, 8], strides = [1, 1]} : vector<5x96xf32> to vector<5x8xf32>
    %cst_94 = arith.constant dense<0.000000e+00> : vector<5x5xf32>
    %257 = tpu.matmul %254, %255, %cst_94 {dimension_numbers = #tpu.dot_dimension_numbers<[1], [1], [0], [0], [0, 0, 1, 0], [], []>} : vector<5x8xf32>, vector<5x8xf32>, vector<5x5xf32> -> vector<5x5xf32>
    %cst_95 = arith.constant 0.353553385 : f32
    %258 = vector.broadcast %cst_95 : f32 to vector<5x5xf32>
    %259 = arith.mulf %257, %258 : vector<5x5xf32>
    %cst_96 = arith.constant dense<0xFF800000> : vector<5xf32>
    %260 = vector.multi_reduction <maximumf>, %259, %cst_96 [1] : vector<5x5xf32> to vector<5xf32>
    %261 = vector.shape_cast %260 : vector<5xf32> to vector<5x1xf32>
    %262 = vector.broadcast %261 : vector<5x1xf32> to vector<5x5xf32>
    %263 = arith.subf %259, %262 : vector<5x5xf32>
    %264 = math.exp %263 : vector<5x5xf32>
    %cst_97 = arith.constant dense<0.000000e+00> : vector<5xf32>
    %265 = vector.multi_reduction <add>, %264, %cst_97 [1] : vector<5x5xf32> to vector<5xf32>
    %266 = vector.shape_cast %265 : vector<5xf32> to vector<5x1xf32>
    %267 = vector.broadcast %266 : vector<5x1xf32> to vector<5x5xf32>
    %268 = arith.divf %264, %267 : vector<5x5xf32>
    %cst_98 = arith.constant dense<0.000000e+00> : vector<5x8xf32>
    %269 = tpu.matmul %268, %256, %cst_98 {dimension_numbers = #tpu.dot_dimension_numbers<[1], [0], [0], [1], [0, 0, 1, 1], [], []>} : vector<5x5xf32>, vector<5x8xf32>, vector<5x8xf32> -> vector<5x8xf32>
    %270 = vector.extract_strided_slice %196 {offsets = [8, 0], sizes = [8, 32], strides = [1, 1]} : vector<32x32xf32> to vector<8x32xf32>
    %cst_99 = arith.constant dense<0.000000e+00> : vector<5x32xf32>
    %271 = tpu.matmul %269, %270, %cst_99 {dimension_numbers = #tpu.dot_dimension_numbers<[1], [0], [0], [1], [0, 0, 1, 1], [], []>} : vector<5x8xf32>, vector<8x32xf32>, vector<5x32xf32> -> vector<5x32xf32>
    %272 = arith.addf %253, %271 : vector<5x32xf32>
    %273 = vector.extract_strided_slice %233 {offsets = [0, 16], sizes = [5, 8], strides = [1, 1]} : vector<5x96xf32> to vector<5x8xf32>
    %274 = vector.extract_strided_slice %233 {offsets = [0, 48], sizes = [5, 8], strides = [1, 1]} : vector<5x96xf32> to vector<5x8xf32>
    %275 = vector.extract_strided_slice %233 {offsets = [0, 80], sizes = [5, 8], strides = [1, 1]} : vector<5x96xf32> to vector<5x8xf32>
    %cst_100 = arith.constant dense<0.000000e+00> : vector<5x5xf32>
    %276 = tpu.matmul %273, %274, %cst_100 {dimension_numbers = #tpu.dot_dimension_numbers<[1], [1], [0], [0], [0, 0, 1, 0], [], []>} : vector<5x8xf32>, vector<5x8xf32>, vector<5x5xf32> -> vector<5x5xf32>
    %cst_101 = arith.constant 0.353553385 : f32
    %277 = vector.broadcast %cst_101 : f32 to vector<5x5xf32>
    %278 = arith.mulf %276, %277 : vector<5x5xf32>
    %cst_102 = arith.constant dense<0xFF800000> : vector<5xf32>
    %279 = vector.multi_reduction <maximumf>, %278, %cst_102 [1] : vector<5x5xf32> to vector<5xf32>
    %280 = vector.shape_cast %279 : vector<5xf32> to vector<5x1xf32>
    %281 = vector.broadcast %280 : vector<5x1xf32> to vector<5x5xf32>
    %282 = arith.subf %278, %281 : vector<5x5xf32>
    %283 = math.exp %282 : vector<5x5xf32>
    %cst_103 = arith.constant dense<0.000000e+00> : vector<5xf32>
    %284 = vector.multi_reduction <add>, %283, %cst_103 [1] : vector<5x5xf32> to vector<5xf32>
    %285 = vector.shape_cast %284 : vector<5xf32> to vector<5x1xf32>
    %286 = vector.broadcast %285 : vector<5x1xf32> to vector<5x5xf32>
    %287 = arith.divf %283, %286 : vector<5x5xf32>
    %cst_104 = arith.constant dense<0.000000e+00> : vector<5x8xf32>
    %288 = tpu.matmul %287, %275, %cst_104 {dimension_numbers = #tpu.dot_dimension_numbers<[1], [0], [0], [1], [0, 0, 1, 1], [], []>} : vector<5x5xf32>, vector<5x8xf32>, vector<5x8xf32> -> vector<5x8xf32>
    %289 = vector.extract_strided_slice %196 {offsets = [16, 0], sizes = [8, 32], strides = [1, 1]} : vector<32x32xf32> to vector<8x32xf32>
    %cst_105 = arith.constant dense<0.000000e+00> : vector<5x32xf32>
    %290 = tpu.matmul %288, %289, %cst_105 {dimension_numbers = #tpu.dot_dimension_numbers<[1], [0], [0], [1], [0, 0, 1, 1], [], []>} : vector<5x8xf32>, vector<8x32xf32>, vector<5x32xf32> -> vector<5x32xf32>
    %291 = arith.addf %272, %290 : vector<5x32xf32>
    %292 = vector.extract_strided_slice %233 {offsets = [0, 24], sizes = [5, 8], strides = [1, 1]} : vector<5x96xf32> to vector<5x8xf32>
    %293 = vector.extract_strided_slice %233 {offsets = [0, 56], sizes = [5, 8], strides = [1, 1]} : vector<5x96xf32> to vector<5x8xf32>
    %294 = vector.extract_strided_slice %233 {offsets = [0, 88], sizes = [5, 8], strides = [1, 1]} : vector<5x96xf32> to vector<5x8xf32>
    %cst_106 = arith.constant dense<0.000000e+00> : vector<5x5xf32>
    %295 = tpu.matmul %292, %293, %cst_106 {dimension_numbers = #tpu.dot_dimension_numbers<[1], [1], [0], [0], [0, 0, 1, 0], [], []>} : vector<5x8xf32>, vector<5x8xf32>, vector<5x5xf32> -> vector<5x5xf32>
    %cst_107 = arith.constant 0.353553385 : f32
    %296 = vector.broadcast %cst_107 : f32 to vector<5x5xf32>
    %297 = arith.mulf %295, %296 : vector<5x5xf32>
    %cst_108 = arith.constant dense<0xFF800000> : vector<5xf32>
    %298 = vector.multi_reduction <maximumf>, %297, %cst_108 [1] : vector<5x5xf32> to vector<5xf32>
    %299 = vector.shape_cast %298 : vector<5xf32> to vector<5x1xf32>
    %300 = vector.broadcast %299 : vector<5x1xf32> to vector<5x5xf32>
    %301 = arith.subf %297, %300 : vector<5x5xf32>
    %302 = math.exp %301 : vector<5x5xf32>
    %cst_109 = arith.constant dense<0.000000e+00> : vector<5xf32>
    %303 = vector.multi_reduction <add>, %302, %cst_109 [1] : vector<5x5xf32> to vector<5xf32>
    %304 = vector.shape_cast %303 : vector<5xf32> to vector<5x1xf32>
    %305 = vector.broadcast %304 : vector<5x1xf32> to vector<5x5xf32>
    %306 = arith.divf %302, %305 : vector<5x5xf32>
    %cst_110 = arith.constant dense<0.000000e+00> : vector<5x8xf32>
    %307 = tpu.matmul %306, %294, %cst_110 {dimension_numbers = #tpu.dot_dimension_numbers<[1], [0], [0], [1], [0, 0, 1, 1], [], []>} : vector<5x5xf32>, vector<5x8xf32>, vector<5x8xf32> -> vector<5x8xf32>
    %308 = vector.extract_strided_slice %196 {offsets = [24, 0], sizes = [8, 32], strides = [1, 1]} : vector<32x32xf32> to vector<8x32xf32>
    %cst_111 = arith.constant dense<0.000000e+00> : vector<5x32xf32>
    %309 = tpu.matmul %307, %308, %cst_111 {dimension_numbers = #tpu.dot_dimension_numbers<[1], [0], [0], [1], [0, 0, 1, 1], [], []>} : vector<5x8xf32>, vector<8x32xf32>, vector<5x32xf32> -> vector<5x32xf32>
    %310 = arith.addf %291, %309 : vector<5x32xf32>
    %311 = arith.addf %192, %310 : vector<5x32xf32>
    %312 = vector.broadcast %206 : vector<1x32xf32> to vector<5x32xf32>
    %313 = arith.addf %311, %312 : vector<5x32xf32>
    %cst_112 = arith.constant dense<0.000000e+00> : vector<5xf32>
    %314 = vector.multi_reduction <add>, %313, %cst_112 [1] : vector<5x32xf32> to vector<5xf32>
    %315 = vector.shape_cast %314 : vector<5xf32> to vector<5x1xf32>
    %cst_113 = arith.constant 3.200000e+01 : f32
    %316 = vector.broadcast %cst_113 : f32 to vector<5x1xf32>
    %317 = arith.divf %315, %316 : vector<5x1xf32>
    %318 = vector.broadcast %317 : vector<5x1xf32> to vector<5x32xf32>
    %319 = arith.subf %313, %318 : vector<5x32xf32>
    %320 = arith.mulf %319, %319 : vector<5x32xf32>
    %cst_114 = arith.constant dense<0.000000e+00> : vector<5xf32>
    %321 = vector.multi_reduction <add>, %320, %cst_114 [1] : vector<5x32xf32> to vector<5xf32>
    %322 = vector.shape_cast %321 : vector<5xf32> to vector<5x1xf32>
    %cst_115 = arith.constant 3.200000e+01 : f32
    %323 = vector.broadcast %cst_115 : f32 to vector<5x1xf32>
    %324 = arith.divf %322, %323 : vector<5x1xf32>
    %cst_116 = arith.constant 9.99999974E-6 : f32
    %325 = vector.broadcast %cst_116 : f32 to vector<5x1xf32>
    %326 = arith.addf %324, %325 : vector<5x1xf32>
    %327 = math.rsqrt %326 : vector<5x1xf32>
    %328 = vector.broadcast %327 : vector<5x1xf32> to vector<5x32xf32>
    %329 = arith.mulf %319, %328 : vector<5x32xf32>
    %330 = vector.broadcast %207 : vector<1x32xf32> to vector<5x32xf32>
    %331 = arith.mulf %329, %330 : vector<5x32xf32>
    %332 = vector.broadcast %208 : vector<1x32xf32> to vector<5x32xf32>
    %333 = arith.addf %331, %332 : vector<5x32xf32>
    %cst_117 = arith.constant dense<0.000000e+00> : vector<5x64xf32>
    %334 = tpu.matmul %333, %198, %cst_117 {dimension_numbers = #tpu.dot_dimension_numbers<[1], [0], [0], [1], [0, 0, 1, 1], [], []>} : vector<5x32xf32>, vector<32x64xf32>, vector<5x64xf32> -> vector<5x64xf32>
    %335 = vector.broadcast %209 : vector<1x64xf32> to vector<5x64xf32>
    %336 = arith.addf %334, %335 : vector<5x64xf32>
    %cst_118 = arith.constant 1.702000e+00 : f32
    %337 = vector.broadcast %cst_118 : f32 to vector<5x64xf32>
    %338 = arith.mulf %337, %336 : vector<5x64xf32>
    %339 = arith.negf %338 : vector<5x64xf32>
    %340 = math.exp %339 : vector<5x64xf32>
    %cst_119 = arith.constant 1.000000e+00 : f32
    %341 = vector.broadcast %cst_119 : f32 to vector<5x64xf32>
    %342 = arith.addf %341, %340 : vector<5x64xf32>
    %343 = arith.divf %341, %342 : vector<5x64xf32>
    %344 = arith.mulf %336, %343 : vector<5x64xf32>
    %cst_120 = arith.constant dense<0.000000e+00> : vector<5x32xf32>
    %345 = tpu.matmul %344, %200, %cst_120 {dimension_numbers = #tpu.dot_dimension_numbers<[1], [0], [0], [1], [0, 0, 1, 1], [], []>} : vector<5x64xf32>, vector<64x32xf32>, vector<5x32xf32> -> vector<5x32xf32>
    %346 = arith.addf %313, %345 : vector<5x32xf32>
    %347 = vector.broadcast %210 : vector<1x32xf32> to vector<5x32xf32>
    %348 = arith.addf %346, %347 : vector<5x32xf32>
    %349 = vector.extract_strided_slice %348 {offsets = [1, 0], sizes = [4, 32], strides = [1, 1]} : vector<5x32xf32> to vector<4x32xf32>
    %c0_121 = arith.constant 0 : index
    %c0_122 = arith.constant 0 : index
    %350 = vector.load %arg12[%c0_121, %c0_122] : memref<2x32xf32, #tpu.memory_space<vmem>>, vector<2x32xf32>
    %c0_123 = arith.constant 0 : index
    %c0_124 = arith.constant 0 : index
    %c0_125 = arith.constant 0 : index
    %351 = vector.load %arg11[%c0_123, %c0_124, %c0_125] : memref<2x32x32xf32, #tpu.memory_space<vmem>>, vector<1x32x32xf32>
    %352 = vector.shape_cast %351 : vector<1x32x32xf32> to vector<32x32xf32>
    %cst_126 = arith.constant dense<0.000000e+00> : vector<4x32xf32>
    %353 = tpu.matmul %349, %352, %cst_126 {dimension_numbers = #tpu.dot_dimension_numbers<[1], [0], [0], [1], [0, 0, 1, 1], [], []>} : vector<4x32xf32>, vector<32x32xf32>, vector<4x32xf32> -> vector<4x32xf32>
    %354 = vector.extract_strided_slice %350 {offsets = [0, 0], sizes = [1, 32], strides = [1, 1]} : vector<2x32xf32> to vector<1x32xf32>
    %355 = vector.broadcast %354 : vector<1x32xf32> to vector<4x32xf32>
    %356 = arith.addf %353, %355 : vector<4x32xf32>
    %357 = arith.mulf %356, %356 : vector<4x32xf32>
    %358 = arith.mulf %356, %357 : vector<4x32xf32>
    %cst_127 = arith.constant 4.471500e-02 : f32
    %359 = vector.broadcast %cst_127 : f32 to vector<4x32xf32>
    %360 = arith.mulf %359, %358 : vector<4x32xf32>
    %361 = arith.addf %356, %360 : vector<4x32xf32>
    %cst_128 = arith.constant 0.797884583 : f32
    %362 = vector.broadcast %cst_128 : f32 to vector<4x32xf32>
    %363 = arith.mulf %362, %361 : vector<4x32xf32>
    %364 = math.tanh %363 : vector<4x32xf32>
    %cst_129 = arith.constant 1.000000e+00 : f32
    %365 = vector.broadcast %cst_129 : f32 to vector<4x32xf32>
    %366 = arith.addf %365, %364 : vector<4x32xf32>
    %cst_130 = arith.constant 5.000000e-01 : f32
    %367 = vector.broadcast %cst_130 : f32 to vector<4x32xf32>
    %368 = arith.mulf %367, %366 : vector<4x32xf32>
    %369 = arith.mulf %356, %368 : vector<4x32xf32>
    %c1_131 = arith.constant 1 : index
    %c0_132 = arith.constant 0 : index
    %c0_133 = arith.constant 0 : index
    %370 = vector.load %arg11[%c1_131, %c0_132, %c0_133] : memref<2x32x32xf32, #tpu.memory_space<vmem>>, vector<1x32x32xf32>
    %371 = vector.shape_cast %370 : vector<1x32x32xf32> to vector<32x32xf32>
    %cst_134 = arith.constant dense<0.000000e+00> : vector<4x32xf32>
    %372 = tpu.matmul %369, %371, %cst_134 {dimension_numbers = #tpu.dot_dimension_numbers<[1], [0], [0], [1], [0, 0, 1, 1], [], []>} : vector<4x32xf32>, vector<32x32xf32>, vector<4x32xf32> -> vector<4x32xf32>
    %373 = vector.extract_strided_slice %350 {offsets = [1, 0], sizes = [1, 32], strides = [1, 1]} : vector<2x32xf32> to vector<1x32xf32>
    %374 = vector.broadcast %373 : vector<1x32xf32> to vector<4x32xf32>
    %375 = arith.addf %372, %374 : vector<4x32xf32>
    %c0_135 = arith.constant 0 : index
    %c0_136 = arith.constant 0 : index
    %c0_137 = arith.constant 0 : index
    %376 = vector.load %arg2[%c0_135, %c0_136, %c0_137] : memref<1x12x1xi32, #tpu.memory_space<vmem>>, vector<1x12x1xi32>
    %377 = vector.shape_cast %376 : vector<1x12x1xi32> to vector<12x1xi32>
    %378 = tpu.iota {dimensions = array<i32: 1>} : vector<12x128xi32>
    %379 = vector.broadcast %377 : vector<12x1xi32> to vector<12x128xi32>
    %380 = arith.cmpi eq, %378, %379 : vector<12x128xi32>
    %381 = arith.extui %380 : vector<12x128xi1> to vector<12x128xi32>
    %382 = arith.sitofp %381 : vector<12x128xi32> to vector<12x128xf32>
    %c0_138 = arith.constant 0 : index
    %c0_139 = arith.constant 0 : index
    %383 = vector.load %arg13[%c0_138, %c0_139] : memref<128x32xf32, #tpu.memory_space<vmem>>, vector<128x32xf32>
    %cst_140 = arith.constant dense<0.000000e+00> : vector<12x32xf32>
    %384 = tpu.matmul %382, %383, %cst_140 {dimension_numbers = #tpu.dot_dimension_numbers<[1], [0], [0], [1], [0, 0, 1, 1], [], []>} : vector<12x128xf32>, vector<128x32xf32>, vector<12x32xf32> -> vector<12x32xf32>
    %c127_i32 = arith.constant 127 : i32
    %385 = vector.broadcast %c127_i32 : i32 to vector<12x1xi32>
    %386 = arith.cmpi eq, %377, %385 : vector<12x1xi32>
    %387 = arith.extui %386 : vector<12x1xi1> to vector<12x1xi32>
    %388 = arith.sitofp %387 : vector<12x1xi32> to vector<12x1xf32>
    %389 = tpu.iota {dimensions = array<i32: 0>} : vector<12x12xi32>
    %390 = tpu.iota {dimensions = array<i32: 1>} : vector<12x12xi32>
    %391 = arith.cmpi sge, %389, %390 : vector<12x12xi32>
    %392 = arith.extui %391 : vector<12x12xi1> to vector<12x12xi32>
    %393 = arith.sitofp %392 : vector<12x12xi32> to vector<12x12xf32>
    %cst_141 = arith.constant dense<0.000000e+00> : vector<12x1xf32>
    %394 = tpu.matmul %393, %388, %cst_141 {dimension_numbers = #tpu.dot_dimension_numbers<[1], [0], [0], [1], [0, 0, 1, 1], [], []>} : vector<12x12xf32>, vector<12x1xf32>, vector<12x1xf32> -> vector<12x1xf32>
    %cst_142 = arith.constant 1.000000e+00 : f32
    %395 = vector.broadcast %cst_142 : f32 to vector<12x1xf32>
    %396 = arith.subf %394, %395 : vector<12x1xf32>
    %cst_143 = arith.constant 0.000000e+00 : f32
    %cst_144 = arith.constant 3.000000e+00 : f32
    %397 = vector.broadcast %cst_143 : f32 to vector<12x1xf32>
    %398 = arith.maximumf %397, %396 : vector<12x1xf32>
    %399 = vector.broadcast %cst_144 : f32 to vector<12x1xf32>
    %400 = arith.minimumf %399, %398 : vector<12x1xf32>
    %401 = tpu.iota {dimensions = array<i32: 1>} : vector<12x4xi32>
    %402 = arith.sitofp %401 : vector<12x4xi32> to vector<12x4xf32>
    %403 = vector.broadcast %400 : vector<12x1xf32> to vector<12x4xf32>
    %404 = arith.cmpf oeq, %402, %403 : vector<12x4xf32>
    %405 = arith.extui %404 : vector<12x4xi1> to vector<12x4xi32>
    %406 = arith.sitofp %405 : vector<12x4xi32> to vector<12x4xf32>
    %cst_145 = arith.constant dense<0.000000e+00> : vector<12x32xf32>
    %407 = tpu.matmul %406, %375, %cst_145 {dimension_numbers = #tpu.dot_dimension_numbers<[1], [0], [0], [1], [0, 0, 1, 1], [], []>} : vector<12x4xf32>, vector<4x32xf32>, vector<12x32xf32> -> vector<12x32xf32>
    %408 = vector.shape_cast %386 : vector<12x1xi1> to vector<12x1xi1>
    %409 = vector.broadcast %408 : vector<12x1xi1> to vector<12x32xi1>
    %410 = arith.select %409, %407, %384 : vector<12x32xi1>, vector<12x32xf32>
    %c0_146 = arith.constant 0 : index
    %c0_147 = arith.constant 0 : index
    %411 = vector.load %arg3[%c0_146, %c0_147] : memref<12x8xf32, #tpu.memory_space<vmem>>, vector<12x8xf32>
    %412 = vector.extract_strided_slice %411 {offsets = [0, 0], sizes = [12, 4], strides = [1, 1]} : vector<12x8xf32> to vector<12x4xf32>
    %413 = vector.extract_strided_slice %411 {offsets = [0, 4], sizes = [12, 4], strides = [1, 1]} : vector<12x8xf32> to vector<12x4xf32>
    %414 = arith.cmpi sge, %389, %390 : vector<12x12xi32>
    %c0_148 = arith.constant 0 : index
    %c0_149 = arith.constant 0 : index
    %c0_150 = arith.constant 0 : index
    %415 = vector.load %arg14[%c0_148, %c0_149, %c0_150] : memref<2x32x96xf32, #tpu.memory_space<vmem>>, vector<1x32x96xf32>
    %416 = vector.shape_cast %415 : vector<1x32x96xf32> to vector<32x96xf32>
    %c0_151 = arith.constant 0 : index
    %c0_152 = arith.constant 0 : index
    %c0_153 = arith.constant 0 : index
    %417 = vector.load %arg15[%c0_151, %c0_152, %c0_153] : memref<2x32x32xf32, #tpu.memory_space<vmem>>, vector<1x32x32xf32>
    %418 = vector.shape_cast %417 : vector<1x32x32xf32> to vector<32x32xf32>
    %c0_154 = arith.constant 0 : index
    %c0_155 = arith.constant 0 : index
    %c0_156 = arith.constant 0 : index
    %419 = vector.load %arg16[%c0_154, %c0_155, %c0_156] : memref<2x32x128xf32, #tpu.memory_space<vmem>>, vector<1x32x128xf32>
    %420 = vector.shape_cast %419 : vector<1x32x128xf32> to vector<32x128xf32>
    %c0_157 = arith.constant 0 : index
    %c0_158 = arith.constant 0 : index
    %c0_159 = arith.constant 0 : index
    %421 = vector.load %arg17[%c0_157, %c0_158, %c0_159] : memref<2x64x32xf32, #tpu.memory_space<vmem>>, vector<1x64x32xf32>
    %422 = vector.shape_cast %421 : vector<1x64x32xf32> to vector<64x32xf32>
    %c0_160 = arith.constant 0 : index
    %c0_161 = arith.constant 0 : index
    %c0_162 = arith.constant 0 : index
    %423 = vector.load %arg18[%c0_160, %c0_161, %c0_162] : memref<2x2x32xf32, #tpu.memory_space<vmem>>, vector<1x2x32xf32>
    %424 = vector.shape_cast %423 : vector<1x2x32xf32> to vector<2x32xf32>
    %425 = vector.extract_strided_slice %424 {offsets = [0, 0], sizes = [1, 32], strides = [1, 1]} : vector<2x32xf32> to vector<1x32xf32>
    %426 = vector.extract_strided_slice %424 {offsets = [1, 0], sizes = [1, 32], strides = [1, 1]} : vector<2x32xf32> to vector<1x32xf32>
    %427 = arith.mulf %410, %410 : vector<12x32xf32>
    %cst_163 = arith.constant dense<0.000000e+00> : vector<12xf32>
    %428 = vector.multi_reduction <add>, %427, %cst_163 [1] : vector<12x32xf32> to vector<12xf32>
    %429 = vector.shape_cast %428 : vector<12xf32> to vector<12x1xf32>
    %cst_164 = arith.constant 3.200000e+01 : f32
    %430 = vector.broadcast %cst_164 : f32 to vector<12x1xf32>
    %431 = arith.divf %429, %430 : vector<12x1xf32>
    %cst_165 = arith.constant 9.99999997E-7 : f32
    %432 = vector.broadcast %cst_165 : f32 to vector<12x1xf32>
    %433 = arith.addf %431, %432 : vector<12x1xf32>
    %434 = math.rsqrt %433 : vector<12x1xf32>
    %435 = vector.broadcast %434 : vector<12x1xf32> to vector<12x32xf32>
    %436 = arith.mulf %410, %435 : vector<12x32xf32>
    %437 = vector.broadcast %425 : vector<1x32xf32> to vector<12x32xf32>
    %438 = arith.mulf %436, %437 : vector<12x32xf32>
    %cst_166 = arith.constant dense<0.000000e+00> : vector<12x96xf32>
    %439 = tpu.matmul %438, %416, %cst_166 {dimension_numbers = #tpu.dot_dimension_numbers<[1], [0], [0], [1], [0, 0, 1, 1], [], []>} : vector<12x32xf32>, vector<32x96xf32>, vector<12x96xf32> -> vector<12x96xf32>
    %cst_167 = arith.constant 0.000000e+00 : f32
    %440 = vector.broadcast %cst_167 : f32 to vector<12x32xf32>
    %441 = vector.extract_strided_slice %439 {offsets = [0, 0], sizes = [12, 8], strides = [1, 1]} : vector<12x96xf32> to vector<12x8xf32>
    %442 = vector.extract_strided_slice %439 {offsets = [0, 32], sizes = [12, 8], strides = [1, 1]} : vector<12x96xf32> to vector<12x8xf32>
    %443 = vector.extract_strided_slice %439 {offsets = [0, 64], sizes = [12, 8], strides = [1, 1]} : vector<12x96xf32> to vector<12x8xf32>
    %444 = vector.extract_strided_slice %441 {offsets = [0, 0], sizes = [12, 4], strides = [1, 1]} : vector<12x8xf32> to vector<12x4xf32>
    %445 = vector.extract_strided_slice %441 {offsets = [0, 4], sizes = [12, 4], strides = [1, 1]} : vector<12x8xf32> to vector<12x4xf32>
    %446 = vector.extract_strided_slice %442 {offsets = [0, 0], sizes = [12, 4], strides = [1, 1]} : vector<12x8xf32> to vector<12x4xf32>
    %447 = vector.extract_strided_slice %442 {offsets = [0, 4], sizes = [12, 4], strides = [1, 1]} : vector<12x8xf32> to vector<12x4xf32>
    %448 = arith.mulf %444, %412 : vector<12x4xf32>
    %449 = arith.mulf %445, %413 : vector<12x4xf32>
    %450 = arith.subf %448, %449 : vector<12x4xf32>
    %451 = arith.mulf %445, %412 : vector<12x4xf32>
    %452 = arith.mulf %444, %413 : vector<12x4xf32>
    %453 = arith.addf %451, %452 : vector<12x4xf32>
    %454 = arith.mulf %446, %412 : vector<12x4xf32>
    %455 = arith.mulf %447, %413 : vector<12x4xf32>
    %456 = arith.subf %454, %455 : vector<12x4xf32>
    %457 = arith.mulf %447, %412 : vector<12x4xf32>
    %458 = arith.mulf %446, %413 : vector<12x4xf32>
    %459 = arith.addf %457, %458 : vector<12x4xf32>
    %cst_168 = arith.constant dense<0.000000e+00> : vector<12x12xf32>
    %460 = tpu.matmul %450, %456, %cst_168 {dimension_numbers = #tpu.dot_dimension_numbers<[1], [1], [0], [0], [0, 0, 1, 0], [], []>} : vector<12x4xf32>, vector<12x4xf32>, vector<12x12xf32> -> vector<12x12xf32>
    %cst_169 = arith.constant dense<0.000000e+00> : vector<12x12xf32>
    %461 = tpu.matmul %453, %459, %cst_169 {dimension_numbers = #tpu.dot_dimension_numbers<[1], [1], [0], [0], [0, 0, 1, 0], [], []>} : vector<12x4xf32>, vector<12x4xf32>, vector<12x12xf32> -> vector<12x12xf32>
    %462 = arith.addf %460, %461 : vector<12x12xf32>
    %cst_170 = arith.constant 0.353553385 : f32
    %463 = vector.broadcast %cst_170 : f32 to vector<12x12xf32>
    %464 = arith.mulf %462, %463 : vector<12x12xf32>
    %cst_171 = arith.constant -1.000000e+09 : f32
    %465 = vector.broadcast %cst_171 : f32 to vector<12x12xf32>
    %466 = arith.select %414, %464, %465 : vector<12x12xi1>, vector<12x12xf32>
    %cst_172 = arith.constant dense<0xFF800000> : vector<12xf32>
    %467 = vector.multi_reduction <maximumf>, %466, %cst_172 [1] : vector<12x12xf32> to vector<12xf32>
    %468 = vector.shape_cast %467 : vector<12xf32> to vector<12x1xf32>
    %469 = vector.broadcast %468 : vector<12x1xf32> to vector<12x12xf32>
    %470 = arith.subf %466, %469 : vector<12x12xf32>
    %471 = math.exp %470 : vector<12x12xf32>
    %cst_173 = arith.constant dense<0.000000e+00> : vector<12xf32>
    %472 = vector.multi_reduction <add>, %471, %cst_173 [1] : vector<12x12xf32> to vector<12xf32>
    %473 = vector.shape_cast %472 : vector<12xf32> to vector<12x1xf32>
    %474 = vector.broadcast %473 : vector<12x1xf32> to vector<12x12xf32>
    %475 = arith.divf %471, %474 : vector<12x12xf32>
    %cst_174 = arith.constant dense<0.000000e+00> : vector<12x8xf32>
    %476 = tpu.matmul %475, %443, %cst_174 {dimension_numbers = #tpu.dot_dimension_numbers<[1], [0], [0], [1], [0, 0, 1, 1], [], []>} : vector<12x12xf32>, vector<12x8xf32>, vector<12x8xf32> -> vector<12x8xf32>
    %477 = vector.extract_strided_slice %418 {offsets = [0, 0], sizes = [8, 32], strides = [1, 1]} : vector<32x32xf32> to vector<8x32xf32>
    %cst_175 = arith.constant dense<0.000000e+00> : vector<12x32xf32>
    %478 = tpu.matmul %476, %477, %cst_175 {dimension_numbers = #tpu.dot_dimension_numbers<[1], [0], [0], [1], [0, 0, 1, 1], [], []>} : vector<12x8xf32>, vector<8x32xf32>, vector<12x32xf32> -> vector<12x32xf32>
    %479 = arith.addf %440, %478 : vector<12x32xf32>
    %480 = vector.extract_strided_slice %439 {offsets = [0, 8], sizes = [12, 8], strides = [1, 1]} : vector<12x96xf32> to vector<12x8xf32>
    %481 = vector.extract_strided_slice %439 {offsets = [0, 40], sizes = [12, 8], strides = [1, 1]} : vector<12x96xf32> to vector<12x8xf32>
    %482 = vector.extract_strided_slice %439 {offsets = [0, 72], sizes = [12, 8], strides = [1, 1]} : vector<12x96xf32> to vector<12x8xf32>
    %483 = vector.extract_strided_slice %480 {offsets = [0, 0], sizes = [12, 4], strides = [1, 1]} : vector<12x8xf32> to vector<12x4xf32>
    %484 = vector.extract_strided_slice %480 {offsets = [0, 4], sizes = [12, 4], strides = [1, 1]} : vector<12x8xf32> to vector<12x4xf32>
    %485 = vector.extract_strided_slice %481 {offsets = [0, 0], sizes = [12, 4], strides = [1, 1]} : vector<12x8xf32> to vector<12x4xf32>
    %486 = vector.extract_strided_slice %481 {offsets = [0, 4], sizes = [12, 4], strides = [1, 1]} : vector<12x8xf32> to vector<12x4xf32>
    %487 = arith.mulf %483, %412 : vector<12x4xf32>
    %488 = arith.mulf %484, %413 : vector<12x4xf32>
    %489 = arith.subf %487, %488 : vector<12x4xf32>
    %490 = arith.mulf %484, %412 : vector<12x4xf32>
    %491 = arith.mulf %483, %413 : vector<12x4xf32>
    %492 = arith.addf %490, %491 : vector<12x4xf32>
    %493 = arith.mulf %485, %412 : vector<12x4xf32>
    %494 = arith.mulf %486, %413 : vector<12x4xf32>
    %495 = arith.subf %493, %494 : vector<12x4xf32>
    %496 = arith.mulf %486, %412 : vector<12x4xf32>
    %497 = arith.mulf %485, %413 : vector<12x4xf32>
    %498 = arith.addf %496, %497 : vector<12x4xf32>
    %cst_176 = arith.constant dense<0.000000e+00> : vector<12x12xf32>
    %499 = tpu.matmul %489, %495, %cst_176 {dimension_numbers = #tpu.dot_dimension_numbers<[1], [1], [0], [0], [0, 0, 1, 0], [], []>} : vector<12x4xf32>, vector<12x4xf32>, vector<12x12xf32> -> vector<12x12xf32>
    %cst_177 = arith.constant dense<0.000000e+00> : vector<12x12xf32>
    %500 = tpu.matmul %492, %498, %cst_177 {dimension_numbers = #tpu.dot_dimension_numbers<[1], [1], [0], [0], [0, 0, 1, 0], [], []>} : vector<12x4xf32>, vector<12x4xf32>, vector<12x12xf32> -> vector<12x12xf32>
    %501 = arith.addf %499, %500 : vector<12x12xf32>
    %cst_178 = arith.constant 0.353553385 : f32
    %502 = vector.broadcast %cst_178 : f32 to vector<12x12xf32>
    %503 = arith.mulf %501, %502 : vector<12x12xf32>
    %cst_179 = arith.constant -1.000000e+09 : f32
    %504 = vector.broadcast %cst_179 : f32 to vector<12x12xf32>
    %505 = arith.select %414, %503, %504 : vector<12x12xi1>, vector<12x12xf32>
    %cst_180 = arith.constant dense<0xFF800000> : vector<12xf32>
    %506 = vector.multi_reduction <maximumf>, %505, %cst_180 [1] : vector<12x12xf32> to vector<12xf32>
    %507 = vector.shape_cast %506 : vector<12xf32> to vector<12x1xf32>
    %508 = vector.broadcast %507 : vector<12x1xf32> to vector<12x12xf32>
    %509 = arith.subf %505, %508 : vector<12x12xf32>
    %510 = math.exp %509 : vector<12x12xf32>
    %cst_181 = arith.constant dense<0.000000e+00> : vector<12xf32>
    %511 = vector.multi_reduction <add>, %510, %cst_181 [1] : vector<12x12xf32> to vector<12xf32>
    %512 = vector.shape_cast %511 : vector<12xf32> to vector<12x1xf32>
    %513 = vector.broadcast %512 : vector<12x1xf32> to vector<12x12xf32>
    %514 = arith.divf %510, %513 : vector<12x12xf32>
    %cst_182 = arith.constant dense<0.000000e+00> : vector<12x8xf32>
    %515 = tpu.matmul %514, %482, %cst_182 {dimension_numbers = #tpu.dot_dimension_numbers<[1], [0], [0], [1], [0, 0, 1, 1], [], []>} : vector<12x12xf32>, vector<12x8xf32>, vector<12x8xf32> -> vector<12x8xf32>
    %516 = vector.extract_strided_slice %418 {offsets = [8, 0], sizes = [8, 32], strides = [1, 1]} : vector<32x32xf32> to vector<8x32xf32>
    %cst_183 = arith.constant dense<0.000000e+00> : vector<12x32xf32>
    %517 = tpu.matmul %515, %516, %cst_183 {dimension_numbers = #tpu.dot_dimension_numbers<[1], [0], [0], [1], [0, 0, 1, 1], [], []>} : vector<12x8xf32>, vector<8x32xf32>, vector<12x32xf32> -> vector<12x32xf32>
    %518 = arith.addf %479, %517 : vector<12x32xf32>
    %519 = vector.extract_strided_slice %439 {offsets = [0, 16], sizes = [12, 8], strides = [1, 1]} : vector<12x96xf32> to vector<12x8xf32>
    %520 = vector.extract_strided_slice %439 {offsets = [0, 48], sizes = [12, 8], strides = [1, 1]} : vector<12x96xf32> to vector<12x8xf32>
    %521 = vector.extract_strided_slice %439 {offsets = [0, 80], sizes = [12, 8], strides = [1, 1]} : vector<12x96xf32> to vector<12x8xf32>
    %522 = vector.extract_strided_slice %519 {offsets = [0, 0], sizes = [12, 4], strides = [1, 1]} : vector<12x8xf32> to vector<12x4xf32>
    %523 = vector.extract_strided_slice %519 {offsets = [0, 4], sizes = [12, 4], strides = [1, 1]} : vector<12x8xf32> to vector<12x4xf32>
    %524 = vector.extract_strided_slice %520 {offsets = [0, 0], sizes = [12, 4], strides = [1, 1]} : vector<12x8xf32> to vector<12x4xf32>
    %525 = vector.extract_strided_slice %520 {offsets = [0, 4], sizes = [12, 4], strides = [1, 1]} : vector<12x8xf32> to vector<12x4xf32>
    %526 = arith.mulf %522, %412 : vector<12x4xf32>
    %527 = arith.mulf %523, %413 : vector<12x4xf32>
    %528 = arith.subf %526, %527 : vector<12x4xf32>
    %529 = arith.mulf %523, %412 : vector<12x4xf32>
    %530 = arith.mulf %522, %413 : vector<12x4xf32>
    %531 = arith.addf %529, %530 : vector<12x4xf32>
    %532 = arith.mulf %524, %412 : vector<12x4xf32>
    %533 = arith.mulf %525, %413 : vector<12x4xf32>
    %534 = arith.subf %532, %533 : vector<12x4xf32>
    %535 = arith.mulf %525, %412 : vector<12x4xf32>
    %536 = arith.mulf %524, %413 : vector<12x4xf32>
    %537 = arith.addf %535, %536 : vector<12x4xf32>
    %cst_184 = arith.constant dense<0.000000e+00> : vector<12x12xf32>
    %538 = tpu.matmul %528, %534, %cst_184 {dimension_numbers = #tpu.dot_dimension_numbers<[1], [1], [0], [0], [0, 0, 1, 0], [], []>} : vector<12x4xf32>, vector<12x4xf32>, vector<12x12xf32> -> vector<12x12xf32>
    %cst_185 = arith.constant dense<0.000000e+00> : vector<12x12xf32>
    %539 = tpu.matmul %531, %537, %cst_185 {dimension_numbers = #tpu.dot_dimension_numbers<[1], [1], [0], [0], [0, 0, 1, 0], [], []>} : vector<12x4xf32>, vector<12x4xf32>, vector<12x12xf32> -> vector<12x12xf32>
    %540 = arith.addf %538, %539 : vector<12x12xf32>
    %cst_186 = arith.constant 0.353553385 : f32
    %541 = vector.broadcast %cst_186 : f32 to vector<12x12xf32>
    %542 = arith.mulf %540, %541 : vector<12x12xf32>
    %cst_187 = arith.constant -1.000000e+09 : f32
    %543 = vector.broadcast %cst_187 : f32 to vector<12x12xf32>
    %544 = arith.select %414, %542, %543 : vector<12x12xi1>, vector<12x12xf32>
    %cst_188 = arith.constant dense<0xFF800000> : vector<12xf32>
    %545 = vector.multi_reduction <maximumf>, %544, %cst_188 [1] : vector<12x12xf32> to vector<12xf32>
    %546 = vector.shape_cast %545 : vector<12xf32> to vector<12x1xf32>
    %547 = vector.broadcast %546 : vector<12x1xf32> to vector<12x12xf32>
    %548 = arith.subf %544, %547 : vector<12x12xf32>
    %549 = math.exp %548 : vector<12x12xf32>
    %cst_189 = arith.constant dense<0.000000e+00> : vector<12xf32>
    %550 = vector.multi_reduction <add>, %549, %cst_189 [1] : vector<12x12xf32> to vector<12xf32>
    %551 = vector.shape_cast %550 : vector<12xf32> to vector<12x1xf32>
    %552 = vector.broadcast %551 : vector<12x1xf32> to vector<12x12xf32>
    %553 = arith.divf %549, %552 : vector<12x12xf32>
    %cst_190 = arith.constant dense<0.000000e+00> : vector<12x8xf32>
    %554 = tpu.matmul %553, %521, %cst_190 {dimension_numbers = #tpu.dot_dimension_numbers<[1], [0], [0], [1], [0, 0, 1, 1], [], []>} : vector<12x12xf32>, vector<12x8xf32>, vector<12x8xf32> -> vector<12x8xf32>
    %555 = vector.extract_strided_slice %418 {offsets = [16, 0], sizes = [8, 32], strides = [1, 1]} : vector<32x32xf32> to vector<8x32xf32>
    %cst_191 = arith.constant dense<0.000000e+00> : vector<12x32xf32>
    %556 = tpu.matmul %554, %555, %cst_191 {dimension_numbers = #tpu.dot_dimension_numbers<[1], [0], [0], [1], [0, 0, 1, 1], [], []>} : vector<12x8xf32>, vector<8x32xf32>, vector<12x32xf32> -> vector<12x32xf32>
    %557 = arith.addf %518, %556 : vector<12x32xf32>
    %558 = vector.extract_strided_slice %439 {offsets = [0, 24], sizes = [12, 8], strides = [1, 1]} : vector<12x96xf32> to vector<12x8xf32>
    %559 = vector.extract_strided_slice %439 {offsets = [0, 56], sizes = [12, 8], strides = [1, 1]} : vector<12x96xf32> to vector<12x8xf32>
    %560 = vector.extract_strided_slice %439 {offsets = [0, 88], sizes = [12, 8], strides = [1, 1]} : vector<12x96xf32> to vector<12x8xf32>
    %561 = vector.extract_strided_slice %558 {offsets = [0, 0], sizes = [12, 4], strides = [1, 1]} : vector<12x8xf32> to vector<12x4xf32>
    %562 = vector.extract_strided_slice %558 {offsets = [0, 4], sizes = [12, 4], strides = [1, 1]} : vector<12x8xf32> to vector<12x4xf32>
    %563 = vector.extract_strided_slice %559 {offsets = [0, 0], sizes = [12, 4], strides = [1, 1]} : vector<12x8xf32> to vector<12x4xf32>
    %564 = vector.extract_strided_slice %559 {offsets = [0, 4], sizes = [12, 4], strides = [1, 1]} : vector<12x8xf32> to vector<12x4xf32>
    %565 = arith.mulf %561, %412 : vector<12x4xf32>
    %566 = arith.mulf %562, %413 : vector<12x4xf32>
    %567 = arith.subf %565, %566 : vector<12x4xf32>
    %568 = arith.mulf %562, %412 : vector<12x4xf32>
    %569 = arith.mulf %561, %413 : vector<12x4xf32>
    %570 = arith.addf %568, %569 : vector<12x4xf32>
    %571 = arith.mulf %563, %412 : vector<12x4xf32>
    %572 = arith.mulf %564, %413 : vector<12x4xf32>
    %573 = arith.subf %571, %572 : vector<12x4xf32>
    %574 = arith.mulf %564, %412 : vector<12x4xf32>
    %575 = arith.mulf %563, %413 : vector<12x4xf32>
    %576 = arith.addf %574, %575 : vector<12x4xf32>
    %cst_192 = arith.constant dense<0.000000e+00> : vector<12x12xf32>
    %577 = tpu.matmul %567, %573, %cst_192 {dimension_numbers = #tpu.dot_dimension_numbers<[1], [1], [0], [0], [0, 0, 1, 0], [], []>} : vector<12x4xf32>, vector<12x4xf32>, vector<12x12xf32> -> vector<12x12xf32>
    %cst_193 = arith.constant dense<0.000000e+00> : vector<12x12xf32>
    %578 = tpu.matmul %570, %576, %cst_193 {dimension_numbers = #tpu.dot_dimension_numbers<[1], [1], [0], [0], [0, 0, 1, 0], [], []>} : vector<12x4xf32>, vector<12x4xf32>, vector<12x12xf32> -> vector<12x12xf32>
    %579 = arith.addf %577, %578 : vector<12x12xf32>
    %cst_194 = arith.constant 0.353553385 : f32
    %580 = vector.broadcast %cst_194 : f32 to vector<12x12xf32>
    %581 = arith.mulf %579, %580 : vector<12x12xf32>
    %cst_195 = arith.constant -1.000000e+09 : f32
    %582 = vector.broadcast %cst_195 : f32 to vector<12x12xf32>
    %583 = arith.select %414, %581, %582 : vector<12x12xi1>, vector<12x12xf32>
    %cst_196 = arith.constant dense<0xFF800000> : vector<12xf32>
    %584 = vector.multi_reduction <maximumf>, %583, %cst_196 [1] : vector<12x12xf32> to vector<12xf32>
    %585 = vector.shape_cast %584 : vector<12xf32> to vector<12x1xf32>
    %586 = vector.broadcast %585 : vector<12x1xf32> to vector<12x12xf32>
    %587 = arith.subf %583, %586 : vector<12x12xf32>
    %588 = math.exp %587 : vector<12x12xf32>
    %cst_197 = arith.constant dense<0.000000e+00> : vector<12xf32>
    %589 = vector.multi_reduction <add>, %588, %cst_197 [1] : vector<12x12xf32> to vector<12xf32>
    %590 = vector.shape_cast %589 : vector<12xf32> to vector<12x1xf32>
    %591 = vector.broadcast %590 : vector<12x1xf32> to vector<12x12xf32>
    %592 = arith.divf %588, %591 : vector<12x12xf32>
    %cst_198 = arith.constant dense<0.000000e+00> : vector<12x8xf32>
    %593 = tpu.matmul %592, %560, %cst_198 {dimension_numbers = #tpu.dot_dimension_numbers<[1], [0], [0], [1], [0, 0, 1, 1], [], []>} : vector<12x12xf32>, vector<12x8xf32>, vector<12x8xf32> -> vector<12x8xf32>
    %594 = vector.extract_strided_slice %418 {offsets = [24, 0], sizes = [8, 32], strides = [1, 1]} : vector<32x32xf32> to vector<8x32xf32>
    %cst_199 = arith.constant dense<0.000000e+00> : vector<12x32xf32>
    %595 = tpu.matmul %593, %594, %cst_199 {dimension_numbers = #tpu.dot_dimension_numbers<[1], [0], [0], [1], [0, 0, 1, 1], [], []>} : vector<12x8xf32>, vector<8x32xf32>, vector<12x32xf32> -> vector<12x32xf32>
    %596 = arith.addf %557, %595 : vector<12x32xf32>
    %597 = arith.addf %410, %596 : vector<12x32xf32>
    %598 = arith.mulf %597, %597 : vector<12x32xf32>
    %cst_200 = arith.constant dense<0.000000e+00> : vector<12xf32>
    %599 = vector.multi_reduction <add>, %598, %cst_200 [1] : vector<12x32xf32> to vector<12xf32>
    %600 = vector.shape_cast %599 : vector<12xf32> to vector<12x1xf32>
    %cst_201 = arith.constant 3.200000e+01 : f32
    %601 = vector.broadcast %cst_201 : f32 to vector<12x1xf32>
    %602 = arith.divf %600, %601 : vector<12x1xf32>
    %cst_202 = arith.constant 9.99999997E-7 : f32
    %603 = vector.broadcast %cst_202 : f32 to vector<12x1xf32>
    %604 = arith.addf %602, %603 : vector<12x1xf32>
    %605 = math.rsqrt %604 : vector<12x1xf32>
    %606 = vector.broadcast %605 : vector<12x1xf32> to vector<12x32xf32>
    %607 = arith.mulf %597, %606 : vector<12x32xf32>
    %608 = vector.broadcast %426 : vector<1x32xf32> to vector<12x32xf32>
    %609 = arith.mulf %607, %608 : vector<12x32xf32>
    %cst_203 = arith.constant dense<0.000000e+00> : vector<12x128xf32>
    %610 = tpu.matmul %609, %420, %cst_203 {dimension_numbers = #tpu.dot_dimension_numbers<[1], [0], [0], [1], [0, 0, 1, 1], [], []>} : vector<12x32xf32>, vector<32x128xf32>, vector<12x128xf32> -> vector<12x128xf32>
    %611 = vector.extract_strided_slice %610 {offsets = [0, 0], sizes = [12, 64], strides = [1, 1]} : vector<12x128xf32> to vector<12x64xf32>
    %612 = vector.extract_strided_slice %610 {offsets = [0, 64], sizes = [12, 64], strides = [1, 1]} : vector<12x128xf32> to vector<12x64xf32>
    %613 = arith.negf %611 : vector<12x64xf32>
    %614 = math.exp %613 : vector<12x64xf32>
    %cst_204 = arith.constant 1.000000e+00 : f32
    %615 = vector.broadcast %cst_204 : f32 to vector<12x64xf32>
    %616 = arith.addf %615, %614 : vector<12x64xf32>
    %617 = arith.divf %615, %616 : vector<12x64xf32>
    %618 = arith.mulf %611, %617 : vector<12x64xf32>
    %619 = arith.mulf %618, %612 : vector<12x64xf32>
    %cst_205 = arith.constant dense<0.000000e+00> : vector<12x32xf32>
    %620 = tpu.matmul %619, %422, %cst_205 {dimension_numbers = #tpu.dot_dimension_numbers<[1], [0], [0], [1], [0, 0, 1, 1], [], []>} : vector<12x64xf32>, vector<64x32xf32>, vector<12x32xf32> -> vector<12x32xf32>
    %621 = arith.addf %597, %620 : vector<12x32xf32>
    %c1_206 = arith.constant 1 : index
    %c0_207 = arith.constant 0 : index
    %c0_208 = arith.constant 0 : index
    %622 = vector.load %arg14[%c1_206, %c0_207, %c0_208] : memref<2x32x96xf32, #tpu.memory_space<vmem>>, vector<1x32x96xf32>
    %623 = vector.shape_cast %622 : vector<1x32x96xf32> to vector<32x96xf32>
    %c1_209 = arith.constant 1 : index
    %c0_210 = arith.constant 0 : index
    %c0_211 = arith.constant 0 : index
    %624 = vector.load %arg15[%c1_209, %c0_210, %c0_211] : memref<2x32x32xf32, #tpu.memory_space<vmem>>, vector<1x32x32xf32>
    %625 = vector.shape_cast %624 : vector<1x32x32xf32> to vector<32x32xf32>
    %c1_212 = arith.constant 1 : index
    %c0_213 = arith.constant 0 : index
    %c0_214 = arith.constant 0 : index
    %626 = vector.load %arg16[%c1_212, %c0_213, %c0_214] : memref<2x32x128xf32, #tpu.memory_space<vmem>>, vector<1x32x128xf32>
    %627 = vector.shape_cast %626 : vector<1x32x128xf32> to vector<32x128xf32>
    %c1_215 = arith.constant 1 : index
    %c0_216 = arith.constant 0 : index
    %c0_217 = arith.constant 0 : index
    %628 = vector.load %arg17[%c1_215, %c0_216, %c0_217] : memref<2x64x32xf32, #tpu.memory_space<vmem>>, vector<1x64x32xf32>
    %629 = vector.shape_cast %628 : vector<1x64x32xf32> to vector<64x32xf32>
    %c1_218 = arith.constant 1 : index
    %c0_219 = arith.constant 0 : index
    %c0_220 = arith.constant 0 : index
    %630 = vector.load %arg18[%c1_218, %c0_219, %c0_220] : memref<2x2x32xf32, #tpu.memory_space<vmem>>, vector<1x2x32xf32>
    %631 = vector.shape_cast %630 : vector<1x2x32xf32> to vector<2x32xf32>
    %632 = vector.extract_strided_slice %631 {offsets = [0, 0], sizes = [1, 32], strides = [1, 1]} : vector<2x32xf32> to vector<1x32xf32>
    %633 = vector.extract_strided_slice %631 {offsets = [1, 0], sizes = [1, 32], strides = [1, 1]} : vector<2x32xf32> to vector<1x32xf32>
    %634 = arith.mulf %621, %621 : vector<12x32xf32>
    %cst_221 = arith.constant dense<0.000000e+00> : vector<12xf32>
    %635 = vector.multi_reduction <add>, %634, %cst_221 [1] : vector<12x32xf32> to vector<12xf32>
    %636 = vector.shape_cast %635 : vector<12xf32> to vector<12x1xf32>
    %cst_222 = arith.constant 3.200000e+01 : f32
    %637 = vector.broadcast %cst_222 : f32 to vector<12x1xf32>
    %638 = arith.divf %636, %637 : vector<12x1xf32>
    %cst_223 = arith.constant 9.99999997E-7 : f32
    %639 = vector.broadcast %cst_223 : f32 to vector<12x1xf32>
    %640 = arith.addf %638, %639 : vector<12x1xf32>
    %641 = math.rsqrt %640 : vector<12x1xf32>
    %642 = vector.broadcast %641 : vector<12x1xf32> to vector<12x32xf32>
    %643 = arith.mulf %621, %642 : vector<12x32xf32>
    %644 = vector.broadcast %632 : vector<1x32xf32> to vector<12x32xf32>
    %645 = arith.mulf %643, %644 : vector<12x32xf32>
    %cst_224 = arith.constant dense<0.000000e+00> : vector<12x96xf32>
    %646 = tpu.matmul %645, %623, %cst_224 {dimension_numbers = #tpu.dot_dimension_numbers<[1], [0], [0], [1], [0, 0, 1, 1], [], []>} : vector<12x32xf32>, vector<32x96xf32>, vector<12x96xf32> -> vector<12x96xf32>
    %cst_225 = arith.constant 0.000000e+00 : f32
    %647 = vector.broadcast %cst_225 : f32 to vector<12x32xf32>
    %648 = vector.extract_strided_slice %646 {offsets = [0, 0], sizes = [12, 8], strides = [1, 1]} : vector<12x96xf32> to vector<12x8xf32>
    %649 = vector.extract_strided_slice %646 {offsets = [0, 32], sizes = [12, 8], strides = [1, 1]} : vector<12x96xf32> to vector<12x8xf32>
    %650 = vector.extract_strided_slice %646 {offsets = [0, 64], sizes = [12, 8], strides = [1, 1]} : vector<12x96xf32> to vector<12x8xf32>
    %651 = vector.extract_strided_slice %648 {offsets = [0, 0], sizes = [12, 4], strides = [1, 1]} : vector<12x8xf32> to vector<12x4xf32>
    %652 = vector.extract_strided_slice %648 {offsets = [0, 4], sizes = [12, 4], strides = [1, 1]} : vector<12x8xf32> to vector<12x4xf32>
    %653 = vector.extract_strided_slice %649 {offsets = [0, 0], sizes = [12, 4], strides = [1, 1]} : vector<12x8xf32> to vector<12x4xf32>
    %654 = vector.extract_strided_slice %649 {offsets = [0, 4], sizes = [12, 4], strides = [1, 1]} : vector<12x8xf32> to vector<12x4xf32>
    %655 = arith.mulf %651, %412 : vector<12x4xf32>
    %656 = arith.mulf %652, %413 : vector<12x4xf32>
    %657 = arith.subf %655, %656 : vector<12x4xf32>
    %658 = arith.mulf %652, %412 : vector<12x4xf32>
    %659 = arith.mulf %651, %413 : vector<12x4xf32>
    %660 = arith.addf %658, %659 : vector<12x4xf32>
    %661 = arith.mulf %653, %412 : vector<12x4xf32>
    %662 = arith.mulf %654, %413 : vector<12x4xf32>
    %663 = arith.subf %661, %662 : vector<12x4xf32>
    %664 = arith.mulf %654, %412 : vector<12x4xf32>
    %665 = arith.mulf %653, %413 : vector<12x4xf32>
    %666 = arith.addf %664, %665 : vector<12x4xf32>
    %cst_226 = arith.constant dense<0.000000e+00> : vector<12x12xf32>
    %667 = tpu.matmul %657, %663, %cst_226 {dimension_numbers = #tpu.dot_dimension_numbers<[1], [1], [0], [0], [0, 0, 1, 0], [], []>} : vector<12x4xf32>, vector<12x4xf32>, vector<12x12xf32> -> vector<12x12xf32>
    %cst_227 = arith.constant dense<0.000000e+00> : vector<12x12xf32>
    %668 = tpu.matmul %660, %666, %cst_227 {dimension_numbers = #tpu.dot_dimension_numbers<[1], [1], [0], [0], [0, 0, 1, 0], [], []>} : vector<12x4xf32>, vector<12x4xf32>, vector<12x12xf32> -> vector<12x12xf32>
    %669 = arith.addf %667, %668 : vector<12x12xf32>
    %cst_228 = arith.constant 0.353553385 : f32
    %670 = vector.broadcast %cst_228 : f32 to vector<12x12xf32>
    %671 = arith.mulf %669, %670 : vector<12x12xf32>
    %cst_229 = arith.constant -1.000000e+09 : f32
    %672 = vector.broadcast %cst_229 : f32 to vector<12x12xf32>
    %673 = arith.select %414, %671, %672 : vector<12x12xi1>, vector<12x12xf32>
    %cst_230 = arith.constant dense<0xFF800000> : vector<12xf32>
    %674 = vector.multi_reduction <maximumf>, %673, %cst_230 [1] : vector<12x12xf32> to vector<12xf32>
    %675 = vector.shape_cast %674 : vector<12xf32> to vector<12x1xf32>
    %676 = vector.broadcast %675 : vector<12x1xf32> to vector<12x12xf32>
    %677 = arith.subf %673, %676 : vector<12x12xf32>
    %678 = math.exp %677 : vector<12x12xf32>
    %cst_231 = arith.constant dense<0.000000e+00> : vector<12xf32>
    %679 = vector.multi_reduction <add>, %678, %cst_231 [1] : vector<12x12xf32> to vector<12xf32>
    %680 = vector.shape_cast %679 : vector<12xf32> to vector<12x1xf32>
    %681 = vector.broadcast %680 : vector<12x1xf32> to vector<12x12xf32>
    %682 = arith.divf %678, %681 : vector<12x12xf32>
    %cst_232 = arith.constant dense<0.000000e+00> : vector<12x8xf32>
    %683 = tpu.matmul %682, %650, %cst_232 {dimension_numbers = #tpu.dot_dimension_numbers<[1], [0], [0], [1], [0, 0, 1, 1], [], []>} : vector<12x12xf32>, vector<12x8xf32>, vector<12x8xf32> -> vector<12x8xf32>
    %684 = vector.extract_strided_slice %625 {offsets = [0, 0], sizes = [8, 32], strides = [1, 1]} : vector<32x32xf32> to vector<8x32xf32>
    %cst_233 = arith.constant dense<0.000000e+00> : vector<12x32xf32>
    %685 = tpu.matmul %683, %684, %cst_233 {dimension_numbers = #tpu.dot_dimension_numbers<[1], [0], [0], [1], [0, 0, 1, 1], [], []>} : vector<12x8xf32>, vector<8x32xf32>, vector<12x32xf32> -> vector<12x32xf32>
    %686 = arith.addf %647, %685 : vector<12x32xf32>
    %687 = vector.extract_strided_slice %646 {offsets = [0, 8], sizes = [12, 8], strides = [1, 1]} : vector<12x96xf32> to vector<12x8xf32>
    %688 = vector.extract_strided_slice %646 {offsets = [0, 40], sizes = [12, 8], strides = [1, 1]} : vector<12x96xf32> to vector<12x8xf32>
    %689 = vector.extract_strided_slice %646 {offsets = [0, 72], sizes = [12, 8], strides = [1, 1]} : vector<12x96xf32> to vector<12x8xf32>
    %690 = vector.extract_strided_slice %687 {offsets = [0, 0], sizes = [12, 4], strides = [1, 1]} : vector<12x8xf32> to vector<12x4xf32>
    %691 = vector.extract_strided_slice %687 {offsets = [0, 4], sizes = [12, 4], strides = [1, 1]} : vector<12x8xf32> to vector<12x4xf32>
    %692 = vector.extract_strided_slice %688 {offsets = [0, 0], sizes = [12, 4], strides = [1, 1]} : vector<12x8xf32> to vector<12x4xf32>
    %693 = vector.extract_strided_slice %688 {offsets = [0, 4], sizes = [12, 4], strides = [1, 1]} : vector<12x8xf32> to vector<12x4xf32>
    %694 = arith.mulf %690, %412 : vector<12x4xf32>
    %695 = arith.mulf %691, %413 : vector<12x4xf32>
    %696 = arith.subf %694, %695 : vector<12x4xf32>
    %697 = arith.mulf %691, %412 : vector<12x4xf32>
    %698 = arith.mulf %690, %413 : vector<12x4xf32>
    %699 = arith.addf %697, %698 : vector<12x4xf32>
    %700 = arith.mulf %692, %412 : vector<12x4xf32>
    %701 = arith.mulf %693, %413 : vector<12x4xf32>
    %702 = arith.subf %700, %701 : vector<12x4xf32>
    %703 = arith.mulf %693, %412 : vector<12x4xf32>
    %704 = arith.mulf %692, %413 : vector<12x4xf32>
    %705 = arith.addf %703, %704 : vector<12x4xf32>
    %cst_234 = arith.constant dense<0.000000e+00> : vector<12x12xf32>
    %706 = tpu.matmul %696, %702, %cst_234 {dimension_numbers = #tpu.dot_dimension_numbers<[1], [1], [0], [0], [0, 0, 1, 0], [], []>} : vector<12x4xf32>, vector<12x4xf32>, vector<12x12xf32> -> vector<12x12xf32>
    %cst_235 = arith.constant dense<0.000000e+00> : vector<12x12xf32>
    %707 = tpu.matmul %699, %705, %cst_235 {dimension_numbers = #tpu.dot_dimension_numbers<[1], [1], [0], [0], [0, 0, 1, 0], [], []>} : vector<12x4xf32>, vector<12x4xf32>, vector<12x12xf32> -> vector<12x12xf32>
    %708 = arith.addf %706, %707 : vector<12x12xf32>
    %cst_236 = arith.constant 0.353553385 : f32
    %709 = vector.broadcast %cst_236 : f32 to vector<12x12xf32>
    %710 = arith.mulf %708, %709 : vector<12x12xf32>
    %cst_237 = arith.constant -1.000000e+09 : f32
    %711 = vector.broadcast %cst_237 : f32 to vector<12x12xf32>
    %712 = arith.select %414, %710, %711 : vector<12x12xi1>, vector<12x12xf32>
    %cst_238 = arith.constant dense<0xFF800000> : vector<12xf32>
    %713 = vector.multi_reduction <maximumf>, %712, %cst_238 [1] : vector<12x12xf32> to vector<12xf32>
    %714 = vector.shape_cast %713 : vector<12xf32> to vector<12x1xf32>
    %715 = vector.broadcast %714 : vector<12x1xf32> to vector<12x12xf32>
    %716 = arith.subf %712, %715 : vector<12x12xf32>
    %717 = math.exp %716 : vector<12x12xf32>
    %cst_239 = arith.constant dense<0.000000e+00> : vector<12xf32>
    %718 = vector.multi_reduction <add>, %717, %cst_239 [1] : vector<12x12xf32> to vector<12xf32>
    %719 = vector.shape_cast %718 : vector<12xf32> to vector<12x1xf32>
    %720 = vector.broadcast %719 : vector<12x1xf32> to vector<12x12xf32>
    %721 = arith.divf %717, %720 : vector<12x12xf32>
    %cst_240 = arith.constant dense<0.000000e+00> : vector<12x8xf32>
    %722 = tpu.matmul %721, %689, %cst_240 {dimension_numbers = #tpu.dot_dimension_numbers<[1], [0], [0], [1], [0, 0, 1, 1], [], []>} : vector<12x12xf32>, vector<12x8xf32>, vector<12x8xf32> -> vector<12x8xf32>
    %723 = vector.extract_strided_slice %625 {offsets = [8, 0], sizes = [8, 32], strides = [1, 1]} : vector<32x32xf32> to vector<8x32xf32>
    %cst_241 = arith.constant dense<0.000000e+00> : vector<12x32xf32>
    %724 = tpu.matmul %722, %723, %cst_241 {dimension_numbers = #tpu.dot_dimension_numbers<[1], [0], [0], [1], [0, 0, 1, 1], [], []>} : vector<12x8xf32>, vector<8x32xf32>, vector<12x32xf32> -> vector<12x32xf32>
    %725 = arith.addf %686, %724 : vector<12x32xf32>
    %726 = vector.extract_strided_slice %646 {offsets = [0, 16], sizes = [12, 8], strides = [1, 1]} : vector<12x96xf32> to vector<12x8xf32>
    %727 = vector.extract_strided_slice %646 {offsets = [0, 48], sizes = [12, 8], strides = [1, 1]} : vector<12x96xf32> to vector<12x8xf32>
    %728 = vector.extract_strided_slice %646 {offsets = [0, 80], sizes = [12, 8], strides = [1, 1]} : vector<12x96xf32> to vector<12x8xf32>
    %729 = vector.extract_strided_slice %726 {offsets = [0, 0], sizes = [12, 4], strides = [1, 1]} : vector<12x8xf32> to vector<12x4xf32>
    %730 = vector.extract_strided_slice %726 {offsets = [0, 4], sizes = [12, 4], strides = [1, 1]} : vector<12x8xf32> to vector<12x4xf32>
    %731 = vector.extract_strided_slice %727 {offsets = [0, 0], sizes = [12, 4], strides = [1, 1]} : vector<12x8xf32> to vector<12x4xf32>
    %732 = vector.extract_strided_slice %727 {offsets = [0, 4], sizes = [12, 4], strides = [1, 1]} : vector<12x8xf32> to vector<12x4xf32>
    %733 = arith.mulf %729, %412 : vector<12x4xf32>
    %734 = arith.mulf %730, %413 : vector<12x4xf32>
    %735 = arith.subf %733, %734 : vector<12x4xf32>
    %736 = arith.mulf %730, %412 : vector<12x4xf32>
    %737 = arith.mulf %729, %413 : vector<12x4xf32>
    %738 = arith.addf %736, %737 : vector<12x4xf32>
    %739 = arith.mulf %731, %412 : vector<12x4xf32>
    %740 = arith.mulf %732, %413 : vector<12x4xf32>
    %741 = arith.subf %739, %740 : vector<12x4xf32>
    %742 = arith.mulf %732, %412 : vector<12x4xf32>
    %743 = arith.mulf %731, %413 : vector<12x4xf32>
    %744 = arith.addf %742, %743 : vector<12x4xf32>
    %cst_242 = arith.constant dense<0.000000e+00> : vector<12x12xf32>
    %745 = tpu.matmul %735, %741, %cst_242 {dimension_numbers = #tpu.dot_dimension_numbers<[1], [1], [0], [0], [0, 0, 1, 0], [], []>} : vector<12x4xf32>, vector<12x4xf32>, vector<12x12xf32> -> vector<12x12xf32>
    %cst_243 = arith.constant dense<0.000000e+00> : vector<12x12xf32>
    %746 = tpu.matmul %738, %744, %cst_243 {dimension_numbers = #tpu.dot_dimension_numbers<[1], [1], [0], [0], [0, 0, 1, 0], [], []>} : vector<12x4xf32>, vector<12x4xf32>, vector<12x12xf32> -> vector<12x12xf32>
    %747 = arith.addf %745, %746 : vector<12x12xf32>
    %cst_244 = arith.constant 0.353553385 : f32
    %748 = vector.broadcast %cst_244 : f32 to vector<12x12xf32>
    %749 = arith.mulf %747, %748 : vector<12x12xf32>
    %cst_245 = arith.constant -1.000000e+09 : f32
    %750 = vector.broadcast %cst_245 : f32 to vector<12x12xf32>
    %751 = arith.select %414, %749, %750 : vector<12x12xi1>, vector<12x12xf32>
    %cst_246 = arith.constant dense<0xFF800000> : vector<12xf32>
    %752 = vector.multi_reduction <maximumf>, %751, %cst_246 [1] : vector<12x12xf32> to vector<12xf32>
    %753 = vector.shape_cast %752 : vector<12xf32> to vector<12x1xf32>
    %754 = vector.broadcast %753 : vector<12x1xf32> to vector<12x12xf32>
    %755 = arith.subf %751, %754 : vector<12x12xf32>
    %756 = math.exp %755 : vector<12x12xf32>
    %cst_247 = arith.constant dense<0.000000e+00> : vector<12xf32>
    %757 = vector.multi_reduction <add>, %756, %cst_247 [1] : vector<12x12xf32> to vector<12xf32>
    %758 = vector.shape_cast %757 : vector<12xf32> to vector<12x1xf32>
    %759 = vector.broadcast %758 : vector<12x1xf32> to vector<12x12xf32>
    %760 = arith.divf %756, %759 : vector<12x12xf32>
    %cst_248 = arith.constant dense<0.000000e+00> : vector<12x8xf32>
    %761 = tpu.matmul %760, %728, %cst_248 {dimension_numbers = #tpu.dot_dimension_numbers<[1], [0], [0], [1], [0, 0, 1, 1], [], []>} : vector<12x12xf32>, vector<12x8xf32>, vector<12x8xf32> -> vector<12x8xf32>
    %762 = vector.extract_strided_slice %625 {offsets = [16, 0], sizes = [8, 32], strides = [1, 1]} : vector<32x32xf32> to vector<8x32xf32>
    %cst_249 = arith.constant dense<0.000000e+00> : vector<12x32xf32>
    %763 = tpu.matmul %761, %762, %cst_249 {dimension_numbers = #tpu.dot_dimension_numbers<[1], [0], [0], [1], [0, 0, 1, 1], [], []>} : vector<12x8xf32>, vector<8x32xf32>, vector<12x32xf32> -> vector<12x32xf32>
    %764 = arith.addf %725, %763 : vector<12x32xf32>
    %765 = vector.extract_strided_slice %646 {offsets = [0, 24], sizes = [12, 8], strides = [1, 1]} : vector<12x96xf32> to vector<12x8xf32>
    %766 = vector.extract_strided_slice %646 {offsets = [0, 56], sizes = [12, 8], strides = [1, 1]} : vector<12x96xf32> to vector<12x8xf32>
    %767 = vector.extract_strided_slice %646 {offsets = [0, 88], sizes = [12, 8], strides = [1, 1]} : vector<12x96xf32> to vector<12x8xf32>
    %768 = vector.extract_strided_slice %765 {offsets = [0, 0], sizes = [12, 4], strides = [1, 1]} : vector<12x8xf32> to vector<12x4xf32>
    %769 = vector.extract_strided_slice %765 {offsets = [0, 4], sizes = [12, 4], strides = [1, 1]} : vector<12x8xf32> to vector<12x4xf32>
    %770 = vector.extract_strided_slice %766 {offsets = [0, 0], sizes = [12, 4], strides = [1, 1]} : vector<12x8xf32> to vector<12x4xf32>
    %771 = vector.extract_strided_slice %766 {offsets = [0, 4], sizes = [12, 4], strides = [1, 1]} : vector<12x8xf32> to vector<12x4xf32>
    %772 = arith.mulf %768, %412 : vector<12x4xf32>
    %773 = arith.mulf %769, %413 : vector<12x4xf32>
    %774 = arith.subf %772, %773 : vector<12x4xf32>
    %775 = arith.mulf %769, %412 : vector<12x4xf32>
    %776 = arith.mulf %768, %413 : vector<12x4xf32>
    %777 = arith.addf %775, %776 : vector<12x4xf32>
    %778 = arith.mulf %770, %412 : vector<12x4xf32>
    %779 = arith.mulf %771, %413 : vector<12x4xf32>
    %780 = arith.subf %778, %779 : vector<12x4xf32>
    %781 = arith.mulf %771, %412 : vector<12x4xf32>
    %782 = arith.mulf %770, %413 : vector<12x4xf32>
    %783 = arith.addf %781, %782 : vector<12x4xf32>
    %cst_250 = arith.constant dense<0.000000e+00> : vector<12x12xf32>
    %784 = tpu.matmul %774, %780, %cst_250 {dimension_numbers = #tpu.dot_dimension_numbers<[1], [1], [0], [0], [0, 0, 1, 0], [], []>} : vector<12x4xf32>, vector<12x4xf32>, vector<12x12xf32> -> vector<12x12xf32>
    %cst_251 = arith.constant dense<0.000000e+00> : vector<12x12xf32>
    %785 = tpu.matmul %777, %783, %cst_251 {dimension_numbers = #tpu.dot_dimension_numbers<[1], [1], [0], [0], [0, 0, 1, 0], [], []>} : vector<12x4xf32>, vector<12x4xf32>, vector<12x12xf32> -> vector<12x12xf32>
    %786 = arith.addf %784, %785 : vector<12x12xf32>
    %cst_252 = arith.constant 0.353553385 : f32
    %787 = vector.broadcast %cst_252 : f32 to vector<12x12xf32>
    %788 = arith.mulf %786, %787 : vector<12x12xf32>
    %cst_253 = arith.constant -1.000000e+09 : f32
    %789 = vector.broadcast %cst_253 : f32 to vector<12x12xf32>
    %790 = arith.select %414, %788, %789 : vector<12x12xi1>, vector<12x12xf32>
    %cst_254 = arith.constant dense<0xFF800000> : vector<12xf32>
    %791 = vector.multi_reduction <maximumf>, %790, %cst_254 [1] : vector<12x12xf32> to vector<12xf32>
    %792 = vector.shape_cast %791 : vector<12xf32> to vector<12x1xf32>
    %793 = vector.broadcast %792 : vector<12x1xf32> to vector<12x12xf32>
    %794 = arith.subf %790, %793 : vector<12x12xf32>
    %795 = math.exp %794 : vector<12x12xf32>
    %cst_255 = arith.constant dense<0.000000e+00> : vector<12xf32>
    %796 = vector.multi_reduction <add>, %795, %cst_255 [1] : vector<12x12xf32> to vector<12xf32>
    %797 = vector.shape_cast %796 : vector<12xf32> to vector<12x1xf32>
    %798 = vector.broadcast %797 : vector<12x1xf32> to vector<12x12xf32>
    %799 = arith.divf %795, %798 : vector<12x12xf32>
    %cst_256 = arith.constant dense<0.000000e+00> : vector<12x8xf32>
    %800 = tpu.matmul %799, %767, %cst_256 {dimension_numbers = #tpu.dot_dimension_numbers<[1], [0], [0], [1], [0, 0, 1, 1], [], []>} : vector<12x12xf32>, vector<12x8xf32>, vector<12x8xf32> -> vector<12x8xf32>
    %801 = vector.extract_strided_slice %625 {offsets = [24, 0], sizes = [8, 32], strides = [1, 1]} : vector<32x32xf32> to vector<8x32xf32>
    %cst_257 = arith.constant dense<0.000000e+00> : vector<12x32xf32>
    %802 = tpu.matmul %800, %801, %cst_257 {dimension_numbers = #tpu.dot_dimension_numbers<[1], [0], [0], [1], [0, 0, 1, 1], [], []>} : vector<12x8xf32>, vector<8x32xf32>, vector<12x32xf32> -> vector<12x32xf32>
    %803 = arith.addf %764, %802 : vector<12x32xf32>
    %804 = arith.addf %621, %803 : vector<12x32xf32>
    %805 = arith.mulf %804, %804 : vector<12x32xf32>
    %cst_258 = arith.constant dense<0.000000e+00> : vector<12xf32>
    %806 = vector.multi_reduction <add>, %805, %cst_258 [1] : vector<12x32xf32> to vector<12xf32>
    %807 = vector.shape_cast %806 : vector<12xf32> to vector<12x1xf32>
    %cst_259 = arith.constant 3.200000e+01 : f32
    %808 = vector.broadcast %cst_259 : f32 to vector<12x1xf32>
    %809 = arith.divf %807, %808 : vector<12x1xf32>
    %cst_260 = arith.constant 9.99999997E-7 : f32
    %810 = vector.broadcast %cst_260 : f32 to vector<12x1xf32>
    %811 = arith.addf %809, %810 : vector<12x1xf32>
    %812 = math.rsqrt %811 : vector<12x1xf32>
    %813 = vector.broadcast %812 : vector<12x1xf32> to vector<12x32xf32>
    %814 = arith.mulf %804, %813 : vector<12x32xf32>
    %815 = vector.broadcast %633 : vector<1x32xf32> to vector<12x32xf32>
    %816 = arith.mulf %814, %815 : vector<12x32xf32>
    %cst_261 = arith.constant dense<0.000000e+00> : vector<12x128xf32>
    %817 = tpu.matmul %816, %627, %cst_261 {dimension_numbers = #tpu.dot_dimension_numbers<[1], [0], [0], [1], [0, 0, 1, 1], [], []>} : vector<12x32xf32>, vector<32x128xf32>, vector<12x128xf32> -> vector<12x128xf32>
    %818 = vector.extract_strided_slice %817 {offsets = [0, 0], sizes = [12, 64], strides = [1, 1]} : vector<12x128xf32> to vector<12x64xf32>
    %819 = vector.extract_strided_slice %817 {offsets = [0, 64], sizes = [12, 64], strides = [1, 1]} : vector<12x128xf32> to vector<12x64xf32>
    %820 = arith.negf %818 : vector<12x64xf32>
    %821 = math.exp %820 : vector<12x64xf32>
    %cst_262 = arith.constant 1.000000e+00 : f32
    %822 = vector.broadcast %cst_262 : f32 to vector<12x64xf32>
    %823 = arith.addf %822, %821 : vector<12x64xf32>
    %824 = arith.divf %822, %823 : vector<12x64xf32>
    %825 = arith.mulf %818, %824 : vector<12x64xf32>
    %826 = arith.mulf %825, %819 : vector<12x64xf32>
    %cst_263 = arith.constant dense<0.000000e+00> : vector<12x32xf32>
    %827 = tpu.matmul %826, %629, %cst_263 {dimension_numbers = #tpu.dot_dimension_numbers<[1], [0], [0], [1], [0, 0, 1, 1], [], []>} : vector<12x64xf32>, vector<64x32xf32>, vector<12x32xf32> -> vector<12x32xf32>
    %828 = arith.addf %804, %827 : vector<12x32xf32>
    %c0_264 = arith.constant 0 : index
    %c0_265 = arith.constant 0 : index
    %829 = vector.load %arg19[%c0_264, %c0_265] : memref<1x32xf32, #tpu.memory_space<vmem>>, vector<1x32xf32>
    %830 = arith.mulf %828, %828 : vector<12x32xf32>
    %cst_266 = arith.constant dense<0.000000e+00> : vector<12xf32>
    %831 = vector.multi_reduction <add>, %830, %cst_266 [1] : vector<12x32xf32> to vector<12xf32>
    %832 = vector.shape_cast %831 : vector<12xf32> to vector<12x1xf32>
    %cst_267 = arith.constant 3.200000e+01 : f32
    %833 = vector.broadcast %cst_267 : f32 to vector<12x1xf32>
    %834 = arith.divf %832, %833 : vector<12x1xf32>
    %cst_268 = arith.constant 9.99999997E-7 : f32
    %835 = vector.broadcast %cst_268 : f32 to vector<12x1xf32>
    %836 = arith.addf %834, %835 : vector<12x1xf32>
    %837 = math.rsqrt %836 : vector<12x1xf32>
    %838 = vector.broadcast %837 : vector<12x1xf32> to vector<12x32xf32>
    %839 = arith.mulf %828, %838 : vector<12x32xf32>
    %840 = vector.broadcast %829 : vector<1x32xf32> to vector<12x32xf32>
    %841 = arith.mulf %839, %840 : vector<12x32xf32>
    %c0_269 = arith.constant 0 : index
    %c0_270 = arith.constant 0 : index
    %842 = vector.load %arg20[%c0_269, %c0_270] : memref<32x128xf32, #tpu.memory_space<vmem>>, vector<32x128xf32>
    %cst_271 = arith.constant dense<0.000000e+00> : vector<12x128xf32>
    %843 = tpu.matmul %841, %842, %cst_271 {dimension_numbers = #tpu.dot_dimension_numbers<[1], [0], [0], [1], [0, 0, 1, 1], [], []>} : vector<12x32xf32>, vector<32x128xf32>, vector<12x128xf32> -> vector<12x128xf32>
    %c0_272 = arith.constant 0 : index
    %c0_273 = arith.constant 0 : index
    %c0_274 = arith.constant 0 : index
    %844 = vector.load %arg21[%c0_272, %c0_273, %c0_274] : memref<1x12x128xf32, #tpu.memory_space<vmem>>, vector<1x12x128xf32>
    %845 = vector.shape_cast %844 : vector<1x12x128xf32> to vector<12x128xf32>
    %846 = vector.shape_cast %843 : vector<12x128xf32> to vector<1x12x128xf32>
    tpu.vector_store %arg21[%c0_272, %c0_273, %c0_274], %846 {strides = array<i32>} : memref<1x12x128xf32, #tpu.memory_space<vmem>>, vector<1x12x128xf32>,
    return
  }
  func.func @transform_0(%arg0: i32) -> (i32, i32, i32) {
    %c0_i32 = arith.constant 0 : i32
    %c0_i32_0 = arith.constant 0 : i32
    %c0_i32_1 = arith.constant 0 : i32
    return %arg0, %c0_i32, %c0_i32_0 : i32, i32, i32
  }
  func.func @transform_1(%arg0: i32) -> (i32, i32, i32) {
    %c0_i32 = arith.constant 0 : i32
    %c0_i32_0 = arith.constant 0 : i32
    %c0_i32_1 = arith.constant 0 : i32
    return %arg0, %c0_i32, %c0_i32_0 : i32, i32, i32
  }
  func.func @transform_2(%arg0: i32) -> (i32, i32) {
    %c0_i32 = arith.constant 0 : i32
    %c0_i32_0 = arith.constant 0 : i32
    %c0_i32_1 = arith.constant 0 : i32
    return %c0_i32, %c0_i32_0 : i32, i32
  }
  func.func @transform_3(%arg0: i32) -> (i32, i32) {
    %c0_i32 = arith.constant 0 : i32
    %c0_i32_0 = arith.constant 0 : i32
    %c0_i32_1 = arith.constant 0 : i32
    return %c0_i32, %c0_i32_0 : i32, i32
  }
  func.func @transform_4(%arg0: i32) -> (i32, i32) {
    %c0_i32 = arith.constant 0 : i32
    %c0_i32_0 = arith.constant 0 : i32
    %c0_i32_1 = arith.constant 0 : i32
    return %c0_i32, %c0_i32_0 : i32, i32
  }
  func.func @transform_5(%arg0: i32) -> (i32, i32, i32) {
    %c0_i32 = arith.constant 0 : i32
    %c0_i32_0 = arith.constant 0 : i32
    %c0_i32_1 = arith.constant 0 : i32
    %c0_i32_2 = arith.constant 0 : i32
    return %c0_i32, %c0_i32_0, %c0_i32_1 : i32, i32, i32
  }
  func.func @transform_6(%arg0: i32) -> (i32, i32, i32) {
    %c0_i32 = arith.constant 0 : i32
    %c0_i32_0 = arith.constant 0 : i32
    %c0_i32_1 = arith.constant 0 : i32
    %c0_i32_2 = arith.constant 0 : i32
    return %c0_i32, %c0_i32_0, %c0_i32_1 : i32, i32, i32
  }
  func.func @transform_7(%arg0: i32) -> (i32, i32, i32) {
    %c0_i32 = arith.constant 0 : i32
    %c0_i32_0 = arith.constant 0 : i32
    %c0_i32_1 = arith.constant 0 : i32
    %c0_i32_2 = arith.constant 0 : i32
    return %c0_i32, %c0_i32_0, %c0_i32_1 : i32, i32, i32
  }
  func.func @transform_8(%arg0: i32) -> (i32, i32, i32) {
    %c0_i32 = arith.constant 0 : i32
    %c0_i32_0 = arith.constant 0 : i32
    %c0_i32_1 = arith.constant 0 : i32
    %c0_i32_2 = arith.constant 0 : i32
    return %c0_i32, %c0_i32_0, %c0_i32_1 : i32, i32, i32
  }
  func.func @transform_9(%arg0: i32) -> (i32, i32, i32) {
    %c0_i32 = arith.constant 0 : i32
    %c0_i32_0 = arith.constant 0 : i32
    %c0_i32_1 = arith.constant 0 : i32
    %c0_i32_2 = arith.constant 0 : i32
    return %c0_i32, %c0_i32_0, %c0_i32_1 : i32, i32, i32
  }
  func.func @transform_10(%arg0: i32) -> (i32, i32, i32) {
    %c0_i32 = arith.constant 0 : i32
    %c0_i32_0 = arith.constant 0 : i32
    %c0_i32_1 = arith.constant 0 : i32
    %c0_i32_2 = arith.constant 0 : i32
    return %c0_i32, %c0_i32_0, %c0_i32_1 : i32, i32, i32
  }
  func.func @transform_11(%arg0: i32) -> (i32, i32) {
    %c0_i32 = arith.constant 0 : i32
    %c0_i32_0 = arith.constant 0 : i32
    %c0_i32_1 = arith.constant 0 : i32
    return %c0_i32, %c0_i32_0 : i32, i32
  }
  func.func @transform_12(%arg0: i32) -> (i32, i32) {
    %c0_i32 = arith.constant 0 : i32
    %c0_i32_0 = arith.constant 0 : i32
    %c0_i32_1 = arith.constant 0 : i32
    return %c0_i32, %c0_i32_0 : i32, i32
  }
  func.func @transform_13(%arg0: i32) -> (i32, i32, i32) {
    %c0_i32 = arith.constant 0 : i32
    %c0_i32_0 = arith.constant 0 : i32
    %c0_i32_1 = arith.constant 0 : i32
    %c0_i32_2 = arith.constant 0 : i32
    return %c0_i32, %c0_i32_0, %c0_i32_1 : i32, i32, i32
  }
  func.func @transform_14(%arg0: i32) -> (i32, i32, i32) {
    %c0_i32 = arith.constant 0 : i32
    %c0_i32_0 = arith.constant 0 : i32
    %c0_i32_1 = arith.constant 0 : i32
    %c0_i32_2 = arith.constant 0 : i32
    return %c0_i32, %c0_i32_0, %c0_i32_1 : i32, i32, i32
  }
  func.func @transform_15(%arg0: i32) -> (i32, i32, i32) {
    %c0_i32 = arith.constant 0 : i32
    %c0_i32_0 = arith.constant 0 : i32
    %c0_i32_1 = arith.constant 0 : i32
    %c0_i32_2 = arith.constant 0 : i32
    return %c0_i32, %c0_i32_0, %c0_i32_1 : i32, i32, i32
  }
  func.func @transform_16(%arg0: i32) -> (i32, i32, i32) {
    %c0_i32 = arith.constant 0 : i32
    %c0_i32_0 = arith.constant 0 : i32
    %c0_i32_1 = arith.constant 0 : i32
    %c0_i32_2 = arith.constant 0 : i32
    return %c0_i32, %c0_i32_0, %c0_i32_1 : i32, i32, i32
  }
  func.func @transform_17(%arg0: i32) -> (i32, i32, i32) {
    %c0_i32 = arith.constant 0 : i32
    %c0_i32_0 = arith.constant 0 : i32
    %c0_i32_1 = arith.constant 0 : i32
    %c0_i32_2 = arith.constant 0 : i32
    return %c0_i32, %c0_i32_0, %c0_i32_1 : i32, i32, i32
  }
  func.func @transform_18(%arg0: i32) -> (i32, i32) {
    %c0_i32 = arith.constant 0 : i32
    %c0_i32_0 = arith.constant 0 : i32
    %c0_i32_1 = arith.constant 0 : i32
    return %c0_i32, %c0_i32_0 : i32, i32
  }
  func.func @transform_19(%arg0: i32) -> (i32, i32) {
    %c0_i32 = arith.constant 0 : i32
    %c0_i32_0 = arith.constant 0 : i32
    %c0_i32_1 = arith.constant 0 : i32
    return %c0_i32, %c0_i32_0 : i32, i32
  }
  func.func @transform_20(%arg0: i32) -> (i32, i32, i32) {
    %c0_i32 = arith.constant 0 : i32
    %c0_i32_0 = arith.constant 0 : i32
    %c0_i32_1 = arith.constant 0 : i32
    return %arg0, %c0_i32, %c0_i32_0 : i32, i32, i32
  }
}

</mosaic_0001>

<llo_original>
// kernel: forward.1
$region0: #{forward.1}
  #allocation0 [shape = 'u32[]', space=smem, size = 0x4, offset = 0x4, fixed_abs, tag = 'smem constant byte address 0x4 - core index']
  #allocation1 [shape = 'u32[144,128]{1,0:T(1,128)}', space=vmem, size = 0x12000, scoped, tag = 'internal scratch']
  %s0 = inlined_call_operand.vmem [shape: f32[2,4,588], index: 0, kind: input, shape index: {}]
  %s1 = inlined_call_operand.vmem [shape: s32[2,12,1], index: 1, kind: input, shape index: {}]
  %s2 = inlined_call_operand.vmem [shape: f32[12,8], index: 2, kind: input, shape index: {}]
  %s3 = inlined_call_operand.vmem [shape: f32[588,32], index: 3, kind: input, shape index: {}]
  %s4 = inlined_call_operand.vmem [shape: f32[7,32], index: 4, kind: input, shape index: {}]
  %s5 = inlined_call_operand.vmem [shape: f32[2,32,96], index: 5, kind: input, shape index: {}]
  %s6 = inlined_call_operand.vmem [shape: f32[2,32,32], index: 6, kind: input, shape index: {}]
  %s7 = inlined_call_operand.vmem [shape: f32[2,32,64], index: 7, kind: input, shape index: {}]
  %s8 = inlined_call_operand.vmem [shape: f32[2,64,32], index: 8, kind: input, shape index: {}]
  %s9 = inlined_call_operand.vmem [shape: f32[2,8,96], index: 9, kind: input, shape index: {}]
  %s10 = inlined_call_operand.vmem [shape: f32[2,32,32], index: 10, kind: input, shape index: {}]
  %s11 = inlined_call_operand.vmem [shape: f32[2,32], index: 11, kind: input, shape index: {}]
  %s12 = inlined_call_operand.vmem [shape: f32[128,32], index: 12, kind: input, shape index: {}]
  %s13 = inlined_call_operand.vmem [shape: f32[2,32,96], index: 13, kind: input, shape index: {}]
  %s14 = inlined_call_operand.vmem [shape: f32[2,32,32], index: 14, kind: input, shape index: {}]
  %s15 = inlined_call_operand.vmem [shape: f32[2,32,128], index: 15, kind: input, shape index: {}]
  %s16 = inlined_call_operand.vmem [shape: f32[2,64,32], index: 16, kind: input, shape index: {}]
  %s17 = inlined_call_operand.vmem [shape: f32[2,2,32], index: 17, kind: input, shape index: {}]
  %s18 = inlined_call_operand.vmem [shape: f32[1,32], index: 18, kind: input, shape index: {}]
  %s19 = inlined_call_operand.vmem [shape: f32[32,128], index: 19, kind: input, shape index: {}]
  %s20 = inlined_call_operand.vmem [shape: f32[2,12,128], index: 20, kind: output, shape index: {}]
  %s21 = sld [smem:[#allocation0]]
  $region113: #{forward.1} parent=0
    _
  %s23 = ssub.s32 1, %s21
  %s24 = scalar_select 0, %s23, %s21
  loop: start=0, step=1, limit=4
  $region2: #{forward.1} parent=0 // loop_pre_header
    _
  $region3: #{forward.1} parent=0 // loop_header
    %s26 = sphi 0, %s30
    %p27 = scmp.ge.s32.totalorder %s26, 4
    %s36 = sphi 0, %s38
    %s39 = sphi 0, %s36
    %s40 = sphi 0, %s39
    %s56 = sphi 0, %s40
    %s62 = sphi 0, %s64
    %s65 = sphi 0, %s62
    %s66 = sphi 0, %s65
    %s82 = sphi 0, %s66
    %s86 = sphi 0, %s86
    %s88 = sphi 0, %s86
    %s89 = sphi 0, %s88
    %s103 = sphi 0, %s89
    %s107 = sphi 0, %s107
    %s109 = sphi 0, %s107
    %s110 = sphi 0, %s109
    %s124 = sphi 0, %s110
    %s128 = sphi 0, %s128
    %s130 = sphi 0, %s128
    %s131 = sphi 0, %s130
    %s145 = sphi 0, %s131
    %s149 = sphi 0, %s149
    %s151 = sphi 0, %s149
    %s152 = sphi 0, %s151
    %s166 = sphi 0, %s152
    %s170 = sphi 0, %s170
    %s172 = sphi 0, %s170
    %s173 = sphi 0, %s172
    %s187 = sphi 0, %s173
    %s191 = sphi 0, %s191
    %s193 = sphi 0, %s191
    %s194 = sphi 0, %s193
    %s208 = sphi 0, %s194
    %s212 = sphi 0, %s212
    %s214 = sphi 0, %s212
    %s215 = sphi 0, %s214
    %s229 = sphi 0, %s215
    %s233 = sphi 0, %s233
    %s235 = sphi 0, %s233
    %s236 = sphi 0, %s235
    %s250 = sphi 0, %s236
    %s254 = sphi 0, %s254
    %s256 = sphi 0, %s254
    %s257 = sphi 0, %s256
    %s271 = sphi 0, %s257
    %s275 = sphi 0, %s275
    %s277 = sphi 0, %s275
    %s278 = sphi 0, %s277
    %s292 = sphi 0, %s278
    %s296 = sphi 0, %s296
    %s298 = sphi 0, %s296
    %s299 = sphi 0, %s298
    %s313 = sphi 0, %s299
    %s317 = sphi 0, %s317
    %s319 = sphi 0, %s317
    %s320 = sphi 0, %s319
    %s334 = sphi 0, %s320
    %s338 = sphi 0, %s338
    %s340 = sphi 0, %s338
    %s341 = sphi 0, %s340
    %s355 = sphi 0, %s341
    %s359 = sphi 0, %s359
    %s361 = sphi 0, %s359
    %s362 = sphi 0, %s361
    %s376 = sphi 0, %s362
    %s380 = sphi 0, %s380
    %s382 = sphi 0, %s380
    %s383 = sphi 0, %s382
    %s397 = sphi 0, %s383
    %s401 = sphi 0, %s401
    %s403 = sphi 0, %s401
    %s404 = sphi 0, %s403
    %s418 = sphi 0, %s404
    %s422 = sphi 0, %s422
    %s424 = sphi 0, %s422
    %s425 = sphi 0, %s424
    %s439 = sphi 0, %s425
    %s443 = sphi 0, %s443
    %s445 = sphi 0, %s443
    %s446 = sphi 0, %s445
    %s460 = sphi 0, %s446
    %s466 = sphi 0, %s468
    %s469 = sphi 0, %s466
    %s470 = sphi 0, %s469
    %s486 = sphi 0, %s470
  $region4: #{forward.1} parent=0 // loop_header_branch
    %29 = sbr.rel (%p27) target = $region8
  $region5: #{forward.1} parent=0 // loop_body
    %s31 = ssub.s32 %s26, 1
    %s32 = ssub.s32 %s26, 2
    %s33 = sadd.s32 %s26, 1
    %s34 = ssub.s32 %s26, %s33
    %p35 = scmp.eq.s32.totalorder %s34, 0
    %s37 = sadd.s32 %s36, 1
    %s38 = scalar_select %p35, %s36, %s37
    %p41 = pneg %p35
    %p42 = scmp.eq.s32.totalorder %s26, 1
    %p43 = por %p41, %p42
    %p44 = scmp.ne.s32.totalorder %s36, %s39
    %p45 = scmp.eq.s32.totalorder %s26, 0
    %p46 = por %p44, %p45
    %p47 = scmp.ne.s32.totalorder %s36, %s39
    %p48 = scmp.eq.s32.totalorder %s31, 1
    %p49 = por %p47, %p48
    %p50 = scmp.ne.s32.totalorder %s39, %s40
    %p51 = scmp.eq.s32.totalorder %s31, 0
    %p52 = por %p50, %p51
    %p53 = scmp.ne.s32.totalorder %s39, %s40
    %p54 = scmp.eq.s32.totalorder %s32, 1
    %p55 = por %p53, %p54
    %p57 = scmp.ne.s32.totalorder %s40, %s56
    %p58 = scmp.eq.s32.totalorder %s32, 0
    %p59 = por %p57, %p58
    %s60 = ssub.s32 %s26, %s33
    %p61 = scmp.eq.s32.totalorder %s60, 0
    %s63 = sadd.s32 %s62, 1
    %s64 = scalar_select %p61, %s62, %s63
    %p67 = pneg %p61
    %p68 = scmp.eq.s32.totalorder %s26, 1
    %p69 = por %p67, %p68
    %p70 = scmp.ne.s32.totalorder %s62, %s65
    %p71 = scmp.eq.s32.totalorder %s26, 0
    %p72 = por %p70, %p71
    %p73 = scmp.ne.s32.totalorder %s62, %s65
    %p74 = scmp.eq.s32.totalorder %s31, 1
    %p75 = por %p73, %p74
    %p76 = scmp.ne.s32.totalorder %s65, %s66
    %p77 = scmp.eq.s32.totalorder %s31, 0
    %p78 = por %p76, %p77
    %p79 = scmp.ne.s32.totalorder %s65, %s66
    %p80 = scmp.eq.s32.totalorder %s32, 1
    %p81 = por %p79, %p80
    %p83 = scmp.ne.s32.totalorder %s66, %s82
    %p84 = scmp.eq.s32.totalorder %s32, 0
    %p85 = por %p83, %p84
    %s87 = sadd.s32 %s86, 1
    %p90 = scmp.eq.s32.totalorder %s26, 1
    %p91 = scmp.ne.s32.totalorder %s86, %s88
    %p92 = scmp.eq.s32.totalorder %s26, 0
    %p93 = por %p91, %p92
    %p94 = scmp.ne.s32.totalorder %s86, %s88
    %p95 = scmp.eq.s32.totalorder %s31, 1
    %p96 = por %p94, %p95
    %p97 = scmp.ne.s32.totalorder %s88, %s89
    %p98 = scmp.eq.s32.totalorder %s31, 0
    %p99 = por %p97, %p98
    %p100 = scmp.ne.s32.totalorder %s88, %s89
    %p101 = scmp.eq.s32.totalorder %s32, 1
    %p102 = por %p100, %p101
    %p104 = scmp.ne.s32.totalorder %s89, %s103
    %p105 = scmp.eq.s32.totalorder %s32, 0
    %p106 = por %p104, %p105
    %s108 = sadd.s32 %s107, 1
    %p111 = scmp.eq.s32.totalorder %s26, 1
    %p112 = scmp.ne.s32.totalorder %s107, %s109
    %p113 = scmp.eq.s32.totalorder %s26, 0
    %p114 = por %p112, %p113
    %p115 = scmp.ne.s32.totalorder %s107, %s109
    %p116 = scmp.eq.s32.totalorder %s31, 1
    %p117 = por %p115, %p116
    %p118 = scmp.ne.s32.totalorder %s109, %s110
    %p119 = scmp.eq.s32.totalorder %s31, 0
    %p120 = por %p118, %p119
    %p121 = scmp.ne.s32.totalorder %s109, %s110
    %p122 = scmp.eq.s32.totalorder %s32, 1
    %p123 = por %p121, %p122
    %p125 = scmp.ne.s32.totalorder %s110, %s124
    %p126 = scmp.eq.s32.totalorder %s32, 0
    %p127 = por %p125, %p126
    %s129 = sadd.s32 %s128, 1
    %p132 = scmp.eq.s32.totalorder %s26, 1
    %p133 = scmp.ne.s32.totalorder %s128, %s130
    %p134 = scmp.eq.s32.totalorder %s26, 0
    %p135 = por %p133, %p134
    %p136 = scmp.ne.s32.totalorder %s128, %s130
    %p137 = scmp.eq.s32.totalorder %s31, 1
    %p138 = por %p136, %p137
    %p139 = scmp.ne.s32.totalorder %s130, %s131
    %p140 = scmp.eq.s32.totalorder %s31, 0
    %p141 = por %p139, %p140
    %p142 = scmp.ne.s32.totalorder %s130, %s131
    %p143 = scmp.eq.s32.totalorder %s32, 1
    %p144 = por %p142, %p143
    %p146 = scmp.ne.s32.totalorder %s131, %s145
    %p147 = scmp.eq.s32.totalorder %s32, 0
    %p148 = por %p146, %p147
    %s150 = sadd.s32 %s149, 1
    %p153 = scmp.eq.s32.totalorder %s26, 1
    %p154 = scmp.ne.s32.totalorder %s149, %s151
    %p155 = scmp.eq.s32.totalorder %s26, 0
    %p156 = por %p154, %p155
    %p157 = scmp.ne.s32.totalorder %s149, %s151
    %p158 = scmp.eq.s32.totalorder %s31, 1
    %p159 = por %p157, %p158
    %p160 = scmp.ne.s32.totalorder %s151, %s152
    %p161 = scmp.eq.s32.totalorder %s31, 0
    %p162 = por %p160, %p161
    %p163 = scmp.ne.s32.totalorder %s151, %s152
    %p164 = scmp.eq.s32.totalorder %s32, 1
    %p165 = por %p163, %p164
    %p167 = scmp.ne.s32.totalorder %s152, %s166
    %p168 = scmp.eq.s32.totalorder %s32, 0
    %p169 = por %p167, %p168
    %s171 = sadd.s32 %s170, 1
    %p174 = scmp.eq.s32.totalorder %s26, 1
    %p175 = scmp.ne.s32.totalorder %s170, %s172
    %p176 = scmp.eq.s32.totalorder %s26, 0
    %p177 = por %p175, %p176
    %p178 = scmp.ne.s32.totalorder %s170, %s172
    %p179 = scmp.eq.s32.totalorder %s31, 1
    %p180 = por %p178, %p179
    %p181 = scmp.ne.s32.totalorder %s172, %s173
    %p182 = scmp.eq.s32.totalorder %s31, 0
    %p183 = por %p181, %p182
    %p184 = scmp.ne.s32.totalorder %s172, %s173
    %p185 = scmp.eq.s32.totalorder %s32, 1
    %p186 = por %p184, %p185
    %p188 = scmp.ne.s32.totalorder %s173, %s187
    %p189 = scmp.eq.s32.totalorder %s32, 0
    %p190 = por %p188, %p189
    %s192 = sadd.s32 %s191, 1
    %p195 = scmp.eq.s32.totalorder %s26, 1
    %p196 = scmp.ne.s32.totalorder %s191, %s193
    %p197 = scmp.eq.s32.totalorder %s26, 0
    %p198 = por %p196, %p197
    %p199 = scmp.ne.s32.totalorder %s191, %s193
    %p200 = scmp.eq.s32.totalorder %s31, 1
    %p201 = por %p199, %p200
    %p202 = scmp.ne.s32.totalorder %s193, %s194
    %p203 = scmp.eq.s32.totalorder %s31, 0
    %p204 = por %p202, %p203
    %p205 = scmp.ne.s32.totalorder %s193, %s194
    %p206 = scmp.eq.s32.totalorder %s32, 1
    %p207 = por %p205, %p206
    %p209 = scmp.ne.s32.totalorder %s194, %s208
    %p210 = scmp.eq.s32.totalorder %s32, 0
    %p211 = por %p209, %p210
    %s213 = sadd.s32 %s212, 1
    %p216 = scmp.eq.s32.totalorder %s26, 1
    %p217 = scmp.ne.s32.totalorder %s212, %s214
    %p218 = scmp.eq.s32.totalorder %s26, 0
    %p219 = por %p217, %p218
    %p220 = scmp.ne.s32.totalorder %s212, %s214
    %p221 = scmp.eq.s32.totalorder %s31, 1
    %p222 = por %p220, %p221
    %p223 = scmp.ne.s32.totalorder %s214, %s215
    %p224 = scmp.eq.s32.totalorder %s31, 0
    %p225 = por %p223, %p224
    %p226 = scmp.ne.s32.totalorder %s214, %s215
    %p227 = scmp.eq.s32.totalorder %s32, 1
    %p228 = por %p226, %p227
    %p230 = scmp.ne.s32.totalorder %s215, %s229
    %p231 = scmp.eq.s32.totalorder %s32, 0
    %p232 = por %p230, %p231
    %s234 = sadd.s32 %s233, 1
    %p237 = scmp.eq.s32.totalorder %s26, 1
    %p238 = scmp.ne.s32.totalorder %s233, %s235
    %p239 = scmp.eq.s32.totalorder %s26, 0
    %p240 = por %p238, %p239
    %p241 = scmp.ne.s32.totalorder %s233, %s235
    %p242 = scmp.eq.s32.totalorder %s31, 1
    %p243 = por %p241, %p242
    %p244 = scmp.ne.s32.totalorder %s235, %s236
    %p245 = scmp.eq.s32.totalorder %s31, 0
    %p246 = por %p244, %p245
    %p247 = scmp.ne.s32.totalorder %s235, %s236
    %p248 = scmp.eq.s32.totalorder %s32, 1
    %p249 = por %p247, %p248
    %p251 = scmp.ne.s32.totalorder %s236, %s250
    %p252 = scmp.eq.s32.totalorder %s32, 0
    %p253 = por %p251, %p252
    %s255 = sadd.s32 %s254, 1
    %p258 = scmp.eq.s32.totalorder %s26, 1
    %p259 = scmp.ne.s32.totalorder %s254, %s256
    %p260 = scmp.eq.s32.totalorder %s26, 0
    %p261 = por %p259, %p260
    %p262 = scmp.ne.s32.totalorder %s254, %s256
    %p263 = scmp.eq.s32.totalorder %s31, 1
    %p264 = por %p262, %p263
    %p265 = scmp.ne.s32.totalorder %s256, %s257
    %p266 = scmp.eq.s32.totalorder %s31, 0
    %p267 = por %p265, %p266
    %p268 = scmp.ne.s32.totalorder %s256, %s257
    %p269 = scmp.eq.s32.totalorder %s32, 1
    %p270 = por %p268, %p269
    %p272 = scmp.ne.s32.totalorder %s257, %s271
    %p273 = scmp.eq.s32.totalorder %s32, 0
    %p274 = por %p272, %p273
    %s276 = sadd.s32 %s275, 1
    %p279 = scmp.eq.s32.totalorder %s26, 1
    %p280 = scmp.ne.s32.totalorder %s275, %s277
    %p281 = scmp.eq.s32.totalorder %s26, 0
    %p282 = por %p280, %p281
    %p283 = scmp.ne.s32.totalorder %s275, %s277
    %p284 = scmp.eq.s32.totalorder %s31, 1
    %p285 = por %p283, %p284
    %p286 = scmp.ne.s32.totalorder %s277, %s278
    %p287 = scmp.eq.s32.totalorder %s31, 0
    %p288 = por %p286, %p287
    %p289 = scmp.ne.s32.totalorder %s277, %s278
    %p290 = scmp.eq.s32.totalorder %s32, 1
    %p291 = por %p289, %p290
    %p293 = scmp.ne.s32.totalorder %s278, %s292
    %p294 = scmp.eq.s32.totalorder %s32, 0
    %p295 = por %p293, %p294
    %s297 = sadd.s32 %s296, 1
    %p300 = scmp.eq.s32.totalorder %s26, 1
    %p301 = scmp.ne.s32.totalorder %s296, %s298
    %p302 = scmp.eq.s32.totalorder %s26, 0
    %p303 = por %p301, %p302
    %p304 = scmp.ne.s32.totalorder %s296, %s298
    %p305 = scmp.eq.s32.totalorder %s31, 1
    %p306 = por %p304, %p305
    %p307 = scmp.ne.s32.totalorder %s298, %s299
    %p308 = scmp.eq.s32.totalorder %s31, 0
    %p309 = por %p307, %p308
    %p310 = scmp.ne.s32.totalorder %s298, %s299
    %p311 = scmp.eq.s32.totalorder %s32, 1
    %p312 = por %p310, %p311
    %p314 = scmp.ne.s32.totalorder %s299, %s313
    %p315 = scmp.eq.s32.totalorder %s32, 0
    %p316 = por %p314, %p315
    %s318 = sadd.s32 %s317, 1
    %p321 = scmp.eq.s32.totalorder %s26, 1
    %p322 = scmp.ne.s32.totalorder %s317, %s319
    %p323 = scmp.eq.s32.totalorder %s26, 0
    %p324 = por %p322, %p323
    %p325 = scmp.ne.s32.totalorder %s317, %s319
    %p326 = scmp.eq.s32.totalorder %s31, 1
    %p327 = por %p325, %p326
    %p328 = scmp.ne.s32.totalorder %s319, %s320
    %p329 = scmp.eq.s32.totalorder %s31, 0
    %p330 = por %p328, %p329
    %p331 = scmp.ne.s32.totalorder %s319, %s320
    %p332 = scmp.eq.s32.totalorder %s32, 1
    %p333 = por %p331, %p332
    %p335 = scmp.ne.s32.totalorder %s320, %s334
    %p336 = scmp.eq.s32.totalorder %s32, 0
    %p337 = por %p335, %p336
    %s339 = sadd.s32 %s338, 1
    %p342 = scmp.eq.s32.totalorder %s26, 1
    %p343 = scmp.ne.s32.totalorder %s338, %s340
    %p344 = scmp.eq.s32.totalorder %s26, 0
    %p345 = por %p343, %p344
    %p346 = scmp.ne.s32.totalorder %s338, %s340
    %p347 = scmp.eq.s32.totalorder %s31, 1
    %p348 = por %p346, %p347
    %p349 = scmp.ne.s32.totalorder %s340, %s341
    %p350 = scmp.eq.s32.totalorder %s31, 0
    %p351 = por %p349, %p350
    %p352 = scmp.ne.s32.totalorder %s340, %s341
    %p353 = scmp.eq.s32.totalorder %s32, 1
    %p354 = por %p352, %p353
    %p356 = scmp.ne.s32.totalorder %s341, %s355
    %p357 = scmp.eq.s32.totalorder %s32, 0
    %p358 = por %p356, %p357
    %s360 = sadd.s32 %s359, 1
    %p363 = scmp.eq.s32.totalorder %s26, 1
    %p364 = scmp.ne.s32.totalorder %s359, %s361
    %p365 = scmp.eq.s32.totalorder %s26, 0
    %p366 = por %p364, %p365
    %p367 = scmp.ne.s32.totalorder %s359, %s361
    %p368 = scmp.eq.s32.totalorder %s31, 1
    %p369 = por %p367, %p368
    %p370 = scmp.ne.s32.totalorder %s361, %s362
    %p371 = scmp.eq.s32.totalorder %s31, 0
    %p372 = por %p370, %p371
    %p373 = scmp.ne.s32.totalorder %s361, %s362
    %p374 = scmp.eq.s32.totalorder %s32, 1
    %p375 = por %p373, %p374
    %p377 = scmp.ne.s32.totalorder %s362, %s376
    %p378 = scmp.eq.s32.totalorder %s32, 0
    %p379 = por %p377, %p378
    %s381 = sadd.s32 %s380, 1
    %p384 = scmp.eq.s32.totalorder %s26, 1
    %p385 = scmp.ne.s32.totalorder %s380, %s382
    %p386 = scmp.eq.s32.totalorder %s26, 0
    %p387 = por %p385, %p386
    %p388 = scmp.ne.s32.totalorder %s380, %s382
    %p389 = scmp.eq.s32.totalorder %s31, 1
    %p390 = por %p388, %p389
    %p391 = scmp.ne.s32.totalorder %s382, %s383
    %p392 = scmp.eq.s32.totalorder %s31, 0
    %p393 = por %p391, %p392
    %p394 = scmp.ne.s32.totalorder %s382, %s383
    %p395 = scmp.eq.s32.totalorder %s32, 1
    %p396 = por %p394, %p395
    %p398 = scmp.ne.s32.totalorder %s383, %s397
    %p399 = scmp.eq.s32.totalorder %s32, 0
    %p400 = por %p398, %p399
    %s402 = sadd.s32 %s401, 1
    %p405 = scmp.eq.s32.totalorder %s26, 1
    %p406 = scmp.ne.s32.totalorder %s401, %s403
    %p407 = scmp.eq.s32.totalorder %s26, 0
    %p408 = por %p406, %p407
    %p409 = scmp.ne.s32.totalorder %s401, %s403
    %p410 = scmp.eq.s32.totalorder %s31, 1
    %p411 = por %p409, %p410
    %p412 = scmp.ne.s32.totalorder %s403, %s404
    %p413 = scmp.eq.s32.totalorder %s31, 0
    %p414 = por %p412, %p413
    %p415 = scmp.ne.s32.totalorder %s403, %s404
    %p416 = scmp.eq.s32.totalorder %s32, 1
    %p417 = por %p415, %p416
    %p419 = scmp.ne.s32.totalorder %s404, %s418
    %p420 = scmp.eq.s32.totalorder %s32, 0
    %p421 = por %p419, %p420
    %s423 = sadd.s32 %s422, 1
    %p426 = scmp.eq.s32.totalorder %s26, 1
    %p427 = scmp.ne.s32.totalorder %s422, %s424
    %p428 = scmp.eq.s32.totalorder %s26, 0
    %p429 = por %p427, %p428
    %p430 = scmp.ne.s32.totalorder %s422, %s424
    %p431 = scmp.eq.s32.totalorder %s31, 1
    %p432 = por %p430, %p431
    %p433 = scmp.ne.s32.totalorder %s424, %s425
    %p434 = scmp.eq.s32.totalorder %s31, 0
    %p435 = por %p433, %p434
    %p436 = scmp.ne.s32.totalorder %s424, %s425
    %p437 = scmp.eq.s32.totalorder %s32, 1
    %p438 = por %p436, %p437
    %p440 = scmp.ne.s32.totalorder %s425, %s439
    %p441 = scmp.eq.s32.totalorder %s32, 0
    %p442 = por %p440, %p441
    %s444 = sadd.s32 %s443, 1
    %p447 = scmp.eq.s32.totalorder %s26, 1
    %p448 = scmp.ne.s32.totalorder %s443, %s445
    %p449 = scmp.eq.s32.totalorder %s26, 0
    %p450 = por %p448, %p449
    %p451 = scmp.ne.s32.totalorder %s443, %s445
    %p452 = scmp.eq.s32.totalorder %s31, 1
    %p453 = por %p451, %p452
    %p454 = scmp.ne.s32.totalorder %s445, %s446
    %p455 = scmp.eq.s32.totalorder %s31, 0
    %p456 = por %p454, %p455
    %p457 = scmp.ne.s32.totalorder %s445, %s446
    %p458 = scmp.eq.s32.totalorder %s32, 1
    %p459 = por %p457, %p458
    %p461 = scmp.ne.s32.totalorder %s446, %s460
    %p462 = scmp.eq.s32.totalorder %s32, 0
    %p463 = por %p461, %p462
    %s464 = ssub.s32 %s26, %s33
    %p465 = scmp.eq.s32.totalorder %s464, 0
    %s467 = sadd.s32 %s466, 1
    %s468 = scalar_select %p465, %s466, %s467
    %p471 = pneg %p465
    %p472 = scmp.eq.s32.totalorder %s26, 1
    %p473 = por %p471, %p472
    %p474 = scmp.ne.s32.totalorder %s466, %s469
    %p475 = scmp.eq.s32.totalorder %s26, 0
    %p476 = por %p474, %p475
    %p477 = scmp.ne.s32.totalorder %s466, %s469
    %p478 = scmp.eq.s32.totalorder %s31, 1
    %p479 = por %p477, %p478
    %p480 = scmp.ne.s32.totalorder %s469, %s470
    %p481 = scmp.eq.s32.totalorder %s31, 0
    %p482 = por %p480, %p481
    %p483 = scmp.ne.s32.totalorder %s469, %s470
    %p484 = scmp.eq.s32.totalorder %s32, 1
    %p485 = por %p483, %p484
    %p487 = scmp.ne.s32.totalorder %s470, %s486
    %p488 = scmp.eq.s32.totalorder %s32, 0
    %p489 = por %p487, %p488
    %p490 = scmp.le.s32.totalorder 1, %s26
    %p491 = scmp.lt.s32.totalorder %s26, 3
    %p492 = pnand %p490, %p491
    %p493 = pneg %p492
    // Predicated region
    $region9: #{forward.1} parent=5 // pred_check
      _
    $region10: #{forward.1} parent=5 // pred_check_branch
      %495 = sbr.rel (%p492) target = $region12
    $region11: #{forward.1} parent=5 // pred_region
      %s496 = ssub.s32 %s26, 1
      // Predicated region
      $region13: #{forward.1} parent=11 // pred_check
        %p497 = pneg %p99
      $region14: #{forward.1} parent=11 // pred_check_branch
        %499 = sbr.rel (%p497) target = $region16
      $region15: #{forward.1} parent=11 // pred_region
        _
      $region16: #{forward.1} parent=11 // pred_fallthru
        _
      // Predicated region
      $region17: #{forward.1} parent=11 // pred_check
        %p500 = pneg %p120
      $region18: #{forward.1} parent=11 // pred_check_branch
        %502 = sbr.rel (%p500) target = $region20
      $region19: #{forward.1} parent=11 // pred_region
        _
      $region20: #{forward.1} parent=11 // pred_fallthru
        _
      // Predicated region
      $region21: #{forward.1} parent=11 // pred_check
        %p503 = pneg %p141
      $region22: #{forward.1} parent=11 // pred_check_branch
        %505 = sbr.rel (%p503) target = $region24
      $region23: #{forward.1} parent=11 // pred_region
        _
      $region24: #{forward.1} parent=11 // pred_fallthru
        _
      // Predicated region
      $region25: #{forward.1} parent=11 // pred_check
        %p506 = pneg %p162
      $region26: #{forward.1} parent=11 // pred_check_branch
        %508 = sbr.rel (%p506) target = $region28
      $region27: #{forward.1} parent=11 // pred_region
        _
      $region28: #{forward.1} parent=11 // pred_fallthru
        _
      // Predicated region
      $region29: #{forward.1} parent=11 // pred_check
        %p509 = pneg %p183
      $region30: #{forward.1} parent=11 // pred_check_branch
        %511 = sbr.rel (%p509) target = $region32
      $region31: #{forward.1} parent=11 // pred_region
        _
      $region32: #{forward.1} parent=11 // pred_fallthru
        _
      // Predicated region
      $region33: #{forward.1} parent=11 // pred_check
        %p512 = pneg %p204
      $region34: #{forward.1} parent=11 // pred_check_branch
        %514 = sbr.rel (%p512) target = $region36
      $region35: #{forward.1} parent=11 // pred_region
        _
      $region36: #{forward.1} parent=11 // pred_fallthru
        _
      // Predicated region
      $region37: #{forward.1} parent=11 // pred_check
        %p515 = pneg %p225
      $region38: #{forward.1} parent=11 // pred_check_branch
        %517 = sbr.rel (%p515) target = $region40
      $region39: #{forward.1} parent=11 // pred_region
        _
      $region40: #{forward.1} parent=11 // pred_fallthru
        _
      // Predicated region
      $region41: #{forward.1} parent=11 // pred_check
        %p518 = pneg %p246
      $region42: #{forward.1} parent=11 // pred_check_branch
        %520 = sbr.rel (%p518) target = $region44
      $region43: #{forward.1} parent=11 // pred_region
        _
      $region44: #{forward.1} parent=11 // pred_fallthru
        _
      // Predicated region
      $region45: #{forward.1} parent=11 // pred_check
        %p521 = pneg %p267
      $region46: #{forward.1} parent=11 // pred_check_branch
        %523 = sbr.rel (%p521) target = $region48
      $region47: #{forward.1} parent=11 // pred_region
        _
      $region48: #{forward.1} parent=11 // pred_fallthru
        _
      // Predicated region
      $region49: #{forward.1} parent=11 // pred_check
        %p524 = pneg %p288
      $region50: #{forward.1} parent=11 // pred_check_branch
        %526 = sbr.rel (%p524) target = $region52
      $region51: #{forward.1} parent=11 // pred_region
        _
      $region52: #{forward.1} parent=11 // pred_fallthru
        _
      // Predicated region
      $region53: #{forward.1} parent=11 // pred_check
        %p527 = pneg %p309
      $region54: #{forward.1} parent=11 // pred_check_branch
        %529 = sbr.rel (%p527) target = $region56
      $region55: #{forward.1} parent=11 // pred_region
        _
      $region56: #{forward.1} parent=11 // pred_fallthru
        _
      // Predicated region
      $region57: #{forward.1} parent=11 // pred_check
        %p530 = pneg %p330
      $region58: #{forward.1} parent=11 // pred_check_branch
        %532 = sbr.rel (%p530) target = $region60
      $region59: #{forward.1} parent=11 // pred_region
        _
      $region60: #{forward.1} parent=11 // pred_fallthru
        _
      // Predicated region
      $region61: #{forward.1} parent=11 // pred_check
        %p533 = pneg %p351
      $region62: #{forward.1} parent=11 // pred_check_branch
        %535 = sbr.rel (%p533) target = $region64
      $region63: #{forward.1} parent=11 // pred_region
        _
      $region64: #{forward.1} parent=11 // pred_fallthru
        _
      // Predicated region
      $region65: #{forward.1} parent=11 // pred_check
        %p536 = pneg %p372
      $region66: #{forward.1} parent=11 // pred_check_branch
        %538 = sbr.rel (%p536) target = $region68
      $region67: #{forward.1} parent=11 // pred_region
        _
      $region68: #{forward.1} parent=11 // pred_fallthru
        _
      // Predicated region
      $region69: #{forward.1} parent=11 // pred_check
        %p539 = pneg %p393
      $region70: #{forward.1} parent=11 // pred_check_branch
        %541 = sbr.rel (%p539) target = $region72
      $region71: #{forward.1} parent=11 // pred_region
        _
      $region72: #{forward.1} parent=11 // pred_fallthru
        _
      // Predicated region
      $region73: #{forward.1} parent=11 // pred_check
        %p542 = pneg %p414
      $region74: #{forward.1} parent=11 // pred_check_branch
        %544 = sbr.rel (%p542) target = $region76
      $region75: #{forward.1} parent=11 // pred_region
        _
      $region76: #{forward.1} parent=11 // pred_fallthru
        _
      // Predicated region
      $region77: #{forward.1} parent=11 // pred_check
        %p545 = pneg %p435
      $region78: #{forward.1} parent=11 // pred_check_branch
        %547 = sbr.rel (%p545) target = $region80
      $region79: #{forward.1} parent=11 // pred_region
        _
      $region80: #{forward.1} parent=11 // pred_fallthru
        _
      // Predicated region
      $region81: #{forward.1} parent=11 // pred_check
        %p548 = pneg %p456
      $region82: #{forward.1} parent=11 // pred_check_branch
        %550 = sbr.rel (%p548) target = $region84
      $region83: #{forward.1} parent=11 // pred_region
        _
      $region84: #{forward.1} parent=11 // pred_fallthru
        _
    $region12: #{forward.1} parent=5 // pred_fallthru
      _
    %p551 = scmp.lt.s32.totalorder %s26, 2
    // Predicated region
    $region85: #{forward.1} parent=5 // pred_check
      %p552 = pneg %p551
    $region86: #{forward.1} parent=5 // pred_check_branch
      %554 = sbr.rel (%p552) target = $region88
    $region87: #{forward.1} parent=5 // pred_region
      // Predicated region
      $region89: #{forward.1} parent=87 // pred_check
        %p555 = pneg %p46
      $region90: #{forward.1} parent=87 // pred_check_branch
        %557 = sbr.rel (%p555) target = $region92
      $region91: #{forward.1} parent=87 // pred_region
        %p558 = scmp.lt.s32.totalorder %s26, 1
        %s559 = scalar_select %p558, %s26, 1
        %s560 = smul.addr %s559, 5
        %s561 = smul.addr %s560, 4
        %s562 = scalar_lea.vmem %s0, %s561
      $region92: #{forward.1} parent=87 // pred_fallthru
        _
      // Predicated region
      $region93: #{forward.1} parent=87 // pred_check
        %p563 = pneg %p72
      $region94: #{forward.1} parent=87 // pred_check_branch
        %565 = sbr.rel (%p563) target = $region96
      $region95: #{forward.1} parent=87 // pred_region
        %p566 = scmp.lt.s32.totalorder %s26, 1
        %s567 = scalar_select %p566, %s26, 1
        %s568 = smul.addr %s567, 2
        %s569 = smul.addr %s568, 8
        %s570 = scalar_lea.vmem %s1, %s569
      $region96: #{forward.1} parent=87 // pred_fallthru
        _
    $region88: #{forward.1} parent=5 // pred_fallthru
      _
    %p571 = scmp.le.s32.totalorder 1, %s26
    %p572 = scmp.lt.s32.totalorder %s26, 3
    %p573 = pnand %p571, %p572
    %p574 = pneg %p573
    // Predicated region
    $region97: #{forward.1} parent=5 // pred_check
      _
    $region98: #{forward.1} parent=5 // pred_check_branch
      %576 = sbr.rel (%p573) target = $region100
    $region99: #{forward.1} parent=5 // pred_region
      %s577 = ssub.s32 %s26, 1
      %p578 = scmp.lt.s32.totalorder %s31, 1
      %s579 = scalar_select %p578, %s31, 1
      %s580 = smul.addr %s579, 5
      %s581 = smul.addr %s580, 4
      %s582 = scalar_lea.vmem %s0, %s581
      %p583 = pneg %p52
      %p584 = pneg %p49
      %p585 = scmp.lt.s32.totalorder %s31, 1
      %s586 = scalar_select %p585, %s31, 1
      %s587 = smul.addr %s586, 2
      %s588 = smul.addr %s587, 8
      %s589 = scalar_lea.vmem %s1, %s588
      %p590 = pneg %p78
      %p591 = pneg %p75
      %p592 = pneg %p99
      %p593 = pneg %p96
      %p594 = pneg %p120
      %p595 = pneg %p117
      %p596 = pneg %p141
      %p597 = pneg %p138
      %p598 = pneg %p162
      %p599 = pneg %p159
      %p600 = pneg %p183
      %p601 = pneg %p180
      %p602 = pneg %p204
      %p603 = pneg %p201
      %p604 = pneg %p225
      %p605 = pneg %p222
      %p606 = pneg %p246
      %p607 = pneg %p243
      %p608 = pneg %p267
      %p609 = pneg %p264
      %p610 = pneg %p288
      %p611 = pneg %p285
      %p612 = pneg %p309
      %p613 = pneg %p306
      %p614 = pneg %p330
      %p615 = pneg %p327
      %p616 = pneg %p351
      %p617 = pneg %p348
      %p618 = pneg %p372
      %p619 = pneg %p369
      %p620 = pneg %p393
      %p621 = pneg %p390
      %p622 = pneg %p414
      %p623 = pneg %p411
      %p624 = pneg %p435
      %p625 = pneg %p432
      %p626 = pneg %p456
      %p627 = pneg %p453
      %p628 = pneg %p482
      %p629 = pneg %p479
      %p630 = scmp.lt.s32.totalorder %s31, 1
      %s631 = scalar_select %p630, %s31, 1
      %s632 = smul.addr %s631, 2
      %s633 = smul.addr %s632, 8
      %s634 = scalar_lea.vmem %s20, %s633
      %p635 = scmp.lt.s32.totalorder %s31, 1
      %s636 = scalar_select %p635, %s31, 1
      %s637 = smul.addr %s636, 5
      %s638 = smul.addr %s637, 4
      %s639 = scalar_lea.vmem %s0, %s638
      %p640 = scmp.lt.s32.totalorder %s31, 1
      %s641 = scalar_select %p640, %s31, 1
      %s642 = smul.addr %s641, 2
      %s643 = smul.addr %s642, 8
      %s644 = scalar_lea.vmem %s1, %s643
      %p645 = scmp.lt.s32.totalorder %s31, 1
      %s646 = scalar_select %p645, %s31, 1
      %s647 = smul.addr %s646, 2
      %s648 = smul.addr %s647, 8
      %s649 = scalar_lea.vmem %s20, %s648
      %v650 = vld [vmem:[%s639] sm:$0xff]
      %v651 = vld [vmem:[%s639 + $0x8] sm:$0xff]
      %v652 = vld [vmem:[%s639 + $0x10] sm:$0xf]
      %v653 = vld [vmem:[%s3] sm:$0xff]
      %v654 = vld [vmem:[%s3 + $0x8] sm:$0xff]
      %v655 = vld [vmem:[%s3 + $0x10] sm:$0xff]
      %v656 = vld [vmem:[%s3 + $0x18] sm:$0xff]
      %v657 = vld [vmem:[%s3 + $0x20] sm:$0xff]
      %v658 = vld [vmem:[%s3 + $0x28] sm:$0xff]
      %v659 = vld [vmem:[%s3 + $0x30] sm:$0xff]
      %v660 = vld [vmem:[%s3 + $0x38] sm:$0xff]
      %v661 = vld [vmem:[%s3 + $0x40] sm:$0xff]
      %v662 = vld [vmem:[%s3 + $0x48] sm:$0xff]
      %v663 = vld [vmem:[%s3 + $0x50] sm:$0xff]
      %v664 = vld [vmem:[%s3 + $0x58] sm:$0xff]
      %v665 = vld [vmem:[%s3 + $0x60] sm:$0xff]
      %v666 = vld [vmem:[%s3 + $0x68] sm:$0xff]
      %v667 = vld [vmem:[%s3 + $0x70] sm:$0xff]
      %v668 = vld [vmem:[%s3 + $0x78] sm:$0xff]
      %v669 = vld [vmem:[%s3 + $0x80] sm:$0xff]
      %v670 = vld [vmem:[%s3 + $0x88] sm:$0xff]
      %v671 = vld [vmem:[%s3 + $0x90] sm:$0xff]
      %v672 = vld [vmem:[%s3 + $0x98] sm:$0xff]
      %v673 = vld [vmem:[%s3 + $0xa0] sm:$0xff]
      %v674 = vld [vmem:[%s3 + $0xa8] sm:$0xff]
      %v675 = vld [vmem:[%s3 + $0xb0] sm:$0xff]
      %v676 = vld [vmem:[%s3 + $0xb8] sm:$0xff]
      %v677 = vld [vmem:[%s3 + $0xc0] sm:$0xff]
      %v678 = vld [vmem:[%s3 + $0xc8] sm:$0xff]
      %v679 = vld [vmem:[%s3 + $0xd0] sm:$0xff]
      %v680 = vld [vmem:[%s3 + $0xd8] sm:$0xff]
      %v681 = vld [vmem:[%s3 + $0xe0] sm:$0xff]
      %v682 = vld [vmem:[%s3 + $0xe8] sm:$0xff]
      %v683 = vld [vmem:[%s3 + $0xf0] sm:$0xff]
      %v684 = vld [vmem:[%s3 + $0xf8] sm:$0xff]
      %v685 = vld [vmem:[%s3 + $0x100] sm:$0xff]
      %v686 = vld [vmem:[%s3 + $0x108] sm:$0xff]
      %v687 = vld [vmem:[%s3 + $0x110] sm:$0xff]
      %v688 = vld [vmem:[%s3 + $0x118] sm:$0xff]
      %v689 = vld [vmem:[%s3 + $0x120] sm:$0xff]
      %v690 = vld [vmem:[%s3 + $0x128] sm:$0xff]
      %v691 = vld [vmem:[%s3 + $0x130] sm:$0xff]
      %v692 = vld [vmem:[%s3 + $0x138] sm:$0xff]
      %v693 = vld [vmem:[%s3 + $0x140] sm:$0xff]
      %v694 = vld [vmem:[%s3 + $0x148] sm:$0xff]
      %v695 = vld [vmem:[%s3 + $0x150] sm:$0xff]
      %v696 = vld [vmem:[%s3 + $0x158] sm:$0xff]
      %v697 = vld [vmem:[%s3 + $0x160] sm:$0xff]
      %v698 = vld [vmem:[%s3 + $0x168] sm:$0xff]
      %v699 = vld [vmem:[%s3 + $0x170] sm:$0xff]
      %v700 = vld [vmem:[%s3 + $0x178] sm:$0xff]
      %v701 = vld [vmem:[%s3 + $0x180] sm:$0xff]
      %v702 = vld [vmem:[%s3 + $0x188] sm:$0xff]
      %v703 = vld [vmem:[%s3 + $0x190] sm:$0xff]
      %v704 = vld [vmem:[%s3 + $0x198] sm:$0xff]
      %v705 = vld [vmem:[%s3 + $0x1a0] sm:$0xff]
      %v706 = vld [vmem:[%s3 + $0x1a8] sm:$0xff]
      %v707 = vld [vmem:[%s3 + $0x1b0] sm:$0xff]
      %v708 = vld [vmem:[%s3 + $0x1b8] sm:$0xff]
      %v709 = vld [vmem:[%s3 + $0x1c0] sm:$0xff]
      %v710 = vld [vmem:[%s3 + $0x1c8] sm:$0xff]
      %v711 = vld [vmem:[%s3 + $0x1d0] sm:$0xff]
      %v712 = vld [vmem:[%s3 + $0x1d8] sm:$0xff]
      %v713 = vld [vmem:[%s3 + $0x1e0] sm:$0xff]
      %v714 = vld [vmem:[%s3 + $0x1e8] sm:$0xff]
      %v715 = vld [vmem:[%s3 + $0x1f0] sm:$0xff]
      %v716 = vld [vmem:[%s3 + $0x1f8] sm:$0xff]
      %v717 = vld [vmem:[%s3 + $0x200] sm:$0xff]
      %v718 = vld [vmem:[%s3 + $0x208] sm:$0xff]
      %v719 = vld [vmem:[%s3 + $0x210] sm:$0xff]
      %v720 = vld [vmem:[%s3 + $0x218] sm:$0xff]
      %v721 = vld [vmem:[%s3 + $0x220] sm:$0xff]
      %v722 = vld [vmem:[%s3 + $0x228] sm:$0xff]
      %v723 = vld [vmem:[%s3 + $0x230] sm:$0xff]
      %v724 = vld [vmem:[%s3 + $0x238] sm:$0xff]
      %v725 = vld [vmem:[%s3 + $0x240] sm:$0xff]
      %v726 = vld [vmem:[%s3 + $0x248] sm:$0xf]
      %v730 = vcombine.high %v650, %v650
      %v731 = vcombine.high %v651, %v651
      %vm734 = vcmask 621568
      %v735 = vsel %vm734, %v652, 0
      %vm737 = vcmask 1043456
      %v739 = vsel %vm737, %v726, 0
      %741 = vmatprep.subr.mxu0 0.0
      %742 = vmatpush1.msra.mxu0 %v653
      %743 = vmatprep.subr.mxu0 0.0
      %744 = vmatpush1.msra.mxu0 %v654
      %745 = vmatprep.subr.mxu0 0.0
      %746 = vmatpush1.msra.mxu0 %v655
      %747 = vmatprep.subr.mxu0 0.0
      %748 = vmatpush1.msra.mxu0 %v656
      %749 = vmatprep.subr.mxu0 0.0
      %750 = vmatpush1.msra.mxu0 %v657
      %751 = vmatprep.subr.mxu0 0.0
      %752 = vmatpush1.msra.mxu0 %v658
      %753 = vmatprep.subr.mxu0 0.0
      %754 = vmatpush1.msra.mxu0 %v659
      %755 = vmatprep.subr.mxu0 0.0
      %756 = vmatpush1.msra.mxu0 %v660
      %757 = vmatprep.subr.mxu0 0.0
      %758 = vmatpush1.msra.mxu0 %v661
      %759 = vmatprep.subr.mxu0 0.0
      %760 = vmatpush1.msra.mxu0 %v662
      %761 = vmatprep.subr.mxu0 0.0
      %762 = vmatpush1.msra.mxu0 %v663
      %763 = vmatprep.subr.mxu0 0.0
      %764 = vmatpush1.msra.mxu0 %v664
      %765 = vmatprep.subr.mxu0 0.0
      %766 = vmatpush1.msra.mxu0 %v665
      %767 = vmatprep.subr.mxu0 0.0
      %768 = vmatpush1.msra.mxu0 %v666
      %769 = vmatprep.subr.mxu0 0.0
      %770 = vmatpush1.msra.mxu0 %v667
      %771 = vmatprep.subr.mxu0 0.0
      %772 = vmatpush1.msra.mxu0 %v668
      %773 = vmatprep.subr.mxu0 0.0
      %774 = vmatpush1.msra.mxu0 %v669
      %775 = vmatprep.subr.mxu0 0.0
      %776 = vmatpush1.msra.mxu0 %v670
      %777 = vmatprep.subr.mxu0 0.0
      %778 = vmatpush1.msra.mxu0 %v671
      %779 = vmatprep.subr.mxu0 0.0
      %780 = vmatpush1.msra.mxu0 %v672
      %781 = vmatprep.subr.mxu0 0.0
      %782 = vmatpush1.msra.mxu0 %v673
      %783 = vmatprep.subr.mxu0 0.0
      %784 = vmatpush1.msra.mxu0 %v674
      %785 = vmatprep.subr.mxu0 0.0
      %786 = vmatpush1.msra.mxu0 %v675
      %787 = vmatprep.subr.mxu0 0.0
      %788 = vmatpush1.msra.mxu0 %v676
      %789 = vmatprep.subr.mxu0 0.0
      %790 = vmatpush1.msra.mxu0 %v677
      %791 = vmatprep.subr.mxu0 0.0
      %792 = vmatpush1.msra.mxu0 %v678
      %793 = vmatprep.subr.mxu0 0.0
      %794 = vmatpush1.msra.mxu0 %v679
      %795 = vmatprep.subr.mxu0 0.0
      %796 = vmatpush1.msra.mxu0 %v680
      %797 = vmatprep.subr.mxu0 0.0
      %798 = vmatpush1.msra.mxu0 %v681
      %799 = vmatprep.subr.mxu0 0.0
      %800 = vmatpush1.msra.mxu0 %v682
      %801 = vmatprep.subr.mxu0 0.0
      %802 = vmatpush1.msra.mxu0 %v683
      %803 = vmatprep.subr.mxu0 0.0
      %804 = vmatpush1.msra.mxu0 %v684
      %805 = vmatprep.mubr.f32.mxu0 %v730
      %806 = vmatmul.mubr.f32.gmra.mrb[0].mxu0 %v650
      %v807 = vpop.f32.mrb[0].mxu0
      %v808 = vadd.f32 0.0, %v807
      %v809 = vpop.f32.mrb[0].mxu0
      %810 = vdwg.mxu0
      %811 = vmatprep.subr.mxu0 0.0
      %812 = vmatpush1.msra.mxu0 %v685
      %813 = vmatprep.subr.mxu0 0.0
      %814 = vmatpush1.msra.mxu0 %v686
      %815 = vmatprep.subr.mxu0 0.0
      %816 = vmatpush1.msra.mxu0 %v687
      %817 = vmatprep.subr.mxu0 0.0
      %818 = vmatpush1.msra.mxu0 %v688
      %819 = vmatprep.subr.mxu0 0.0
      %820 = vmatpush1.msra.mxu0 %v689
      %821 = vmatprep.subr.mxu0 0.0
      %822 = vmatpush1.msra.mxu0 %v690
      %823 = vmatprep.subr.mxu0 0.0
      %824 = vmatpush1.msra.mxu0 %v691
      %825 = vmatprep.subr.mxu0 0.0
      %826 = vmatpush1.msra.mxu0 %v692
      %827 = vmatprep.subr.mxu0 0.0
      %828 = vmatpush1.msra.mxu0 %v693
      %829 = vmatprep.subr.mxu0 0.0
      %830 = vmatpush1.msra.mxu0 %v694
      %831 = vmatprep.subr.mxu0 0.0
      %832 = vmatpush1.msra.mxu0 %v695
      %833 = vmatprep.subr.mxu0 0.0
      %834 = vmatpush1.msra.mxu0 %v696
      %835 = vmatprep.subr.mxu0 0.0
      %836 = vmatpush1.msra.mxu0 %v697
      %837 = vmatprep.subr.mxu0 0.0
      %838 = vmatpush1.msra.mxu0 %v698
      %839 = vmatprep.subr.mxu0 0.0
      %840 = vmatpush1.msra.mxu0 %v699
      %841 = vmatprep.subr.mxu0 0.0
      %842 = vmatpush1.msra.mxu0 %v700
      %843 = vmatprep.subr.mxu0 0.0
      %844 = vmatpush1.msra.mxu0 %v701
      %845 = vmatprep.subr.mxu0 0.0
      %846 = vmatpush1.msra.mxu0 %v702
      %847 = vmatprep.subr.mxu0 0.0
      %848 = vmatpush1.msra.mxu0 %v703
      %849 = vmatprep.subr.mxu0 0.0
      %850 = vmatpush1.msra.mxu0 %v704
      %851 = vmatprep.subr.mxu0 0.0
      %852 = vmatpush1.msra.mxu0 %v705
      %853 = vmatprep.subr.mxu0 0.0
      %854 = vmatpush1.msra.mxu0 %v706
      %855 = vmatprep.subr.mxu0 0.0
      %856 = vmatpush1.msra.mxu0 %v707
      %857 = vmatprep.subr.mxu0 0.0
      %858 = vmatpush1.msra.mxu0 %v708
      %859 = vmatprep.subr.mxu0 0.0
      %860 = vmatpush1.msra.mxu0 %v709
      %861 = vmatprep.subr.mxu0 0.0
      %862 = vmatpush1.msra.mxu0 %v710
      %863 = vmatprep.subr.mxu0 0.0
      %864 = vmatpush1.msra.mxu0 %v711
      %865 = vmatprep.subr.mxu0 0.0
      %866 = vmatpush1.msra.mxu0 %v712
      %867 = vmatprep.subr.mxu0 0.0
      %868 = vmatpush1.msra.mxu0 %v713
      %869 = vmatprep.subr.mxu0 0.0
      %870 = vmatpush1.msra.mxu0 %v714
      %871 = vmatprep.subr.mxu0 0.0
      %872 = vmatpush1.msra.mxu0 %v715
      %873 = vmatprep.subr.mxu0 0.0
      %874 = vmatpush1.msra.mxu0 %v716
      %875 = vmatprep.mubr.f32.mxu0 %v731
      %876 = vmatmul.mubr.f32.gmra.mrb[0].mxu0 %v651
      %v877 = vpop.f32.mrb[0].mxu0
      %v878 = vadd.f32 %v808, %v877
      %v879 = vpop.f32.mrb[0].mxu0
      %880 = vdwg.mxu0
      %881 = vmatprep.subr.mxu0 0.0
      %882 = vmatpush1.msra.mxu0 %v717
      %883 = vmatprep.subr.mxu0 0.0
      %884 = vmatpush1.msra.mxu0 %v718
      %885 = vmatprep.subr.mxu0 0.0
      %886 = vmatpush1.msra.mxu0 %v719
      %887 = vmatprep.subr.mxu0 0.0
      %888 = vmatpush1.msra.mxu0 %v720
      %889 = vmatprep.subr.mxu0 0.0
      %890 = vmatpush1.msra.mxu0 %v721
      %891 = vmatprep.subr.mxu0 0.0
      %892 = vmatpush1.msra.mxu0 %v722
      %893 = vmatprep.subr.mxu0 0.0
      %894 = vmatpush1.msra.mxu0 %v723
      %895 = vmatprep.subr.mxu0 0.0
      %896 = vmatpush1.msra.mxu0 %v724
      %897 = vmatprep.subr.mxu0 0.0
      %898 = vmatpush1.msra.mxu0 %v725
      %899 = vmatprep.subr.mxu0 0.0
      %900 = vmatpush1.msra.mxu0 %v739
      %901 = vmatprep.subr.mxu0 0.0
      %902 = vmatpush1.msra.mxu0 0.0
      %903 = vmatprep.subr.mxu0 0.0
      %904 = vmatpush1.msra.mxu0 0.0
      %905 = vmatprep.subr.mxu0 0.0
      %906 = vmatpush1.msra.mxu0 0.0
      %907 = vmatprep.subr.mxu0 0.0
      %908 = vmatpush1.msra.mxu0 0.0
      %909 = vmatprep.subr.mxu0 0.0
      %910 = vmatpush1.msra.mxu0 0.0
      %911 = vmatprep.subr.mxu0 0.0
      %912 = vmatpush1.msra.mxu0 0.0
      %913 = vmatprep.subr.mxu0 0.0
      %914 = vmatpush1.msra.mxu0 0.0
      %915 = vmatprep.subr.mxu0 0.0
      %916 = vmatpush1.msra.mxu0 0.0
      %917 = vmatprep.subr.mxu0 0.0
      %918 = vmatpush1.msra.mxu0 0.0
      %919 = vmatprep.subr.mxu0 0.0
      %920 = vmatpush1.msra.mxu0 0.0
      %921 = vmatprep.subr.mxu0 0.0
      %922 = vmatpush1.msra.mxu0 0.0
      %923 = vmatprep.subr.mxu0 0.0
      %924 = vmatpush1.msra.mxu0 0.0
      %925 = vmatprep.subr.mxu0 0.0
      %926 = vmatpush1.msra.mxu0 0.0
      %927 = vmatprep.subr.mxu0 0.0
      %928 = vmatpush1.msra.mxu0 0.0
      %929 = vmatprep.subr.mxu0 0.0
      %930 = vmatpush1.msra.mxu0 0.0
      %931 = vmatprep.subr.mxu0 0.0
      %932 = vmatpush1.msra.mxu0 0.0
      %933 = vmatprep.subr.mxu0 0.0
      %934 = vmatpush1.msra.mxu0 0.0
      %935 = vmatprep.subr.mxu0 0.0
      %936 = vmatpush1.msra.mxu0 0.0
      %937 = vmatprep.subr.mxu0 0.0
      %938 = vmatpush1.msra.mxu0 0.0
      %939 = vmatprep.subr.mxu0 0.0
      %940 = vmatpush1.msra.mxu0 0.0
      %941 = vmatprep.subr.mxu0 0.0
      %942 = vmatpush1.msra.mxu0 0.0
      %943 = vmatprep.subr.mxu0 0.0
      %944 = vmatpush1.msra.mxu0 0.0
      %945 = vmatprep.mubr.f32.mxu0 0.0
      %946 = vmatmul.mubr.f32.gmra.mrb[0].mxu0 %v735
      %v947 = vpop.f32.mrb[0].mxu0
      %v948 = vadd.f32 %v878, %v947
      %v949 = vpop.f32.mrb[0].mxu0
      %950 = vdwg.mxu0
      %v951 = vld [vmem:[%s4] sm:$0x7f]
      %v952 = vlaneseq
      %v953 = vshrl.u32 %v952, 7
      %v954 = vlaneseq
      %v955 = vand.u32 %v954, 127
      %v956 = vadd.s32 %v955, 1
      %vm957 = vcmp.eq.s32.totalorder %v953, %v956
      %v958 = vsel %vm957, 1, 0
      %v959 = vcvt.s32.f32 %v958
      %vm960 = vcmask 31744
      %v962 = vsel %vm960, %v959, 0
      %v965 = vsel %vm737, %v948, 0
      %967 = vmatprep.subr.mxu0 0.0
      %968 = vmatpush1.msra.mxu0 %v965
      %969 = vmatprep.subr.mxu0 0.0
      %970 = vmatpush1.msra.mxu0 0.0
      %971 = vmatprep.subr.mxu0 0.0
      %972 = vmatpush1.msra.mxu0 0.0
      %973 = vmatprep.subr.mxu0 0.0
      %974 = vmatpush1.msra.mxu0 0.0
      %975 = vmatprep.subr.mxu0 0.0
      %976 = vmatpush1.msra.mxu0 0.0
      %977 = vmatprep.subr.mxu0 0.0
      %978 = vmatpush1.msra.mxu0 0.0
      %979 = vmatprep.subr.mxu0 0.0
      %980 = vmatpush1.msra.mxu0 0.0
      %981 = vmatprep.subr.mxu0 0.0
      %982 = vmatpush1.msra.mxu0 0.0
      %983 = vmatprep.subr.mxu0 0.0
      %984 = vmatpush1.msra.mxu0 0.0
      %985 = vmatprep.subr.mxu0 0.0
      %986 = vmatpush1.msra.mxu0 0.0
      %987 = vmatprep.subr.mxu0 0.0
      %988 = vmatpush1.msra.mxu0 0.0
      %989 = vmatprep.subr.mxu0 0.0
      %990 = vmatpush1.msra.mxu0 0.0
      %991 = vmatprep.subr.mxu0 0.0
      %992 = vmatpush1.msra.mxu0 0.0
      %993 = vmatprep.subr.mxu0 0.0
      %994 = vmatpush1.msra.mxu0 0.0
      %995 = vmatprep.subr.mxu0 0.0
      %996 = vmatpush1.msra.mxu0 0.0
      %997 = vmatprep.subr.mxu0 0.0
      %998 = vmatpush1.msra.mxu0 0.0
      %999 = vmatprep.subr.mxu0 0.0
      %1000 = vmatpush1.msra.mxu0 0.0
      %1001 = vmatprep.subr.mxu0 0.0
      %1002 = vmatpush1.msra.mxu0 0.0
      %1003 = vmatprep.subr.mxu0 0.0
      %1004 = vmatpush1.msra.mxu0 0.0
      %1005 = vmatprep.subr.mxu0 0.0
      %1006 = vmatpush1.msra.mxu0 0.0
      %1007 = vmatprep.subr.mxu0 0.0
      %1008 = vmatpush1.msra.mxu0 0.0
      %1009 = vmatprep.subr.mxu0 0.0
      %1010 = vmatpush1.msra.mxu0 0.0
      %1011 = vmatprep.subr.mxu0 0.0
      %1012 = vmatpush1.msra.mxu0 0.0
      %1013 = vmatprep.subr.mxu0 0.0
      %1014 = vmatpush1.msra.mxu0 0.0
      %1015 = vmatprep.subr.mxu0 0.0
      %1016 = vmatpush1.msra.mxu0 0.0
      %1017 = vmatprep.subr.mxu0 0.0
      %1018 = vmatpush1.msra.mxu0 0.0
      %1019 = vmatprep.subr.mxu0 0.0
      %1020 = vmatpush1.msra.mxu0 0.0
      %1021 = vmatprep.subr.mxu0 0.0
      %1022 = vmatpush1.msra.mxu0 0.0
      %1023 = vmatprep.subr.mxu0 0.0
      %1024 = vmatpush1.msra.mxu0 0.0
      %1025 = vmatprep.subr.mxu0 0.0
      %1026 = vmatpush1.msra.mxu0 0.0
      %1027 = vmatprep.subr.mxu0 0.0
      %1028 = vmatpush1.msra.mxu0 0.0
      %1029 = vmatprep.subr.mxu0 0.0
      %1030 = vmatpush1.msra.mxu0 0.0
      %1031 = vmatprep.mubr.f32.mxu0 0.0
      %1032 = vmatmul.mubr.f32.gmra.mrb[0].mxu0 %v962
      %v1033 = vpop.f32.mrb[0].mxu0
      %v1034 = vadd.f32 0.0, %v1033
      %v1035 = vpop.f32.mrb[0].mxu0
      %1036 = vdwg.mxu0
      %v1037 = vadd.f32 %v951, %v1034
      %vm1038 = vcmask 258048
      %v1039 = vsel %vm1038, %v1037, 0.0
      %1040 = vadd.xlane.f32.xlu0 %v1039
      %v1041 = vpop.xlane.xlu0 %1040
      %v1042 = vrcp.pop 32.0
      %v1043 = vmul.f32 %v1041, %v1042
      %v1044 = vsub.f32 %v1037, %v1043
      %v1045 = vmul.f32 %v1044, %v1044
      %v1046 = vsel %vm1038, %v1045, 0.0
      %1047 = vadd.xlane.f32.xlu0 %v1046
      %v1048 = vpop.xlane.xlu0 %1047
      %v1049 = vmul.f32 %v1048, %v1042
      %v1050 = vadd.f32 %v1049, 1e-05
      %v1051 = vrsqrt.pop %v1050
      %v1052 = vmul.f32 %v1044, %v1051
      %v1053 = vlaneseq
      %v1054 = vshrl.u32 %v1053, 7
      %v1055 = vsub.s32 5, %v1054
      %v1056 = vrot.slane %v951, %v1055
      %v1057 = vmul.f32 %v1052, %v1056
      %v1058 = vlaneseq
      %v1059 = vshrl.u32 %v1058, 7
      %v1060 = vsub.s32 6, %v1059
      %v1061 = vrot.slane %v951, %v1060
      %v1062 = vadd.f32 %v1057, %v1061
      %v1063 = vld [vmem:[%s5] sm:$0xff]
      %v1064 = vld [vmem:[%s5 + $0x8] sm:$0xff]
      %v1065 = vld [vmem:[%s5 + $0x10] sm:$0xff]
      %v1066 = vld [vmem:[%s5 + $0x18] sm:$0xff]
      %v1067 = vld [vmem:[%s6] sm:$0xff]
      %v1068 = vld [vmem:[%s6 + $0x8] sm:$0xff]
      %v1069 = vld [vmem:[%s6 + $0x10] sm:$0xff]
      %v1070 = vld [vmem:[%s6 + $0x18] sm:$0xff]
      %v1071 = vld [vmem:[%s7] sm:$0xff]
      %v1072 = vld [vmem:[%s7 + $0x8] sm:$0xff]
      %v1073 = vld [vmem:[%s7 + $0x10] sm:$0xff]
      %v1074 = vld [vmem:[%s7 + $0x18] sm:$0xff]
      %v1075 = vld [vmem:[%s8] sm:$0xff]
      %v1076 = vld [vmem:[%s8 + $0x8] sm:$0xff]
      %v1077 = vld [vmem:[%s8 + $0x10] sm:$0xff]
      %v1078 = vld [vmem:[%s8 + $0x18] sm:$0xff]
      %v1079 = vld [vmem:[%s8 + $0x20] sm:$0xff]
      %v1080 = vld [vmem:[%s8 + $0x28] sm:$0xff]
      %v1081 = vld [vmem:[%s8 + $0x30] sm:$0xff]
      %v1082 = vld [vmem:[%s8 + $0x38] sm:$0xff]
      %v1083 = vld [vmem:[%s9] sm:$0xff]
      %v1084 = vsel %vm1038, %v1062, 0.0
      %1085 = vadd.xlane.f32.xlu0 %v1084
      %v1086 = vpop.xlane.xlu0 %1085
      %v1087 = vmul.f32 %v1086, %v1042
      %v1088 = vsub.f32 %v1062, %v1087
      %v1089 = vmul.f32 %v1088, %v1088
      %v1090 = vsel %vm1038, %v1089, 0.0
      %1091 = vadd.xlane.f32.xlu0 %v1090
      %v1092 = vpop.xlane.xlu0 %1091
      %v1093 = vmul.f32 %v1092, %v1042
      %v1094 = vadd.f32 %v1093, 1e-05
      %v1095 = vrsqrt.pop %v1094
      %v1096 = vmul.f32 %v1088, %v1095
      %v1097 = vlaneseq
      %v1098 = vshrl.u32 %v1097, 7
      %v1099 = vsub.s32 0, %v1098
      %v1100 = vrot.slane %v1083, %v1099
      %v1101 = vmul.f32 %v1096, %v1100
      %v1102 = vlaneseq
      %v1103 = vshrl.u32 %v1102, 7
      %v1104 = vsub.s32 1, %v1103
      %v1105 = vrot.slane %v1083, %v1104
      %v1106 = vadd.f32 %v1101, %v1105
      %v1107 = vlaneseq
      %v1108 = vshrl.u32 %v1107, 7
      %v1109 = vsub.s32 2, %v1108
      %v1110 = vrot.slane %v1083, %v1109
      %vm1111 = vcmask 261120
      %v1113 = vsel %vm1111, %v1106, 0
      %1115 = vmatprep.subr.mxu0 0.0
      %1116 = vmatpush1.msra.mxu0 %v1063
      %1117 = vmatprep.subr.mxu0 0.0
      %1118 = vmatpush1.msra.mxu0 %v1064
      %1119 = vmatprep.subr.mxu0 0.0
      %1120 = vmatpush1.msra.mxu0 %v1065
      %1121 = vmatprep.subr.mxu0 0.0
      %1122 = vmatpush1.msra.mxu0 %v1066
      %1123 = vmatprep.subr.mxu0 0.0
      %1124 = vmatpush1.msra.mxu0 0.0
      %1125 = vmatprep.subr.mxu0 0.0
      %1126 = vmatpush1.msra.mxu0 0.0
      %1127 = vmatprep.subr.mxu0 0.0
      %1128 = vmatpush1.msra.mxu0 0.0
      %1129 = vmatprep.subr.mxu0 0.0
      %1130 = vmatpush1.msra.mxu0 0.0
      %1131 = vmatprep.subr.mxu0 0.0
      %1132 = vmatpush1.msra.mxu0 0.0
      %1133 = vmatprep.subr.mxu0 0.0
      %1134 = vmatpush1.msra.mxu0 0.0
      %1135 = vmatprep.subr.mxu0 0.0
      %1136 = vmatpush1.msra.mxu0 0.0
      %1137 = vmatprep.subr.mxu0 0.0
      %1138 = vmatpush1.msra.mxu0 0.0
      %1139 = vmatprep.subr.mxu0 0.0
      %1140 = vmatpush1.msra.mxu0 0.0
      %1141 = vmatprep.subr.mxu0 0.0
      %1142 = vmatpush1.msra.mxu0 0.0
      %1143 = vmatprep.subr.mxu0 0.0
      %1144 = vmatpush1.msra.mxu0 0.0
      %1145 = vmatprep.subr.mxu0 0.0
      %1146 = vmatpush1.msra.mxu0 0.0
      %1147 = vmatprep.subr.mxu0 0.0
      %1148 = vmatpush1.msra.mxu0 0.0
      %1149 = vmatprep.subr.mxu0 0.0
      %1150 = vmatpush1.msra.mxu0 0.0
      %1151 = vmatprep.subr.mxu0 0.0
      %1152 = vmatpush1.msra.mxu0 0.0
      %1153 = vmatprep.subr.mxu0 0.0
      %1154 = vmatpush1.msra.mxu0 0.0
      %1155 = vmatprep.subr.mxu0 0.0
      %1156 = vmatpush1.msra.mxu0 0.0
      %1157 = vmatprep.subr.mxu0 0.0
      %1158 = vmatpush1.msra.mxu0 0.0
      %1159 = vmatprep.subr.mxu0 0.0
      %1160 = vmatpush1.msra.mxu0 0.0
      %1161 = vmatprep.subr.mxu0 0.0
      %1162 = vmatpush1.msra.mxu0 0.0
      %1163 = vmatprep.subr.mxu0 0.0
      %1164 = vmatpush1.msra.mxu0 0.0
      %1165 = vmatprep.subr.mxu0 0.0
      %1166 = vmatpush1.msra.mxu0 0.0
      %1167 = vmatprep.subr.mxu0 0.0
      %1168 = vmatpush1.msra.mxu0 0.0
      %1169 = vmatprep.subr.mxu0 0.0
      %1170 = vmatpush1.msra.mxu0 0.0
      %1171 = vmatprep.subr.mxu0 0.0
      %1172 = vmatpush1.msra.mxu0 0.0
      %1173 = vmatprep.subr.mxu0 0.0
      %1174 = vmatpush1.msra.mxu0 0.0
      %1175 = vmatprep.subr.mxu0 0.0
      %1176 = vmatpush1.msra.mxu0 0.0
      %1177 = vmatprep.subr.mxu0 0.0
      %1178 = vmatpush1.msra.mxu0 0.0
      %1179 = vmatprep.mubr.f32.mxu0 0.0
      %1180 = vmatmul.mubr.f32.gmra.mrb[0].mxu0 %v1113
      %v1181 = vpop.f32.mrb[0].mxu0
      %v1182 = vadd.f32 %v1110, %v1181
      %v1183 = vpop.f32.mrb[0].mxu0
      %1184 = vdwg.mxu0
      %1186 = vrot.lane.b32.xlu0 %v1182, 96
      %v1187 = vpop.permute.xlu0 %1186
      %vm1188 = vcmask 64512
      %v1189 = vsel %vm1188, %v1182, 0
      %v1191 = vsel %vm1188, %v1187, 0
      %1193 = vmatprep.subr.mxu0 0.0
      %1194 = vmatpush1.xpose.msra.mxu0 %v1191
      %1195 = vmatprep.subr.mxu0 0.0
      %1196 = vmatpush1.xpose.msra.mxu0 0.0
      %1197 = vmatprep.subr.mxu0 0.0
      %1198 = vmatpush1.xpose.msra.mxu0 0.0
      %1199 = vmatprep.subr.mxu0 0.0
      %1200 = vmatpush1.xpose.msra.mxu0 0.0
      %1201 = vmatprep.subr.mxu0 0.0
      %1202 = vmatpush1.xpose.msra.mxu0 0.0
      %1203 = vmatprep.subr.mxu0 0.0
      %1204 = vmatpush1.xpose.msra.mxu0 0.0
      %1205 = vmatprep.subr.mxu0 0.0
      %1206 = vmatpush1.xpose.msra.mxu0 0.0
      %1207 = vmatprep.subr.mxu0 0.0
      %1208 = vmatpush1.xpose.msra.mxu0 0.0
      %1209 = vmatprep.subr.mxu0 0.0
      %1210 = vmatpush1.xpose.msra.mxu0 0.0
      %1211 = vmatprep.subr.mxu0 0.0
      %1212 = vmatpush1.xpose.msra.mxu0 0.0
      %1213 = vmatprep.subr.mxu0 0.0
      %1214 = vmatpush1.xpose.msra.mxu0 0.0
      %1215 = vmatprep.subr.mxu0 0.0
      %1216 = vmatpush1.xpose.msra.mxu0 0.0
      %1217 = vmatprep.subr.mxu0 0.0
      %1218 = vmatpush1.xpose.msra.mxu0 0.0
      %1219 = vmatprep.subr.mxu0 0.0
      %1220 = vmatpush1.xpose.msra.mxu0 0.0
      %1221 = vmatprep.subr.mxu0 0.0
      %1222 = vmatpush1.xpose.msra.mxu0 0.0
      %1223 = vmatprep.subr.mxu0 0.0
      %1224 = vmatpush1.xpose.msra.mxu0 0.0
      %1225 = vmatprep.subr.mxu0 0.0
      %1226 = vmatpush1.xpose.msra.mxu0 0.0
      %1227 = vmatprep.subr.mxu0 0.0
      %1228 = vmatpush1.xpose.msra.mxu0 0.0
      %1229 = vmatprep.subr.mxu0 0.0
      %1230 = vmatpush1.xpose.msra.mxu0 0.0
      %1231 = vmatprep.subr.mxu0 0.0
      %1232 = vmatpush1.xpose.msra.mxu0 0.0
      %1233 = vmatprep.subr.mxu0 0.0
      %1234 = vmatpush1.xpose.msra.mxu0 0.0
      %1235 = vmatprep.subr.mxu0 0.0
      %1236 = vmatpush1.xpose.msra.mxu0 0.0
      %1237 = vmatprep.subr.mxu0 0.0
      %1238 = vmatpush1.xpose.msra.mxu0 0.0
      %1239 = vmatprep.subr.mxu0 0.0
      %1240 = vmatpush1.xpose.msra.mxu0 0.0
      %1241 = vmatprep.subr.mxu0 0.0
      %1242 = vmatpush1.xpose.msra.mxu0 0.0
      %1243 = vmatprep.subr.mxu0 0.0
      %1244 = vmatpush1.xpose.msra.mxu0 0.0
      %1245 = vmatprep.subr.mxu0 0.0
      %1246 = vmatpush1.xpose.msra.mxu0 0.0
      %1247 = vmatprep.subr.mxu0 0.0
      %1248 = vmatpush1.xpose.msra.mxu0 0.0
      %1249 = vmatprep.subr.mxu0 0.0
      %1250 = vmatpush1.xpose.msra.mxu0 0.0
      %1251 = vmatprep.subr.mxu0 0.0
      %1252 = vmatpush1.xpose.msra.mxu0 0.0
      %1253 = vmatprep.subr.mxu0 0.0
      %1254 = vmatpush1.xpose.msra.mxu0 0.0
      %1255 = vmatprep.subr.mxu0 0.0
      %1256 = vmatpush1.xpose.msra.mxu0 0.0
      %1257 = vmatprep.mubr.f32.mxu0 0.0
      %1258 = vmatmul.mubr.f32.gmra.mrb[0].mxu0 %v1189
      %v1259 = vpop.f32.mrb[0].mxu0
      %v1260 = vadd.f32 0.0, %v1259
      %v1261 = vpop.f32.mrb[0].mxu0
      %1262 = vdwg.mxu0
      %v1263 = vmul.f32 %v1260, 0.35355338
      %vm1264 = vcmask 36864
      %v1265 = vsel %vm1264, %v1263, -inf
      %1266 = vmax.xlane.f32.xlu0 %v1265
      %v1267 = vpop.xlane.xlu0 %1266
      %v1268 = vsub.f32 %v1263, %v1267
      %v1269 = vmul.f32 %v1268, 1.442695
      %v1270 = vpow.pop %v1269
      %v1271 = vsel %vm1264, %v1270, 0.0
      %1272 = vadd.xlane.f32.xlu0 %v1271
      %v1273 = vpop.xlane.xlu0 %1272
      %v1274 = vrcp.pop %v1273
      %v1275 = vmul.f32 %v1270, %v1274
      %1276 = vrot.lane.b32.xlu0 %v1182, 64
      %v1277 = vpop.permute.xlu0 %1276
      %vm1278 = vcmask 39936
      %v1280 = vsel %vm1278, %v1275, 0
      %vm1282 = vcmask 1044480
      %v1283 = vsel %vm1282, %v1277, 0
      %1285 = vmatprep.subr.mxu0 0.0
      %1286 = vmatpush1.msra.mxu0 %v1283
      %1287 = vmatprep.subr.mxu0 0.0
      %1288 = vmatpush1.msra.mxu0 0.0
      %1289 = vmatprep.subr.mxu0 0.0
      %1290 = vmatpush1.msra.mxu0 0.0
      %1291 = vmatprep.subr.mxu0 0.0
      %1292 = vmatpush1.msra.mxu0 0.0
      %1293 = vmatprep.subr.mxu0 0.0
      %1294 = vmatpush1.msra.mxu0 0.0
      %1295 = vmatprep.subr.mxu0 0.0
      %1296 = vmatpush1.msra.mxu0 0.0
      %1297 = vmatprep.subr.mxu0 0.0
      %1298 = vmatpush1.msra.mxu0 0.0
      %1299 = vmatprep.subr.mxu0 0.0
      %1300 = vmatpush1.msra.mxu0 0.0
      %1301 = vmatprep.subr.mxu0 0.0
      %1302 = vmatpush1.msra.mxu0 0.0
      %1303 = vmatprep.subr.mxu0 0.0
      %1304 = vmatpush1.msra.mxu0 0.0
      %1305 = vmatprep.subr.mxu0 0.0
      %1306 = vmatpush1.msra.mxu0 0.0
      %1307 = vmatprep.subr.mxu0 0.0
      %1308 = vmatpush1.msra.mxu0 0.0
      %1309 = vmatprep.subr.mxu0 0.0
      %1310 = vmatpush1.msra.mxu0 0.0
      %1311 = vmatprep.subr.mxu0 0.0
      %1312 = vmatpush1.msra.mxu0 0.0
      %1313 = vmatprep.subr.mxu0 0.0
      %1314 = vmatpush1.msra.mxu0 0.0
      %1315 = vmatprep.subr.mxu0 0.0
      %1316 = vmatpush1.msra.mxu0 0.0
      %1317 = vmatprep.subr.mxu0 0.0
      %1318 = vmatpush1.msra.mxu0 0.0
      %1319 = vmatprep.subr.mxu0 0.0
      %1320 = vmatpush1.msra.mxu0 0.0
      %1321 = vmatprep.subr.mxu0 0.0
      %1322 = vmatpush1.msra.mxu0 0.0
      %1323 = vmatprep.subr.mxu0 0.0
      %1324 = vmatpush1.msra.mxu0 0.0
      %1325 = vmatprep.subr.mxu0 0.0
      %1326 = vmatpush1.msra.mxu0 0.0
      %1327 = vmatprep.subr.mxu0 0.0
      %1328 = vmatpush1.msra.mxu0 0.0
      %1329 = vmatprep.subr.mxu0 0.0
      %1330 = vmatpush1.msra.mxu0 0.0
      %1331 = vmatprep.subr.mxu0 0.0
      %1332 = vmatpush1.msra.mxu0 0.0
      %1333 = vmatprep.subr.mxu0 0.0
      %1334 = vmatpush1.msra.mxu0 0.0
      %1335 = vmatprep.subr.mxu0 0.0
      %1336 = vmatpush1.msra.mxu0 0.0
      %1337 = vmatprep.subr.mxu0 0.0
      %1338 = vmatpush1.msra.mxu0 0.0
      %1339 = vmatprep.subr.mxu0 0.0
      %1340 = vmatpush1.msra.mxu0 0.0
      %1341 = vmatprep.subr.mxu0 0.0
      %1342 = vmatpush1.msra.mxu0 0.0
      %1343 = vmatprep.subr.mxu0 0.0
      %1344 = vmatpush1.msra.mxu0 0.0
      %1345 = vmatprep.subr.mxu0 0.0
      %1346 = vmatpush1.msra.mxu0 0.0
      %1347 = vmatprep.subr.mxu0 0.0
      %1348 = vmatpush1.msra.mxu0 0.0
      %1349 = vmatprep.mubr.f32.mxu0 0.0
      %1350 = vmatmul.mubr.f32.gmra.mrb[0].mxu0 %v1280
      %v1351 = vpop.f32.mrb[0].mxu0
      %v1352 = vadd.f32 0.0, %v1351
      %v1353 = vpop.f32.mrb[0].mxu0
      %1354 = vdwg.mxu0
      %1355 = vrot.lane.b32.xlu0 %v1182, 120
      %v1356 = vpop.permute.xlu0 %1355
      %1357 = vrot.lane.b32.xlu0 %v1182, 88
      %v1358 = vpop.permute.xlu0 %1357
      %v1359 = vsel %vm1188, %v1356, 0
      %v1361 = vsel %vm1188, %v1358, 0
      %1363 = vmatprep.subr.mxu0 0.0
      %1364 = vmatpush1.xpose.msra.mxu0 %v1361
      %1365 = vmatprep.subr.mxu0 0.0
      %1366 = vmatpush1.xpose.msra.mxu0 0.0
      %1367 = vmatprep.subr.mxu0 0.0
      %1368 = vmatpush1.xpose.msra.mxu0 0.0
      %1369 = vmatprep.subr.mxu0 0.0
      %1370 = vmatpush1.xpose.msra.mxu0 0.0
      %1371 = vmatprep.subr.mxu0 0.0
      %1372 = vmatpush1.xpose.msra.mxu0 0.0
      %1373 = vmatprep.subr.mxu0 0.0
      %1374 = vmatpush1.xpose.msra.mxu0 0.0
      %1375 = vmatprep.subr.mxu0 0.0
      %1376 = vmatpush1.xpose.msra.mxu0 0.0
      %1377 = vmatprep.subr.mxu0 0.0
      %1378 = vmatpush1.xpose.msra.mxu0 0.0
      %1379 = vmatprep.subr.mxu0 0.0
      %1380 = vmatpush1.xpose.msra.mxu0 0.0
      %1381 = vmatprep.subr.mxu0 0.0
      %1382 = vmatpush1.xpose.msra.mxu0 0.0
      %1383 = vmatprep.subr.mxu0 0.0
      %1384 = vmatpush1.xpose.msra.mxu0 0.0
      %1385 = vmatprep.subr.mxu0 0.0
      %1386 = vmatpush1.xpose.msra.mxu0 0.0
      %1387 = vmatprep.subr.mxu0 0.0
      %1388 = vmatpush1.xpose.msra.mxu0 0.0
      %1389 = vmatprep.subr.mxu0 0.0
      %1390 = vmatpush1.xpose.msra.mxu0 0.0
      %1391 = vmatprep.subr.mxu0 0.0
      %1392 = vmatpush1.xpose.msra.mxu0 0.0
      %1393 = vmatprep.subr.mxu0 0.0
      %1394 = vmatpush1.xpose.msra.mxu0 0.0
      %1395 = vmatprep.subr.mxu0 0.0
      %1396 = vmatpush1.xpose.msra.mxu0 0.0
      %1397 = vmatprep.subr.mxu0 0.0
      %1398 = vmatpush1.xpose.msra.mxu0 0.0
      %1399 = vmatprep.subr.mxu0 0.0
      %1400 = vmatpush1.xpose.msra.mxu0 0.0
      %1401 = vmatprep.subr.mxu0 0.0
      %1402 = vmatpush1.xpose.msra.mxu0 0.0
      %1403 = vmatprep.subr.mxu0 0.0
      %1404 = vmatpush1.xpose.msra.mxu0 0.0
      %1405 = vmatprep.subr.mxu0 0.0
      %1406 = vmatpush1.xpose.msra.mxu0 0.0
      %1407 = vmatprep.subr.mxu0 0.0
      %1408 = vmatpush1.xpose.msra.mxu0 0.0
      %1409 = vmatprep.subr.mxu0 0.0
      %1410 = vmatpush1.xpose.msra.mxu0 0.0
      %1411 = vmatprep.subr.mxu0 0.0
      %1412 = vmatpush1.xpose.msra.mxu0 0.0
      %1413 = vmatprep.subr.mxu0 0.0
      %1414 = vmatpush1.xpose.msra.mxu0 0.0
      %1415 = vmatprep.subr.mxu0 0.0
      %1416 = vmatpush1.xpose.msra.mxu0 0.0
      %1417 = vmatprep.subr.mxu0 0.0
      %1418 = vmatpush1.xpose.msra.mxu0 0.0
      %1419 = vmatprep.subr.mxu0 0.0
      %1420 = vmatpush1.xpose.msra.mxu0 0.0
      %1421 = vmatprep.subr.mxu0 0.0
      %1422 = vmatpush1.xpose.msra.mxu0 0.0
      %1423 = vmatprep.subr.mxu0 0.0
      %1424 = vmatpush1.xpose.msra.mxu0 0.0
      %1425 = vmatprep.subr.mxu0 0.0
      %1426 = vmatpush1.xpose.msra.mxu0 0.0
      %1427 = vmatprep.mubr.f32.mxu0 0.0
      %1428 = vmatmul.mubr.f32.gmra.mrb[0].mxu0 %v1359
      %v1429 = vpop.f32.mrb[0].mxu0
      %v1430 = vadd.f32 0.0, %v1429
      %v1431 = vpop.f32.mrb[0].mxu0
      %1432 = vdwg.mxu0
      %v1433 = vmul.f32 %v1430, 0.35355338
      %v1434 = vsel %vm1264, %v1433, -inf
      %1435 = vmax.xlane.f32.xlu0 %v1434
      %v1436 = vpop.xlane.xlu0 %1435
      %v1437 = vsub.f32 %v1433, %v1436
      %v1438 = vmul.f32 %v1437, 1.442695
      %v1439 = vpow.pop %v1438
      %v1440 = vsel %vm1264, %v1439, 0.0
      %1441 = vadd.xlane.f32.xlu0 %v1440
      %v1442 = vpop.xlane.xlu0 %1441
      %v1443 = vrcp.pop %v1442
      %v1444 = vmul.f32 %v1439, %v1443
      %1445 = vrot.lane.b32.xlu0 %v1182, 56
      %v1446 = vpop.permute.xlu0 %1445
      %v1448 = vsel %vm1278, %v1444, 0
      %v1450 = vsel %vm1282, %v1446, 0
      %1452 = vmatprep.subr.mxu0 0.0
      %1453 = vmatpush1.msra.mxu0 %v1450
      %1454 = vmatprep.subr.mxu0 0.0
      %1455 = vmatpush1.msra.mxu0 0.0
      %1456 = vmatprep.subr.mxu0 0.0
      %1457 = vmatpush1.msra.mxu0 0.0
      %1458 = vmatprep.subr.mxu0 0.0
      %1459 = vmatpush1.msra.mxu0 0.0
      %1460 = vmatprep.subr.mxu0 0.0
      %1461 = vmatpush1.msra.mxu0 0.0
      %1462 = vmatprep.subr.mxu0 0.0
      %1463 = vmatpush1.msra.mxu0 0.0
      %1464 = vmatprep.subr.mxu0 0.0
      %1465 = vmatpush1.msra.mxu0 0.0
      %1466 = vmatprep.subr.mxu0 0.0
      %1467 = vmatpush1.msra.mxu0 0.0
      %1468 = vmatprep.subr.mxu0 0.0
      %1469 = vmatpush1.msra.mxu0 0.0
      %1470 = vmatprep.subr.mxu0 0.0
      %1471 = vmatpush1.msra.mxu0 0.0
      %1472 = vmatprep.subr.mxu0 0.0
      %1473 = vmatpush1.msra.mxu0 0.0
      %1474 = vmatprep.subr.mxu0 0.0
      %1475 = vmatpush1.msra.mxu0 0.0
      %1476 = vmatprep.subr.mxu0 0.0
      %1477 = vmatpush1.msra.mxu0 0.0
      %1478 = vmatprep.subr.mxu0 0.0
      %1479 = vmatpush1.msra.mxu0 0.0
      %1480 = vmatprep.subr.mxu0 0.0
      %1481 = vmatpush1.msra.mxu0 0.0
      %1482 = vmatprep.subr.mxu0 0.0
      %1483 = vmatpush1.msra.mxu0 0.0
      %1484 = vmatprep.subr.mxu0 0.0
      %1485 = vmatpush1.msra.mxu0 0.0
      %1486 = vmatprep.subr.mxu0 0.0
      %1487 = vmatpush1.msra.mxu0 0.0
      %1488 = vmatprep.subr.mxu0 0.0
      %1489 = vmatpush1.msra.mxu0 0.0
      %1490 = vmatprep.subr.mxu0 0.0
      %1491 = vmatpush1.msra.mxu0 0.0
      %1492 = vmatprep.subr.mxu0 0.0
      %1493 = vmatpush1.msra.mxu0 0.0
      %1494 = vmatprep.subr.mxu0 0.0
      %1495 = vmatpush1.msra.mxu0 0.0
      %1496 = vmatprep.subr.mxu0 0.0
      %1497 = vmatpush1.msra.mxu0 0.0
      %1498 = vmatprep.subr.mxu0 0.0
      %1499 = vmatpush1.msra.mxu0 0.0
      %1500 = vmatprep.subr.mxu0 0.0
      %1501 = vmatpush1.msra.mxu0 0.0
      %1502 = vmatprep.subr.mxu0 0.0
      %1503 = vmatpush1.msra.mxu0 0.0
      %1504 = vmatprep.subr.mxu0 0.0
      %1505 = vmatpush1.msra.mxu0 0.0
      %1506 = vmatprep.subr.mxu0 0.0
      %1507 = vmatpush1.msra.mxu0 0.0
      %1508 = vmatprep.subr.mxu0 0.0
      %1509 = vmatpush1.msra.mxu0 0.0
      %1510 = vmatprep.subr.mxu0 0.0
      %1511 = vmatpush1.msra.mxu0 0.0
      %1512 = vmatprep.subr.mxu0 0.0
      %1513 = vmatpush1.msra.mxu0 0.0
      %1514 = vmatprep.subr.mxu0 0.0
      %1515 = vmatpush1.msra.mxu0 0.0
      %1516 = vmatprep.mubr.f32.mxu0 0.0
      %1517 = vmatmul.mubr.f32.gmra.mrb[0].mxu0 %v1448
      %v1518 = vpop.f32.mrb[0].mxu0
      %v1519 = vadd.f32 0.0, %v1518
      %v1520 = vpop.f32.mrb[0].mxu0
      %1521 = vdwg.mxu0
      %v1523 = vsel %vm1188, %v1519, 0
      %1525 = vmatprep.subr.mxu0 0.0
      %1526 = vmatpush1.msra.mxu0 %v1068
      %1527 = vmatprep.subr.mxu0 0.0
      %1528 = vmatpush1.msra.mxu0 0.0
      %1529 = vmatprep.subr.mxu0 0.0
      %1530 = vmatpush1.msra.mxu0 0.0
      %1531 = vmatprep.subr.mxu0 0.0
      %1532 = vmatpush1.msra.mxu0 0.0
      %1533 = vmatprep.subr.mxu0 0.0
      %1534 = vmatpush1.msra.mxu0 0.0
      %1535 = vmatprep.subr.mxu0 0.0
      %1536 = vmatpush1.msra.mxu0 0.0
      %1537 = vmatprep.subr.mxu0 0.0
      %1538 = vmatpush1.msra.mxu0 0.0
      %1539 = vmatprep.subr.mxu0 0.0
      %1540 = vmatpush1.msra.mxu0 0.0
      %1541 = vmatprep.subr.mxu0 0.0
      %1542 = vmatpush1.msra.mxu0 0.0
      %1543 = vmatprep.subr.mxu0 0.0
      %1544 = vmatpush1.msra.mxu0 0.0
      %1545 = vmatprep.subr.mxu0 0.0
      %1546 = vmatpush1.msra.mxu0 0.0
      %1547 = vmatprep.subr.mxu0 0.0
      %1548 = vmatpush1.msra.mxu0 0.0
      %1549 = vmatprep.subr.mxu0 0.0
      %1550 = vmatpush1.msra.mxu0 0.0
      %1551 = vmatprep.subr.mxu0 0.0
      %1552 = vmatpush1.msra.mxu0 0.0
      %1553 = vmatprep.subr.mxu0 0.0
      %1554 = vmatpush1.msra.mxu0 0.0
      %1555 = vmatprep.subr.mxu0 0.0
      %1556 = vmatpush1.msra.mxu0 0.0
      %1557 = vmatprep.subr.mxu0 0.0
      %1558 = vmatpush1.msra.mxu0 0.0
      %1559 = vmatprep.subr.mxu0 0.0
      %1560 = vmatpush1.msra.mxu0 0.0
      %1561 = vmatprep.subr.mxu0 0.0
      %1562 = vmatpush1.msra.mxu0 0.0
      %1563 = vmatprep.subr.mxu0 0.0
      %1564 = vmatpush1.msra.mxu0 0.0
      %1565 = vmatprep.subr.mxu0 0.0
      %1566 = vmatpush1.msra.mxu0 0.0
      %1567 = vmatprep.subr.mxu0 0.0
      %1568 = vmatpush1.msra.mxu0 0.0
      %1569 = vmatprep.subr.mxu0 0.0
      %1570 = vmatpush1.msra.mxu0 0.0
      %1571 = vmatprep.subr.mxu0 0.0
      %1572 = vmatpush1.msra.mxu0 0.0
      %1573 = vmatprep.subr.mxu0 0.0
      %1574 = vmatpush1.msra.mxu0 0.0
      %1575 = vmatprep.subr.mxu0 0.0
      %1576 = vmatpush1.msra.mxu0 0.0
      %1577 = vmatprep.subr.mxu0 0.0
      %1578 = vmatpush1.msra.mxu0 0.0
      %1579 = vmatprep.subr.mxu0 0.0
      %1580 = vmatpush1.msra.mxu0 0.0
      %1581 = vmatprep.subr.mxu0 0.0
      %1582 = vmatpush1.msra.mxu0 0.0
      %1583 = vmatprep.subr.mxu0 0.0
      %1584 = vmatpush1.msra.mxu0 0.0
      %1585 = vmatprep.subr.mxu0 0.0
      %1586 = vmatpush1.msra.mxu0 0.0
      %1587 = vmatprep.subr.mxu0 0.0
      %1588 = vmatpush1.msra.mxu0 0.0
      %1589 = vmatprep.mubr.f32.mxu0 0.0
      %1590 = vmatmul.mubr.f32.gmra.mrb[0].mxu0 %v1523
      %v1591 = vpop.f32.mrb[0].mxu0
      %v1592 = vadd.f32 0.0, %v1591
      %v1593 = vpop.f32.mrb[0].mxu0
      %1594 = vdwg.mxu0
      %v1596 = vsel %vm1188, %v1352, 0
      %1598 = vmatprep.subr.mxu0 0.0
      %1599 = vmatpush1.msra.mxu0 %v1067
      %1600 = vmatprep.subr.mxu0 0.0
      %1601 = vmatpush1.msra.mxu0 0.0
      %1602 = vmatprep.subr.mxu0 0.0
      %1603 = vmatpush1.msra.mxu0 0.0
      %1604 = vmatprep.subr.mxu0 0.0
      %1605 = vmatpush1.msra.mxu0 0.0
      %1606 = vmatprep.subr.mxu0 0.0
      %1607 = vmatpush1.msra.mxu0 0.0
      %1608 = vmatprep.subr.mxu0 0.0
      %1609 = vmatpush1.msra.mxu0 0.0
      %1610 = vmatprep.subr.mxu0 0.0
      %1611 = vmatpush1.msra.mxu0 0.0
      %1612 = vmatprep.subr.mxu0 0.0
      %1613 = vmatpush1.msra.mxu0 0.0
      %1614 = vmatprep.subr.mxu0 0.0
      %1615 = vmatpush1.msra.mxu0 0.0
      %1616 = vmatprep.subr.mxu0 0.0
      %1617 = vmatpush1.msra.mxu0 0.0
      %1618 = vmatprep.subr.mxu0 0.0
      %1619 = vmatpush1.msra.mxu0 0.0
      %1620 = vmatprep.subr.mxu0 0.0
      %1621 = vmatpush1.msra.mxu0 0.0
      %1622 = vmatprep.subr.mxu0 0.0
      %1623 = vmatpush1.msra.mxu0 0.0
      %1624 = vmatprep.subr.mxu0 0.0
      %1625 = vmatpush1.msra.mxu0 0.0
      %1626 = vmatprep.subr.mxu0 0.0
      %1627 = vmatpush1.msra.mxu0 0.0
      %1628 = vmatprep.subr.mxu0 0.0
      %1629 = vmatpush1.msra.mxu0 0.0
      %1630 = vmatprep.subr.mxu0 0.0
      %1631 = vmatpush1.msra.mxu0 0.0
      %1632 = vmatprep.subr.mxu0 0.0
      %1633 = vmatpush1.msra.mxu0 0.0
      %1634 = vmatprep.subr.mxu0 0.0
      %1635 = vmatpush1.msra.mxu0 0.0
      %1636 = vmatprep.subr.mxu0 0.0
      %1637 = vmatpush1.msra.mxu0 0.0
      %1638 = vmatprep.subr.mxu0 0.0
      %1639 = vmatpush1.msra.mxu0 0.0
      %1640 = vmatprep.subr.mxu0 0.0
      %1641 = vmatpush1.msra.mxu0 0.0
      %1642 = vmatprep.subr.mxu0 0.0
      %1643 = vmatpush1.msra.mxu0 0.0
      %1644 = vmatprep.subr.mxu0 0.0
      %1645 = vmatpush1.msra.mxu0 0.0
      %1646 = vmatprep.subr.mxu0 0.0
      %1647 = vmatpush1.msra.mxu0 0.0
      %1648 = vmatprep.subr.mxu0 0.0
      %1649 = vmatpush1.msra.mxu0 0.0
      %1650 = vmatprep.subr.mxu0 0.0
      %1651 = vmatpush1.msra.mxu0 0.0
      %1652 = vmatprep.subr.mxu0 0.0
      %1653 = vmatpush1.msra.mxu0 0.0
      %1654 = vmatprep.subr.mxu0 0.0
      %1655 = vmatpush1.msra.mxu0 0.0
      %1656 = vmatprep.subr.mxu0 0.0
      %1657 = vmatpush1.msra.mxu0 0.0
      %1658 = vmatprep.subr.mxu0 0.0
      %1659 = vmatpush1.msra.mxu0 0.0
      %1660 = vmatprep.subr.mxu0 0.0
      %1661 = vmatpush1.msra.mxu0 0.0
      %1662 = vmatprep.mubr.f32.mxu0 0.0
      %1663 = vmatmul.mubr.f32.gmra.mrb[0].mxu0 %v1596
      %v1664 = vpop.f32.mrb[0].mxu0
      %v1665 = vadd.f32 %v1592, %v1664
      %v1666 = vpop.f32.mrb[0].mxu0
      %1667 = vdwg.mxu0
      %1668 = vrot.lane.b32.xlu0 %v1182, 112
      %v1669 = vpop.permute.xlu0 %1668
      %1670 = vrot.lane.b32.xlu0 %v1182, 80
      %v1671 = vpop.permute.xlu0 %1670
      %v1672 = vsel %vm1188, %v1669, 0
      %v1674 = vsel %vm1188, %v1671, 0
      %1676 = vmatprep.subr.mxu0 0.0
      %1677 = vmatpush1.xpose.msra.mxu0 %v1674
      %1678 = vmatprep.subr.mxu0 0.0
      %1679 = vmatpush1.xpose.msra.mxu0 0.0
      %1680 = vmatprep.subr.mxu0 0.0
      %1681 = vmatpush1.xpose.msra.mxu0 0.0
      %1682 = vmatprep.subr.mxu0 0.0
      %1683 = vmatpush1.xpose.msra.mxu0 0.0
      %1684 = vmatprep.subr.mxu0 0.0
      %1685 = vmatpush1.xpose.msra.mxu0 0.0
      %1686 = vmatprep.subr.mxu0 0.0
      %1687 = vmatpush1.xpose.msra.mxu0 0.0
      %1688 = vmatprep.subr.mxu0 0.0
      %1689 = vmatpush1.xpose.msra.mxu0 0.0
      %1690 = vmatprep.subr.mxu0 0.0
      %1691 = vmatpush1.xpose.msra.mxu0 0.0
      %1692 = vmatprep.subr.mxu0 0.0
      %1693 = vmatpush1.xpose.msra.mxu0 0.0
      %1694 = vmatprep.subr.mxu0 0.0
      %1695 = vmatpush1.xpose.msra.mxu0 0.0
      %1696 = vmatprep.subr.mxu0 0.0
      %1697 = vmatpush1.xpose.msra.mxu0 0.0
      %1698 = vmatprep.subr.mxu0 0.0
      %1699 = vmatpush1.xpose.msra.mxu0 0.0
      %1700 = vmatprep.subr.mxu0 0.0
      %1701 = vmatpush1.xpose.msra.mxu0 0.0
      %1702 = vmatprep.subr.mxu0 0.0
      %1703 = vmatpush1.xpose.msra.mxu0 0.0
      %1704 = vmatprep.subr.mxu0 0.0
      %1705 = vmatpush1.xpose.msra.mxu0 0.0
      %1706 = vmatprep.subr.mxu0 0.0
      %1707 = vmatpush1.xpose.msra.mxu0 0.0
      %1708 = vmatprep.subr.mxu0 0.0
      %1709 = vmatpush1.xpose.msra.mxu0 0.0
      %1710 = vmatprep.subr.mxu0 0.0
      %1711 = vmatpush1.xpose.msra.mxu0 0.0
      %1712 = vmatprep.subr.mxu0 0.0
      %1713 = vmatpush1.xpose.msra.mxu0 0.0
      %1714 = vmatprep.subr.mxu0 0.0
      %1715 = vmatpush1.xpose.msra.mxu0 0.0
      %1716 = vmatprep.subr.mxu0 0.0
      %1717 = vmatpush1.xpose.msra.mxu0 0.0
      %1718 = vmatprep.subr.mxu0 0.0
      %1719 = vmatpush1.xpose.msra.mxu0 0.0
      %1720 = vmatprep.subr.mxu0 0.0
      %1721 = vmatpush1.xpose.msra.mxu0 0.0
      %1722 = vmatprep.subr.mxu0 0.0
      %1723 = vmatpush1.xpose.msra.mxu0 0.0
      %1724 = vmatprep.subr.mxu0 0.0
      %1725 = vmatpush1.xpose.msra.mxu0 0.0
      %1726 = vmatprep.subr.mxu0 0.0
      %1727 = vmatpush1.xpose.msra.mxu0 0.0
      %1728 = vmatprep.subr.mxu0 0.0
      %1729 = vmatpush1.xpose.msra.mxu0 0.0
      %1730 = vmatprep.subr.mxu0 0.0
      %1731 = vmatpush1.xpose.msra.mxu0 0.0
      %1732 = vmatprep.subr.mxu0 0.0
      %1733 = vmatpush1.xpose.msra.mxu0 0.0
      %1734 = vmatprep.subr.mxu0 0.0
      %1735 = vmatpush1.xpose.msra.mxu0 0.0
      %1736 = vmatprep.subr.mxu0 0.0
      %1737 = vmatpush1.xpose.msra.mxu0 0.0
      %1738 = vmatprep.subr.mxu0 0.0
      %1739 = vmatpush1.xpose.msra.mxu0 0.0
      %1740 = vmatprep.mubr.f32.mxu0 0.0
      %1741 = vmatmul.mubr.f32.gmra.mrb[0].mxu0 %v1672
      %v1742 = vpop.f32.mrb[0].mxu0
      %v1743 = vadd.f32 0.0, %v1742
      %v1744 = vpop.f32.mrb[0].mxu0
      %1745 = vdwg.mxu0
      %v1746 = vmul.f32 %v1743, 0.35355338
      %v1747 = vsel %vm1264, %v1746, -inf
      %1748 = vmax.xlane.f32.xlu0 %v1747
      %v1749 = vpop.xlane.xlu0 %1748
      %v1750 = vsub.f32 %v1746, %v1749
      %v1751 = vmul.f32 %v1750, 1.442695
      %v1752 = vpow.pop %v1751
      %v1753 = vsel %vm1264, %v1752, 0.0
      %1754 = vadd.xlane.f32.xlu0 %v1753
      %v1755 = vpop.xlane.xlu0 %1754
      %v1756 = vrcp.pop %v1755
      %v1757 = vmul.f32 %v1752, %v1756
      %1758 = vrot.lane.b32.xlu0 %v1182, 48
      %v1759 = vpop.permute.xlu0 %1758
      %v1761 = vsel %vm1278, %v1757, 0
      %v1763 = vsel %vm1282, %v1759, 0
      %1765 = vmatprep.subr.mxu0 0.0
      %1766 = vmatpush1.msra.mxu0 %v1763
      %1767 = vmatprep.subr.mxu0 0.0
      %1768 = vmatpush1.msra.mxu0 0.0
      %1769 = vmatprep.subr.mxu0 0.0
      %1770 = vmatpush1.msra.mxu0 0.0
      %1771 = vmatprep.subr.mxu0 0.0
      %1772 = vmatpush1.msra.mxu0 0.0
      %1773 = vmatprep.subr.mxu0 0.0
      %1774 = vmatpush1.msra.mxu0 0.0
      %1775 = vmatprep.subr.mxu0 0.0
      %1776 = vmatpush1.msra.mxu0 0.0
      %1777 = vmatprep.subr.mxu0 0.0
      %1778 = vmatpush1.msra.mxu0 0.0
      %1779 = vmatprep.subr.mxu0 0.0
      %1780 = vmatpush1.msra.mxu0 0.0
      %1781 = vmatprep.subr.mxu0 0.0
      %1782 = vmatpush1.msra.mxu0 0.0
      %1783 = vmatprep.subr.mxu0 0.0
      %1784 = vmatpush1.msra.mxu0 0.0
      %1785 = vmatprep.subr.mxu0 0.0
      %1786 = vmatpush1.msra.mxu0 0.0
      %1787 = vmatprep.subr.mxu0 0.0
      %1788 = vmatpush1.msra.mxu0 0.0
      %1789 = vmatprep.subr.mxu0 0.0
      %1790 = vmatpush1.msra.mxu0 0.0
      %1791 = vmatprep.subr.mxu0 0.0
      %1792 = vmatpush1.msra.mxu0 0.0
      %1793 = vmatprep.subr.mxu0 0.0
      %1794 = vmatpush1.msra.mxu0 0.0
      %1795 = vmatprep.subr.mxu0 0.0
      %1796 = vmatpush1.msra.mxu0 0.0
      %1797 = vmatprep.subr.mxu0 0.0
      %1798 = vmatpush1.msra.mxu0 0.0
      %1799 = vmatprep.subr.mxu0 0.0
      %1800 = vmatpush1.msra.mxu0 0.0
      %1801 = vmatprep.subr.mxu0 0.0
      %1802 = vmatpush1.msra.mxu0 0.0
      %1803 = vmatprep.subr.mxu0 0.0
      %1804 = vmatpush1.msra.mxu0 0.0
      %1805 = vmatprep.subr.mxu0 0.0
      %1806 = vmatpush1.msra.mxu0 0.0
      %1807 = vmatprep.subr.mxu0 0.0
      %1808 = vmatpush1.msra.mxu0 0.0
      %1809 = vmatprep.subr.mxu0 0.0
      %1810 = vmatpush1.msra.mxu0 0.0
      %1811 = vmatprep.subr.mxu0 0.0
      %1812 = vmatpush1.msra.mxu0 0.0
      %1813 = vmatprep.subr.mxu0 0.0
      %1814 = vmatpush1.msra.mxu0 0.0
      %1815 = vmatprep.subr.mxu0 0.0
      %1816 = vmatpush1.msra.mxu0 0.0
      %1817 = vmatprep.subr.mxu0 0.0
      %1818 = vmatpush1.msra.mxu0 0.0
      %1819 = vmatprep.subr.mxu0 0.0
      %1820 = vmatpush1.msra.mxu0 0.0
      %1821 = vmatprep.subr.mxu0 0.0
      %1822 = vmatpush1.msra.mxu0 0.0
      %1823 = vmatprep.subr.mxu0 0.0
      %1824 = vmatpush1.msra.mxu0 0.0
      %1825 = vmatprep.subr.mxu0 0.0
      %1826 = vmatpush1.msra.mxu0 0.0
      %1827 = vmatprep.subr.mxu0 0.0
      %1828 = vmatpush1.msra.mxu0 0.0
      %1829 = vmatprep.mubr.f32.mxu0 0.0
      %1830 = vmatmul.mubr.f32.gmra.mrb[0].mxu0 %v1761
      %v1831 = vpop.f32.mrb[0].mxu0
      %v1832 = vadd.f32 0.0, %v1831
      %v1833 = vpop.f32.mrb[0].mxu0
      %1834 = vdwg.mxu0
      %v1836 = vsel %vm1188, %v1832, 0
      %1838 = vmatprep.subr.mxu0 0.0
      %1839 = vmatpush1.msra.mxu0 %v1069
      %1840 = vmatprep.subr.mxu0 0.0
      %1841 = vmatpush1.msra.mxu0 0.0
      %1842 = vmatprep.subr.mxu0 0.0
      %1843 = vmatpush1.msra.mxu0 0.0
      %1844 = vmatprep.subr.mxu0 0.0
      %1845 = vmatpush1.msra.mxu0 0.0
      %1846 = vmatprep.subr.mxu0 0.0
      %1847 = vmatpush1.msra.mxu0 0.0
      %1848 = vmatprep.subr.mxu0 0.0
      %1849 = vmatpush1.msra.mxu0 0.0
      %1850 = vmatprep.subr.mxu0 0.0
      %1851 = vmatpush1.msra.mxu0 0.0
      %1852 = vmatprep.subr.mxu0 0.0
      %1853 = vmatpush1.msra.mxu0 0.0
      %1854 = vmatprep.subr.mxu0 0.0
      %1855 = vmatpush1.msra.mxu0 0.0
      %1856 = vmatprep.subr.mxu0 0.0
      %1857 = vmatpush1.msra.mxu0 0.0
      %1858 = vmatprep.subr.mxu0 0.0
      %1859 = vmatpush1.msra.mxu0 0.0
      %1860 = vmatprep.subr.mxu0 0.0
      %1861 = vmatpush1.msra.mxu0 0.0
      %1862 = vmatprep.subr.mxu0 0.0
      %1863 = vmatpush1.msra.mxu0 0.0
      %1864 = vmatprep.subr.mxu0 0.0
      %1865 = vmatpush1.msra.mxu0 0.0
      %1866 = vmatprep.subr.mxu0 0.0
      %1867 = vmatpush1.msra.mxu0 0.0
      %1868 = vmatprep.subr.mxu0 0.0
      %1869 = vmatpush1.msra.mxu0 0.0
      %1870 = vmatprep.subr.mxu0 0.0
      %1871 = vmatpush1.msra.mxu0 0.0
      %1872 = vmatprep.subr.mxu0 0.0
      %1873 = vmatpush1.msra.mxu0 0.0
      %1874 = vmatprep.subr.mxu0 0.0
      %1875 = vmatpush1.msra.mxu0 0.0
      %1876 = vmatprep.subr.mxu0 0.0
      %1877 = vmatpush1.msra.mxu0 0.0
      %1878 = vmatprep.subr.mxu0 0.0
      %1879 = vmatpush1.msra.mxu0 0.0
      %1880 = vmatprep.subr.mxu0 0.0
      %1881 = vmatpush1.msra.mxu0 0.0
      %1882 = vmatprep.subr.mxu0 0.0
      %1883 = vmatpush1.msra.mxu0 0.0
      %1884 = vmatprep.subr.mxu0 0.0
      %1885 = vmatpush1.msra.mxu0 0.0
      %1886 = vmatprep.subr.mxu0 0.0
      %1887 = vmatpush1.msra.mxu0 0.0
      %1888 = vmatprep.subr.mxu0 0.0
      %1889 = vmatpush1.msra.mxu0 0.0
      %1890 = vmatprep.subr.mxu0 0.0
      %1891 = vmatpush1.msra.mxu0 0.0
      %1892 = vmatprep.subr.mxu0 0.0
      %1893 = vmatpush1.msra.mxu0 0.0
      %1894 = vmatprep.subr.mxu0 0.0
      %1895 = vmatpush1.msra.mxu0 0.0
      %1896 = vmatprep.subr.mxu0 0.0
      %1897 = vmatpush1.msra.mxu0 0.0
      %1898 = vmatprep.subr.mxu0 0.0
      %1899 = vmatpush1.msra.mxu0 0.0
      %1900 = vmatprep.subr.mxu0 0.0
      %1901 = vmatpush1.msra.mxu0 0.0
      %1902 = vmatprep.mubr.f32.mxu0 0.0
      %1903 = vmatmul.mubr.f32.gmra.mrb[0].mxu0 %v1836
      %v1904 = vpop.f32.mrb[0].mxu0
      %v1905 = vadd.f32 0.0, %v1904
      %v1906 = vpop.f32.mrb[0].mxu0
      %1907 = vdwg.mxu0
      %v1908 = vadd.f32 %v1665, %v1905
      %1909 = vrot.lane.b32.xlu0 %v1182, 104
      %v1910 = vpop.permute.xlu0 %1909
      %1911 = vrot.lane.b32.xlu0 %v1182, 72
      %v1912 = vpop.permute.xlu0 %1911
      %v1913 = vsel %vm1188, %v1910, 0
      %v1915 = vsel %vm1188, %v1912, 0
      %1917 = vmatprep.subr.mxu0 0.0
      %1918 = vmatpush1.xpose.msra.mxu0 %v1915
      %1919 = vmatprep.subr.mxu0 0.0
      %1920 = vmatpush1.xpose.msra.mxu0 0.0
      %1921 = vmatprep.subr.mxu0 0.0
      %1922 = vmatpush1.xpose.msra.mxu0 0.0
      %1923 = vmatprep.subr.mxu0 0.0
      %1924 = vmatpush1.xpose.msra.mxu0 0.0
      %1925 = vmatprep.subr.mxu0 0.0
      %1926 = vmatpush1.xpose.msra.mxu0 0.0
      %1927 = vmatprep.subr.mxu0 0.0
      %1928 = vmatpush1.xpose.msra.mxu0 0.0
      %1929 = vmatprep.subr.mxu0 0.0
      %1930 = vmatpush1.xpose.msra.mxu0 0.0
      %1931 = vmatprep.subr.mxu0 0.0
      %1932 = vmatpush1.xpose.msra.mxu0 0.0
      %1933 = vmatprep.subr.mxu0 0.0
      %1934 = vmatpush1.xpose.msra.mxu0 0.0
      %1935 = vmatprep.subr.mxu0 0.0
      %1936 = vmatpush1.xpose.msra.mxu0 0.0
      %1937 = vmatprep.subr.mxu0 0.0
      %1938 = vmatpush1.xpose.msra.mxu0 0.0
      %1939 = vmatprep.subr.mxu0 0.0
      %1940 = vmatpush1.xpose.msra.mxu0 0.0
      %1941 = vmatprep.subr.mxu0 0.0
      %1942 = vmatpush1.xpose.msra.mxu0 0.0
      %1943 = vmatprep.subr.mxu0 0.0
      %1944 = vmatpush1.xpose.msra.mxu0 0.0
      %1945 = vmatprep.subr.mxu0 0.0
      %1946 = vmatpush1.xpose.msra.mxu0 0.0
      %1947 = vmatprep.subr.mxu0 0.0
      %1948 = vmatpush1.xpose.msra.mxu0 0.0
      %1949 = vmatprep.subr.mxu0 0.0
      %1950 = vmatpush1.xpose.msra.mxu0 0.0
      %1951 = vmatprep.subr.mxu0 0.0
      %1952 = vmatpush1.xpose.msra.mxu0 0.0
      %1953 = vmatprep.subr.mxu0 0.0
      %1954 = vmatpush1.xpose.msra.mxu0 0.0
      %1955 = vmatprep.subr.mxu0 0.0
      %1956 = vmatpush1.xpose.msra.mxu0 0.0
      %1957 = vmatprep.subr.mxu0 0.0
      %1958 = vmatpush1.xpose.msra.mxu0 0.0
      %1959 = vmatprep.subr.mxu0 0.0
      %1960 = vmatpush1.xpose.msra.mxu0 0.0
      %1961 = vmatprep.subr.mxu0 0.0
      %1962 = vmatpush1.xpose.msra.mxu0 0.0
      %1963 = vmatprep.subr.mxu0 0.0
      %1964 = vmatpush1.xpose.msra.mxu0 0.0
      %1965 = vmatprep.subr.mxu0 0.0
      %1966 = vmatpush1.xpose.msra.mxu0 0.0
      %1967 = vmatprep.subr.mxu0 0.0
      %1968 = vmatpush1.xpose.msra.mxu0 0.0
      %1969 = vmatprep.subr.mxu0 0.0
      %1970 = vmatpush1.xpose.msra.mxu0 0.0
      %1971 = vmatprep.subr.mxu0 0.0
      %1972 = vmatpush1.xpose.msra.mxu0 0.0
      %1973 = vmatprep.subr.mxu0 0.0
      %1974 = vmatpush1.xpose.msra.mxu0 0.0
      %1975 = vmatprep.subr.mxu0 0.0
      %1976 = vmatpush1.xpose.msra.mxu0 0.0
      %1977 = vmatprep.subr.mxu0 0.0
      %1978 = vmatpush1.xpose.msra.mxu0 0.0
      %1979 = vmatprep.subr.mxu0 0.0
      %1980 = vmatpush1.xpose.msra.mxu0 0.0
      %1981 = vmatprep.mubr.f32.mxu0 0.0
      %1982 = vmatmul.mubr.f32.gmra.mrb[0].mxu0 %v1913
      %v1983 = vpop.f32.mrb[0].mxu0
      %v1984 = vadd.f32 0.0, %v1983
      %v1985 = vpop.f32.mrb[0].mxu0
      %1986 = vdwg.mxu0
      %v1987 = vmul.f32 %v1984, 0.35355338
      %v1988 = vsel %vm1264, %v1987, -inf
      %1989 = vmax.xlane.f32.xlu0 %v1988
      %v1990 = vpop.xlane.xlu0 %1989
      %v1991 = vsub.f32 %v1987, %v1990
      %v1992 = vmul.f32 %v1991, 1.442695
      %v1993 = vpow.pop %v1992
      %v1994 = vsel %vm1264, %v1993, 0.0
      %1995 = vadd.xlane.f32.xlu0 %v1994
      %v1996 = vpop.xlane.xlu0 %1995
      %v1997 = vrcp.pop %v1996
      %v1998 = vmul.f32 %v1993, %v1997
      %1999 = vrot.lane.b32.xlu0 %v1182, 40
      %v2000 = vpop.permute.xlu0 %1999
      %v2002 = vsel %vm1278, %v1998, 0
      %v2004 = vsel %vm1282, %v2000, 0
      %2006 = vmatprep.subr.mxu0 0.0
      %2007 = vmatpush1.msra.mxu0 %v2004
      %2008 = vmatprep.subr.mxu0 0.0
      %2009 = vmatpush1.msra.mxu0 0.0
      %2010 = vmatprep.subr.mxu0 0.0
      %2011 = vmatpush1.msra.mxu0 0.0
      %2012 = vmatprep.subr.mxu0 0.0
      %2013 = vmatpush1.msra.mxu0 0.0
      %2014 = vmatprep.subr.mxu0 0.0
      %2015 = vmatpush1.msra.mxu0 0.0
      %2016 = vmatprep.subr.mxu0 0.0
      %2017 = vmatpush1.msra.mxu0 0.0
      %2018 = vmatprep.subr.mxu0 0.0
      %2019 = vmatpush1.msra.mxu0 0.0
      %2020 = vmatprep.subr.mxu0 0.0
      %2021 = vmatpush1.msra.mxu0 0.0
      %2022 = vmatprep.subr.mxu0 0.0
      %2023 = vmatpush1.msra.mxu0 0.0
      %2024 = vmatprep.subr.mxu0 0.0
      %2025 = vmatpush1.msra.mxu0 0.0
      %2026 = vmatprep.subr.mxu0 0.0
      %2027 = vmatpush1.msra.mxu0 0.0
      %2028 = vmatprep.subr.mxu0 0.0
      %2029 = vmatpush1.msra.mxu0 0.0
      %2030 = vmatprep.subr.mxu0 0.0
      %2031 = vmatpush1.msra.mxu0 0.0
      %2032 = vmatprep.subr.mxu0 0.0
      %2033 = vmatpush1.msra.mxu0 0.0
      %2034 = vmatprep.subr.mxu0 0.0
      %2035 = vmatpush1.msra.mxu0 0.0
      %2036 = vmatprep.subr.mxu0 0.0
      %2037 = vmatpush1.msra.mxu0 0.0
      %2038 = vmatprep.subr.mxu0 0.0
      %2039 = vmatpush1.msra.mxu0 0.0
      %2040 = vmatprep.subr.mxu0 0.0
      %2041 = vmatpush1.msra.mxu0 0.0
      %2042 = vmatprep.subr.mxu0 0.0
      %2043 = vmatpush1.msra.mxu0 0.0
      %2044 = vmatprep.subr.mxu0 0.0
      %2045 = vmatpush1.msra.mxu0 0.0
      %2046 = vmatprep.subr.mxu0 0.0
      %2047 = vmatpush1.msra.mxu0 0.0
      %2048 = vmatprep.subr.mxu0 0.0
      %2049 = vmatpush1.msra.mxu0 0.0
      %2050 = vmatprep.subr.mxu0 0.0
      %2051 = vmatpush1.msra.mxu0 0.0
      %2052 = vmatprep.subr.mxu0 0.0
      %2053 = vmatpush1.msra.mxu0 0.0
      %2054 = vmatprep.subr.mxu0 0.0
      %2055 = vmatpush1.msra.mxu0 0.0
      %2056 = vmatprep.subr.mxu0 0.0
      %2057 = vmatpush1.msra.mxu0 0.0
      %2058 = vmatprep.subr.mxu0 0.0
      %2059 = vmatpush1.msra.mxu0 0.0
      %2060 = vmatprep.subr.mxu0 0.0
      %2061 = vmatpush1.msra.mxu0 0.0
      %2062 = vmatprep.subr.mxu0 0.0
      %2063 = vmatpush1.msra.mxu0 0.0
      %2064 = vmatprep.subr.mxu0 0.0
      %2065 = vmatpush1.msra.mxu0 0.0
      %2066 = vmatprep.subr.mxu0 0.0
      %2067 = vmatpush1.msra.mxu0 0.0
      %2068 = vmatprep.subr.mxu0 0.0
      %2069 = vmatpush1.msra.mxu0 0.0
      %2070 = vmatprep.mubr.f32.mxu0 0.0
      %2071 = vmatmul.mubr.f32.gmra.mrb[0].mxu0 %v2002
      %v2072 = vpop.f32.mrb[0].mxu0
      %v2073 = vadd.f32 0.0, %v2072
      %v2074 = vpop.f32.mrb[0].mxu0
      %2075 = vdwg.mxu0
      %v2077 = vsel %vm1188, %v2073, 0
      %2079 = vmatprep.subr.mxu0 0.0
      %2080 = vmatpush1.msra.mxu0 %v1070
      %2081 = vmatprep.subr.mxu0 0.0
      %2082 = vmatpush1.msra.mxu0 0.0
      %2083 = vmatprep.subr.mxu0 0.0
      %2084 = vmatpush1.msra.mxu0 0.0
      %2085 = vmatprep.subr.mxu0 0.0
      %2086 = vmatpush1.msra.mxu0 0.0
      %2087 = vmatprep.subr.mxu0 0.0
      %2088 = vmatpush1.msra.mxu0 0.0
      %2089 = vmatprep.subr.mxu0 0.0
      %2090 = vmatpush1.msra.mxu0 0.0
      %2091 = vmatprep.subr.mxu0 0.0
      %2092 = vmatpush1.msra.mxu0 0.0
      %2093 = vmatprep.subr.mxu0 0.0
      %2094 = vmatpush1.msra.mxu0 0.0
      %2095 = vmatprep.subr.mxu0 0.0
      %2096 = vmatpush1.msra.mxu0 0.0
      %2097 = vmatprep.subr.mxu0 0.0
      %2098 = vmatpush1.msra.mxu0 0.0
      %2099 = vmatprep.subr.mxu0 0.0
      %2100 = vmatpush1.msra.mxu0 0.0
      %2101 = vmatprep.subr.mxu0 0.0
      %2102 = vmatpush1.msra.mxu0 0.0
      %2103 = vmatprep.subr.mxu0 0.0
      %2104 = vmatpush1.msra.mxu0 0.0
      %2105 = vmatprep.subr.mxu0 0.0
      %2106 = vmatpush1.msra.mxu0 0.0
      %2107 = vmatprep.subr.mxu0 0.0
      %2108 = vmatpush1.msra.mxu0 0.0
      %2109 = vmatprep.subr.mxu0 0.0
      %2110 = vmatpush1.msra.mxu0 0.0
      %2111 = vmatprep.subr.mxu0 0.0
      %2112 = vmatpush1.msra.mxu0 0.0
      %2113 = vmatprep.subr.mxu0 0.0
      %2114 = vmatpush1.msra.mxu0 0.0
      %2115 = vmatprep.subr.mxu0 0.0
      %2116 = vmatpush1.msra.mxu0 0.0
      %2117 = vmatprep.subr.mxu0 0.0
      %2118 = vmatpush1.msra.mxu0 0.0
      %2119 = vmatprep.subr.mxu0 0.0
      %2120 = vmatpush1.msra.mxu0 0.0
      %2121 = vmatprep.subr.mxu0 0.0
      %2122 = vmatpush1.msra.mxu0 0.0
      %2123 = vmatprep.subr.mxu0 0.0
      %2124 = vmatpush1.msra.mxu0 0.0
      %2125 = vmatprep.subr.mxu0 0.0
      %2126 = vmatpush1.msra.mxu0 0.0
      %2127 = vmatprep.subr.mxu0 0.0
      %2128 = vmatpush1.msra.mxu0 0.0
      %2129 = vmatprep.subr.mxu0 0.0
      %2130 = vmatpush1.msra.mxu0 0.0
      %2131 = vmatprep.subr.mxu0 0.0
      %2132 = vmatpush1.msra.mxu0 0.0
      %2133 = vmatprep.subr.mxu0 0.0
      %2134 = vmatpush1.msra.mxu0 0.0
      %2135 = vmatprep.subr.mxu0 0.0
      %2136 = vmatpush1.msra.mxu0 0.0
      %2137 = vmatprep.subr.mxu0 0.0
      %2138 = vmatpush1.msra.mxu0 0.0
      %2139 = vmatprep.subr.mxu0 0.0
      %2140 = vmatpush1.msra.mxu0 0.0
      %2141 = vmatprep.subr.mxu0 0.0
      %2142 = vmatpush1.msra.mxu0 0.0
      %2143 = vmatprep.mubr.f32.mxu0 0.0
      %2144 = vmatmul.mubr.f32.gmra.mrb[0].mxu0 %v2077
      %v2145 = vpop.f32.mrb[0].mxu0
      %v2146 = vadd.f32 0.0, %v2145
      %v2147 = vpop.f32.mrb[0].mxu0
      %2148 = vdwg.mxu0
      %v2149 = vadd.f32 %v1908, %v2146
      %v2150 = vadd.f32 %v1062, %v2149
      %v2151 = vlaneseq
      %v2152 = vshrl.u32 %v2151, 7
      %v2153 = vsub.s32 3, %v2152
      %v2154 = vrot.slane %v1083, %v2153
      %v2155 = vadd.f32 %v2150, %v2154
      %v2156 = vsel %vm1038, %v2155, 0.0
      %2157 = vadd.xlane.f32.xlu0 %v2156
      %v2158 = vpop.xlane.xlu0 %2157
      %v2159 = vmul.f32 %v2158, %v1042
      %v2160 = vsub.f32 %v2155, %v2159
      %v2161 = vmul.f32 %v2160, %v2160
      %v2162 = vsel %vm1038, %v2161, 0.0
      %2163 = vadd.xlane.f32.xlu0 %v2162
      %v2164 = vpop.xlane.xlu0 %2163
      %v2165 = vmul.f32 %v2164, %v1042
      %v2166 = vadd.f32 %v2165, 1e-05
      %v2167 = vrsqrt.pop %v2166
      %v2168 = vmul.f32 %v2160, %v2167
      %v2169 = vlaneseq
      %v2170 = vshrl.u32 %v2169, 7
      %v2171 = vsub.s32 4, %v2170
      %v2172 = vrot.slane %v1083, %v2171
      %v2173 = vmul.f32 %v2168, %v2172
      %v2174 = vlaneseq
      %v2175 = vshrl.u32 %v2174, 7
      %v2176 = vsub.s32 5, %v2175
      %v2177 = vrot.slane %v1083, %v2176
      %v2178 = vadd.f32 %v2173, %v2177
      %v2179 = vlaneseq
      %v2180 = vshrl.u32 %v2179, 7
      %v2181 = vsub.s32 6, %v2180
      %v2182 = vrot.slane %v1083, %v2181
      %v2184 = vsel %vm1111, %v2178, 0
      %2186 = vmatprep.subr.mxu0 0.0
      %2187 = vmatpush1.msra.mxu0 %v1071
      %2188 = vmatprep.subr.mxu0 0.0
      %2189 = vmatpush1.msra.mxu0 %v1072
      %2190 = vmatprep.subr.mxu0 0.0
      %2191 = vmatpush1.msra.mxu0 %v1073
      %2192 = vmatprep.subr.mxu0 0.0
      %2193 = vmatpush1.msra.mxu0 %v1074
      %2194 = vmatprep.subr.mxu0 0.0
      %2195 = vmatpush1.msra.mxu0 0.0
      %2196 = vmatprep.subr.mxu0 0.0
      %2197 = vmatpush1.msra.mxu0 0.0
      %2198 = vmatprep.subr.mxu0 0.0
      %2199 = vmatpush1.msra.mxu0 0.0
      %2200 = vmatprep.subr.mxu0 0.0
      %2201 = vmatpush1.msra.mxu0 0.0
      %2202 = vmatprep.subr.mxu0 0.0
      %2203 = vmatpush1.msra.mxu0 0.0
      %2204 = vmatprep.subr.mxu0 0.0
      %2205 = vmatpush1.msra.mxu0 0.0
      %2206 = vmatprep.subr.mxu0 0.0
      %2207 = vmatpush1.msra.mxu0 0.0
      %2208 = vmatprep.subr.mxu0 0.0
      %2209 = vmatpush1.msra.mxu0 0.0
      %2210 = vmatprep.subr.mxu0 0.0
      %2211 = vmatpush1.msra.mxu0 0.0
      %2212 = vmatprep.subr.mxu0 0.0
      %2213 = vmatpush1.msra.mxu0 0.0
      %2214 = vmatprep.subr.mxu0 0.0
      %2215 = vmatpush1.msra.mxu0 0.0
      %2216 = vmatprep.subr.mxu0 0.0
      %2217 = vmatpush1.msra.mxu0 0.0
      %2218 = vmatprep.subr.mxu0 0.0
      %2219 = vmatpush1.msra.mxu0 0.0
      %2220 = vmatprep.subr.mxu0 0.0
      %2221 = vmatpush1.msra.mxu0 0.0
      %2222 = vmatprep.subr.mxu0 0.0
      %2223 = vmatpush1.msra.mxu0 0.0
      %2224 = vmatprep.subr.mxu0 0.0
      %2225 = vmatpush1.msra.mxu0 0.0
      %2226 = vmatprep.subr.mxu0 0.0
      %2227 = vmatpush1.msra.mxu0 0.0
      %2228 = vmatprep.subr.mxu0 0.0
      %2229 = vmatpush1.msra.mxu0 0.0
      %2230 = vmatprep.subr.mxu0 0.0
      %2231 = vmatpush1.msra.mxu0 0.0
      %2232 = vmatprep.subr.mxu0 0.0
      %2233 = vmatpush1.msra.mxu0 0.0
      %2234 = vmatprep.subr.mxu0 0.0
      %2235 = vmatpush1.msra.mxu0 0.0
      %2236 = vmatprep.subr.mxu0 0.0
      %2237 = vmatpush1.msra.mxu0 0.0
      %2238 = vmatprep.subr.mxu0 0.0
      %2239 = vmatpush1.msra.mxu0 0.0
      %2240 = vmatprep.subr.mxu0 0.0
      %2241 = vmatpush1.msra.mxu0 0.0
      %2242 = vmatprep.subr.mxu0 0.0
      %2243 = vmatpush1.msra.mxu0 0.0
      %2244 = vmatprep.subr.mxu0 0.0
      %2245 = vmatpush1.msra.mxu0 0.0
      %2246 = vmatprep.subr.mxu0 0.0
      %2247 = vmatpush1.msra.mxu0 0.0
      %2248 = vmatprep.subr.mxu0 0.0
      %2249 = vmatpush1.msra.mxu0 0.0
      %2250 = vmatprep.mubr.f32.mxu0 0.0
      %2251 = vmatmul.mubr.f32.gmra.mrb[0].mxu0 %v2184
      %v2252 = vpop.f32.mrb[0].mxu0
      %v2253 = vadd.f32 %v2182, %v2252
      %v2254 = vpop.f32.mrb[0].mxu0
      %2255 = vdwg.mxu0
      %v2256 = vmul.f32 %v2253, 1.702
      %v2257 = vxor.u32 %v2256, 2147483648
      %v2258 = vmul.f32 %v2257, 1.442695
      %v2259 = vpow.pop %v2258
      %v2260 = vadd.f32 %v2259, 1.0
      %v2261 = vrcp.pop %v2260
      %v2262 = vmul.f32 1.0, %v2261
      %v2263 = vmul.f32 %v2253, %v2262
      %vm2264 = vcmask 523264
      %v2266 = vsel %vm2264, %v2263, 0
      %2268 = vmatprep.subr.mxu0 0.0
      %2269 = vmatpush1.msra.mxu0 %v1075
      %2270 = vmatprep.subr.mxu0 0.0
      %2271 = vmatpush1.msra.mxu0 %v1076
      %2272 = vmatprep.subr.mxu0 0.0
      %2273 = vmatpush1.msra.mxu0 %v1077
      %2274 = vmatprep.subr.mxu0 0.0
      %2275 = vmatpush1.msra.mxu0 %v1078
      %2276 = vmatprep.subr.mxu0 0.0
      %2277 = vmatpush1.msra.mxu0 %v1079
      %2278 = vmatprep.subr.mxu0 0.0
      %2279 = vmatpush1.msra.mxu0 %v1080
      %2280 = vmatprep.subr.mxu0 0.0
      %2281 = vmatpush1.msra.mxu0 %v1081
      %2282 = vmatprep.subr.mxu0 0.0
      %2283 = vmatpush1.msra.mxu0 %v1082
      %2284 = vmatprep.subr.mxu0 0.0
      %2285 = vmatpush1.msra.mxu0 0.0
      %2286 = vmatprep.subr.mxu0 0.0
      %2287 = vmatpush1.msra.mxu0 0.0
      %2288 = vmatprep.subr.mxu0 0.0
      %2289 = vmatpush1.msra.mxu0 0.0
      %2290 = vmatprep.subr.mxu0 0.0
      %2291 = vmatpush1.msra.mxu0 0.0
      %2292 = vmatprep.subr.mxu0 0.0
      %2293 = vmatpush1.msra.mxu0 0.0
      %2294 = vmatprep.subr.mxu0 0.0
      %2295 = vmatpush1.msra.mxu0 0.0
      %2296 = vmatprep.subr.mxu0 0.0
      %2297 = vmatpush1.msra.mxu0 0.0
      %2298 = vmatprep.subr.mxu0 0.0
      %2299 = vmatpush1.msra.mxu0 0.0
      %2300 = vmatprep.subr.mxu0 0.0
      %2301 = vmatpush1.msra.mxu0 0.0
      %2302 = vmatprep.subr.mxu0 0.0
      %2303 = vmatpush1.msra.mxu0 0.0
      %2304 = vmatprep.subr.mxu0 0.0
      %2305 = vmatpush1.msra.mxu0 0.0
      %2306 = vmatprep.subr.mxu0 0.0
      %2307 = vmatpush1.msra.mxu0 0.0
      %2308 = vmatprep.subr.mxu0 0.0
      %2309 = vmatpush1.msra.mxu0 0.0
      %2310 = vmatprep.subr.mxu0 0.0
      %2311 = vmatpush1.msra.mxu0 0.0
      %2312 = vmatprep.subr.mxu0 0.0
      %2313 = vmatpush1.msra.mxu0 0.0
      %2314 = vmatprep.subr.mxu0 0.0
      %2315 = vmatpush1.msra.mxu0 0.0
      %2316 = vmatprep.subr.mxu0 0.0
      %2317 = vmatpush1.msra.mxu0 0.0
      %2318 = vmatprep.subr.mxu0 0.0
      %2319 = vmatpush1.msra.mxu0 0.0
      %2320 = vmatprep.subr.mxu0 0.0
      %2321 = vmatpush1.msra.mxu0 0.0
      %2322 = vmatprep.subr.mxu0 0.0
      %2323 = vmatpush1.msra.mxu0 0.0
      %2324 = vmatprep.subr.mxu0 0.0
      %2325 = vmatpush1.msra.mxu0 0.0
      %2326 = vmatprep.subr.mxu0 0.0
      %2327 = vmatpush1.msra.mxu0 0.0
      %2328 = vmatprep.subr.mxu0 0.0
      %2329 = vmatpush1.msra.mxu0 0.0
      %2330 = vmatprep.subr.mxu0 0.0
      %2331 = vmatpush1.msra.mxu0 0.0
      %2332 = vmatprep.mubr.f32.mxu0 0.0
      %2333 = vmatmul.mubr.f32.gmra.mrb[0].mxu0 %v2266
      %v2334 = vpop.f32.mrb[0].mxu0
      %v2335 = vadd.f32 0.0, %v2334
      %v2336 = vpop.f32.mrb[0].mxu0
      %2337 = vdwg.mxu0
      %v2338 = vadd.f32 %v2155, %v2335
      %v2339 = vlaneseq
      %v2340 = vshrl.u32 %v2339, 7
      %v2341 = vsub.s32 7, %v2340
      %v2342 = vrot.slane %v1083, %v2341
      %v2343 = vadd.f32 %v2338, %v2342
      %s2344 = scalar_lea.vmem %s5, 32
      %v2345 = vld [vmem:[%s2344] sm:$0xff]
      %v2346 = vld [vmem:[%s2344 + $0x8] sm:$0xff]
      %v2347 = vld [vmem:[%s2344 + $0x10] sm:$0xff]
      %v2348 = vld [vmem:[%s2344 + $0x18] sm:$0xff]
      %s2349 = scalar_lea.vmem %s6, 32
      %v2350 = vld [vmem:[%s2349] sm:$0xff]
      %v2351 = vld [vmem:[%s2349 + $0x8] sm:$0xff]
      %v2352 = vld [vmem:[%s2349 + $0x10] sm:$0xff]
      %v2353 = vld [vmem:[%s2349 + $0x18] sm:$0xff]
      %s2354 = scalar_lea.vmem %s7, 32
      %v2355 = vld [vmem:[%s2354] sm:$0xff]
      %v2356 = vld [vmem:[%s2354 + $0x8] sm:$0xff]
      %v2357 = vld [vmem:[%s2354 + $0x10] sm:$0xff]
      %v2358 = vld [vmem:[%s2354 + $0x18] sm:$0xff]
      %s2359 = scalar_lea.vmem %s8, 64
      %v2360 = vld [vmem:[%s2359] sm:$0xff]
      %v2361 = vld [vmem:[%s2359 + $0x8] sm:$0xff]
      %v2362 = vld [vmem:[%s2359 + $0x10] sm:$0xff]
      %v2363 = vld [vmem:[%s2359 + $0x18] sm:$0xff]
      %v2364 = vld [vmem:[%s2359 + $0x20] sm:$0xff]
      %v2365 = vld [vmem:[%s2359 + $0x28] sm:$0xff]
      %v2366 = vld [vmem:[%s2359 + $0x30] sm:$0xff]
      %v2367 = vld [vmem:[%s2359 + $0x38] sm:$0xff]
      %s2368 = scalar_lea.vmem %s9, 8
      %v2369 = vld [vmem:[%s2368] sm:$0xff]
      %v2370 = vsel %vm1038, %v2343, 0.0
      %2371 = vadd.xlane.f32.xlu0 %v2370
      %v2372 = vpop.xlane.xlu0 %2371
      %v2373 = vmul.f32 %v2372, %v1042
      %v2374 = vsub.f32 %v2343, %v2373
      %v2375 = vmul.f32 %v2374, %v2374
      %v2376 = vsel %vm1038, %v2375, 0.0
      %2377 = vadd.xlane.f32.xlu0 %v2376
      %v2378 = vpop.xlane.xlu0 %2377
      %v2379 = vmul.f32 %v2378, %v1042
      %v2380 = vadd.f32 %v2379, 1e-05
      %v2381 = vrsqrt.pop %v2380
      %v2382 = vmul.f32 %v2374, %v2381
      %v2383 = vlaneseq
      %v2384 = vshrl.u32 %v2383, 7
      %v2385 = vsub.s32 0, %v2384
      %v2386 = vrot.slane %v2369, %v2385
      %v2387 = vmul.f32 %v2382, %v2386
      %v2388 = vlaneseq
      %v2389 = vshrl.u32 %v2388, 7
      %v2390 = vsub.s32 1, %v2389
      %v2391 = vrot.slane %v2369, %v2390
      %v2392 = vadd.f32 %v2387, %v2391
      %v2393 = vlaneseq
      %v2394 = vshrl.u32 %v2393, 7
      %v2395 = vsub.s32 2, %v2394
      %v2396 = vrot.slane %v2369, %v2395
      %v2398 = vsel %vm1111, %v2392, 0
      %2400 = vmatprep.subr.mxu0 0.0
      %2401 = vmatpush1.msra.mxu0 %v2345
      %2402 = vmatprep.subr.mxu0 0.0
      %2403 = vmatpush1.msra.mxu0 %v2346
      %2404 = vmatprep.subr.mxu0 0.0
      %2405 = vmatpush1.msra.mxu0 %v2347
      %2406 = vmatprep.subr.mxu0 0.0
      %2407 = vmatpush1.msra.mxu0 %v2348
      %2408 = vmatprep.subr.mxu0 0.0
      %2409 = vmatpush1.msra.mxu0 0.0
      %2410 = vmatprep.subr.mxu0 0.0
      %2411 = vmatpush1.msra.mxu0 0.0
      %2412 = vmatprep.subr.mxu0 0.0
      %2413 = vmatpush1.msra.mxu0 0.0
      %2414 = vmatprep.subr.mxu0 0.0
      %2415 = vmatpush1.msra.mxu0 0.0
      %2416 = vmatprep.subr.mxu0 0.0
      %2417 = vmatpush1.msra.mxu0 0.0
      %2418 = vmatprep.subr.mxu0 0.0
      %2419 = vmatpush1.msra.mxu0 0.0
      %2420 = vmatprep.subr.mxu0 0.0
      %2421 = vmatpush1.msra.mxu0 0.0
      %2422 = vmatprep.subr.mxu0 0.0
      %2423 = vmatpush1.msra.mxu0 0.0
      %2424 = vmatprep.subr.mxu0 0.0
      %2425 = vmatpush1.msra.mxu0 0.0
      %2426 = vmatprep.subr.mxu0 0.0
      %2427 = vmatpush1.msra.mxu0 0.0
      %2428 = vmatprep.subr.mxu0 0.0
      %2429 = vmatpush1.msra.mxu0 0.0
      %2430 = vmatprep.subr.mxu0 0.0
      %2431 = vmatpush1.msra.mxu0 0.0
      %2432 = vmatprep.subr.mxu0 0.0
      %2433 = vmatpush1.msra.mxu0 0.0
      %2434 = vmatprep.subr.mxu0 0.0
      %2435 = vmatpush1.msra.mxu0 0.0
      %2436 = vmatprep.subr.mxu0 0.0
      %2437 = vmatpush1.msra.mxu0 0.0
      %2438 = vmatprep.subr.mxu0 0.0
      %2439 = vmatpush1.msra.mxu0 0.0
      %2440 = vmatprep.subr.mxu0 0.0
      %2441 = vmatpush1.msra.mxu0 0.0
      %2442 = vmatprep.subr.mxu0 0.0
      %2443 = vmatpush1.msra.mxu0 0.0
      %2444 = vmatprep.subr.mxu0 0.0
      %2445 = vmatpush1.msra.mxu0 0.0
      %2446 = vmatprep.subr.mxu0 0.0
      %2447 = vmatpush1.msra.mxu0 0.0
      %2448 = vmatprep.subr.mxu0 0.0
      %2449 = vmatpush1.msra.mxu0 0.0
      %2450 = vmatprep.subr.mxu0 0.0
      %2451 = vmatpush1.msra.mxu0 0.0
      %2452 = vmatprep.subr.mxu0 0.0
      %2453 = vmatpush1.msra.mxu0 0.0
      %2454 = vmatprep.subr.mxu0 0.0
      %2455 = vmatpush1.msra.mxu0 0.0
      %2456 = vmatprep.subr.mxu0 0.0
      %2457 = vmatpush1.msra.mxu0 0.0
      %2458 = vmatprep.subr.mxu0 0.0
      %2459 = vmatpush1.msra.mxu0 0.0
      %2460 = vmatprep.subr.mxu0 0.0
      %2461 = vmatpush1.msra.mxu0 0.0
      %2462 = vmatprep.subr.mxu0 0.0
      %2463 = vmatpush1.msra.mxu0 0.0
      %2464 = vmatprep.mubr.f32.mxu0 0.0
      %2465 = vmatmul.mubr.f32.gmra.mrb[0].mxu0 %v2398
      %v2466 = vpop.f32.mrb[0].mxu0
      %v2467 = vadd.f32 %v2396, %v2466
      %v2468 = vpop.f32.mrb[0].mxu0
      %2469 = vdwg.mxu0
      %2471 = vrot.lane.b32.xlu0 %v2467, 96
      %v2472 = vpop.permute.xlu0 %2471
      %v2473 = vsel %vm1188, %v2467, 0
      %v2475 = vsel %vm1188, %v2472, 0
      %2477 = vmatprep.subr.mxu0 0.0
      %2478 = vmatpush1.xpose.msra.mxu0 %v2475
      %2479 = vmatprep.subr.mxu0 0.0
      %2480 = vmatpush1.xpose.msra.mxu0 0.0
      %2481 = vmatprep.subr.mxu0 0.0
      %2482 = vmatpush1.xpose.msra.mxu0 0.0
      %2483 = vmatprep.subr.mxu0 0.0
      %2484 = vmatpush1.xpose.msra.mxu0 0.0
      %2485 = vmatprep.subr.mxu0 0.0
      %2486 = vmatpush1.xpose.msra.mxu0 0.0
      %2487 = vmatprep.subr.mxu0 0.0
      %2488 = vmatpush1.xpose.msra.mxu0 0.0
      %2489 = vmatprep.subr.mxu0 0.0
      %2490 = vmatpush1.xpose.msra.mxu0 0.0
      %2491 = vmatprep.subr.mxu0 0.0
      %2492 = vmatpush1.xpose.msra.mxu0 0.0
      %2493 = vmatprep.subr.mxu0 0.0
      %2494 = vmatpush1.xpose.msra.mxu0 0.0
      %2495 = vmatprep.subr.mxu0 0.0
      %2496 = vmatpush1.xpose.msra.mxu0 0.0
      %2497 = vmatprep.subr.mxu0 0.0
      %2498 = vmatpush1.xpose.msra.mxu0 0.0
      %2499 = vmatprep.subr.mxu0 0.0
      %2500 = vmatpush1.xpose.msra.mxu0 0.0
      %2501 = vmatprep.subr.mxu0 0.0
      %2502 = vmatpush1.xpose.msra.mxu0 0.0
      %2503 = vmatprep.subr.mxu0 0.0
      %2504 = vmatpush1.xpose.msra.mxu0 0.0
      %2505 = vmatprep.subr.mxu0 0.0
      %2506 = vmatpush1.xpose.msra.mxu0 0.0
      %2507 = vmatprep.subr.mxu0 0.0
      %2508 = vmatpush1.xpose.msra.mxu0 0.0
      %2509 = vmatprep.subr.mxu0 0.0
      %2510 = vmatpush1.xpose.msra.mxu0 0.0
      %2511 = vmatprep.subr.mxu0 0.0
      %2512 = vmatpush1.xpose.msra.mxu0 0.0
      %2513 = vmatprep.subr.mxu0 0.0
      %2514 = vmatpush1.xpose.msra.mxu0 0.0
      %2515 = vmatprep.subr.mxu0 0.0
      %2516 = vmatpush1.xpose.msra.mxu0 0.0
      %2517 = vmatprep.subr.mxu0 0.0
      %2518 = vmatpush1.xpose.msra.mxu0 0.0
      %2519 = vmatprep.subr.mxu0 0.0
      %2520 = vmatpush1.xpose.msra.mxu0 0.0
      %2521 = vmatprep.subr.mxu0 0.0
      %2522 = vmatpush1.xpose.msra.mxu0 0.0
      %2523 = vmatprep.subr.mxu0 0.0
      %2524 = vmatpush1.xpose.msra.mxu0 0.0
      %2525 = vmatprep.subr.mxu0 0.0
      %2526 = vmatpush1.xpose.msra.mxu0 0.0
      %2527 = vmatprep.subr.mxu0 0.0
      %2528 = vmatpush1.xpose.msra.mxu0 0.0
      %2529 = vmatprep.subr.mxu0 0.0
      %2530 = vmatpush1.xpose.msra.mxu0 0.0
      %2531 = vmatprep.subr.mxu0 0.0
      %2532 = vmatpush1.xpose.msra.mxu0 0.0
      %2533 = vmatprep.subr.mxu0 0.0
      %2534 = vmatpush1.xpose.msra.mxu0 0.0
      %2535 = vmatprep.subr.mxu0 0.0
      %2536 = vmatpush1.xpose.msra.mxu0 0.0
      %2537 = vmatprep.subr.mxu0 0.0
      %2538 = vmatpush1.xpose.msra.mxu0 0.0
      %2539 = vmatprep.subr.mxu0 0.0
      %2540 = vmatpush1.xpose.msra.mxu0 0.0
      %2541 = vmatprep.mubr.f32.mxu0 0.0
      %2542 = vmatmul.mubr.f32.gmra.mrb[0].mxu0 %v2473
      %v2543 = vpop.f32.mrb[0].mxu0
      %v2544 = vadd.f32 0.0, %v2543
      %v2545 = vpop.f32.mrb[0].mxu0
      %2546 = vdwg.mxu0
      %v2547 = vmul.f32 %v2544, 0.35355338
      %v2548 = vsel %vm1264, %v2547, -inf
      %2549 = vmax.xlane.f32.xlu0 %v2548
      %v2550 = vpop.xlane.xlu0 %2549
      %v2551 = vsub.f32 %v2547, %v2550
      %v2552 = vmul.f32 %v2551, 1.442695
      %v2553 = vpow.pop %v2552
      %v2554 = vsel %vm1264, %v2553, 0.0
      %2555 = vadd.xlane.f32.xlu0 %v2554
      %v2556 = vpop.xlane.xlu0 %2555
      %v2557 = vrcp.pop %v2556
      %v2558 = vmul.f32 %v2553, %v2557
      %2559 = vrot.lane.b32.xlu0 %v2467, 64
      %v2560 = vpop.permute.xlu0 %2559
      %v2562 = vsel %vm1278, %v2558, 0
      %v2564 = vsel %vm1282, %v2560, 0
      %2566 = vmatprep.subr.mxu0 0.0
      %2567 = vmatpush1.msra.mxu0 %v2564
      %2568 = vmatprep.subr.mxu0 0.0
      %2569 = vmatpush1.msra.mxu0 0.0
      %2570 = vmatprep.subr.mxu0 0.0
      %2571 = vmatpush1.msra.mxu0 0.0
      %2572 = vmatprep.subr.mxu0 0.0
      %2573 = vmatpush1.msra.mxu0 0.0
      %2574 = vmatprep.subr.mxu0 0.0
      %2575 = vmatpush1.msra.mxu0 0.0
      %2576 = vmatprep.subr.mxu0 0.0
      %2577 = vmatpush1.msra.mxu0 0.0
      %2578 = vmatprep.subr.mxu0 0.0
      %2579 = vmatpush1.msra.mxu0 0.0
      %2580 = vmatprep.subr.mxu0 0.0
      %2581 = vmatpush1.msra.mxu0 0.0
      %2582 = vmatprep.subr.mxu0 0.0
      %2583 = vmatpush1.msra.mxu0 0.0
      %2584 = vmatprep.subr.mxu0 0.0
      %2585 = vmatpush1.msra.mxu0 0.0
      %2586 = vmatprep.subr.mxu0 0.0
      %2587 = vmatpush1.msra.mxu0 0.0
      %2588 = vmatprep.subr.mxu0 0.0
      %2589 = vmatpush1.msra.mxu0 0.0
      %2590 = vmatprep.subr.mxu0 0.0
      %2591 = vmatpush1.msra.mxu0 0.0
      %2592 = vmatprep.subr.mxu0 0.0
      %2593 = vmatpush1.msra.mxu0 0.0
      %2594 = vmatprep.subr.mxu0 0.0
      %2595 = vmatpush1.msra.mxu0 0.0
      %2596 = vmatprep.subr.mxu0 0.0
      %2597 = vmatpush1.msra.mxu0 0.0
      %2598 = vmatprep.subr.mxu0 0.0
      %2599 = vmatpush1.msra.mxu0 0.0
      %2600 = vmatprep.subr.mxu0 0.0
      %2601 = vmatpush1.msra.mxu0 0.0
      %2602 = vmatprep.subr.mxu0 0.0
      %2603 = vmatpush1.msra.mxu0 0.0
      %2604 = vmatprep.subr.mxu0 0.0
      %2605 = vmatpush1.msra.mxu0 0.0
      %2606 = vmatprep.subr.mxu0 0.0
      %2607 = vmatpush1.msra.mxu0 0.0
      %2608 = vmatprep.subr.mxu0 0.0
      %2609 = vmatpush1.msra.mxu0 0.0
      %2610 = vmatprep.subr.mxu0 0.0
      %2611 = vmatpush1.msra.mxu0 0.0
      %2612 = vmatprep.subr.mxu0 0.0
      %2613 = vmatpush1.msra.mxu0 0.0
      %2614 = vmatprep.subr.mxu0 0.0
      %2615 = vmatpush1.msra.mxu0 0.0
      %2616 = vmatprep.subr.mxu0 0.0
      %2617 = vmatpush1.msra.mxu0 0.0
      %2618 = vmatprep.subr.mxu0 0.0
      %2619 = vmatpush1.msra.mxu0 0.0
      %2620 = vmatprep.subr.mxu0 0.0
      %2621 = vmatpush1.msra.mxu0 0.0
      %2622 = vmatprep.subr.mxu0 0.0
      %2623 = vmatpush1.msra.mxu0 0.0
      %2624 = vmatprep.subr.mxu0 0.0
      %2625 = vmatpush1.msra.mxu0 0.0
      %2626 = vmatprep.subr.mxu0 0.0
      %2627 = vmatpush1.msra.mxu0 0.0
      %2628 = vmatprep.subr.mxu0 0.0
      %2629 = vmatpush1.msra.mxu0 0.0
      %2630 = vmatprep.mubr.f32.mxu0 0.0
      %2631 = vmatmul.mubr.f32.gmra.mrb[0].mxu0 %v2562
      %v2632 = vpop.f32.mrb[0].mxu0
      %v2633 = vadd.f32 0.0, %v2632
      %v2634 = vpop.f32.mrb[0].mxu0
      %2635 = vdwg.mxu0
      %2636 = vrot.lane.b32.xlu0 %v2467, 120
      %v2637 = vpop.permute.xlu0 %2636
      %2638 = vrot.lane.b32.xlu0 %v2467, 88
      %v2639 = vpop.permute.xlu0 %2638
      %v2640 = vsel %vm1188, %v2637, 0
      %v2642 = vsel %vm1188, %v2639, 0
      %2644 = vmatprep.subr.mxu0 0.0
      %2645 = vmatpush1.xpose.msra.mxu0 %v2642
      %2646 = vmatprep.subr.mxu0 0.0
      %2647 = vmatpush1.xpose.msra.mxu0 0.0
      %2648 = vmatprep.subr.mxu0 0.0
      %2649 = vmatpush1.xpose.msra.mxu0 0.0
      %2650 = vmatprep.subr.mxu0 0.0
      %2651 = vmatpush1.xpose.msra.mxu0 0.0
      %2652 = vmatprep.subr.mxu0 0.0
      %2653 = vmatpush1.xpose.msra.mxu0 0.0
      %2654 = vmatprep.subr.mxu0 0.0
      %2655 = vmatpush1.xpose.msra.mxu0 0.0
      %2656 = vmatprep.subr.mxu0 0.0
      %2657 = vmatpush1.xpose.msra.mxu0 0.0
      %2658 = vmatprep.subr.mxu0 0.0
      %2659 = vmatpush1.xpose.msra.mxu0 0.0
      %2660 = vmatprep.subr.mxu0 0.0
      %2661 = vmatpush1.xpose.msra.mxu0 0.0
      %2662 = vmatprep.subr.mxu0 0.0
      %2663 = vmatpush1.xpose.msra.mxu0 0.0
      %2664 = vmatprep.subr.mxu0 0.0
      %2665 = vmatpush1.xpose.msra.mxu0 0.0
      %2666 = vmatprep.subr.mxu0 0.0
      %2667 = vmatpush1.xpose.msra.mxu0 0.0
      %2668 = vmatprep.subr.mxu0 0.0
      %2669 = vmatpush1.xpose.msra.mxu0 0.0
      %2670 = vmatprep.subr.mxu0 0.0
      %2671 = vmatpush1.xpose.msra.mxu0 0.0
      %2672 = vmatprep.subr.mxu0 0.0
      %2673 = vmatpush1.xpose.msra.mxu0 0.0
      %2674 = vmatprep.subr.mxu0 0.0
      %2675 = vmatpush1.xpose.msra.mxu0 0.0
      %2676 = vmatprep.subr.mxu0 0.0
      %2677 = vmatpush1.xpose.msra.mxu0 0.0
      %2678 = vmatprep.subr.mxu0 0.0
      %2679 = vmatpush1.xpose.msra.mxu0 0.0
      %2680 = vmatprep.subr.mxu0 0.0
      %2681 = vmatpush1.xpose.msra.mxu0 0.0
      %2682 = vmatprep.subr.mxu0 0.0
      %2683 = vmatpush1.xpose.msra.mxu0 0.0
      %2684 = vmatprep.subr.mxu0 0.0
      %2685 = vmatpush1.xpose.msra.mxu0 0.0
      %2686 = vmatprep.subr.mxu0 0.0
      %2687 = vmatpush1.xpose.msra.mxu0 0.0
      %2688 = vmatprep.subr.mxu0 0.0
      %2689 = vmatpush1.xpose.msra.mxu0 0.0
      %2690 = vmatprep.subr.mxu0 0.0
      %2691 = vmatpush1.xpose.msra.mxu0 0.0
      %2692 = vmatprep.subr.mxu0 0.0
      %2693 = vmatpush1.xpose.msra.mxu0 0.0
      %2694 = vmatprep.subr.mxu0 0.0
      %2695 = vmatpush1.xpose.msra.mxu0 0.0
      %2696 = vmatprep.subr.mxu0 0.0
      %2697 = vmatpush1.xpose.msra.mxu0 0.0
      %2698 = vmatprep.subr.mxu0 0.0
      %2699 = vmatpush1.xpose.msra.mxu0 0.0
      %2700 = vmatprep.subr.mxu0 0.0
      %2701 = vmatpush1.xpose.msra.mxu0 0.0
      %2702 = vmatprep.subr.mxu0 0.0
      %2703 = vmatpush1.xpose.msra.mxu0 0.0
      %2704 = vmatprep.subr.mxu0 0.0
      %2705 = vmatpush1.xpose.msra.mxu0 0.0
      %2706 = vmatprep.subr.mxu0 0.0
      %2707 = vmatpush1.xpose.msra.mxu0 0.0
      %2708 = vmatprep.mubr.f32.mxu0 0.0
      %2709 = vmatmul.mubr.f32.gmra.mrb[0].mxu0 %v2640
      %v2710 = vpop.f32.mrb[0].mxu0
      %v2711 = vadd.f32 0.0, %v2710
      %v2712 = vpop.f32.mrb[0].mxu0
      %2713 = vdwg.mxu0
      %v2714 = vmul.f32 %v2711, 0.35355338
      %v2715 = vsel %vm1264, %v2714, -inf
      %2716 = vmax.xlane.f32.xlu0 %v2715
      %v2717 = vpop.xlane.xlu0 %2716
      %v2718 = vsub.f32 %v2714, %v2717
      %v2719 = vmul.f32 %v2718, 1.442695
      %v2720 = vpow.pop %v2719
      %v2721 = vsel %vm1264, %v2720, 0.0
      %2722 = vadd.xlane.f32.xlu0 %v2721
      %v2723 = vpop.xlane.xlu0 %2722
      %v2724 = vrcp.pop %v2723
      %v2725 = vmul.f32 %v2720, %v2724
      %2726 = vrot.lane.b32.xlu0 %v2467, 56
      %v2727 = vpop.permute.xlu0 %2726
      %v2729 = vsel %vm1278, %v2725, 0
      %v2731 = vsel %vm1282, %v2727, 0
      %2733 = vmatprep.subr.mxu0 0.0
      %2734 = vmatpush1.msra.mxu0 %v2731
      %2735 = vmatprep.subr.mxu0 0.0
      %2736 = vmatpush1.msra.mxu0 0.0
      %2737 = vmatprep.subr.mxu0 0.0
      %2738 = vmatpush1.msra.mxu0 0.0
      %2739 = vmatprep.subr.mxu0 0.0
      %2740 = vmatpush1.msra.mxu0 0.0
      %2741 = vmatprep.subr.mxu0 0.0
      %2742 = vmatpush1.msra.mxu0 0.0
      %2743 = vmatprep.subr.mxu0 0.0
      %2744 = vmatpush1.msra.mxu0 0.0
      %2745 = vmatprep.subr.mxu0 0.0
      %2746 = vmatpush1.msra.mxu0 0.0
      %2747 = vmatprep.subr.mxu0 0.0
      %2748 = vmatpush1.msra.mxu0 0.0
      %2749 = vmatprep.subr.mxu0 0.0
      %2750 = vmatpush1.msra.mxu0 0.0
      %2751 = vmatprep.subr.mxu0 0.0
      %2752 = vmatpush1.msra.mxu0 0.0
      %2753 = vmatprep.subr.mxu0 0.0
      %2754 = vmatpush1.msra.mxu0 0.0
      %2755 = vmatprep.subr.mxu0 0.0
      %2756 = vmatpush1.msra.mxu0 0.0
      %2757 = vmatprep.subr.mxu0 0.0
      %2758 = vmatpush1.msra.mxu0 0.0
      %2759 = vmatprep.subr.mxu0 0.0
      %2760 = vmatpush1.msra.mxu0 0.0
      %2761 = vmatprep.subr.mxu0 0.0
      %2762 = vmatpush1.msra.mxu0 0.0
      %2763 = vmatprep.subr.mxu0 0.0
      %2764 = vmatpush1.msra.mxu0 0.0
      %2765 = vmatprep.subr.mxu0 0.0
      %2766 = vmatpush1.msra.mxu0 0.0
      %2767 = vmatprep.subr.mxu0 0.0
      %2768 = vmatpush1.msra.mxu0 0.0
      %2769 = vmatprep.subr.mxu0 0.0
      %2770 = vmatpush1.msra.mxu0 0.0
      %2771 = vmatprep.subr.mxu0 0.0
      %2772 = vmatpush1.msra.mxu0 0.0
      %2773 = vmatprep.subr.mxu0 0.0
      %2774 = vmatpush1.msra.mxu0 0.0
      %2775 = vmatprep.subr.mxu0 0.0
      %2776 = vmatpush1.msra.mxu0 0.0
      %2777 = vmatprep.subr.mxu0 0.0
      %2778 = vmatpush1.msra.mxu0 0.0
      %2779 = vmatprep.subr.mxu0 0.0
      %2780 = vmatpush1.msra.mxu0 0.0
      %2781 = vmatprep.subr.mxu0 0.0
      %2782 = vmatpush1.msra.mxu0 0.0
      %2783 = vmatprep.subr.mxu0 0.0
      %2784 = vmatpush1.msra.mxu0 0.0
      %2785 = vmatprep.subr.mxu0 0.0
      %2786 = vmatpush1.msra.mxu0 0.0
      %2787 = vmatprep.subr.mxu0 0.0
      %2788 = vmatpush1.msra.mxu0 0.0
      %2789 = vmatprep.subr.mxu0 0.0
      %2790 = vmatpush1.msra.mxu0 0.0
      %2791 = vmatprep.subr.mxu0 0.0
      %2792 = vmatpush1.msra.mxu0 0.0
      %2793 = vmatprep.subr.mxu0 0.0
      %2794 = vmatpush1.msra.mxu0 0.0
      %2795 = vmatprep.subr.mxu0 0.0
      %2796 = vmatpush1.msra.mxu0 0.0
      %2797 = vmatprep.mubr.f32.mxu0 0.0
      %2798 = vmatmul.mubr.f32.gmra.mrb[0].mxu0 %v2729
      %v2799 = vpop.f32.mrb[0].mxu0
      %v2800 = vadd.f32 0.0, %v2799
      %v2801 = vpop.f32.mrb[0].mxu0
      %2802 = vdwg.mxu0
      %v2804 = vsel %vm1188, %v2800, 0
      %2806 = vmatprep.subr.mxu0 0.0
      %2807 = vmatpush1.msra.mxu0 %v2351
      %2808 = vmatprep.subr.mxu0 0.0
      %2809 = vmatpush1.msra.mxu0 0.0
      %2810 = vmatprep.subr.mxu0 0.0
      %2811 = vmatpush1.msra.mxu0 0.0
      %2812 = vmatprep.subr.mxu0 0.0
      %2813 = vmatpush1.msra.mxu0 0.0
      %2814 = vmatprep.subr.mxu0 0.0
      %2815 = vmatpush1.msra.mxu0 0.0
      %2816 = vmatprep.subr.mxu0 0.0
      %2817 = vmatpush1.msra.mxu0 0.0
      %2818 = vmatprep.subr.mxu0 0.0
      %2819 = vmatpush1.msra.mxu0 0.0
      %2820 = vmatprep.subr.mxu0 0.0
      %2821 = vmatpush1.msra.mxu0 0.0
      %2822 = vmatprep.subr.mxu0 0.0
      %2823 = vmatpush1.msra.mxu0 0.0
      %2824 = vmatprep.subr.mxu0 0.0
      %2825 = vmatpush1.msra.mxu0 0.0
      %2826 = vmatprep.subr.mxu0 0.0
      %2827 = vmatpush1.msra.mxu0 0.0
      %2828 = vmatprep.subr.mxu0 0.0
      %2829 = vmatpush1.msra.mxu0 0.0
      %2830 = vmatprep.subr.mxu0 0.0
      %2831 = vmatpush1.msra.mxu0 0.0
      %2832 = vmatprep.subr.mxu0 0.0
      %2833 = vmatpush1.msra.mxu0 0.0
      %2834 = vmatprep.subr.mxu0 0.0
      %2835 = vmatpush1.msra.mxu0 0.0
      %2836 = vmatprep.subr.mxu0 0.0
      %2837 = vmatpush1.msra.mxu0 0.0
      %2838 = vmatprep.subr.mxu0 0.0
      %2839 = vmatpush1.msra.mxu0 0.0
      %2840 = vmatprep.subr.mxu0 0.0
      %2841 = vmatpush1.msra.mxu0 0.0
      %2842 = vmatprep.subr.mxu0 0.0
      %2843 = vmatpush1.msra.mxu0 0.0
      %2844 = vmatprep.subr.mxu0 0.0
      %2845 = vmatpush1.msra.mxu0 0.0
      %2846 = vmatprep.subr.mxu0 0.0
      %2847 = vmatpush1.msra.mxu0 0.0
      %2848 = vmatprep.subr.mxu0 0.0
      %2849 = vmatpush1.msra.mxu0 0.0
      %2850 = vmatprep.subr.mxu0 0.0
      %2851 = vmatpush1.msra.mxu0 0.0
      %2852 = vmatprep.subr.mxu0 0.0
      %2853 = vmatpush1.msra.mxu0 0.0
      %2854 = vmatprep.subr.mxu0 0.0
      %2855 = vmatpush1.msra.mxu0 0.0
      %2856 = vmatprep.subr.mxu0 0.0
      %2857 = vmatpush1.msra.mxu0 0.0
      %2858 = vmatprep.subr.mxu0 0.0
      %2859 = vmatpush1.msra.mxu0 0.0
      %2860 = vmatprep.subr.mxu0 0.0
      %2861 = vmatpush1.msra.mxu0 0.0
      %2862 = vmatprep.subr.mxu0 0.0
      %2863 = vmatpush1.msra.mxu0 0.0
      %2864 = vmatprep.subr.mxu0 0.0
      %2865 = vmatpush1.msra.mxu0 0.0
      %2866 = vmatprep.subr.mxu0 0.0
      %2867 = vmatpush1.msra.mxu0 0.0
      %2868 = vmatprep.subr.mxu0 0.0
      %2869 = vmatpush1.msra.mxu0 0.0
      %2870 = vmatprep.mubr.f32.mxu0 0.0
      %2871 = vmatmul.mubr.f32.gmra.mrb[0].mxu0 %v2804
      %v2872 = vpop.f32.mrb[0].mxu0
      %v2873 = vadd.f32 0.0, %v2872
      %v2874 = vpop.f32.mrb[0].mxu0
      %2875 = vdwg.mxu0
      %v2877 = vsel %vm1188, %v2633, 0
      %2879 = vmatprep.subr.mxu0 0.0
      %2880 = vmatpush1.msra.mxu0 %v2350
      %2881 = vmatprep.subr.mxu0 0.0
      %2882 = vmatpush1.msra.mxu0 0.0
      %2883 = vmatprep.subr.mxu0 0.0
      %2884 = vmatpush1.msra.mxu0 0.0
      %2885 = vmatprep.subr.mxu0 0.0
      %2886 = vmatpush1.msra.mxu0 0.0
      %2887 = vmatprep.subr.mxu0 0.0
      %2888 = vmatpush1.msra.mxu0 0.0
      %2889 = vmatprep.subr.mxu0 0.0
      %2890 = vmatpush1.msra.mxu0 0.0
      %2891 = vmatprep.subr.mxu0 0.0
      %2892 = vmatpush1.msra.mxu0 0.0
      %2893 = vmatprep.subr.mxu0 0.0
      %2894 = vmatpush1.msra.mxu0 0.0
      %2895 = vmatprep.subr.mxu0 0.0
      %2896 = vmatpush1.msra.mxu0 0.0
      %2897 = vmatprep.subr.mxu0 0.0
      %2898 = vmatpush1.msra.mxu0 0.0
      %2899 = vmatprep.subr.mxu0 0.0
      %2900 = vmatpush1.msra.mxu0 0.0
      %2901 = vmatprep.subr.mxu0 0.0
      %2902 = vmatpush1.msra.mxu0 0.0
      %2903 = vmatprep.subr.mxu0 0.0
      %2904 = vmatpush1.msra.mxu0 0.0
      %2905 = vmatprep.subr.mxu0 0.0
      %2906 = vmatpush1.msra.mxu0 0.0
      %2907 = vmatprep.subr.mxu0 0.0
      %2908 = vmatpush1.msra.mxu0 0.0
      %2909 = vmatprep.subr.mxu0 0.0
      %2910 = vmatpush1.msra.mxu0 0.0
      %2911 = vmatprep.subr.mxu0 0.0
      %2912 = vmatpush1.msra.mxu0 0.0
      %2913 = vmatprep.subr.mxu0 0.0
      %2914 = vmatpush1.msra.mxu0 0.0
      %2915 = vmatprep.subr.mxu0 0.0
      %2916 = vmatpush1.msra.mxu0 0.0
      %2917 = vmatprep.subr.mxu0 0.0
      %2918 = vmatpush1.msra.mxu0 0.0
      %2919 = vmatprep.subr.mxu0 0.0
      %2920 = vmatpush1.msra.mxu0 0.0
      %2921 = vmatprep.subr.mxu0 0.0
      %2922 = vmatpush1.msra.mxu0 0.0
      %2923 = vmatprep.subr.mxu0 0.0
      %2924 = vmatpush1.msra.mxu0 0.0
      %2925 = vmatprep.subr.mxu0 0.0
      %2926 = vmatpush1.msra.mxu0 0.0
      %2927 = vmatprep.subr.mxu0 0.0
      %2928 = vmatpush1.msra.mxu0 0.0
      %2929 = vmatprep.subr.mxu0 0.0
      %2930 = vmatpush1.msra.mxu0 0.0
      %2931 = vmatprep.subr.mxu0 0.0
      %2932 = vmatpush1.msra.mxu0 0.0
      %2933 = vmatprep.subr.mxu0 0.0
      %2934 = vmatpush1.msra.mxu0 0.0
      %2935 = vmatprep.subr.mxu0 0.0
      %2936 = vmatpush1.msra.mxu0 0.0
      %2937 = vmatprep.subr.mxu0 0.0
      %2938 = vmatpush1.msra.mxu0 0.0
      %2939 = vmatprep.subr.mxu0 0.0
      %2940 = vmatpush1.msra.mxu0 0.0
      %2941 = vmatprep.subr.mxu0 0.0
      %2942 = vmatpush1.msra.mxu0 0.0
      %2943 = vmatprep.mubr.f32.mxu0 0.0
      %2944 = vmatmul.mubr.f32.gmra.mrb[0].mxu0 %v2877
      %v2945 = vpop.f32.mrb[0].mxu0
      %v2946 = vadd.f32 %v2873, %v2945
      %v2947 = vpop.f32.mrb[0].mxu0
      %2948 = vdwg.mxu0
      %2949 = vrot.lane.b32.xlu0 %v2467, 112
      %v2950 = vpop.permute.xlu0 %2949
      %2951 = vrot.lane.b32.xlu0 %v2467, 80
      %v2952 = vpop.permute.xlu0 %2951
      %v2953 = vsel %vm1188, %v2950, 0
      %v2955 = vsel %vm1188, %v2952, 0
      %2957 = vmatprep.subr.mxu0 0.0
      %2958 = vmatpush1.xpose.msra.mxu0 %v2955
      %2959 = vmatprep.subr.mxu0 0.0
      %2960 = vmatpush1.xpose.msra.mxu0 0.0
      %2961 = vmatprep.subr.mxu0 0.0
      %2962 = vmatpush1.xpose.msra.mxu0 0.0
      %2963 = vmatprep.subr.mxu0 0.0
      %2964 = vmatpush1.xpose.msra.mxu0 0.0
      %2965 = vmatprep.subr.mxu0 0.0
      %2966 = vmatpush1.xpose.msra.mxu0 0.0
      %2967 = vmatprep.subr.mxu0 0.0
      %2968 = vmatpush1.xpose.msra.mxu0 0.0
      %2969 = vmatprep.subr.mxu0 0.0
      %2970 = vmatpush1.xpose.msra.mxu0 0.0
      %2971 = vmatprep.subr.mxu0 0.0
      %2972 = vmatpush1.xpose.msra.mxu0 0.0
      %2973 = vmatprep.subr.mxu0 0.0
      %2974 = vmatpush1.xpose.msra.mxu0 0.0
      %2975 = vmatprep.subr.mxu0 0.0
      %2976 = vmatpush1.xpose.msra.mxu0 0.0
      %2977 = vmatprep.subr.mxu0 0.0
      %2978 = vmatpush1.xpose.msra.mxu0 0.0
      %2979 = vmatprep.subr.mxu0 0.0
      %2980 = vmatpush1.xpose.msra.mxu0 0.0
      %2981 = vmatprep.subr.mxu0 0.0
      %2982 = vmatpush1.xpose.msra.mxu0 0.0
      %2983 = vmatprep.subr.mxu0 0.0
      %2984 = vmatpush1.xpose.msra.mxu0 0.0
      %2985 = vmatprep.subr.mxu0 0.0
      %2986 = vmatpush1.xpose.msra.mxu0 0.0
      %2987 = vmatprep.subr.mxu0 0.0
      %2988 = vmatpush1.xpose.msra.mxu0 0.0
      %2989 = vmatprep.subr.mxu0 0.0
      %2990 = vmatpush1.xpose.msra.mxu0 0.0
      %2991 = vmatprep.subr.mxu0 0.0
      %2992 = vmatpush1.xpose.msra.mxu0 0.0
      %2993 = vmatprep.subr.mxu0 0.0
      %2994 = vmatpush1.xpose.msra.mxu0 0.0
      %2995 = vmatprep.subr.mxu0 0.0
      %2996 = vmatpush1.xpose.msra.mxu0 0.0
      %2997 = vmatprep.subr.mxu0 0.0
      %2998 = vmatpush1.xpose.msra.mxu0 0.0
      %2999 = vmatprep.subr.mxu0 0.0
      %3000 = vmatpush1.xpose.msra.mxu0 0.0
      %3001 = vmatprep.subr.mxu0 0.0
      %3002 = vmatpush1.xpose.msra.mxu0 0.0
      %3003 = vmatprep.subr.mxu0 0.0
      %3004 = vmatpush1.xpose.msra.mxu0 0.0
      %3005 = vmatprep.subr.mxu0 0.0
      %3006 = vmatpush1.xpose.msra.mxu0 0.0
      %3007 = vmatprep.subr.mxu0 0.0
      %3008 = vmatpush1.xpose.msra.mxu0 0.0
      %3009 = vmatprep.subr.mxu0 0.0
      %3010 = vmatpush1.xpose.msra.mxu0 0.0
      %3011 = vmatprep.subr.mxu0 0.0
      %3012 = vmatpush1.xpose.msra.mxu0 0.0
      %3013 = vmatprep.subr.mxu0 0.0
      %3014 = vmatpush1.xpose.msra.mxu0 0.0
      %3015 = vmatprep.subr.mxu0 0.0
      %3016 = vmatpush1.xpose.msra.mxu0 0.0
      %3017 = vmatprep.subr.mxu0 0.0
      %3018 = vmatpush1.xpose.msra.mxu0 0.0
      %3019 = vmatprep.subr.mxu0 0.0
      %3020 = vmatpush1.xpose.msra.mxu0 0.0
      %3021 = vmatprep.mubr.f32.mxu0 0.0
      %3022 = vmatmul.mubr.f32.gmra.mrb[0].mxu0 %v2953
      %v3023 = vpop.f32.mrb[0].mxu0
      %v3024 = vadd.f32 0.0, %v3023
      %v3025 = vpop.f32.mrb[0].mxu0
      %3026 = vdwg.mxu0
      %v3027 = vmul.f32 %v3024, 0.35355338
      %v3028 = vsel %vm1264, %v3027, -inf
      %3029 = vmax.xlane.f32.xlu0 %v3028
      %v3030 = vpop.xlane.xlu0 %3029
      %v3031 = vsub.f32 %v3027, %v3030
      %v3032 = vmul.f32 %v3031, 1.442695
      %v3033 = vpow.pop %v3032
      %v3034 = vsel %vm1264, %v3033, 0.0
      %3035 = vadd.xlane.f32.xlu0 %v3034
      %v3036 = vpop.xlane.xlu0 %3035
      %v3037 = vrcp.pop %v3036
      %v3038 = vmul.f32 %v3033, %v3037
      %3039 = vrot.lane.b32.xlu0 %v2467, 48
      %v3040 = vpop.permute.xlu0 %3039
      %v3042 = vsel %vm1278, %v3038, 0
      %v3044 = vsel %vm1282, %v3040, 0
      %3046 = vmatprep.subr.mxu0 0.0
      %3047 = vmatpush1.msra.mxu0 %v3044
      %3048 = vmatprep.subr.mxu0 0.0
      %3049 = vmatpush1.msra.mxu0 0.0
      %3050 = vmatprep.subr.mxu0 0.0
      %3051 = vmatpush1.msra.mxu0 0.0
      %3052 = vmatprep.subr.mxu0 0.0
      %3053 = vmatpush1.msra.mxu0 0.0
      %3054 = vmatprep.subr.mxu0 0.0
      %3055 = vmatpush1.msra.mxu0 0.0
      %3056 = vmatprep.subr.mxu0 0.0
      %3057 = vmatpush1.msra.mxu0 0.0
      %3058 = vmatprep.subr.mxu0 0.0
      %3059 = vmatpush1.msra.mxu0 0.0
      %3060 = vmatprep.subr.mxu0 0.0
      %3061 = vmatpush1.msra.mxu0 0.0
      %3062 = vmatprep.subr.mxu0 0.0
      %3063 = vmatpush1.msra.mxu0 0.0
      %3064 = vmatprep.subr.mxu0 0.0
      %3065 = vmatpush1.msra.mxu0 0.0
      %3066 = vmatprep.subr.mxu0 0.0
      %3067 = vmatpush1.msra.mxu0 0.0
      %3068 = vmatprep.subr.mxu0 0.0
      %3069 = vmatpush1.msra.mxu0 0.0
      %3070 = vmatprep.subr.mxu0 0.0
      %3071 = vmatpush1.msra.mxu0 0.0
      %3072 = vmatprep.subr.mxu0 0.0
      %3073 = vmatpush1.msra.mxu0 0.0
      %3074 = vmatprep.subr.mxu0 0.0
      %3075 = vmatpush1.msra.mxu0 0.0
      %3076 = vmatprep.subr.mxu0 0.0
      %3077 = vmatpush1.msra.mxu0 0.0
      %3078 = vmatprep.subr.mxu0 0.0
      %3079 = vmatpush1.msra.mxu0 0.0
      %3080 = vmatprep.subr.mxu0 0.0
      %3081 = vmatpush1.msra.mxu0 0.0
      %3082 = vmatprep.subr.mxu0 0.0
      %3083 = vmatpush1.msra.mxu0 0.0
      %3084 = vmatprep.subr.mxu0 0.0
      %3085 = vmatpush1.msra.mxu0 0.0
      %3086 = vmatprep.subr.mxu0 0.0
      %3087 = vmatpush1.msra.mxu0 0.0
      %3088 = vmatprep.subr.mxu0 0.0
      %3089 = vmatpush1.msra.mxu0 0.0
      %3090 = vmatprep.subr.mxu0 0.0
      %3091 = vmatpush1.msra.mxu0 0.0
      %3092 = vmatprep.subr.mxu0 0.0
      %3093 = vmatpush1.msra.mxu0 0.0
      %3094 = vmatprep.subr.mxu0 0.0
      %3095 = vmatpush1.msra.mxu0 0.0
      %3096 = vmatprep.subr.mxu0 0.0
      %3097 = vmatpush1.msra.mxu0 0.0
      %3098 = vmatprep.subr.mxu0 0.0
      %3099 = vmatpush1.msra.mxu0 0.0
      %3100 = vmatprep.subr.mxu0 0.0
      %3101 = vmatpush1.msra.mxu0 0.0
      %3102 = vmatprep.subr.mxu0 0.0
      %3103 = vmatpush1.msra.mxu0 0.0
      %3104 = vmatprep.subr.mxu0 0.0
      %3105 = vmatpush1.msra.mxu0 0.0
      %3106 = vmatprep.subr.mxu0 0.0
      %3107 = vmatpush1.msra.mxu0 0.0
      %3108 = vmatprep.subr.mxu0 0.0
      %3109 = vmatpush1.msra.mxu0 0.0
      %3110 = vmatprep.mubr.f32.mxu0 0.0
      %3111 = vmatmul.mubr.f32.gmra.mrb[0].mxu0 %v3042
      %v3112 = vpop.f32.mrb[0].mxu0
      %v3113 = vadd.f32 0.0, %v3112
      %v3114 = vpop.f32.mrb[0].mxu0
      %3115 = vdwg.mxu0
      %v3117 = vsel %vm1188, %v3113, 0
      %3119 = vmatprep.subr.mxu0 0.0
      %3120 = vmatpush1.msra.mxu0 %v2352
      %3121 = vmatprep.subr.mxu0 0.0
      %3122 = vmatpush1.msra.mxu0 0.0
      %3123 = vmatprep.subr.mxu0 0.0
      %3124 = vmatpush1.msra.mxu0 0.0
      %3125 = vmatprep.subr.mxu0 0.0
      %3126 = vmatpush1.msra.mxu0 0.0
      %3127 = vmatprep.subr.mxu0 0.0
      %3128 = vmatpush1.msra.mxu0 0.0
      %3129 = vmatprep.subr.mxu0 0.0
      %3130 = vmatpush1.msra.mxu0 0.0
      %3131 = vmatprep.subr.mxu0 0.0
      %3132 = vmatpush1.msra.mxu0 0.0
      %3133 = vmatprep.subr.mxu0 0.0
      %3134 = vmatpush1.msra.mxu0 0.0
      %3135 = vmatprep.subr.mxu0 0.0
      %3136 = vmatpush1.msra.mxu0 0.0
      %3137 = vmatprep.subr.mxu0 0.0
      %3138 = vmatpush1.msra.mxu0 0.0
      %3139 = vmatprep.subr.mxu0 0.0
      %3140 = vmatpush1.msra.mxu0 0.0
      %3141 = vmatprep.subr.mxu0 0.0
      %3142 = vmatpush1.msra.mxu0 0.0
      %3143 = vmatprep.subr.mxu0 0.0
      %3144 = vmatpush1.msra.mxu0 0.0
      %3145 = vmatprep.subr.mxu0 0.0
      %3146 = vmatpush1.msra.mxu0 0.0
      %3147 = vmatprep.subr.mxu0 0.0
      %3148 = vmatpush1.msra.mxu0 0.0
      %3149 = vmatprep.subr.mxu0 0.0
      %3150 = vmatpush1.msra.mxu0 0.0
      %3151 = vmatprep.subr.mxu0 0.0
      %3152 = vmatpush1.msra.mxu0 0.0
      %3153 = vmatprep.subr.mxu0 0.0
      %3154 = vmatpush1.msra.mxu0 0.0
      %3155 = vmatprep.subr.mxu0 0.0
      %3156 = vmatpush1.msra.mxu0 0.0
      %3157 = vmatprep.subr.mxu0 0.0
      %3158 = vmatpush1.msra.mxu0 0.0
      %3159 = vmatprep.subr.mxu0 0.0
      %3160 = vmatpush1.msra.mxu0 0.0
      %3161 = vmatprep.subr.mxu0 0.0
      %3162 = vmatpush1.msra.mxu0 0.0
      %3163 = vmatprep.subr.mxu0 0.0
      %3164 = vmatpush1.msra.mxu0 0.0
      %3165 = vmatprep.subr.mxu0 0.0
      %3166 = vmatpush1.msra.mxu0 0.0
      %3167 = vmatprep.subr.mxu0 0.0
      %3168 = vmatpush1.msra.mxu0 0.0
      %3169 = vmatprep.subr.mxu0 0.0
      %3170 = vmatpush1.msra.mxu0 0.0
      %3171 = vmatprep.subr.mxu0 0.0
      %3172 = vmatpush1.msra.mxu0 0.0
      %3173 = vmatprep.subr.mxu0 0.0
      %3174 = vmatpush1.msra.mxu0 0.0
      %3175 = vmatprep.subr.mxu0 0.0
      %3176 = vmatpush1.msra.mxu0 0.0
      %3177 = vmatprep.subr.mxu0 0.0
      %3178 = vmatpush1.msra.mxu0 0.0
      %3179 = vmatprep.subr.mxu0 0.0
      %3180 = vmatpush1.msra.mxu0 0.0
      %3181 = vmatprep.subr.mxu0 0.0
      %3182 = vmatpush1.msra.mxu0 0.0
      %3183 = vmatprep.mubr.f32.mxu0 0.0
      %3184 = vmatmul.mubr.f32.gmra.mrb[0].mxu0 %v3117
      %v3185 = vpop.f32.mrb[0].mxu0
      %v3186 = vadd.f32 0.0, %v3185
      %v3187 = vpop.f32.mrb[0].mxu0
      %3188 = vdwg.mxu0
      %v3189 = vadd.f32 %v2946, %v3186
      %3190 = vrot.lane.b32.xlu0 %v2467, 104
      %v3191 = vpop.permute.xlu0 %3190
      %3192 = vrot.lane.b32.xlu0 %v2467, 72
      %v3193 = vpop.permute.xlu0 %3192
      %v3194 = vsel %vm1188, %v3191, 0
      %v3196 = vsel %vm1188, %v3193, 0
      %3198 = vmatprep.subr.mxu0 0.0
      %3199 = vmatpush1.xpose.msra.mxu0 %v3196
      %3200 = vmatprep.subr.mxu0 0.0
      %3201 = vmatpush1.xpose.msra.mxu0 0.0
      %3202 = vmatprep.subr.mxu0 0.0
      %3203 = vmatpush1.xpose.msra.mxu0 0.0
      %3204 = vmatprep.subr.mxu0 0.0
      %3205 = vmatpush1.xpose.msra.mxu0 0.0
      %3206 = vmatprep.subr.mxu0 0.0
      %3207 = vmatpush1.xpose.msra.mxu0 0.0
      %3208 = vmatprep.subr.mxu0 0.0
      %3209 = vmatpush1.xpose.msra.mxu0 0.0
      %3210 = vmatprep.subr.mxu0 0.0
      %3211 = vmatpush1.xpose.msra.mxu0 0.0
      %3212 = vmatprep.subr.mxu0 0.0
      %3213 = vmatpush1.xpose.msra.mxu0 0.0
      %3214 = vmatprep.subr.mxu0 0.0
      %3215 = vmatpush1.xpose.msra.mxu0 0.0
      %3216 = vmatprep.subr.mxu0 0.0
      %3217 = vmatpush1.xpose.msra.mxu0 0.0
      %3218 = vmatprep.subr.mxu0 0.0
      %3219 = vmatpush1.xpose.msra.mxu0 0.0
      %3220 = vmatprep.subr.mxu0 0.0
      %3221 = vmatpush1.xpose.msra.mxu0 0.0
      %3222 = vmatprep.subr.mxu0 0.0
      %3223 = vmatpush1.xpose.msra.mxu0 0.0
      %3224 = vmatprep.subr.mxu0 0.0
      %3225 = vmatpush1.xpose.msra.mxu0 0.0
      %3226 = vmatprep.subr.mxu0 0.0
      %3227 = vmatpush1.xpose.msra.mxu0 0.0
      %3228 = vmatprep.subr.mxu0 0.0
      %3229 = vmatpush1.xpose.msra.mxu0 0.0
      %3230 = vmatprep.subr.mxu0 0.0
      %3231 = vmatpush1.xpose.msra.mxu0 0.0
      %3232 = vmatprep.subr.mxu0 0.0
      %3233 = vmatpush1.xpose.msra.mxu0 0.0
      %3234 = vmatprep.subr.mxu0 0.0
      %3235 = vmatpush1.xpose.msra.mxu0 0.0
      %3236 = vmatprep.subr.mxu0 0.0
      %3237 = vmatpush1.xpose.msra.mxu0 0.0
      %3238 = vmatprep.subr.mxu0 0.0
      %3239 = vmatpush1.xpose.msra.mxu0 0.0
      %3240 = vmatprep.subr.mxu0 0.0
      %3241 = vmatpush1.xpose.msra.mxu0 0.0
      %3242 = vmatprep.subr.mxu0 0.0
      %3243 = vmatpush1.xpose.msra.mxu0 0.0
      %3244 = vmatprep.subr.mxu0 0.0
      %3245 = vmatpush1.xpose.msra.mxu0 0.0
      %3246 = vmatprep.subr.mxu0 0.0
      %3247 = vmatpush1.xpose.msra.mxu0 0.0
      %3248 = vmatprep.subr.mxu0 0.0
      %3249 = vmatpush1.xpose.msra.mxu0 0.0
      %3250 = vmatprep.subr.mxu0 0.0
      %3251 = vmatpush1.xpose.msra.mxu0 0.0
      %3252 = vmatprep.subr.mxu0 0.0
      %3253 = vmatpush1.xpose.msra.mxu0 0.0
      %3254 = vmatprep.subr.mxu0 0.0
      %3255 = vmatpush1.xpose.msra.mxu0 0.0
      %3256 = vmatprep.subr.mxu0 0.0
      %3257 = vmatpush1.xpose.msra.mxu0 0.0
      %3258 = vmatprep.subr.mxu0 0.0
      %3259 = vmatpush1.xpose.msra.mxu0 0.0
      %3260 = vmatprep.subr.mxu0 0.0
      %3261 = vmatpush1.xpose.msra.mxu0 0.0
      %3262 = vmatprep.mubr.f32.mxu0 0.0
      %3263 = vmatmul.mubr.f32.gmra.mrb[0].mxu0 %v3194
      %v3264 = vpop.f32.mrb[0].mxu0
      %v3265 = vadd.f32 0.0, %v3264
      %v3266 = vpop.f32.mrb[0].mxu0
      %3267 = vdwg.mxu0
      %v3268 = vmul.f32 %v3265, 0.35355338
      %v3269 = vsel %vm1264, %v3268, -inf
      %3270 = vmax.xlane.f32.xlu0 %v3269
      %v3271 = vpop.xlane.xlu0 %3270
      %v3272 = vsub.f32 %v3268, %v3271
      %v3273 = vmul.f32 %v3272, 1.442695
      %v3274 = vpow.pop %v3273
      %v3275 = vsel %vm1264, %v3274, 0.0
      %3276 = vadd.xlane.f32.xlu0 %v3275
      %v3277 = vpop.xlane.xlu0 %3276
      %v3278 = vrcp.pop %v3277
      %v3279 = vmul.f32 %v3274, %v3278
      %3280 = vrot.lane.b32.xlu0 %v2467, 40
      %v3281 = vpop.permute.xlu0 %3280
      %v3283 = vsel %vm1278, %v3279, 0
      %v3285 = vsel %vm1282, %v3281, 0
      %3287 = vmatprep.subr.mxu0 0.0
      %3288 = vmatpush1.msra.mxu0 %v3285
      %3289 = vmatprep.subr.mxu0 0.0
      %3290 = vmatpush1.msra.mxu0 0.0
      %3291 = vmatprep.subr.mxu0 0.0
      %3292 = vmatpush1.msra.mxu0 0.0
      %3293 = vmatprep.subr.mxu0 0.0
      %3294 = vmatpush1.msra.mxu0 0.0
      %3295 = vmatprep.subr.mxu0 0.0
      %3296 = vmatpush1.msra.mxu0 0.0
      %3297 = vmatprep.subr.mxu0 0.0
      %3298 = vmatpush1.msra.mxu0 0.0
      %3299 = vmatprep.subr.mxu0 0.0
      %3300 = vmatpush1.msra.mxu0 0.0
      %3301 = vmatprep.subr.mxu0 0.0
      %3302 = vmatpush1.msra.mxu0 0.0
      %3303 = vmatprep.subr.mxu0 0.0
      %3304 = vmatpush1.msra.mxu0 0.0
      %3305 = vmatprep.subr.mxu0 0.0
      %3306 = vmatpush1.msra.mxu0 0.0
      %3307 = vmatprep.subr.mxu0 0.0
      %3308 = vmatpush1.msra.mxu0 0.0
      %3309 = vmatprep.subr.mxu0 0.0
      %3310 = vmatpush1.msra.mxu0 0.0
      %3311 = vmatprep.subr.mxu0 0.0
      %3312 = vmatpush1.msra.mxu0 0.0
      %3313 = vmatprep.subr.mxu0 0.0
      %3314 = vmatpush1.msra.mxu0 0.0
      %3315 = vmatprep.subr.mxu0 0.0
      %3316 = vmatpush1.msra.mxu0 0.0
      %3317 = vmatprep.subr.mxu0 0.0
      %3318 = vmatpush1.msra.mxu0 0.0
      %3319 = vmatprep.subr.mxu0 0.0
      %3320 = vmatpush1.msra.mxu0 0.0
      %3321 = vmatprep.subr.mxu0 0.0
      %3322 = vmatpush1.msra.mxu0 0.0
      %3323 = vmatprep.subr.mxu0 0.0
      %3324 = vmatpush1.msra.mxu0 0.0
      %3325 = vmatprep.subr.mxu0 0.0
      %3326 = vmatpush1.msra.mxu0 0.0
      %3327 = vmatprep.subr.mxu0 0.0
      %3328 = vmatpush1.msra.mxu0 0.0
      %3329 = vmatprep.subr.mxu0 0.0
      %3330 = vmatpush1.msra.mxu0 0.0
      %3331 = vmatprep.subr.mxu0 0.0
      %3332 = vmatpush1.msra.mxu0 0.0
      %3333 = vmatprep.subr.mxu0 0.0
      %3334 = vmatpush1.msra.mxu0 0.0
      %3335 = vmatprep.subr.mxu0 0.0
      %3336 = vmatpush1.msra.mxu0 0.0
      %3337 = vmatprep.subr.mxu0 0.0
      %3338 = vmatpush1.msra.mxu0 0.0
      %3339 = vmatprep.subr.mxu0 0.0
      %3340 = vmatpush1.msra.mxu0 0.0
      %3341 = vmatprep.subr.mxu0 0.0
      %3342 = vmatpush1.msra.mxu0 0.0
      %3343 = vmatprep.subr.mxu0 0.0
      %3344 = vmatpush1.msra.mxu0 0.0
      %3345 = vmatprep.subr.mxu0 0.0
      %3346 = vmatpush1.msra.mxu0 0.0
      %3347 = vmatprep.subr.mxu0 0.0
      %3348 = vmatpush1.msra.mxu0 0.0
      %3349 = vmatprep.subr.mxu0 0.0
      %3350 = vmatpush1.msra.mxu0 0.0
      %3351 = vmatprep.mubr.f32.mxu0 0.0
      %3352 = vmatmul.mubr.f32.gmra.mrb[0].mxu0 %v3283
      %v3353 = vpop.f32.mrb[0].mxu0
      %v3354 = vadd.f32 0.0, %v3353
      %v3355 = vpop.f32.mrb[0].mxu0
      %3356 = vdwg.mxu0
      %v3358 = vsel %vm1188, %v3354, 0
      %3360 = vmatprep.subr.mxu0 0.0
      %3361 = vmatpush1.msra.mxu0 %v2353
      %3362 = vmatprep.subr.mxu0 0.0
      %3363 = vmatpush1.msra.mxu0 0.0
      %3364 = vmatprep.subr.mxu0 0.0
      %3365 = vmatpush1.msra.mxu0 0.0
      %3366 = vmatprep.subr.mxu0 0.0
      %3367 = vmatpush1.msra.mxu0 0.0
      %3368 = vmatprep.subr.mxu0 0.0
      %3369 = vmatpush1.msra.mxu0 0.0
      %3370 = vmatprep.subr.mxu0 0.0
      %3371 = vmatpush1.msra.mxu0 0.0
      %3372 = vmatprep.subr.mxu0 0.0
      %3373 = vmatpush1.msra.mxu0 0.0
      %3374 = vmatprep.subr.mxu0 0.0
      %3375 = vmatpush1.msra.mxu0 0.0
      %3376 = vmatprep.subr.mxu0 0.0
      %3377 = vmatpush1.msra.mxu0 0.0
      %3378 = vmatprep.subr.mxu0 0.0
      %3379 = vmatpush1.msra.mxu0 0.0
      %3380 = vmatprep.subr.mxu0 0.0
      %3381 = vmatpush1.msra.mxu0 0.0
      %3382 = vmatprep.subr.mxu0 0.0
      %3383 = vmatpush1.msra.mxu0 0.0
      %3384 = vmatprep.subr.mxu0 0.0
      %3385 = vmatpush1.msra.mxu0 0.0
      %3386 = vmatprep.subr.mxu0 0.0
      %3387 = vmatpush1.msra.mxu0 0.0
      %3388 = vmatprep.subr.mxu0 0.0
      %3389 = vmatpush1.msra.mxu0 0.0
      %3390 = vmatprep.subr.mxu0 0.0
      %3391 = vmatpush1.msra.mxu0 0.0
      %3392 = vmatprep.subr.mxu0 0.0
      %3393 = vmatpush1.msra.mxu0 0.0
      %3394 = vmatprep.subr.mxu0 0.0
      %3395 = vmatpush1.msra.mxu0 0.0
      %3396 = vmatprep.subr.mxu0 0.0
      %3397 = vmatpush1.msra.mxu0 0.0
      %3398 = vmatprep.subr.mxu0 0.0
      %3399 = vmatpush1.msra.mxu0 0.0
      %3400 = vmatprep.subr.mxu0 0.0
      %3401 = vmatpush1.msra.mxu0 0.0
      %3402 = vmatprep.subr.mxu0 0.0
      %3403 = vmatpush1.msra.mxu0 0.0
      %3404 = vmatprep.subr.mxu0 0.0
      %3405 = vmatpush1.msra.mxu0 0.0
      %3406 = vmatprep.subr.mxu0 0.0
      %3407 = vmatpush1.msra.mxu0 0.0
      %3408 = vmatprep.subr.mxu0 0.0
      %3409 = vmatpush1.msra.mxu0 0.0
      %3410 = vmatprep.subr.mxu0 0.0
      %3411 = vmatpush1.msra.mxu0 0.0
      %3412 = vmatprep.subr.mxu0 0.0
      %3413 = vmatpush1.msra.mxu0 0.0
      %3414 = vmatprep.subr.mxu0 0.0
      %3415 = vmatpush1.msra.mxu0 0.0
      %3416 = vmatprep.subr.mxu0 0.0
      %3417 = vmatpush1.msra.mxu0 0.0
      %3418 = vmatprep.subr.mxu0 0.0
      %3419 = vmatpush1.msra.mxu0 0.0
      %3420 = vmatprep.subr.mxu0 0.0
      %3421 = vmatpush1.msra.mxu0 0.0
      %3422 = vmatprep.subr.mxu0 0.0
      %3423 = vmatpush1.msra.mxu0 0.0
      %3424 = vmatprep.mubr.f32.mxu0 0.0
      %3425 = vmatmul.mubr.f32.gmra.mrb[0].mxu0 %v3358
      %v3426 = vpop.f32.mrb[0].mxu0
      %v3427 = vadd.f32 0.0, %v3426
      %v3428 = vpop.f32.mrb[0].mxu0
      %3429 = vdwg.mxu0
      %v3430 = vadd.f32 %v3189, %v3427
      %v3431 = vadd.f32 %v2343, %v3430
      %v3432 = vlaneseq
      %v3433 = vshrl.u32 %v3432, 7
      %v3434 = vsub.s32 3, %v3433
      %v3435 = vrot.slane %v2369, %v3434
      %v3436 = vadd.f32 %v3431, %v3435
      %v3437 = vsel %vm1038, %v3436, 0.0
      %3438 = vadd.xlane.f32.xlu0 %v3437
      %v3439 = vpop.xlane.xlu0 %3438
      %v3440 = vmul.f32 %v3439, %v1042
      %v3441 = vsub.f32 %v3436, %v3440
      %v3442 = vmul.f32 %v3441, %v3441
      %v3443 = vsel %vm1038, %v3442, 0.0
      %3444 = vadd.xlane.f32.xlu0 %v3443
      %v3445 = vpop.xlane.xlu0 %3444
      %v3446 = vmul.f32 %v3445, %v1042
      %v3447 = vadd.f32 %v3446, 1e-05
      %v3448 = vrsqrt.pop %v3447
      %v3449 = vmul.f32 %v3441, %v3448
      %v3450 = vlaneseq
      %v3451 = vshrl.u32 %v3450, 7
      %v3452 = vsub.s32 4, %v3451
      %v3453 = vrot.slane %v2369, %v3452
      %v3454 = vmul.f32 %v3449, %v3453
      %v3455 = vlaneseq
      %v3456 = vshrl.u32 %v3455, 7
      %v3457 = vsub.s32 5, %v3456
      %v3458 = vrot.slane %v2369, %v3457
      %v3459 = vadd.f32 %v3454, %v3458
      %v3460 = vlaneseq
      %v3461 = vshrl.u32 %v3460, 7
      %v3462 = vsub.s32 6, %v3461
      %v3463 = vrot.slane %v2369, %v3462
      %v3465 = vsel %vm1111, %v3459, 0
      %3467 = vmatprep.subr.mxu0 0.0
      %3468 = vmatpush1.msra.mxu0 %v2355
      %3469 = vmatprep.subr.mxu0 0.0
      %3470 = vmatpush1.msra.mxu0 %v2356
      %3471 = vmatprep.subr.mxu0 0.0
      %3472 = vmatpush1.msra.mxu0 %v2357
      %3473 = vmatprep.subr.mxu0 0.0
      %3474 = vmatpush1.msra.mxu0 %v2358
      %3475 = vmatprep.subr.mxu0 0.0
      %3476 = vmatpush1.msra.mxu0 0.0
      %3477 = vmatprep.subr.mxu0 0.0
      %3478 = vmatpush1.msra.mxu0 0.0
      %3479 = vmatprep.subr.mxu0 0.0
      %3480 = vmatpush1.msra.mxu0 0.0
      %3481 = vmatprep.subr.mxu0 0.0
      %3482 = vmatpush1.msra.mxu0 0.0
      %3483 = vmatprep.subr.mxu0 0.0
      %3484 = vmatpush1.msra.mxu0 0.0
      %3485 = vmatprep.subr.mxu0 0.0
      %3486 = vmatpush1.msra.mxu0 0.0
      %3487 = vmatprep.subr.mxu0 0.0
      %3488 = vmatpush1.msra.mxu0 0.0
      %3489 = vmatprep.subr.mxu0 0.0
      %3490 = vmatpush1.msra.mxu0 0.0
      %3491 = vmatprep.subr.mxu0 0.0
      %3492 = vmatpush1.msra.mxu0 0.0
      %3493 = vmatprep.subr.mxu0 0.0
      %3494 = vmatpush1.msra.mxu0 0.0
      %3495 = vmatprep.subr.mxu0 0.0
      %3496 = vmatpush1.msra.mxu0 0.0
      %3497 = vmatprep.subr.mxu0 0.0
      %3498 = vmatpush1.msra.mxu0 0.0
      %3499 = vmatprep.subr.mxu0 0.0
      %3500 = vmatpush1.msra.mxu0 0.0
      %3501 = vmatprep.subr.mxu0 0.0
      %3502 = vmatpush1.msra.mxu0 0.0
      %3503 = vmatprep.subr.mxu0 0.0
      %3504 = vmatpush1.msra.mxu0 0.0
      %3505 = vmatprep.subr.mxu0 0.0
      %3506 = vmatpush1.msra.mxu0 0.0
      %3507 = vmatprep.subr.mxu0 0.0
      %3508 = vmatpush1.msra.mxu0 0.0
      %3509 = vmatprep.subr.mxu0 0.0
      %3510 = vmatpush1.msra.mxu0 0.0
      %3511 = vmatprep.subr.mxu0 0.0
      %3512 = vmatpush1.msra.mxu0 0.0
      %3513 = vmatprep.subr.mxu0 0.0
      %3514 = vmatpush1.msra.mxu0 0.0
      %3515 = vmatprep.subr.mxu0 0.0
      %3516 = vmatpush1.msra.mxu0 0.0
      %3517 = vmatprep.subr.mxu0 0.0
      %3518 = vmatpush1.msra.mxu0 0.0
      %3519 = vmatprep.subr.mxu0 0.0
      %3520 = vmatpush1.msra.mxu0 0.0
      %3521 = vmatprep.subr.mxu0 0.0
      %3522 = vmatpush1.msra.mxu0 0.0
      %3523 = vmatprep.subr.mxu0 0.0
      %3524 = vmatpush1.msra.mxu0 0.0
      %3525 = vmatprep.subr.mxu0 0.0
      %3526 = vmatpush1.msra.mxu0 0.0
      %3527 = vmatprep.subr.mxu0 0.0
      %3528 = vmatpush1.msra.mxu0 0.0
      %3529 = vmatprep.subr.mxu0 0.0
      %3530 = vmatpush1.msra.mxu0 0.0
      %3531 = vmatprep.mubr.f32.mxu0 0.0
      %3532 = vmatmul.mubr.f32.gmra.mrb[0].mxu0 %v3465
      %v3533 = vpop.f32.mrb[0].mxu0
      %v3534 = vadd.f32 %v3463, %v3533
      %v3535 = vpop.f32.mrb[0].mxu0
      %3536 = vdwg.mxu0
      %v3537 = vmul.f32 %v3534, 1.702
      %v3538 = vxor.u32 %v3537, 2147483648
      %v3539 = vmul.f32 %v3538, 1.442695
      %v3540 = vpow.pop %v3539
      %v3541 = vadd.f32 %v3540, 1.0
      %v3542 = vrcp.pop %v3541
      %v3543 = vmul.f32 1.0, %v3542
      %v3544 = vmul.f32 %v3534, %v3543
      %v3546 = vsel %vm2264, %v3544, 0
      %3548 = vmatprep.subr.mxu0 0.0
      %3549 = vmatpush1.msra.mxu0 %v2360
      %3550 = vmatprep.subr.mxu0 0.0
      %3551 = vmatpush1.msra.mxu0 %v2361
      %3552 = vmatprep.subr.mxu0 0.0
      %3553 = vmatpush1.msra.mxu0 %v2362
      %3554 = vmatprep.subr.mxu0 0.0
      %3555 = vmatpush1.msra.mxu0 %v2363
      %3556 = vmatprep.subr.mxu0 0.0
      %3557 = vmatpush1.msra.mxu0 %v2364
      %3558 = vmatprep.subr.mxu0 0.0
      %3559 = vmatpush1.msra.mxu0 %v2365
      %3560 = vmatprep.subr.mxu0 0.0
      %3561 = vmatpush1.msra.mxu0 %v2366
      %3562 = vmatprep.subr.mxu0 0.0
      %3563 = vmatpush1.msra.mxu0 %v2367
      %3564 = vmatprep.subr.mxu0 0.0
      %3565 = vmatpush1.msra.mxu0 0.0
      %3566 = vmatprep.subr.mxu0 0.0
      %3567 = vmatpush1.msra.mxu0 0.0
      %3568 = vmatprep.subr.mxu0 0.0
      %3569 = vmatpush1.msra.mxu0 0.0
      %3570 = vmatprep.subr.mxu0 0.0
      %3571 = vmatpush1.msra.mxu0 0.0
      %3572 = vmatprep.subr.mxu0 0.0
      %3573 = vmatpush1.msra.mxu0 0.0
      %3574 = vmatprep.subr.mxu0 0.0
      %3575 = vmatpush1.msra.mxu0 0.0
      %3576 = vmatprep.subr.mxu0 0.0
      %3577 = vmatpush1.msra.mxu0 0.0
      %3578 = vmatprep.subr.mxu0 0.0
      %3579 = vmatpush1.msra.mxu0 0.0
      %3580 = vmatprep.subr.mxu0 0.0
      %3581 = vmatpush1.msra.mxu0 0.0
      %3582 = vmatprep.subr.mxu0 0.0
      %3583 = vmatpush1.msra.mxu0 0.0
      %3584 = vmatprep.subr.mxu0 0.0
      %3585 = vmatpush1.msra.mxu0 0.0
      %3586 = vmatprep.subr.mxu0 0.0
      %3587 = vmatpush1.msra.mxu0 0.0
      %3588 = vmatprep.subr.mxu0 0.0
      %3589 = vmatpush1.msra.mxu0 0.0
      %3590 = vmatprep.subr.mxu0 0.0
      %3591 = vmatpush1.msra.mxu0 0.0
      %3592 = vmatprep.subr.mxu0 0.0
      %3593 = vmatpush1.msra.mxu0 0.0
      %3594 = vmatprep.subr.mxu0 0.0
      %3595 = vmatpush1.msra.mxu0 0.0
      %3596 = vmatprep.subr.mxu0 0.0
      %3597 = vmatpush1.msra.mxu0 0.0
      %3598 = vmatprep.subr.mxu0 0.0
      %3599 = vmatpush1.msra.mxu0 0.0
      %3600 = vmatprep.subr.mxu0 0.0
      %3601 = vmatpush1.msra.mxu0 0.0
      %3602 = vmatprep.subr.mxu0 0.0
      %3603 = vmatpush1.msra.mxu0 0.0
      %3604 = vmatprep.subr.mxu0 0.0
      %3605 = vmatpush1.msra.mxu0 0.0
      %3606 = vmatprep.subr.mxu0 0.0
      %3607 = vmatpush1.msra.mxu0 0.0
      %3608 = vmatprep.subr.mxu0 0.0
      %3609 = vmatpush1.msra.mxu0 0.0
      %3610 = vmatprep.subr.mxu0 0.0
      %3611 = vmatpush1.msra.mxu0 0.0
      %3612 = vmatprep.mubr.f32.mxu0 0.0
      %3613 = vmatmul.mubr.f32.gmra.mrb[0].mxu0 %v3546
      %v3614 = vpop.f32.mrb[0].mxu0
      %v3615 = vadd.f32 0.0, %v3614
      %v3616 = vpop.f32.mrb[0].mxu0
      %3617 = vdwg.mxu0
      %v3618 = vadd.f32 %v3436, %v3615
      %v3619 = vlaneseq
      %v3620 = vshrl.u32 %v3619, 7
      %v3621 = vsub.s32 7, %v3620
      %v3622 = vrot.slane %v2369, %v3621
      %v3623 = vadd.f32 %v3618, %v3622
      %v3624 = vld [vmem:[%s11] sm:$0x3]
      %v3625 = vld [vmem:[%s10] sm:$0xff]
      %v3626 = vld [vmem:[%s10 + $0x8] sm:$0xff]
      %v3627 = vld [vmem:[%s10 + $0x10] sm:$0xff]
      %v3628 = vld [vmem:[%s10 + $0x18] sm:$0xff]
      %v3629 = vlaneseq
      %v3630 = vshrl.u32 %v3629, 7
      %v3631 = vsub.s32 0, %v3630
      %v3632 = vrot.slane %v3624, %v3631
      %v3634 = vrot.slane %v3623, 1
      %v3635 = vsel %vm1111, %v3634, 0
      %3637 = vmatprep.subr.mxu0 0.0
      %3638 = vmatpush1.msra.mxu0 %v3625
      %3639 = vmatprep.subr.mxu0 0.0
      %3640 = vmatpush1.msra.mxu0 %v3626
      %3641 = vmatprep.subr.mxu0 0.0
      %3642 = vmatpush1.msra.mxu0 %v3627
      %3643 = vmatprep.subr.mxu0 0.0
      %3644 = vmatpush1.msra.mxu0 %v3628
      %3645 = vmatprep.subr.mxu0 0.0
      %3646 = vmatpush1.msra.mxu0 0.0
      %3647 = vmatprep.subr.mxu0 0.0
      %3648 = vmatpush1.msra.mxu0 0.0
      %3649 = vmatprep.subr.mxu0 0.0
      %3650 = vmatpush1.msra.mxu0 0.0
      %3651 = vmatprep.subr.mxu0 0.0
      %3652 = vmatpush1.msra.mxu0 0.0
      %3653 = vmatprep.subr.mxu0 0.0
      %3654 = vmatpush1.msra.mxu0 0.0
      %3655 = vmatprep.subr.mxu0 0.0
      %3656 = vmatpush1.msra.mxu0 0.0
      %3657 = vmatprep.subr.mxu0 0.0
      %3658 = vmatpush1.msra.mxu0 0.0
      %3659 = vmatprep.subr.mxu0 0.0
      %3660 = vmatpush1.msra.mxu0 0.0
      %3661 = vmatprep.subr.mxu0 0.0
      %3662 = vmatpush1.msra.mxu0 0.0
      %3663 = vmatprep.subr.mxu0 0.0
      %3664 = vmatpush1.msra.mxu0 0.0
      %3665 = vmatprep.subr.mxu0 0.0
      %3666 = vmatpush1.msra.mxu0 0.0
      %3667 = vmatprep.subr.mxu0 0.0
      %3668 = vmatpush1.msra.mxu0 0.0
      %3669 = vmatprep.subr.mxu0 0.0
      %3670 = vmatpush1.msra.mxu0 0.0
      %3671 = vmatprep.subr.mxu0 0.0
      %3672 = vmatpush1.msra.mxu0 0.0
      %3673 = vmatprep.subr.mxu0 0.0
      %3674 = vmatpush1.msra.mxu0 0.0
      %3675 = vmatprep.subr.mxu0 0.0
      %3676 = vmatpush1.msra.mxu0 0.0
      %3677 = vmatprep.subr.mxu0 0.0
      %3678 = vmatpush1.msra.mxu0 0.0
      %3679 = vmatprep.subr.mxu0 0.0
      %3680 = vmatpush1.msra.mxu0 0.0
      %3681 = vmatprep.subr.mxu0 0.0
      %3682 = vmatpush1.msra.mxu0 0.0
      %3683 = vmatprep.subr.mxu0 0.0
      %3684 = vmatpush1.msra.mxu0 0.0
      %3685 = vmatprep.subr.mxu0 0.0
      %3686 = vmatpush1.msra.mxu0 0.0
      %3687 = vmatprep.subr.mxu0 0.0
      %3688 = vmatpush1.msra.mxu0 0.0
      %3689 = vmatprep.subr.mxu0 0.0
      %3690 = vmatpush1.msra.mxu0 0.0
      %3691 = vmatprep.subr.mxu0 0.0
      %3692 = vmatpush1.msra.mxu0 0.0
      %3693 = vmatprep.subr.mxu0 0.0
      %3694 = vmatpush1.msra.mxu0 0.0
      %3695 = vmatprep.subr.mxu0 0.0
      %3696 = vmatpush1.msra.mxu0 0.0
      %3697 = vmatprep.subr.mxu0 0.0
      %3698 = vmatpush1.msra.mxu0 0.0
      %3699 = vmatprep.subr.mxu0 0.0
      %3700 = vmatpush1.msra.mxu0 0.0
      %3701 = vmatprep.mubr.f32.mxu0 0.0
      %3702 = vmatmul.mubr.f32.gmra.mrb[0].mxu0 %v3635
      %v3703 = vpop.f32.mrb[0].mxu0
      %v3704 = vadd.f32 %v3632, %v3703
      %v3705 = vpop.f32.mrb[0].mxu0
      %3706 = vdwg.mxu0
      %v3707 = vmul.f32 %v3704, %v3704
      %v3708 = vmul.f32 %v3704, %v3707
      %v3709 = vmul.f32 %v3708, 0.044715
      %v3710 = vadd.f32 %v3704, %v3709
      %v3711 = vmul.f32 %v3710, 0.7978846
      %v3712 = vtanh.pop %v3711
      %v3713 = vadd.f32 %v3712, 1.0
      %v3714 = vmul.f32 %v3713, 0.5
      %v3715 = vmul.f32 %v3704, %v3714
      %s3716 = scalar_lea.vmem %s10, 32
      %v3717 = vld [vmem:[%s3716] sm:$0xff]
      %v3718 = vld [vmem:[%s3716 + $0x8] sm:$0xff]
      %v3719 = vld [vmem:[%s3716 + $0x10] sm:$0xff]
      %v3720 = vld [vmem:[%s3716 + $0x18] sm:$0xff]
      %v3721 = vlaneseq
      %v3722 = vshrl.u32 %v3721, 7
      %v3723 = vsub.s32 1, %v3722
      %v3724 = vrot.slane %v3624, %v3723
      %v3726 = vsel %vm1111, %v3715, 0
      %3728 = vmatprep.subr.mxu0 0.0
      %3729 = vmatpush1.msra.mxu0 %v3717
      %3730 = vmatprep.subr.mxu0 0.0
      %3731 = vmatpush1.msra.mxu0 %v3718
      %3732 = vmatprep.subr.mxu0 0.0
      %3733 = vmatpush1.msra.mxu0 %v3719
      %3734 = vmatprep.subr.mxu0 0.0
      %3735 = vmatpush1.msra.mxu0 %v3720
      %3736 = vmatprep.subr.mxu0 0.0
      %3737 = vmatpush1.msra.mxu0 0.0
      %3738 = vmatprep.subr.mxu0 0.0
      %3739 = vmatpush1.msra.mxu0 0.0
      %3740 = vmatprep.subr.mxu0 0.0
      %3741 = vmatpush1.msra.mxu0 0.0
      %3742 = vmatprep.subr.mxu0 0.0
      %3743 = vmatpush1.msra.mxu0 0.0
      %3744 = vmatprep.subr.mxu0 0.0
      %3745 = vmatpush1.msra.mxu0 0.0
      %3746 = vmatprep.subr.mxu0 0.0
      %3747 = vmatpush1.msra.mxu0 0.0
      %3748 = vmatprep.subr.mxu0 0.0
      %3749 = vmatpush1.msra.mxu0 0.0
      %3750 = vmatprep.subr.mxu0 0.0
      %3751 = vmatpush1.msra.mxu0 0.0
      %3752 = vmatprep.subr.mxu0 0.0
      %3753 = vmatpush1.msra.mxu0 0.0
      %3754 = vmatprep.subr.mxu0 0.0
      %3755 = vmatpush1.msra.mxu0 0.0
      %3756 = vmatprep.subr.mxu0 0.0
      %3757 = vmatpush1.msra.mxu0 0.0
      %3758 = vmatprep.subr.mxu0 0.0
      %3759 = vmatpush1.msra.mxu0 0.0
      %3760 = vmatprep.subr.mxu0 0.0
      %3761 = vmatpush1.msra.mxu0 0.0
      %3762 = vmatprep.subr.mxu0 0.0
      %3763 = vmatpush1.msra.mxu0 0.0
      %3764 = vmatprep.subr.mxu0 0.0
      %3765 = vmatpush1.msra.mxu0 0.0
      %3766 = vmatprep.subr.mxu0 0.0
      %3767 = vmatpush1.msra.mxu0 0.0
      %3768 = vmatprep.subr.mxu0 0.0
      %3769 = vmatpush1.msra.mxu0 0.0
      %3770 = vmatprep.subr.mxu0 0.0
      %3771 = vmatpush1.msra.mxu0 0.0
      %3772 = vmatprep.subr.mxu0 0.0
      %3773 = vmatpush1.msra.mxu0 0.0
      %3774 = vmatprep.subr.mxu0 0.0
      %3775 = vmatpush1.msra.mxu0 0.0
      %3776 = vmatprep.subr.mxu0 0.0
      %3777 = vmatpush1.msra.mxu0 0.0
      %3778 = vmatprep.subr.mxu0 0.0
      %3779 = vmatpush1.msra.mxu0 0.0
      %3780 = vmatprep.subr.mxu0 0.0
      %3781 = vmatpush1.msra.mxu0 0.0
      %3782 = vmatprep.subr.mxu0 0.0
      %3783 = vmatpush1.msra.mxu0 0.0
      %3784 = vmatprep.subr.mxu0 0.0
      %3785 = vmatpush1.msra.mxu0 0.0
      %3786 = vmatprep.subr.mxu0 0.0
      %3787 = vmatpush1.msra.mxu0 0.0
      %3788 = vmatprep.subr.mxu0 0.0
      %3789 = vmatpush1.msra.mxu0 0.0
      %3790 = vmatprep.subr.mxu0 0.0
      %3791 = vmatpush1.msra.mxu0 0.0
      %3792 = vmatprep.mubr.f32.mxu0 0.0
      %3793 = vmatmul.mubr.f32.gmra.mrb[0].mxu0 %v3726
      %v3794 = vpop.f32.mrb[0].mxu0
      %v3795 = vadd.f32 %v3724, %v3794
      %v3796 = vpop.f32.mrb[0].mxu0
      %3797 = vdwg.mxu0
      %v3798 = vld [vmem:[%s644] sm:$0xff]
      %v3799 = vld [vmem:[%s644 + $0x8] sm:$0xf]
      %3800 = vset.pattern.permute.xlu0 0
      %3801 = vperm.xlu0 %3800, %v3798
      %v3802 = vpop.permute.xlu0 %3801
      %3803 = vset.pattern.permute.xlu0 0
      %3804 = vperm.xlu0 %3803, %v3799
      %v3805 = vpop.permute.xlu0 %3804
      %vm3806 = vcmp.eq.s32.totalorder %v955, %v3802
      %vm3807 = vcmp.eq.s32.totalorder %v955, %v3805
      %v3808 = vsel %vm3806, 1, 0
      %v3809 = vsel %vm3807, 1, 0
      %v3810 = vcvt.s32.f32 %v3808
      %v3811 = vcvt.s32.f32 %v3809
      %v3812 = vld [vmem:[%s12] sm:$0xff]
      %v3813 = vld [vmem:[%s12 + $0x8] sm:$0xff]
      %v3814 = vld [vmem:[%s12 + $0x10] sm:$0xff]
      %v3815 = vld [vmem:[%s12 + $0x18] sm:$0xff]
      %v3816 = vld [vmem:[%s12 + $0x20] sm:$0xff]
      %v3817 = vld [vmem:[%s12 + $0x28] sm:$0xff]
      %v3818 = vld [vmem:[%s12 + $0x30] sm:$0xff]
      %v3819 = vld [vmem:[%s12 + $0x38] sm:$0xff]
      %v3820 = vld [vmem:[%s12 + $0x40] sm:$0xff]
      %v3821 = vld [vmem:[%s12 + $0x48] sm:$0xff]
      %v3822 = vld [vmem:[%s12 + $0x50] sm:$0xff]
      %v3823 = vld [vmem:[%s12 + $0x58] sm:$0xff]
      %v3824 = vld [vmem:[%s12 + $0x60] sm:$0xff]
      %v3825 = vld [vmem:[%s12 + $0x68] sm:$0xff]
      %v3826 = vld [vmem:[%s12 + $0x70] sm:$0xff]
      %v3827 = vld [vmem:[%s12 + $0x78] sm:$0xff]
      %3828 = vmatprep.subr.mxu0 0.0
      %3829 = vmatpush1.msra.mxu0 %v3812
      %3830 = vmatprep.subr.mxu0 0.0
      %3831 = vmatpush1.msra.mxu0 %v3813
      %3832 = vmatprep.subr.mxu0 0.0
      %3833 = vmatpush1.msra.mxu0 %v3814
      %3834 = vmatprep.subr.mxu0 0.0
      %3835 = vmatpush1.msra.mxu0 %v3815
      %3836 = vmatprep.subr.mxu0 0.0
      %3837 = vmatpush1.msra.mxu0 %v3816
      %3838 = vmatprep.subr.mxu0 0.0
      %3839 = vmatpush1.msra.mxu0 %v3817
      %3840 = vmatprep.subr.mxu0 0.0
      %3841 = vmatpush1.msra.mxu0 %v3818
      %3842 = vmatprep.subr.mxu0 0.0
      %3843 = vmatpush1.msra.mxu0 %v3819
      %3844 = vmatprep.subr.mxu0 0.0
      %3845 = vmatpush1.msra.mxu0 %v3820
      %3846 = vmatprep.subr.mxu0 0.0
      %3847 = vmatpush1.msra.mxu0 %v3821
      %3848 = vmatprep.subr.mxu0 0.0
      %3849 = vmatpush1.msra.mxu0 %v3822
      %3850 = vmatprep.subr.mxu0 0.0
      %3851 = vmatpush1.msra.mxu0 %v3823
      %3852 = vmatprep.subr.mxu0 0.0
      %3853 = vmatpush1.msra.mxu0 %v3824
      %3854 = vmatprep.subr.mxu0 0.0
      %3855 = vmatpush1.msra.mxu0 %v3825
      %3856 = vmatprep.subr.mxu0 0.0
      %3857 = vmatpush1.msra.mxu0 %v3826
      %3858 = vmatprep.subr.mxu0 0.0
      %3859 = vmatpush1.msra.mxu0 %v3827
      %3860 = vmatprep.subr.mxu0 0.0
      %3861 = vmatpush1.msra.mxu0 0.0
      %3862 = vmatprep.subr.mxu0 0.0
      %3863 = vmatpush1.msra.mxu0 0.0
      %3864 = vmatprep.subr.mxu0 0.0
      %3865 = vmatpush1.msra.mxu0 0.0
      %3866 = vmatprep.subr.mxu0 0.0
      %3867 = vmatpush1.msra.mxu0 0.0
      %3868 = vmatprep.subr.mxu0 0.0
      %3869 = vmatpush1.msra.mxu0 0.0
      %3870 = vmatprep.subr.mxu0 0.0
      %3871 = vmatpush1.msra.mxu0 0.0
      %3872 = vmatprep.subr.mxu0 0.0
      %3873 = vmatpush1.msra.mxu0 0.0
      %3874 = vmatprep.subr.mxu0 0.0
      %3875 = vmatpush1.msra.mxu0 0.0
      %3876 = vmatprep.subr.mxu0 0.0
      %3877 = vmatpush1.msra.mxu0 0.0
      %3878 = vmatprep.subr.mxu0 0.0
      %3879 = vmatpush1.msra.mxu0 0.0
      %3880 = vmatprep.subr.mxu0 0.0
      %3881 = vmatpush1.msra.mxu0 0.0
      %3882 = vmatprep.subr.mxu0 0.0
      %3883 = vmatpush1.msra.mxu0 0.0
      %3884 = vmatprep.subr.mxu0 0.0
      %3885 = vmatpush1.msra.mxu0 0.0
      %3886 = vmatprep.subr.mxu0 0.0
      %3887 = vmatpush1.msra.mxu0 0.0
      %3888 = vmatprep.subr.mxu0 0.0
      %3889 = vmatpush1.msra.mxu0 0.0
      %3890 = vmatprep.subr.mxu0 0.0
      %3891 = vmatpush1.msra.mxu0 0.0
      %3892 = vmatprep.mubr.f32.mxu0 0.0
      %3893 = vmatmul.mubr.f32.gmra.mrb[0].mxu0 %v3810
      %v3894 = vpop.f32.mrb[0].mxu0
      %v3895 = vadd.f32 0.0, %v3894
      %v3896 = vpop.f32.mrb[0].mxu0
      %3897 = vmatprep.mubr.f32.mxu0 0.0
      %3898 = vmatmul.mubr.f32.gmra.mrb[0].mxu0 %v3811
      %v3899 = vpop.f32.mrb[0].mxu0
      %v3900 = vadd.f32 0.0, %v3899
      %v3901 = vpop.f32.mrb[0].mxu0
      %3902 = vdwg.mxu0
      %vm3903 = vcmp.eq.s32.totalorder %v3798, 127
      %vm3904 = vcmp.eq.s32.totalorder %v3799, 127
      %v3905 = vsel %vm3903, 1, 0
      %v3906 = vsel %vm3904, 1, 0
      %v3907 = vcvt.s32.f32 %v3905
      %v3908 = vcvt.s32.f32 %v3906
      %v3909 = vadd.s32 %v953, 8
      %vm3910 = vcmp.ge.s32.totalorder %v953, %v955
      %vm3911 = vcmp.ge.s32.totalorder %v3909, %v955
      %v3912 = vsel %vm3910, 1, 0
      %v3913 = vsel %vm3911, 1, 0
      %v3914 = vcvt.s32.f32 %v3912
      %v3915 = vcvt.s32.f32 %v3913
      %vm3916 = vcmask 97280
      %v3918 = vsel %vm3916, %v3914, 0
      %v3921 = vsel %vm3916, %v3915, 0
      %v3924 = vsel %vm737, %v3908, 0
      %3926 = vmatprep.subr.mxu0 0.0
      %3927 = vmatpush1.msra.mxu0 %v3907
      %3928 = vmatprep.subr.mxu0 0.0
      %3929 = vmatpush1.msra.mxu0 %v3924
      %3930 = vmatprep.subr.mxu0 0.0
      %3931 = vmatpush1.msra.mxu0 0.0
      %3932 = vmatprep.subr.mxu0 0.0
      %3933 = vmatpush1.msra.mxu0 0.0
      %3934 = vmatprep.subr.mxu0 0.0
      %3935 = vmatpush1.msra.mxu0 0.0
      %3936 = vmatprep.subr.mxu0 0.0
      %3937 = vmatpush1.msra.mxu0 0.0
      %3938 = vmatprep.subr.mxu0 0.0
      %3939 = vmatpush1.msra.mxu0 0.0
      %3940 = vmatprep.subr.mxu0 0.0
      %3941 = vmatpush1.msra.mxu0 0.0
      %3942 = vmatprep.subr.mxu0 0.0
      %3943 = vmatpush1.msra.mxu0 0.0
      %3944 = vmatprep.subr.mxu0 0.0
      %3945 = vmatpush1.msra.mxu0 0.0
      %3946 = vmatprep.subr.mxu0 0.0
      %3947 = vmatpush1.msra.mxu0 0.0
      %3948 = vmatprep.subr.mxu0 0.0
      %3949 = vmatpush1.msra.mxu0 0.0
      %3950 = vmatprep.subr.mxu0 0.0
      %3951 = vmatpush1.msra.mxu0 0.0
      %3952 = vmatprep.subr.mxu0 0.0
      %3953 = vmatpush1.msra.mxu0 0.0
      %3954 = vmatprep.subr.mxu0 0.0
      %3955 = vmatpush1.msra.mxu0 0.0
      %3956 = vmatprep.subr.mxu0 0.0
      %3957 = vmatpush1.msra.mxu0 0.0
      %3958 = vmatprep.subr.mxu0 0.0
      %3959 = vmatpush1.msra.mxu0 0.0
      %3960 = vmatprep.subr.mxu0 0.0
      %3961 = vmatpush1.msra.mxu0 0.0
      %3962 = vmatprep.subr.mxu0 0.0
      %3963 = vmatpush1.msra.mxu0 0.0
      %3964 = vmatprep.subr.mxu0 0.0
      %3965 = vmatpush1.msra.mxu0 0.0
      %3966 = vmatprep.subr.mxu0 0.0
      %3967 = vmatpush1.msra.mxu0 0.0
      %3968 = vmatprep.subr.mxu0 0.0
      %3969 = vmatpush1.msra.mxu0 0.0
      %3970 = vmatprep.subr.mxu0 0.0
      %3971 = vmatpush1.msra.mxu0 0.0
      %3972 = vmatprep.subr.mxu0 0.0
      %3973 = vmatpush1.msra.mxu0 0.0
      %3974 = vmatprep.subr.mxu0 0.0
      %3975 = vmatpush1.msra.mxu0 0.0
      %3976 = vmatprep.subr.mxu0 0.0
      %3977 = vmatpush1.msra.mxu0 0.0
      %3978 = vmatprep.subr.mxu0 0.0
      %3979 = vmatpush1.msra.mxu0 0.0
      %3980 = vmatprep.subr.mxu0 0.0
      %3981 = vmatpush1.msra.mxu0 0.0
      %3982 = vmatprep.subr.mxu0 0.0
      %3983 = vmatpush1.msra.mxu0 0.0
      %3984 = vmatprep.subr.mxu0 0.0
      %3985 = vmatpush1.msra.mxu0 0.0
      %3986 = vmatprep.subr.mxu0 0.0
      %3987 = vmatpush1.msra.mxu0 0.0
      %3988 = vmatprep.subr.mxu0 0.0
      %3989 = vmatpush1.msra.mxu0 0.0
      %3990 = vmatprep.mubr.f32.mxu0 0.0
      %3991 = vmatmul.mubr.f32.gmra.mrb[0].mxu0 %v3918
      %v3992 = vpop.f32.mrb[0].mxu0
      %v3993 = vadd.f32 0.0, %v3992
      %v3994 = vpop.f32.mrb[0].mxu0
      %3995 = vmatprep.mubr.f32.mxu0 0.0
      %3996 = vmatmul.mubr.f32.gmra.mrb[0].mxu0 %v3921
      %v3997 = vpop.f32.mrb[0].mxu0
      %v3998 = vadd.f32 0.0, %v3997
      %v3999 = vpop.f32.mrb[0].mxu0
      %4000 = vdwg.mxu0
      %v4001 = vsub.f32 %v3993, 1.0
      %v4002 = vsub.f32 %v3998, 1.0
      %v4003 = vmax.f32 %v4001, 0.0
      %v4004 = vmax.f32 %v4002, 0.0
      %v4005 = vmin.f32 %v4003, 3.0
      %v4006 = vmin.f32 %v4004, 3.0
      %v4007 = vcvt.s32.f32 %v955
      %4009 = vset.pattern.permute.xlu0 0
      %4010 = vperm.xlu0 %4009, %v4005
      %v4011 = vpop.permute.xlu0 %4010
      %4014 = vset.pattern.permute.xlu0 0
      %4015 = vperm.xlu0 %4014, %v4006
      %v4016 = vpop.permute.xlu0 %4015
      %vm4018 = vcmp.eq.f32.partialorder %v4007, %v4011
      %vm4019 = vcmp.eq.f32.partialorder %v4007, %v4016
      %v4020 = vsel %vm4018, 1, 0
      %v4021 = vsel %vm4019, 1, 0
      %v4022 = vcvt.s32.f32 %v4020
      %v4023 = vcvt.s32.f32 %v4021
      %v4025 = vsel %vm960, %v4022, 0
      %v4028 = vsel %vm960, %v4023, 0
      %v4031 = vsel %vm737, %v3795, 0
      %4033 = vmatprep.subr.mxu0 0.0
      %4034 = vmatpush1.msra.mxu0 %v4031
      %4035 = vmatprep.subr.mxu0 0.0
      %4036 = vmatpush1.msra.mxu0 0.0
      %4037 = vmatprep.subr.mxu0 0.0
      %4038 = vmatpush1.msra.mxu0 0.0
      %4039 = vmatprep.subr.mxu0 0.0
      %4040 = vmatpush1.msra.mxu0 0.0
      %4041 = vmatprep.subr.mxu0 0.0
      %4042 = vmatpush1.msra.mxu0 0.0
      %4043 = vmatprep.subr.mxu0 0.0
      %4044 = vmatpush1.msra.mxu0 0.0
      %4045 = vmatprep.subr.mxu0 0.0
      %4046 = vmatpush1.msra.mxu0 0.0
      %4047 = vmatprep.subr.mxu0 0.0
      %4048 = vmatpush1.msra.mxu0 0.0
      %4049 = vmatprep.subr.mxu0 0.0
      %4050 = vmatpush1.msra.mxu0 0.0
      %4051 = vmatprep.subr.mxu0 0.0
      %4052 = vmatpush1.msra.mxu0 0.0
      %4053 = vmatprep.subr.mxu0 0.0
      %4054 = vmatpush1.msra.mxu0 0.0
      %4055 = vmatprep.subr.mxu0 0.0
      %4056 = vmatpush1.msra.mxu0 0.0
      %4057 = vmatprep.subr.mxu0 0.0
      %4058 = vmatpush1.msra.mxu0 0.0
      %4059 = vmatprep.subr.mxu0 0.0
      %4060 = vmatpush1.msra.mxu0 0.0
      %4061 = vmatprep.subr.mxu0 0.0
      %4062 = vmatpush1.msra.mxu0 0.0
      %4063 = vmatprep.subr.mxu0 0.0
      %4064 = vmatpush1.msra.mxu0 0.0
      %4065 = vmatprep.subr.mxu0 0.0
      %4066 = vmatpush1.msra.mxu0 0.0
      %4067 = vmatprep.subr.mxu0 0.0
      %4068 = vmatpush1.msra.mxu0 0.0
      %4069 = vmatprep.subr.mxu0 0.0
      %4070 = vmatpush1.msra.mxu0 0.0
      %4071 = vmatprep.subr.mxu0 0.0
      %4072 = vmatpush1.msra.mxu0 0.0
      %4073 = vmatprep.subr.mxu0 0.0
      %4074 = vmatpush1.msra.mxu0 0.0
      %4075 = vmatprep.subr.mxu0 0.0
      %4076 = vmatpush1.msra.mxu0 0.0
      %4077 = vmatprep.subr.mxu0 0.0
      %4078 = vmatpush1.msra.mxu0 0.0
      %4079 = vmatprep.subr.mxu0 0.0
      %4080 = vmatpush1.msra.mxu0 0.0
      %4081 = vmatprep.subr.mxu0 0.0
      %4082 = vmatpush1.msra.mxu0 0.0
      %4083 = vmatprep.subr.mxu0 0.0
      %4084 = vmatpush1.msra.mxu0 0.0
      %4085 = vmatprep.subr.mxu0 0.0
      %4086 = vmatpush1.msra.mxu0 0.0
      %4087 = vmatprep.subr.mxu0 0.0
      %4088 = vmatpush1.msra.mxu0 0.0
      %4089 = vmatprep.subr.mxu0 0.0
      %4090 = vmatpush1.msra.mxu0 0.0
      %4091 = vmatprep.subr.mxu0 0.0
      %4092 = vmatpush1.msra.mxu0 0.0
      %4093 = vmatprep.subr.mxu0 0.0
      %4094 = vmatpush1.msra.mxu0 0.0
      %4095 = vmatprep.subr.mxu0 0.0
      %4096 = vmatpush1.msra.mxu0 0.0
      %4097 = vmatprep.mubr.f32.mxu0 0.0
      %4098 = vmatmul.mubr.f32.gmra.mrb[0].mxu0 %v4025
      %v4099 = vpop.f32.mrb[0].mxu0
      %v4100 = vadd.f32 0.0, %v4099
      %v4101 = vpop.f32.mrb[0].mxu0
      %4102 = vmatprep.mubr.f32.mxu0 0.0
      %4103 = vmatmul.mubr.f32.gmra.mrb[0].mxu0 %v4028
      %v4104 = vpop.f32.mrb[0].mxu0
      %v4105 = vadd.f32 0.0, %v4104
      %v4106 = vpop.f32.mrb[0].mxu0
      %4107 = vdwg.mxu0
      %4108 = vset.pattern.permute.xlu0 0
      %4109 = vperm.xlu0 %4108, %v3905
      %v4110 = vpop.permute.xlu0 %4109
      %4111 = vset.pattern.permute.xlu0 0
      %4112 = vperm.xlu0 %4111, %v3906
      %v4113 = vpop.permute.xlu0 %4112
      %vm4114 = vcmp.eq.s32.totalorder %v4110, 1
      %vm4115 = vcmp.eq.s32.totalorder %v4113, 1
      %v4116 = vsel %vm4114, %v4100, %v3895
      %v4117 = vsel %vm4115, %v4105, %v3900
      %v4118 = vld [vmem:[%s2] sm:$0xff]
      %v4119 = vld [vmem:[%s2 + $0x8] sm:$0xf]
      %v4120 = vld [vmem:[%s13] sm:$0xff]
      %v4121 = vld [vmem:[%s13 + $0x8] sm:$0xff]
      %v4122 = vld [vmem:[%s13 + $0x10] sm:$0xff]
      %v4123 = vld [vmem:[%s13 + $0x18] sm:$0xff]
      %v4124 = vld [vmem:[%s14] sm:$0xff]
      %v4125 = vld [vmem:[%s14 + $0x8] sm:$0xff]
      %v4126 = vld [vmem:[%s14 + $0x10] sm:$0xff]
      %v4127 = vld [vmem:[%s14 + $0x18] sm:$0xff]
      %v4128 = vld [vmem:[%s15] sm:$0xff]
      %v4129 = vld [vmem:[%s15 + $0x8] sm:$0xff]
      %v4130 = vld [vmem:[%s15 + $0x10] sm:$0xff]
      %v4131 = vld [vmem:[%s15 + $0x18] sm:$0xff]
      %v4132 = vld [vmem:[%s16] sm:$0xff]
      %v4133 = vld [vmem:[%s16 + $0x8] sm:$0xff]
      %v4134 = vld [vmem:[%s16 + $0x10] sm:$0xff]
      %v4135 = vld [vmem:[%s16 + $0x18] sm:$0xff]
      %v4136 = vld [vmem:[%s16 + $0x20] sm:$0xff]
      %v4137 = vld [vmem:[%s16 + $0x28] sm:$0xff]
      %v4138 = vld [vmem:[%s16 + $0x30] sm:$0xff]
      %v4139 = vld [vmem:[%s16 + $0x38] sm:$0xff]
      %v4140 = vld [vmem:[%s17] sm:$0x3]
      %v4141 = vmul.f32 %v4116, %v4116
      %v4142 = vmul.f32 %v4117, %v4117
      %v4143 = vsel %vm1111, %v4141, 0.0
      %4144 = vadd.xlane.f32.xlu0 %v4143
      %v4145 = vpop.xlane.xlu0 %4144
      %vm4146 = vcmask 257024
      %v4147 = vsel %vm4146, %v4142, 0.0
      %4148 = vadd.xlane.f32.xlu0 %v4147
      %v4149 = vpop.xlane.xlu0 %4148
      %v4150 = vmul.f32 %v4145, %v1042
      %v4151 = vmul.f32 %v4149, %v1042
      %v4152 = vadd.f32 %v4150, 1e-06
      %v4153 = vadd.f32 %v4151, 1e-06
      %v4154 = vrsqrt.pop %v4152
      %v4155 = vrsqrt.pop %v4153
      %v4156 = vmul.f32 %v4116, %v4154
      %v4157 = vmul.f32 %v4117, %v4155
      %v4158 = vlaneseq
      %v4159 = vshrl.u32 %v4158, 7
      %v4160 = vsub.s32 0, %v4159
      %v4161 = vrot.slane %v4140, %v4160
      %v4162 = vmul.f32 %v4156, %v4161
      %v4163 = vmul.f32 %v4157, %v4161
      %v4165 = vsel %vm1111, %v4162, 0
      %v4168 = vsel %vm1111, %v4163, 0
      %4170 = vmatprep.subr.mxu0 0.0
      %4171 = vmatpush1.msra.mxu0 %v4120
      %4172 = vmatprep.subr.mxu0 0.0
      %4173 = vmatpush1.msra.mxu0 %v4121
      %4174 = vmatprep.subr.mxu0 0.0
      %4175 = vmatpush1.msra.mxu0 %v4122
      %4176 = vmatprep.subr.mxu0 0.0
      %4177 = vmatpush1.msra.mxu0 %v4123
      %4178 = vmatprep.subr.mxu0 0.0
      %4179 = vmatpush1.msra.mxu0 0.0
      %4180 = vmatprep.subr.mxu0 0.0
      %4181 = vmatpush1.msra.mxu0 0.0
      %4182 = vmatprep.subr.mxu0 0.0
      %4183 = vmatpush1.msra.mxu0 0.0
      %4184 = vmatprep.subr.mxu0 0.0
      %4185 = vmatpush1.msra.mxu0 0.0
      %4186 = vmatprep.subr.mxu0 0.0
      %4187 = vmatpush1.msra.mxu0 0.0
      %4188 = vmatprep.subr.mxu0 0.0
      %4189 = vmatpush1.msra.mxu0 0.0
      %4190 = vmatprep.subr.mxu0 0.0
      %4191 = vmatpush1.msra.mxu0 0.0
      %4192 = vmatprep.subr.mxu0 0.0
      %4193 = vmatpush1.msra.mxu0 0.0
      %4194 = vmatprep.subr.mxu0 0.0
      %4195 = vmatpush1.msra.mxu0 0.0
      %4196 = vmatprep.subr.mxu0 0.0
      %4197 = vmatpush1.msra.mxu0 0.0
      %4198 = vmatprep.subr.mxu0 0.0
      %4199 = vmatpush1.msra.mxu0 0.0
      %4200 = vmatprep.subr.mxu0 0.0
      %4201 = vmatpush1.msra.mxu0 0.0
      %4202 = vmatprep.subr.mxu0 0.0
      %4203 = vmatpush1.msra.mxu0 0.0
      %4204 = vmatprep.subr.mxu0 0.0
      %4205 = vmatpush1.msra.mxu0 0.0
      %4206 = vmatprep.subr.mxu0 0.0
      %4207 = vmatpush1.msra.mxu0 0.0
      %4208 = vmatprep.subr.mxu0 0.0
      %4209 = vmatpush1.msra.mxu0 0.0
      %4210 = vmatprep.subr.mxu0 0.0
      %4211 = vmatpush1.msra.mxu0 0.0
      %4212 = vmatprep.subr.mxu0 0.0
      %4213 = vmatpush1.msra.mxu0 0.0
      %4214 = vmatprep.subr.mxu0 0.0
      %4215 = vmatpush1.msra.mxu0 0.0
      %4216 = vmatprep.subr.mxu0 0.0
      %4217 = vmatpush1.msra.mxu0 0.0
      %4218 = vmatprep.subr.mxu0 0.0
      %4219 = vmatpush1.msra.mxu0 0.0
      %4220 = vmatprep.subr.mxu0 0.0
      %4221 = vmatpush1.msra.mxu0 0.0
      %4222 = vmatprep.subr.mxu0 0.0
      %4223 = vmatpush1.msra.mxu0 0.0
      %4224 = vmatprep.subr.mxu0 0.0
      %4225 = vmatpush1.msra.mxu0 0.0
      %4226 = vmatprep.subr.mxu0 0.0
      %4227 = vmatpush1.msra.mxu0 0.0
      %4228 = vmatprep.subr.mxu0 0.0
      %4229 = vmatpush1.msra.mxu0 0.0
      %4230 = vmatprep.subr.mxu0 0.0
      %4231 = vmatpush1.msra.mxu0 0.0
      %4232 = vmatprep.subr.mxu0 0.0
      %4233 = vmatpush1.msra.mxu0 0.0
      %4234 = vmatprep.mubr.f32.mxu0 0.0
      %4235 = vmatmul.mubr.f32.gmra.mrb[0].mxu0 %v4165
      %v4236 = vpop.f32.mrb[0].mxu0
      %v4237 = vadd.f32 0.0, %v4236
      %v4238 = vpop.f32.mrb[0].mxu0
      %4239 = vmatprep.mubr.f32.mxu0 0.0
      %4240 = vmatmul.mubr.f32.gmra.mrb[0].mxu0 %v4168
      %v4241 = vpop.f32.mrb[0].mxu0
      %v4242 = vadd.f32 0.0, %v4241
      %v4243 = vpop.f32.mrb[0].mxu0
      %4244 = vdwg.mxu0
      %v4245 = vmul.f32 %v4237, %v4118
      %v4246 = vmul.f32 %v4242, %v4119
      %4249 = vrot.lane.b32.xlu0 %v4245, 124
      %v4250 = vpop.permute.xlu0 %4249
      %4251 = vrot.lane.b32.xlu0 %v4246, 124
      %v4252 = vpop.permute.xlu0 %4251
      %v4255 = vsub.f32 %v4245, %v4250
      %v4256 = vsub.f32 %v4246, %v4252
      %4259 = vrot.lane.b32.xlu0 %v4118, 4
      %v4260 = vpop.permute.xlu0 %4259
      %4261 = vrot.lane.b32.xlu0 %v4119, 4
      %v4262 = vpop.permute.xlu0 %4261
      %v4265 = vmul.f32 %v4237, %v4260
      %v4266 = vmul.f32 %v4242, %v4262
      %4267 = vrot.lane.b32.xlu0 %v4118, 124
      %v4268 = vpop.permute.xlu0 %4267
      %4269 = vrot.lane.b32.xlu0 %v4119, 124
      %v4270 = vpop.permute.xlu0 %4269
      %v4273 = vmul.f32 %v4237, %v4268
      %v4274 = vmul.f32 %v4242, %v4270
      %4277 = vrot.lane.b32.xlu0 %v4273, 4
      %v4278 = vpop.permute.xlu0 %4277
      %4279 = vrot.lane.b32.xlu0 %v4274, 4
      %v4280 = vpop.permute.xlu0 %4279
      %v4283 = vadd.f32 %v4265, %v4278
      %v4284 = vadd.f32 %v4266, %v4280
      %4285 = vrot.lane.b32.xlu0 %v4118, 32
      %v4286 = vpop.permute.xlu0 %4285
      %4287 = vrot.lane.b32.xlu0 %v4119, 32
      %v4288 = vpop.permute.xlu0 %4287
      %v4291 = vmul.f32 %v4237, %v4286
      %v4292 = vmul.f32 %v4242, %v4288
      %4295 = vrot.lane.b32.xlu0 %v4291, 124
      %v4296 = vpop.permute.xlu0 %4295
      %4297 = vrot.lane.b32.xlu0 %v4292, 124
      %v4298 = vpop.permute.xlu0 %4297
      %v4301 = vsub.f32 %v4291, %v4296
      %v4302 = vsub.f32 %v4292, %v4298
      %4303 = vrot.lane.b32.xlu0 %v4118, 36
      %v4304 = vpop.permute.xlu0 %4303
      %4305 = vrot.lane.b32.xlu0 %v4119, 36
      %v4306 = vpop.permute.xlu0 %4305
      %v4309 = vmul.f32 %v4237, %v4304
      %v4310 = vmul.f32 %v4242, %v4306
      %4311 = vrot.lane.b32.xlu0 %v4118, 28
      %v4312 = vpop.permute.xlu0 %4311
      %4313 = vrot.lane.b32.xlu0 %v4119, 28
      %v4314 = vpop.permute.xlu0 %4313
      %v4317 = vmul.f32 %v4237, %v4312
      %v4318 = vmul.f32 %v4242, %v4314
      %4321 = vrot.lane.b32.xlu0 %v4317, 4
      %v4322 = vpop.permute.xlu0 %4321
      %4323 = vrot.lane.b32.xlu0 %v4318, 4
      %v4324 = vpop.permute.xlu0 %4323
      %v4327 = vadd.f32 %v4309, %v4322
      %v4328 = vadd.f32 %v4310, %v4324
      %4331 = vrot.lane.b32.xlu0 %v4283, 124
      %v4332 = vpop.permute.xlu0 %4331
      %4333 = vrot.lane.b32.xlu0 %v4284, 124
      %v4334 = vpop.permute.xlu0 %4333
      %4337 = vrot.lane.b32.xlu0 %v4327, 92
      %v4338 = vpop.permute.xlu0 %4337
      %4339 = vrot.lane.b32.xlu0 %v4328, 92
      %v4340 = vpop.permute.xlu0 %4339
      %v4341 = vsel %vm960, %v4332, 0
      %v4343 = vsel %vm960, %v4334, 0
      %v4345 = vsel %vm960, %v4338, 0
      %v4347 = vsel %vm960, %v4340, 0
      %4349 = vmatprep.subr.mxu0 0.0
      %4350 = vmatpush1.xpose.msra.mxu0 %v4345
      %4351 = vmatprep.subr.mxu0 0.0
      %4352 = vmatpush1.xpose.msra.mxu0 %v4347
      %4353 = vmatprep.subr.mxu0 0.0
      %4354 = vmatpush1.xpose.msra.mxu0 0.0
      %4355 = vmatprep.subr.mxu0 0.0
      %4356 = vmatpush1.xpose.msra.mxu0 0.0
      %4357 = vmatprep.subr.mxu0 0.0
      %4358 = vmatpush1.xpose.msra.mxu0 0.0
      %4359 = vmatprep.subr.mxu0 0.0
      %4360 = vmatpush1.xpose.msra.mxu0 0.0
      %4361 = vmatprep.subr.mxu0 0.0
      %4362 = vmatpush1.xpose.msra.mxu0 0.0
      %4363 = vmatprep.subr.mxu0 0.0
      %4364 = vmatpush1.xpose.msra.mxu0 0.0
      %4365 = vmatprep.subr.mxu0 0.0
      %4366 = vmatpush1.xpose.msra.mxu0 0.0
      %4367 = vmatprep.subr.mxu0 0.0
      %4368 = vmatpush1.xpose.msra.mxu0 0.0
      %4369 = vmatprep.subr.mxu0 0.0
      %4370 = vmatpush1.xpose.msra.mxu0 0.0
      %4371 = vmatprep.subr.mxu0 0.0
      %4372 = vmatpush1.xpose.msra.mxu0 0.0
      %4373 = vmatprep.subr.mxu0 0.0
      %4374 = vmatpush1.xpose.msra.mxu0 0.0
      %4375 = vmatprep.subr.mxu0 0.0
      %4376 = vmatpush1.xpose.msra.mxu0 0.0
      %4377 = vmatprep.subr.mxu0 0.0
      %4378 = vmatpush1.xpose.msra.mxu0 0.0
      %4379 = vmatprep.subr.mxu0 0.0
      %4380 = vmatpush1.xpose.msra.mxu0 0.0
      %4381 = vmatprep.subr.mxu0 0.0
      %4382 = vmatpush1.xpose.msra.mxu0 0.0
      %4383 = vmatprep.subr.mxu0 0.0
      %4384 = vmatpush1.xpose.msra.mxu0 0.0
      %4385 = vmatprep.subr.mxu0 0.0
      %4386 = vmatpush1.xpose.msra.mxu0 0.0
      %4387 = vmatprep.subr.mxu0 0.0
      %4388 = vmatpush1.xpose.msra.mxu0 0.0
      %4389 = vmatprep.subr.mxu0 0.0
      %4390 = vmatpush1.xpose.msra.mxu0 0.0
      %4391 = vmatprep.subr.mxu0 0.0
      %4392 = vmatpush1.xpose.msra.mxu0 0.0
      %4393 = vmatprep.subr.mxu0 0.0
      %4394 = vmatpush1.xpose.msra.mxu0 0.0
      %4395 = vmatprep.subr.mxu0 0.0
      %4396 = vmatpush1.xpose.msra.mxu0 0.0
      %4397 = vmatprep.subr.mxu0 0.0
      %4398 = vmatpush1.xpose.msra.mxu0 0.0
      %4399 = vmatprep.subr.mxu0 0.0
      %4400 = vmatpush1.xpose.msra.mxu0 0.0
      %4401 = vmatprep.subr.mxu0 0.0
      %4402 = vmatpush1.xpose.msra.mxu0 0.0
      %4403 = vmatprep.subr.mxu0 0.0
      %4404 = vmatpush1.xpose.msra.mxu0 0.0
      %4405 = vmatprep.subr.mxu0 0.0
      %4406 = vmatpush1.xpose.msra.mxu0 0.0
      %4407 = vmatprep.subr.mxu0 0.0
      %4408 = vmatpush1.xpose.msra.mxu0 0.0
      %4409 = vmatprep.subr.mxu0 0.0
      %4410 = vmatpush1.xpose.msra.mxu0 0.0
      %4411 = vmatprep.subr.mxu0 0.0
      %4412 = vmatpush1.xpose.msra.mxu0 0.0
      %4413 = vmatprep.mubr.f32.mxu0 0.0
      %4414 = vmatmul.mubr.f32.gmra.mrb[0].mxu0 %v4341
      %v4415 = vpop.f32.mrb[0].mxu0
      %v4416 = vadd.f32 0.0, %v4415
      %v4417 = vpop.f32.mrb[0].mxu0
      %4418 = vmatprep.mubr.f32.mxu0 0.0
      %4419 = vmatmul.mubr.f32.gmra.mrb[0].mxu0 %v4343
      %v4420 = vpop.f32.mrb[0].mxu0
      %v4421 = vadd.f32 0.0, %v4420
      %v4422 = vpop.f32.mrb[0].mxu0
      %4423 = vdwg.mxu0
      %4426 = vrot.lane.b32.xlu0 %v4301, 96
      %v4427 = vpop.permute.xlu0 %4426
      %4428 = vrot.lane.b32.xlu0 %v4302, 96
      %v4429 = vpop.permute.xlu0 %4428
      %v4431 = vsel %vm960, %v4255, 0
      %v4434 = vsel %vm960, %v4256, 0
      %v4436 = vsel %vm960, %v4427, 0
      %v4438 = vsel %vm960, %v4429, 0
      %4440 = vmatprep.subr.mxu0 0.0
      %4441 = vmatpush1.xpose.msra.mxu0 %v4436
      %4442 = vmatprep.subr.mxu0 0.0
      %4443 = vmatpush1.xpose.msra.mxu0 %v4438
      %4444 = vmatprep.subr.mxu0 0.0
      %4445 = vmatpush1.xpose.msra.mxu0 0.0
      %4446 = vmatprep.subr.mxu0 0.0
      %4447 = vmatpush1.xpose.msra.mxu0 0.0
      %4448 = vmatprep.subr.mxu0 0.0
      %4449 = vmatpush1.xpose.msra.mxu0 0.0
      %4450 = vmatprep.subr.mxu0 0.0
      %4451 = vmatpush1.xpose.msra.mxu0 0.0
      %4452 = vmatprep.subr.mxu0 0.0
      %4453 = vmatpush1.xpose.msra.mxu0 0.0
      %4454 = vmatprep.subr.mxu0 0.0
      %4455 = vmatpush1.xpose.msra.mxu0 0.0
      %4456 = vmatprep.subr.mxu0 0.0
      %4457 = vmatpush1.xpose.msra.mxu0 0.0
      %4458 = vmatprep.subr.mxu0 0.0
      %4459 = vmatpush1.xpose.msra.mxu0 0.0
      %4460 = vmatprep.subr.mxu0 0.0
      %4461 = vmatpush1.xpose.msra.mxu0 0.0
      %4462 = vmatprep.subr.mxu0 0.0
      %4463 = vmatpush1.xpose.msra.mxu0 0.0
      %4464 = vmatprep.subr.mxu0 0.0
      %4465 = vmatpush1.xpose.msra.mxu0 0.0
      %4466 = vmatprep.subr.mxu0 0.0
      %4467 = vmatpush1.xpose.msra.mxu0 0.0
      %4468 = vmatprep.subr.mxu0 0.0
      %4469 = vmatpush1.xpose.msra.mxu0 0.0
      %4470 = vmatprep.subr.mxu0 0.0
      %4471 = vmatpush1.xpose.msra.mxu0 0.0
      %4472 = vmatprep.subr.mxu0 0.0
      %4473 = vmatpush1.xpose.msra.mxu0 0.0
      %4474 = vmatprep.subr.mxu0 0.0
      %4475 = vmatpush1.xpose.msra.mxu0 0.0
      %4476 = vmatprep.subr.mxu0 0.0
      %4477 = vmatpush1.xpose.msra.mxu0 0.0
      %4478 = vmatprep.subr.mxu0 0.0
      %4479 = vmatpush1.xpose.msra.mxu0 0.0
      %4480 = vmatprep.subr.mxu0 0.0
      %4481 = vmatpush1.xpose.msra.mxu0 0.0
      %4482 = vmatprep.subr.mxu0 0.0
      %4483 = vmatpush1.xpose.msra.mxu0 0.0
      %4484 = vmatprep.subr.mxu0 0.0
      %4485 = vmatpush1.xpose.msra.mxu0 0.0
      %4486 = vmatprep.subr.mxu0 0.0
      %4487 = vmatpush1.xpose.msra.mxu0 0.0
      %4488 = vmatprep.subr.mxu0 0.0
      %4489 = vmatpush1.xpose.msra.mxu0 0.0
      %4490 = vmatprep.subr.mxu0 0.0
      %4491 = vmatpush1.xpose.msra.mxu0 0.0
      %4492 = vmatprep.subr.mxu0 0.0
      %4493 = vmatpush1.xpose.msra.mxu0 0.0
      %4494 = vmatprep.subr.mxu0 0.0
      %4495 = vmatpush1.xpose.msra.mxu0 0.0
      %4496 = vmatprep.subr.mxu0 0.0
      %4497 = vmatpush1.xpose.msra.mxu0 0.0
      %4498 = vmatprep.subr.mxu0 0.0
      %4499 = vmatpush1.xpose.msra.mxu0 0.0
      %4500 = vmatprep.subr.mxu0 0.0
      %4501 = vmatpush1.xpose.msra.mxu0 0.0
      %4502 = vmatprep.subr.mxu0 0.0
      %4503 = vmatpush1.xpose.msra.mxu0 0.0
      %4504 = vmatprep.mubr.f32.mxu0 0.0
      %4505 = vmatmul.mubr.f32.gmra.mrb[0].mxu0 %v4431
      %v4506 = vpop.f32.mrb[0].mxu0
      %v4507 = vadd.f32 %v4416, %v4506
      %v4508 = vpop.f32.mrb[0].mxu0
      %4509 = vmatprep.mubr.f32.mxu0 0.0
      %4510 = vmatmul.mubr.f32.gmra.mrb[0].mxu0 %v4434
      %v4511 = vpop.f32.mrb[0].mxu0
      %v4512 = vadd.f32 %v4421, %v4511
      %v4513 = vpop.f32.mrb[0].mxu0
      %4514 = vdwg.mxu0
      %v4515 = vmul.f32 %v4507, 0.35355338
      %v4516 = vmul.f32 %v4512, 0.35355338
      %v4517 = vsel %vm3910, %v4515, -1e+09
      %v4518 = vsel %vm3911, %v4516, -1e+09
      %v4519 = vsel %vm3916, %v4517, -inf
      %4520 = vmax.xlane.f32.xlu0 %v4519
      %v4521 = vpop.xlane.xlu0 %4520
      %vm4522 = vcmask 93184
      %v4523 = vsel %vm4522, %v4518, -inf
      %4524 = vmax.xlane.f32.xlu0 %v4523
      %v4525 = vpop.xlane.xlu0 %4524
      %v4526 = vsub.f32 %v4517, %v4521
      %v4527 = vsub.f32 %v4518, %v4525
      %v4528 = vmul.f32 %v4526, 1.442695
      %v4529 = vpow.pop %v4528
      %v4530 = vmul.f32 %v4527, 1.442695
      %v4531 = vpow.pop %v4530
      %v4532 = vsel %vm3916, %v4529, 0.0
      %4533 = vadd.xlane.f32.xlu0 %v4532
      %v4534 = vpop.xlane.xlu0 %4533
      %v4535 = vsel %vm4522, %v4531, 0.0
      %4536 = vadd.xlane.f32.xlu0 %v4535
      %v4537 = vpop.xlane.xlu0 %4536
      %v4538 = vrcp.pop %v4534
      %v4539 = vmul.f32 %v4529, %v4538
      %v4540 = vrcp.pop %v4537
      %v4541 = vmul.f32 %v4531, %v4540
      %4544 = vrot.lane.b32.xlu0 %v4237, 64
      %v4545 = vpop.permute.xlu0 %4544
      %4546 = vrot.lane.b32.xlu0 %v4242, 64
      %v4547 = vpop.permute.xlu0 %4546
      %v4550 = vsel %vm3916, %v4539, 0
      %v4553 = vsel %vm3916, %v4541, 0
      %v4555 = vsel %vm737, %v4547, 0
      %4557 = vmatprep.subr.mxu0 0.0
      %4558 = vmatpush1.msra.mxu0 %v4545
      %4559 = vmatprep.subr.mxu0 0.0
      %4560 = vmatpush1.msra.mxu0 %v4555
      %4561 = vmatprep.subr.mxu0 0.0
      %4562 = vmatpush1.msra.mxu0 0.0
      %4563 = vmatprep.subr.mxu0 0.0
      %4564 = vmatpush1.msra.mxu0 0.0
      %4565 = vmatprep.subr.mxu0 0.0
      %4566 = vmatpush1.msra.mxu0 0.0
      %4567 = vmatprep.subr.mxu0 0.0
      %4568 = vmatpush1.msra.mxu0 0.0
      %4569 = vmatprep.subr.mxu0 0.0
      %4570 = vmatpush1.msra.mxu0 0.0
      %4571 = vmatprep.subr.mxu0 0.0
      %4572 = vmatpush1.msra.mxu0 0.0
      %4573 = vmatprep.subr.mxu0 0.0
      %4574 = vmatpush1.msra.mxu0 0.0
      %4575 = vmatprep.subr.mxu0 0.0
      %4576 = vmatpush1.msra.mxu0 0.0
      %4577 = vmatprep.subr.mxu0 0.0
      %4578 = vmatpush1.msra.mxu0 0.0
      %4579 = vmatprep.subr.mxu0 0.0
      %4580 = vmatpush1.msra.mxu0 0.0
      %4581 = vmatprep.subr.mxu0 0.0
      %4582 = vmatpush1.msra.mxu0 0.0
      %4583 = vmatprep.subr.mxu0 0.0
      %4584 = vmatpush1.msra.mxu0 0.0
      %4585 = vmatprep.subr.mxu0 0.0
      %4586 = vmatpush1.msra.mxu0 0.0
      %4587 = vmatprep.subr.mxu0 0.0
      %4588 = vmatpush1.msra.mxu0 0.0
      %4589 = vmatprep.subr.mxu0 0.0
      %4590 = vmatpush1.msra.mxu0 0.0
      %4591 = vmatprep.subr.mxu0 0.0
      %4592 = vmatpush1.msra.mxu0 0.0
      %4593 = vmatprep.subr.mxu0 0.0
      %4594 = vmatpush1.msra.mxu0 0.0
      %4595 = vmatprep.subr.mxu0 0.0
      %4596 = vmatpush1.msra.mxu0 0.0
      %4597 = vmatprep.subr.mxu0 0.0
      %4598 = vmatpush1.msra.mxu0 0.0
      %4599 = vmatprep.subr.mxu0 0.0
      %4600 = vmatpush1.msra.mxu0 0.0
      %4601 = vmatprep.subr.mxu0 0.0
      %4602 = vmatpush1.msra.mxu0 0.0
      %4603 = vmatprep.subr.mxu0 0.0
      %4604 = vmatpush1.msra.mxu0 0.0
      %4605 = vmatprep.subr.mxu0 0.0
      %4606 = vmatpush1.msra.mxu0 0.0
      %4607 = vmatprep.subr.mxu0 0.0
      %4608 = vmatpush1.msra.mxu0 0.0
      %4609 = vmatprep.subr.mxu0 0.0
      %4610 = vmatpush1.msra.mxu0 0.0
      %4611 = vmatprep.subr.mxu0 0.0
      %4612 = vmatpush1.msra.mxu0 0.0
      %4613 = vmatprep.subr.mxu0 0.0
      %4614 = vmatpush1.msra.mxu0 0.0
      %4615 = vmatprep.subr.mxu0 0.0
      %4616 = vmatpush1.msra.mxu0 0.0
      %4617 = vmatprep.subr.mxu0 0.0
      %4618 = vmatpush1.msra.mxu0 0.0
      %4619 = vmatprep.subr.mxu0 0.0
      %4620 = vmatpush1.msra.mxu0 0.0
      %4621 = vmatprep.mubr.f32.mxu0 0.0
      %4622 = vmatmul.mubr.f32.gmra.mrb[0].mxu0 %v4550
      %v4623 = vpop.f32.mrb[0].mxu0
      %v4624 = vadd.f32 0.0, %v4623
      %v4625 = vpop.f32.mrb[0].mxu0
      %4626 = vmatprep.mubr.f32.mxu0 0.0
      %4627 = vmatmul.mubr.f32.gmra.mrb[0].mxu0 %v4553
      %v4628 = vpop.f32.mrb[0].mxu0
      %v4629 = vadd.f32 0.0, %v4628
      %v4630 = vpop.f32.mrb[0].mxu0
      %4631 = vdwg.mxu0
      %4632 = vrot.lane.b32.xlu0 %v4118, 8
      %v4633 = vpop.permute.xlu0 %4632
      %4634 = vrot.lane.b32.xlu0 %v4119, 8
      %v4635 = vpop.permute.xlu0 %4634
      %v4638 = vmul.f32 %v4237, %v4633
      %v4639 = vmul.f32 %v4242, %v4635
      %4642 = vrot.lane.b32.xlu0 %v4638, 124
      %v4643 = vpop.permute.xlu0 %4642
      %4644 = vrot.lane.b32.xlu0 %v4639, 124
      %v4645 = vpop.permute.xlu0 %4644
      %v4648 = vsub.f32 %v4638, %v4643
      %v4649 = vsub.f32 %v4639, %v4645
      %4650 = vrot.lane.b32.xlu0 %v4118, 12
      %v4651 = vpop.permute.xlu0 %4650
      %4652 = vrot.lane.b32.xlu0 %v4119, 12
      %v4653 = vpop.permute.xlu0 %4652
      %v4656 = vmul.f32 %v4237, %v4651
      %v4657 = vmul.f32 %v4242, %v4653
      %4660 = vrot.lane.b32.xlu0 %v4265, 4
      %v4661 = vpop.permute.xlu0 %4660
      %4662 = vrot.lane.b32.xlu0 %v4266, 4
      %v4663 = vpop.permute.xlu0 %4662
      %v4666 = vadd.f32 %v4656, %v4661
      %v4667 = vadd.f32 %v4657, %v4663
      %4668 = vrot.lane.b32.xlu0 %v4118, 40
      %v4669 = vpop.permute.xlu0 %4668
      %4670 = vrot.lane.b32.xlu0 %v4119, 40
      %v4671 = vpop.permute.xlu0 %4670
      %v4674 = vmul.f32 %v4237, %v4669
      %v4675 = vmul.f32 %v4242, %v4671
      %4678 = vrot.lane.b32.xlu0 %v4674, 124
      %v4679 = vpop.permute.xlu0 %4678
      %4680 = vrot.lane.b32.xlu0 %v4675, 124
      %v4681 = vpop.permute.xlu0 %4680
      %v4684 = vsub.f32 %v4674, %v4679
      %v4685 = vsub.f32 %v4675, %v4681
      %4686 = vrot.lane.b32.xlu0 %v4118, 44
      %v4687 = vpop.permute.xlu0 %4686
      %4688 = vrot.lane.b32.xlu0 %v4119, 44
      %v4689 = vpop.permute.xlu0 %4688
      %v4692 = vmul.f32 %v4237, %v4687
      %v4693 = vmul.f32 %v4242, %v4689
      %4696 = vrot.lane.b32.xlu0 %v4309, 4
      %v4697 = vpop.permute.xlu0 %4696
      %4698 = vrot.lane.b32.xlu0 %v4310, 4
      %v4699 = vpop.permute.xlu0 %4698
      %v4702 = vadd.f32 %v4692, %v4697
      %v4703 = vadd.f32 %v4693, %v4699
      %4706 = vrot.lane.b32.xlu0 %v4666, 116
      %v4707 = vpop.permute.xlu0 %4706
      %4708 = vrot.lane.b32.xlu0 %v4667, 116
      %v4709 = vpop.permute.xlu0 %4708
      %4712 = vrot.lane.b32.xlu0 %v4702, 84
      %v4713 = vpop.permute.xlu0 %4712
      %4714 = vrot.lane.b32.xlu0 %v4703, 84
      %v4715 = vpop.permute.xlu0 %4714
      %v4716 = vsel %vm960, %v4707, 0
      %v4718 = vsel %vm960, %v4709, 0
      %v4720 = vsel %vm960, %v4713, 0
      %v4722 = vsel %vm960, %v4715, 0
      %4724 = vmatprep.subr.mxu0 0.0
      %4725 = vmatpush1.xpose.msra.mxu0 %v4720
      %4726 = vmatprep.subr.mxu0 0.0
      %4727 = vmatpush1.xpose.msra.mxu0 %v4722
      %4728 = vmatprep.subr.mxu0 0.0
      %4729 = vmatpush1.xpose.msra.mxu0 0.0
      %4730 = vmatprep.subr.mxu0 0.0
      %4731 = vmatpush1.xpose.msra.mxu0 0.0
      %4732 = vmatprep.subr.mxu0 0.0
      %4733 = vmatpush1.xpose.msra.mxu0 0.0
      %4734 = vmatprep.subr.mxu0 0.0
      %4735 = vmatpush1.xpose.msra.mxu0 0.0
      %4736 = vmatprep.subr.mxu0 0.0
      %4737 = vmatpush1.xpose.msra.mxu0 0.0
      %4738 = vmatprep.subr.mxu0 0.0
      %4739 = vmatpush1.xpose.msra.mxu0 0.0
      %4740 = vmatprep.subr.mxu0 0.0
      %4741 = vmatpush1.xpose.msra.mxu0 0.0
      %4742 = vmatprep.subr.mxu0 0.0
      %4743 = vmatpush1.xpose.msra.mxu0 0.0
      %4744 = vmatprep.subr.mxu0 0.0
      %4745 = vmatpush1.xpose.msra.mxu0 0.0
      %4746 = vmatprep.subr.mxu0 0.0
      %4747 = vmatpush1.xpose.msra.mxu0 0.0
      %4748 = vmatprep.subr.mxu0 0.0
      %4749 = vmatpush1.xpose.msra.mxu0 0.0
      %4750 = vmatprep.subr.mxu0 0.0
      %4751 = vmatpush1.xpose.msra.mxu0 0.0
      %4752 = vmatprep.subr.mxu0 0.0
      %4753 = vmatpush1.xpose.msra.mxu0 0.0
      %4754 = vmatprep.subr.mxu0 0.0
      %4755 = vmatpush1.xpose.msra.mxu0 0.0
      %4756 = vmatprep.subr.mxu0 0.0
      %4757 = vmatpush1.xpose.msra.mxu0 0.0
      %4758 = vmatprep.subr.mxu0 0.0
      %4759 = vmatpush1.xpose.msra.mxu0 0.0
      %4760 = vmatprep.subr.mxu0 0.0
      %4761 = vmatpush1.xpose.msra.mxu0 0.0
      %4762 = vmatprep.subr.mxu0 0.0
      %4763 = vmatpush1.xpose.msra.mxu0 0.0
      %4764 = vmatprep.subr.mxu0 0.0
      %4765 = vmatpush1.xpose.msra.mxu0 0.0
      %4766 = vmatprep.subr.mxu0 0.0
      %4767 = vmatpush1.xpose.msra.mxu0 0.0
      %4768 = vmatprep.subr.mxu0 0.0
      %4769 = vmatpush1.xpose.msra.mxu0 0.0
      %4770 = vmatprep.subr.mxu0 0.0
      %4771 = vmatpush1.xpose.msra.mxu0 0.0
      %4772 = vmatprep.subr.mxu0 0.0
      %4773 = vmatpush1.xpose.msra.mxu0 0.0
      %4774 = vmatprep.subr.mxu0 0.0
      %4775 = vmatpush1.xpose.msra.mxu0 0.0
      %4776 = vmatprep.subr.mxu0 0.0
      %4777 = vmatpush1.xpose.msra.mxu0 0.0
      %4778 = vmatprep.subr.mxu0 0.0
      %4779 = vmatpush1.xpose.msra.mxu0 0.0
      %4780 = vmatprep.subr.mxu0 0.0
      %4781 = vmatpush1.xpose.msra.mxu0 0.0
      %4782 = vmatprep.subr.mxu0 0.0
      %4783 = vmatpush1.xpose.msra.mxu0 0.0
      %4784 = vmatprep.subr.mxu0 0.0
      %4785 = vmatpush1.xpose.msra.mxu0 0.0
      %4786 = vmatprep.subr.mxu0 0.0
      %4787 = vmatpush1.xpose.msra.mxu0 0.0
      %4788 = vmatprep.mubr.f32.mxu0 0.0
      %4789 = vmatmul.mubr.f32.gmra.mrb[0].mxu0 %v4716
      %v4790 = vpop.f32.mrb[0].mxu0
      %v4791 = vadd.f32 0.0, %v4790
      %v4792 = vpop.f32.mrb[0].mxu0
      %4793 = vmatprep.mubr.f32.mxu0 0.0
      %4794 = vmatmul.mubr.f32.gmra.mrb[0].mxu0 %v4718
      %v4795 = vpop.f32.mrb[0].mxu0
      %v4796 = vadd.f32 0.0, %v4795
      %v4797 = vpop.f32.mrb[0].mxu0
      %4798 = vdwg.mxu0
      %4801 = vrot.lane.b32.xlu0 %v4648, 120
      %v4802 = vpop.permute.xlu0 %4801
      %4803 = vrot.lane.b32.xlu0 %v4649, 120
      %v4804 = vpop.permute.xlu0 %4803
      %4807 = vrot.lane.b32.xlu0 %v4684, 88
      %v4808 = vpop.permute.xlu0 %4807
      %4809 = vrot.lane.b32.xlu0 %v4685, 88
      %v4810 = vpop.permute.xlu0 %4809
      %v4811 = vsel %vm960, %v4802, 0
      %v4813 = vsel %vm960, %v4804, 0
      %v4815 = vsel %vm960, %v4808, 0
      %v4817 = vsel %vm960, %v4810, 0
      %4819 = vmatprep.subr.mxu0 0.0
      %4820 = vmatpush1.xpose.msra.mxu0 %v4815
      %4821 = vmatprep.subr.mxu0 0.0
      %4822 = vmatpush1.xpose.msra.mxu0 %v4817
      %4823 = vmatprep.subr.mxu0 0.0
      %4824 = vmatpush1.xpose.msra.mxu0 0.0
      %4825 = vmatprep.subr.mxu0 0.0
      %4826 = vmatpush1.xpose.msra.mxu0 0.0
      %4827 = vmatprep.subr.mxu0 0.0
      %4828 = vmatpush1.xpose.msra.mxu0 0.0
      %4829 = vmatprep.subr.mxu0 0.0
      %4830 = vmatpush1.xpose.msra.mxu0 0.0
      %4831 = vmatprep.subr.mxu0 0.0
      %4832 = vmatpush1.xpose.msra.mxu0 0.0
      %4833 = vmatprep.subr.mxu0 0.0
      %4834 = vmatpush1.xpose.msra.mxu0 0.0
      %4835 = vmatprep.subr.mxu0 0.0
      %4836 = vmatpush1.xpose.msra.mxu0 0.0
      %4837 = vmatprep.subr.mxu0 0.0
      %4838 = vmatpush1.xpose.msra.mxu0 0.0
      %4839 = vmatprep.subr.mxu0 0.0
      %4840 = vmatpush1.xpose.msra.mxu0 0.0
      %4841 = vmatprep.subr.mxu0 0.0
      %4842 = vmatpush1.xpose.msra.mxu0 0.0
      %4843 = vmatprep.subr.mxu0 0.0
      %4844 = vmatpush1.xpose.msra.mxu0 0.0
      %4845 = vmatprep.subr.mxu0 0.0
      %4846 = vmatpush1.xpose.msra.mxu0 0.0
      %4847 = vmatprep.subr.mxu0 0.0
      %4848 = vmatpush1.xpose.msra.mxu0 0.0
      %4849 = vmatprep.subr.mxu0 0.0
      %4850 = vmatpush1.xpose.msra.mxu0 0.0
      %4851 = vmatprep.subr.mxu0 0.0
      %4852 = vmatpush1.xpose.msra.mxu0 0.0
      %4853 = vmatprep.subr.mxu0 0.0
      %4854 = vmatpush1.xpose.msra.mxu0 0.0
      %4855 = vmatprep.subr.mxu0 0.0
      %4856 = vmatpush1.xpose.msra.mxu0 0.0
      %4857 = vmatprep.subr.mxu0 0.0
      %4858 = vmatpush1.xpose.msra.mxu0 0.0
      %4859 = vmatprep.subr.mxu0 0.0
      %4860 = vmatpush1.xpose.msra.mxu0 0.0
      %4861 = vmatprep.subr.mxu0 0.0
      %4862 = vmatpush1.xpose.msra.mxu0 0.0
      %4863 = vmatprep.subr.mxu0 0.0
      %4864 = vmatpush1.xpose.msra.mxu0 0.0
      %4865 = vmatprep.subr.mxu0 0.0
      %4866 = vmatpush1.xpose.msra.mxu0 0.0
      %4867 = vmatprep.subr.mxu0 0.0
      %4868 = vmatpush1.xpose.msra.mxu0 0.0
      %4869 = vmatprep.subr.mxu0 0.0
      %4870 = vmatpush1.xpose.msra.mxu0 0.0
      %4871 = vmatprep.subr.mxu0 0.0
      %4872 = vmatpush1.xpose.msra.mxu0 0.0
      %4873 = vmatprep.subr.mxu0 0.0
      %4874 = vmatpush1.xpose.msra.mxu0 0.0
      %4875 = vmatprep.subr.mxu0 0.0
      %4876 = vmatpush1.xpose.msra.mxu0 0.0
      %4877 = vmatprep.subr.mxu0 0.0
      %4878 = vmatpush1.xpose.msra.mxu0 0.0
      %4879 = vmatprep.subr.mxu0 0.0
      %4880 = vmatpush1.xpose.msra.mxu0 0.0
      %4881 = vmatprep.subr.mxu0 0.0
      %4882 = vmatpush1.xpose.msra.mxu0 0.0
      %4883 = vmatprep.mubr.f32.mxu0 0.0
      %4884 = vmatmul.mubr.f32.gmra.mrb[0].mxu0 %v4811
      %v4885 = vpop.f32.mrb[0].mxu0
      %v4886 = vadd.f32 %v4791, %v4885
      %v4887 = vpop.f32.mrb[0].mxu0
      %4888 = vmatprep.mubr.f32.mxu0 0.0
      %4889 = vmatmul.mubr.f32.gmra.mrb[0].mxu0 %v4813
      %v4890 = vpop.f32.mrb[0].mxu0
      %v4891 = vadd.f32 %v4796, %v4890
      %v4892 = vpop.f32.mrb[0].mxu0
      %4893 = vdwg.mxu0
      %v4894 = vmul.f32 %v4886, 0.35355338
      %v4895 = vmul.f32 %v4891, 0.35355338
      %v4896 = vsel %vm3910, %v4894, -1e+09
      %v4897 = vsel %vm3911, %v4895, -1e+09
      %v4898 = vsel %vm3916, %v4896, -inf
      %4899 = vmax.xlane.f32.xlu0 %v4898
      %v4900 = vpop.xlane.xlu0 %4899
      %v4901 = vsel %vm4522, %v4897, -inf
      %4902 = vmax.xlane.f32.xlu0 %v4901
      %v4903 = vpop.xlane.xlu0 %4902
      %v4904 = vsub.f32 %v4896, %v4900
      %v4905 = vsub.f32 %v4897, %v4903
      %v4906 = vmul.f32 %v4904, 1.442695
      %v4907 = vpow.pop %v4906
      %v4908 = vmul.f32 %v4905, 1.442695
      %v4909 = vpow.pop %v4908
      %v4910 = vsel %vm3916, %v4907, 0.0
      %4911 = vadd.xlane.f32.xlu0 %v4910
      %v4912 = vpop.xlane.xlu0 %4911
      %v4913 = vsel %vm4522, %v4909, 0.0
      %4914 = vadd.xlane.f32.xlu0 %v4913
      %v4915 = vpop.xlane.xlu0 %4914
      %v4916 = vrcp.pop %v4912
      %v4917 = vmul.f32 %v4907, %v4916
      %v4918 = vrcp.pop %v4915
      %v4919 = vmul.f32 %v4909, %v4918
      %4920 = vrot.lane.b32.xlu0 %v4237, 56
      %v4921 = vpop.permute.xlu0 %4920
      %4922 = vrot.lane.b32.xlu0 %v4242, 56
      %v4923 = vpop.permute.xlu0 %4922
      %v4926 = vsel %vm3916, %v4917, 0
      %v4929 = vsel %vm3916, %v4919, 0
      %v4931 = vsel %vm737, %v4923, 0
      %4933 = vmatprep.subr.mxu0 0.0
      %4934 = vmatpush1.msra.mxu0 %v4921
      %4935 = vmatprep.subr.mxu0 0.0
      %4936 = vmatpush1.msra.mxu0 %v4931
      %4937 = vmatprep.subr.mxu0 0.0
      %4938 = vmatpush1.msra.mxu0 0.0
      %4939 = vmatprep.subr.mxu0 0.0
      %4940 = vmatpush1.msra.mxu0 0.0
      %4941 = vmatprep.subr.mxu0 0.0
      %4942 = vmatpush1.msra.mxu0 0.0
      %4943 = vmatprep.subr.mxu0 0.0
      %4944 = vmatpush1.msra.mxu0 0.0
      %4945 = vmatprep.subr.mxu0 0.0
      %4946 = vmatpush1.msra.mxu0 0.0
      %4947 = vmatprep.subr.mxu0 0.0
      %4948 = vmatpush1.msra.mxu0 0.0
      %4949 = vmatprep.subr.mxu0 0.0
      %4950 = vmatpush1.msra.mxu0 0.0
      %4951 = vmatprep.subr.mxu0 0.0
      %4952 = vmatpush1.msra.mxu0 0.0
      %4953 = vmatprep.subr.mxu0 0.0
      %4954 = vmatpush1.msra.mxu0 0.0
      %4955 = vmatprep.subr.mxu0 0.0
      %4956 = vmatpush1.msra.mxu0 0.0
      %4957 = vmatprep.subr.mxu0 0.0
      %4958 = vmatpush1.msra.mxu0 0.0
      %4959 = vmatprep.subr.mxu0 0.0
      %4960 = vmatpush1.msra.mxu0 0.0
      %4961 = vmatprep.subr.mxu0 0.0
      %4962 = vmatpush1.msra.mxu0 0.0
      %4963 = vmatprep.subr.mxu0 0.0
      %4964 = vmatpush1.msra.mxu0 0.0
      %4965 = vmatprep.subr.mxu0 0.0
      %4966 = vmatpush1.msra.mxu0 0.0
      %4967 = vmatprep.subr.mxu0 0.0
      %4968 = vmatpush1.msra.mxu0 0.0
      %4969 = vmatprep.subr.mxu0 0.0
      %4970 = vmatpush1.msra.mxu0 0.0
      %4971 = vmatprep.subr.mxu0 0.0
      %4972 = vmatpush1.msra.mxu0 0.0
      %4973 = vmatprep.subr.mxu0 0.0
      %4974 = vmatpush1.msra.mxu0 0.0
      %4975 = vmatprep.subr.mxu0 0.0
      %4976 = vmatpush1.msra.mxu0 0.0
      %4977 = vmatprep.subr.mxu0 0.0
      %4978 = vmatpush1.msra.mxu0 0.0
      %4979 = vmatprep.subr.mxu0 0.0
      %4980 = vmatpush1.msra.mxu0 0.0
      %4981 = vmatprep.subr.mxu0 0.0
      %4982 = vmatpush1.msra.mxu0 0.0
      %4983 = vmatprep.subr.mxu0 0.0
      %4984 = vmatpush1.msra.mxu0 0.0
      %4985 = vmatprep.subr.mxu0 0.0
      %4986 = vmatpush1.msra.mxu0 0.0
      %4987 = vmatprep.subr.mxu0 0.0
      %4988 = vmatpush1.msra.mxu0 0.0
      %4989 = vmatprep.subr.mxu0 0.0
      %4990 = vmatpush1.msra.mxu0 0.0
      %4991 = vmatprep.subr.mxu0 0.0
      %4992 = vmatpush1.msra.mxu0 0.0
      %4993 = vmatprep.subr.mxu0 0.0
      %4994 = vmatpush1.msra.mxu0 0.0
      %4995 = vmatprep.subr.mxu0 0.0
      %4996 = vmatpush1.msra.mxu0 0.0
      %4997 = vmatprep.mubr.f32.mxu0 0.0
      %4998 = vmatmul.mubr.f32.gmra.mrb[0].mxu0 %v4926
      %v4999 = vpop.f32.mrb[0].mxu0
      %v5000 = vadd.f32 0.0, %v4999
      %v5001 = vpop.f32.mrb[0].mxu0
      %5002 = vmatprep.mubr.f32.mxu0 0.0
      %5003 = vmatmul.mubr.f32.gmra.mrb[0].mxu0 %v4929
      %v5004 = vpop.f32.mrb[0].mxu0
      %v5005 = vadd.f32 0.0, %v5004
      %v5006 = vpop.f32.mrb[0].mxu0
      %5007 = vdwg.mxu0
      %v5009 = vsel %vm1188, %v5000, 0
      %v5012 = vsel %vm1188, %v5005, 0
      %5014 = vmatprep.subr.mxu0 0.0
      %5015 = vmatpush1.msra.mxu0 %v4125
      %5016 = vmatprep.subr.mxu0 0.0
      %5017 = vmatpush1.msra.mxu0 0.0
      %5018 = vmatprep.subr.mxu0 0.0
      %5019 = vmatpush1.msra.mxu0 0.0
      %5020 = vmatprep.subr.mxu0 0.0
      %5021 = vmatpush1.msra.mxu0 0.0
      %5022 = vmatprep.subr.mxu0 0.0
      %5023 = vmatpush1.msra.mxu0 0.0
      %5024 = vmatprep.subr.mxu0 0.0
      %5025 = vmatpush1.msra.mxu0 0.0
      %5026 = vmatprep.subr.mxu0 0.0
      %5027 = vmatpush1.msra.mxu0 0.0
      %5028 = vmatprep.subr.mxu0 0.0
      %5029 = vmatpush1.msra.mxu0 0.0
      %5030 = vmatprep.subr.mxu0 0.0
      %5031 = vmatpush1.msra.mxu0 0.0
      %5032 = vmatprep.subr.mxu0 0.0
      %5033 = vmatpush1.msra.mxu0 0.0
      %5034 = vmatprep.subr.mxu0 0.0
      %5035 = vmatpush1.msra.mxu0 0.0
      %5036 = vmatprep.subr.mxu0 0.0
      %5037 = vmatpush1.msra.mxu0 0.0
      %5038 = vmatprep.subr.mxu0 0.0
      %5039 = vmatpush1.msra.mxu0 0.0
      %5040 = vmatprep.subr.mxu0 0.0
      %5041 = vmatpush1.msra.mxu0 0.0
      %5042 = vmatprep.subr.mxu0 0.0
      %5043 = vmatpush1.msra.mxu0 0.0
      %5044 = vmatprep.subr.mxu0 0.0
      %5045 = vmatpush1.msra.mxu0 0.0
      %5046 = vmatprep.subr.mxu0 0.0
      %5047 = vmatpush1.msra.mxu0 0.0
      %5048 = vmatprep.subr.mxu0 0.0
      %5049 = vmatpush1.msra.mxu0 0.0
      %5050 = vmatprep.subr.mxu0 0.0
      %5051 = vmatpush1.msra.mxu0 0.0
      %5052 = vmatprep.subr.mxu0 0.0
      %5053 = vmatpush1.msra.mxu0 0.0
      %5054 = vmatprep.subr.mxu0 0.0
      %5055 = vmatpush1.msra.mxu0 0.0
      %5056 = vmatprep.subr.mxu0 0.0
      %5057 = vmatpush1.msra.mxu0 0.0
      %5058 = vmatprep.subr.mxu0 0.0
      %5059 = vmatpush1.msra.mxu0 0.0
      %5060 = vmatprep.subr.mxu0 0.0
      %5061 = vmatpush1.msra.mxu0 0.0
      %5062 = vmatprep.subr.mxu0 0.0
      %5063 = vmatpush1.msra.mxu0 0.0
      %5064 = vmatprep.subr.mxu0 0.0
      %5065 = vmatpush1.msra.mxu0 0.0
      %5066 = vmatprep.subr.mxu0 0.0
      %5067 = vmatpush1.msra.mxu0 0.0
      %5068 = vmatprep.subr.mxu0 0.0
      %5069 = vmatpush1.msra.mxu0 0.0
      %5070 = vmatprep.subr.mxu0 0.0
      %5071 = vmatpush1.msra.mxu0 0.0
      %5072 = vmatprep.subr.mxu0 0.0
      %5073 = vmatpush1.msra.mxu0 0.0
      %5074 = vmatprep.subr.mxu0 0.0
      %5075 = vmatpush1.msra.mxu0 0.0
      %5076 = vmatprep.subr.mxu0 0.0
      %5077 = vmatpush1.msra.mxu0 0.0
      %5078 = vmatprep.mubr.f32.mxu0 0.0
      %5079 = vmatmul.mubr.f32.gmra.mrb[0].mxu0 %v5009
      %v5080 = vpop.f32.mrb[0].mxu0
      %v5081 = vadd.f32 0.0, %v5080
      %v5082 = vpop.f32.mrb[0].mxu0
      %5083 = vmatprep.mubr.f32.mxu0 0.0
      %5084 = vmatmul.mubr.f32.gmra.mrb[0].mxu0 %v5012
      %v5085 = vpop.f32.mrb[0].mxu0
      %v5086 = vadd.f32 0.0, %v5085
      %v5087 = vpop.f32.mrb[0].mxu0
      %5088 = vdwg.mxu0
      %v5090 = vsel %vm1188, %v4624, 0
      %v5093 = vsel %vm1188, %v4629, 0
      %5095 = vmatprep.subr.mxu0 0.0
      %5096 = vmatpush1.msra.mxu0 %v4124
      %5097 = vmatprep.subr.mxu0 0.0
      %5098 = vmatpush1.msra.mxu0 0.0
      %5099 = vmatprep.subr.mxu0 0.0
      %5100 = vmatpush1.msra.mxu0 0.0
      %5101 = vmatprep.subr.mxu0 0.0
      %5102 = vmatpush1.msra.mxu0 0.0
      %5103 = vmatprep.subr.mxu0 0.0
      %5104 = vmatpush1.msra.mxu0 0.0
      %5105 = vmatprep.subr.mxu0 0.0
      %5106 = vmatpush1.msra.mxu0 0.0
      %5107 = vmatprep.subr.mxu0 0.0
      %5108 = vmatpush1.msra.mxu0 0.0
      %5109 = vmatprep.subr.mxu0 0.0
      %5110 = vmatpush1.msra.mxu0 0.0
      %5111 = vmatprep.subr.mxu0 0.0
      %5112 = vmatpush1.msra.mxu0 0.0
      %5113 = vmatprep.subr.mxu0 0.0
      %5114 = vmatpush1.msra.mxu0 0.0
      %5115 = vmatprep.subr.mxu0 0.0
      %5116 = vmatpush1.msra.mxu0 0.0
      %5117 = vmatprep.subr.mxu0 0.0
      %5118 = vmatpush1.msra.mxu0 0.0
      %5119 = vmatprep.subr.mxu0 0.0
      %5120 = vmatpush1.msra.mxu0 0.0
      %5121 = vmatprep.subr.mxu0 0.0
      %5122 = vmatpush1.msra.mxu0 0.0
      %5123 = vmatprep.subr.mxu0 0.0
      %5124 = vmatpush1.msra.mxu0 0.0
      %5125 = vmatprep.subr.mxu0 0.0
      %5126 = vmatpush1.msra.mxu0 0.0
      %5127 = vmatprep.subr.mxu0 0.0
      %5128 = vmatpush1.msra.mxu0 0.0
      %5129 = vmatprep.subr.mxu0 0.0
      %5130 = vmatpush1.msra.mxu0 0.0
      %5131 = vmatprep.subr.mxu0 0.0
      %5132 = vmatpush1.msra.mxu0 0.0
      %5133 = vmatprep.subr.mxu0 0.0
      %5134 = vmatpush1.msra.mxu0 0.0
      %5135 = vmatprep.subr.mxu0 0.0
      %5136 = vmatpush1.msra.mxu0 0.0
      %5137 = vmatprep.subr.mxu0 0.0
      %5138 = vmatpush1.msra.mxu0 0.0
      %5139 = vmatprep.subr.mxu0 0.0
      %5140 = vmatpush1.msra.mxu0 0.0
      %5141 = vmatprep.subr.mxu0 0.0
      %5142 = vmatpush1.msra.mxu0 0.0
      %5143 = vmatprep.subr.mxu0 0.0
      %5144 = vmatpush1.msra.mxu0 0.0
      %5145 = vmatprep.subr.mxu0 0.0
      %5146 = vmatpush1.msra.mxu0 0.0
      %5147 = vmatprep.subr.mxu0 0.0
      %5148 = vmatpush1.msra.mxu0 0.0
      %5149 = vmatprep.subr.mxu0 0.0
      %5150 = vmatpush1.msra.mxu0 0.0
      %5151 = vmatprep.subr.mxu0 0.0
      %5152 = vmatpush1.msra.mxu0 0.0
      %5153 = vmatprep.subr.mxu0 0.0
      %5154 = vmatpush1.msra.mxu0 0.0
      %5155 = vmatprep.subr.mxu0 0.0
      %5156 = vmatpush1.msra.mxu0 0.0
      %5157 = vmatprep.subr.mxu0 0.0
      %5158 = vmatpush1.msra.mxu0 0.0
      %5159 = vmatprep.mubr.f32.mxu0 0.0
      %5160 = vmatmul.mubr.f32.gmra.mrb[0].mxu0 %v5090
      %v5161 = vpop.f32.mrb[0].mxu0
      %v5162 = vadd.f32 %v5081, %v5161
      %v5163 = vpop.f32.mrb[0].mxu0
      %5164 = vmatprep.mubr.f32.mxu0 0.0
      %5165 = vmatmul.mubr.f32.gmra.mrb[0].mxu0 %v5093
      %v5166 = vpop.f32.mrb[0].mxu0
      %v5167 = vadd.f32 %v5086, %v5166
      %v5168 = vpop.f32.mrb[0].mxu0
      %5169 = vdwg.mxu0
      %5170 = vrot.lane.b32.xlu0 %v4118, 16
      %v5171 = vpop.permute.xlu0 %5170
      %5172 = vrot.lane.b32.xlu0 %v4119, 16
      %v5173 = vpop.permute.xlu0 %5172
      %v5176 = vmul.f32 %v4237, %v5171
      %v5177 = vmul.f32 %v4242, %v5173
      %5180 = vrot.lane.b32.xlu0 %v5176, 124
      %v5181 = vpop.permute.xlu0 %5180
      %5182 = vrot.lane.b32.xlu0 %v5177, 124
      %v5183 = vpop.permute.xlu0 %5182
      %v5186 = vsub.f32 %v5176, %v5181
      %v5187 = vsub.f32 %v5177, %v5183
      %5188 = vrot.lane.b32.xlu0 %v4118, 20
      %v5189 = vpop.permute.xlu0 %5188
      %5190 = vrot.lane.b32.xlu0 %v4119, 20
      %v5191 = vpop.permute.xlu0 %5190
      %v5194 = vmul.f32 %v4237, %v5189
      %v5195 = vmul.f32 %v4242, %v5191
      %5198 = vrot.lane.b32.xlu0 %v4656, 4
      %v5199 = vpop.permute.xlu0 %5198
      %5200 = vrot.lane.b32.xlu0 %v4657, 4
      %v5201 = vpop.permute.xlu0 %5200
      %v5204 = vadd.f32 %v5194, %v5199
      %v5205 = vadd.f32 %v5195, %v5201
      %5206 = vrot.lane.b32.xlu0 %v4118, 48
      %v5207 = vpop.permute.xlu0 %5206
      %5208 = vrot.lane.b32.xlu0 %v4119, 48
      %v5209 = vpop.permute.xlu0 %5208
      %v5212 = vmul.f32 %v4237, %v5207
      %v5213 = vmul.f32 %v4242, %v5209
      %5216 = vrot.lane.b32.xlu0 %v5212, 124
      %v5217 = vpop.permute.xlu0 %5216
      %5218 = vrot.lane.b32.xlu0 %v5213, 124
      %v5219 = vpop.permute.xlu0 %5218
      %v5222 = vsub.f32 %v5212, %v5217
      %v5223 = vsub.f32 %v5213, %v5219
      %5224 = vrot.lane.b32.xlu0 %v4118, 52
      %v5225 = vpop.permute.xlu0 %5224
      %5226 = vrot.lane.b32.xlu0 %v4119, 52
      %v5227 = vpop.permute.xlu0 %5226
      %v5230 = vmul.f32 %v4237, %v5225
      %v5231 = vmul.f32 %v4242, %v5227
      %5234 = vrot.lane.b32.xlu0 %v4692, 4
      %v5235 = vpop.permute.xlu0 %5234
      %5236 = vrot.lane.b32.xlu0 %v4693, 4
      %v5237 = vpop.permute.xlu0 %5236
      %v5240 = vadd.f32 %v5230, %v5235
      %v5241 = vadd.f32 %v5231, %v5237
      %5244 = vrot.lane.b32.xlu0 %v5204, 108
      %v5245 = vpop.permute.xlu0 %5244
      %5246 = vrot.lane.b32.xlu0 %v5205, 108
      %v5247 = vpop.permute.xlu0 %5246
      %5250 = vrot.lane.b32.xlu0 %v5240, 76
      %v5251 = vpop.permute.xlu0 %5250
      %5252 = vrot.lane.b32.xlu0 %v5241, 76
      %v5253 = vpop.permute.xlu0 %5252
      %v5254 = vsel %vm960, %v5245, 0
      %v5256 = vsel %vm960, %v5247, 0
      %v5258 = vsel %vm960, %v5251, 0
      %v5260 = vsel %vm960, %v5253, 0
      %5262 = vmatprep.subr.mxu0 0.0
      %5263 = vmatpush1.xpose.msra.mxu0 %v5258
      %5264 = vmatprep.subr.mxu0 0.0
      %5265 = vmatpush1.xpose.msra.mxu0 %v5260
      %5266 = vmatprep.subr.mxu0 0.0
      %5267 = vmatpush1.xpose.msra.mxu0 0.0
      %5268 = vmatprep.subr.mxu0 0.0
      %5269 = vmatpush1.xpose.msra.mxu0 0.0
      %5270 = vmatprep.subr.mxu0 0.0
      %5271 = vmatpush1.xpose.msra.mxu0 0.0
      %5272 = vmatprep.subr.mxu0 0.0
      %5273 = vmatpush1.xpose.msra.mxu0 0.0
      %5274 = vmatprep.subr.mxu0 0.0
      %5275 = vmatpush1.xpose.msra.mxu0 0.0
      %5276 = vmatprep.subr.mxu0 0.0
      %5277 = vmatpush1.xpose.msra.mxu0 0.0
      %5278 = vmatprep.subr.mxu0 0.0
      %5279 = vmatpush1.xpose.msra.mxu0 0.0
      %5280 = vmatprep.subr.mxu0 0.0
      %5281 = vmatpush1.xpose.msra.mxu0 0.0
      %5282 = vmatprep.subr.mxu0 0.0
      %5283 = vmatpush1.xpose.msra.mxu0 0.0
      %5284 = vmatprep.subr.mxu0 0.0
      %5285 = vmatpush1.xpose.msra.mxu0 0.0
      %5286 = vmatprep.subr.mxu0 0.0
      %5287 = vmatpush1.xpose.msra.mxu0 0.0
      %5288 = vmatprep.subr.mxu0 0.0
      %5289 = vmatpush1.xpose.msra.mxu0 0.0
      %5290 = vmatprep.subr.mxu0 0.0
      %5291 = vmatpush1.xpose.msra.mxu0 0.0
      %5292 = vmatprep.subr.mxu0 0.0
      %5293 = vmatpush1.xpose.msra.mxu0 0.0
      %5294 = vmatprep.subr.mxu0 0.0
      %5295 = vmatpush1.xpose.msra.mxu0 0.0
      %5296 = vmatprep.subr.mxu0 0.0
      %5297 = vmatpush1.xpose.msra.mxu0 0.0
      %5298 = vmatprep.subr.mxu0 0.0
      %5299 = vmatpush1.xpose.msra.mxu0 0.0
      %5300 = vmatprep.subr.mxu0 0.0
      %5301 = vmatpush1.xpose.msra.mxu0 0.0
      %5302 = vmatprep.subr.mxu0 0.0
      %5303 = vmatpush1.xpose.msra.mxu0 0.0
      %5304 = vmatprep.subr.mxu0 0.0
      %5305 = vmatpush1.xpose.msra.mxu0 0.0
      %5306 = vmatprep.subr.mxu0 0.0
      %5307 = vmatpush1.xpose.msra.mxu0 0.0
      %5308 = vmatprep.subr.mxu0 0.0
      %5309 = vmatpush1.xpose.msra.mxu0 0.0
      %5310 = vmatprep.subr.mxu0 0.0
      %5311 = vmatpush1.xpose.msra.mxu0 0.0
      %5312 = vmatprep.subr.mxu0 0.0
      %5313 = vmatpush1.xpose.msra.mxu0 0.0
      %5314 = vmatprep.subr.mxu0 0.0
      %5315 = vmatpush1.xpose.msra.mxu0 0.0
      %5316 = vmatprep.subr.mxu0 0.0
      %5317 = vmatpush1.xpose.msra.mxu0 0.0
      %5318 = vmatprep.subr.mxu0 0.0
      %5319 = vmatpush1.xpose.msra.mxu0 0.0
      %5320 = vmatprep.subr.mxu0 0.0
      %5321 = vmatpush1.xpose.msra.mxu0 0.0
      %5322 = vmatprep.subr.mxu0 0.0
      %5323 = vmatpush1.xpose.msra.mxu0 0.0
      %5324 = vmatprep.subr.mxu0 0.0
      %5325 = vmatpush1.xpose.msra.mxu0 0.0
      %5326 = vmatprep.mubr.f32.mxu0 0.0
      %5327 = vmatmul.mubr.f32.gmra.mrb[0].mxu0 %v5254
      %v5328 = vpop.f32.mrb[0].mxu0
      %v5329 = vadd.f32 0.0, %v5328
      %v5330 = vpop.f32.mrb[0].mxu0
      %5331 = vmatprep.mubr.f32.mxu0 0.0
      %5332 = vmatmul.mubr.f32.gmra.mrb[0].mxu0 %v5256
      %v5333 = vpop.f32.mrb[0].mxu0
      %v5334 = vadd.f32 0.0, %v5333
      %v5335 = vpop.f32.mrb[0].mxu0
      %5336 = vdwg.mxu0
      %5339 = vrot.lane.b32.xlu0 %v5186, 112
      %v5340 = vpop.permute.xlu0 %5339
      %5341 = vrot.lane.b32.xlu0 %v5187, 112
      %v5342 = vpop.permute.xlu0 %5341
      %5345 = vrot.lane.b32.xlu0 %v5222, 80
      %v5346 = vpop.permute.xlu0 %5345
      %5347 = vrot.lane.b32.xlu0 %v5223, 80
      %v5348 = vpop.permute.xlu0 %5347
      %v5349 = vsel %vm960, %v5340, 0
      %v5351 = vsel %vm960, %v5342, 0
      %v5353 = vsel %vm960, %v5346, 0
      %v5355 = vsel %vm960, %v5348, 0
      %5357 = vmatprep.subr.mxu0 0.0
      %5358 = vmatpush1.xpose.msra.mxu0 %v5353
      %5359 = vmatprep.subr.mxu0 0.0
      %5360 = vmatpush1.xpose.msra.mxu0 %v5355
      %5361 = vmatprep.subr.mxu0 0.0
      %5362 = vmatpush1.xpose.msra.mxu0 0.0
      %5363 = vmatprep.subr.mxu0 0.0
      %5364 = vmatpush1.xpose.msra.mxu0 0.0
      %5365 = vmatprep.subr.mxu0 0.0
      %5366 = vmatpush1.xpose.msra.mxu0 0.0
      %5367 = vmatprep.subr.mxu0 0.0
      %5368 = vmatpush1.xpose.msra.mxu0 0.0
      %5369 = vmatprep.subr.mxu0 0.0
      %5370 = vmatpush1.xpose.msra.mxu0 0.0
      %5371 = vmatprep.subr.mxu0 0.0
      %5372 = vmatpush1.xpose.msra.mxu0 0.0
      %5373 = vmatprep.subr.mxu0 0.0
      %5374 = vmatpush1.xpose.msra.mxu0 0.0
      %5375 = vmatprep.subr.mxu0 0.0
      %5376 = vmatpush1.xpose.msra.mxu0 0.0
      %5377 = vmatprep.subr.mxu0 0.0
      %5378 = vmatpush1.xpose.msra.mxu0 0.0
      %5379 = vmatprep.subr.mxu0 0.0
      %5380 = vmatpush1.xpose.msra.mxu0 0.0
      %5381 = vmatprep.subr.mxu0 0.0
      %5382 = vmatpush1.xpose.msra.mxu0 0.0
      %5383 = vmatprep.subr.mxu0 0.0
      %5384 = vmatpush1.xpose.msra.mxu0 0.0
      %5385 = vmatprep.subr.mxu0 0.0
      %5386 = vmatpush1.xpose.msra.mxu0 0.0
      %5387 = vmatprep.subr.mxu0 0.0
      %5388 = vmatpush1.xpose.msra.mxu0 0.0
      %5389 = vmatprep.subr.mxu0 0.0
      %5390 = vmatpush1.xpose.msra.mxu0 0.0
      %5391 = vmatprep.subr.mxu0 0.0
      %5392 = vmatpush1.xpose.msra.mxu0 0.0
      %5393 = vmatprep.subr.mxu0 0.0
      %5394 = vmatpush1.xpose.msra.mxu0 0.0
      %5395 = vmatprep.subr.mxu0 0.0
      %5396 = vmatpush1.xpose.msra.mxu0 0.0
      %5397 = vmatprep.subr.mxu0 0.0
      %5398 = vmatpush1.xpose.msra.mxu0 0.0
      %5399 = vmatprep.subr.mxu0 0.0
      %5400 = vmatpush1.xpose.msra.mxu0 0.0
      %5401 = vmatprep.subr.mxu0 0.0
      %5402 = vmatpush1.xpose.msra.mxu0 0.0
      %5403 = vmatprep.subr.mxu0 0.0
      %5404 = vmatpush1.xpose.msra.mxu0 0.0
      %5405 = vmatprep.subr.mxu0 0.0
      %5406 = vmatpush1.xpose.msra.mxu0 0.0
      %5407 = vmatprep.subr.mxu0 0.0
      %5408 = vmatpush1.xpose.msra.mxu0 0.0
      %5409 = vmatprep.subr.mxu0 0.0
      %5410 = vmatpush1.xpose.msra.mxu0 0.0
      %5411 = vmatprep.subr.mxu0 0.0
      %5412 = vmatpush1.xpose.msra.mxu0 0.0
      %5413 = vmatprep.subr.mxu0 0.0
      %5414 = vmatpush1.xpose.msra.mxu0 0.0
      %5415 = vmatprep.subr.mxu0 0.0
      %5416 = vmatpush1.xpose.msra.mxu0 0.0
      %5417 = vmatprep.subr.mxu0 0.0
      %5418 = vmatpush1.xpose.msra.mxu0 0.0
      %5419 = vmatprep.subr.mxu0 0.0
      %5420 = vmatpush1.xpose.msra.mxu0 0.0
      %5421 = vmatprep.mubr.f32.mxu0 0.0
      %5422 = vmatmul.mubr.f32.gmra.mrb[0].mxu0 %v5349
      %v5423 = vpop.f32.mrb[0].mxu0
      %v5424 = vadd.f32 %v5329, %v5423
      %v5425 = vpop.f32.mrb[0].mxu0
      %5426 = vmatprep.mubr.f32.mxu0 0.0
      %5427 = vmatmul.mubr.f32.gmra.mrb[0].mxu0 %v5351
      %v5428 = vpop.f32.mrb[0].mxu0
      %v5429 = vadd.f32 %v5334, %v5428
      %v5430 = vpop.f32.mrb[0].mxu0
      %5431 = vdwg.mxu0
      %v5432 = vmul.f32 %v5424, 0.35355338
      %v5433 = vmul.f32 %v5429, 0.35355338
      %v5434 = vsel %vm3910, %v5432, -1e+09
      %v5435 = vsel %vm3911, %v5433, -1e+09
      %v5436 = vsel %vm3916, %v5434, -inf
      %5437 = vmax.xlane.f32.xlu0 %v5436
      %v5438 = vpop.xlane.xlu0 %5437
      %v5439 = vsel %vm4522, %v5435, -inf
      %5440 = vmax.xlane.f32.xlu0 %v5439
      %v5441 = vpop.xlane.xlu0 %5440
      %v5442 = vsub.f32 %v5434, %v5438
      %v5443 = vsub.f32 %v5435, %v5441
      %v5444 = vmul.f32 %v5442, 1.442695
      %v5445 = vpow.pop %v5444
      %v5446 = vmul.f32 %v5443, 1.442695
      %v5447 = vpow.pop %v5446
      %v5448 = vsel %vm3916, %v5445, 0.0
      %5449 = vadd.xlane.f32.xlu0 %v5448
      %v5450 = vpop.xlane.xlu0 %5449
      %v5451 = vsel %vm4522, %v5447, 0.0
      %5452 = vadd.xlane.f32.xlu0 %v5451
      %v5453 = vpop.xlane.xlu0 %5452
      %v5454 = vrcp.pop %v5450
      %v5455 = vmul.f32 %v5445, %v5454
      %v5456 = vrcp.pop %v5453
      %v5457 = vmul.f32 %v5447, %v5456
      %5458 = vrot.lane.b32.xlu0 %v4237, 48
      %v5459 = vpop.permute.xlu0 %5458
      %5460 = vrot.lane.b32.xlu0 %v4242, 48
      %v5461 = vpop.permute.xlu0 %5460
      %v5464 = vsel %vm3916, %v5455, 0
      %v5467 = vsel %vm3916, %v5457, 0
      %v5469 = vsel %vm737, %v5461, 0
      %5471 = vmatprep.subr.mxu0 0.0
      %5472 = vmatpush1.msra.mxu0 %v5459
      %5473 = vmatprep.subr.mxu0 0.0
      %5474 = vmatpush1.msra.mxu0 %v5469
      %5475 = vmatprep.subr.mxu0 0.0
      %5476 = vmatpush1.msra.mxu0 0.0
      %5477 = vmatprep.subr.mxu0 0.0
      %5478 = vmatpush1.msra.mxu0 0.0
      %5479 = vmatprep.subr.mxu0 0.0
      %5480 = vmatpush1.msra.mxu0 0.0
      %5481 = vmatprep.subr.mxu0 0.0
      %5482 = vmatpush1.msra.mxu0 0.0
      %5483 = vmatprep.subr.mxu0 0.0
      %5484 = vmatpush1.msra.mxu0 0.0
      %5485 = vmatprep.subr.mxu0 0.0
      %5486 = vmatpush1.msra.mxu0 0.0
      %5487 = vmatprep.subr.mxu0 0.0
      %5488 = vmatpush1.msra.mxu0 0.0
      %5489 = vmatprep.subr.mxu0 0.0
      %5490 = vmatpush1.msra.mxu0 0.0
      %5491 = vmatprep.subr.mxu0 0.0
      %5492 = vmatpush1.msra.mxu0 0.0
      %5493 = vmatprep.subr.mxu0 0.0
      %5494 = vmatpush1.msra.mxu0 0.0
      %5495 = vmatprep.subr.mxu0 0.0
      %5496 = vmatpush1.msra.mxu0 0.0
      %5497 = vmatprep.subr.mxu0 0.0
      %5498 = vmatpush1.msra.mxu0 0.0
      %5499 = vmatprep.subr.mxu0 0.0
      %5500 = vmatpush1.msra.mxu0 0.0
      %5501 = vmatprep.subr.mxu0 0.0
      %5502 = vmatpush1.msra.mxu0 0.0
      %5503 = vmatprep.subr.mxu0 0.0
      %5504 = vmatpush1.msra.mxu0 0.0
      %5505 = vmatprep.subr.mxu0 0.0
      %5506 = vmatpush1.msra.mxu0 0.0
      %5507 = vmatprep.subr.mxu0 0.0
      %5508 = vmatpush1.msra.mxu0 0.0
      %5509 = vmatprep.subr.mxu0 0.0
      %5510 = vmatpush1.msra.mxu0 0.0
      %5511 = vmatprep.subr.mxu0 0.0
      %5512 = vmatpush1.msra.mxu0 0.0
      %5513 = vmatprep.subr.mxu0 0.0
      %5514 = vmatpush1.msra.mxu0 0.0
      %5515 = vmatprep.subr.mxu0 0.0
      %5516 = vmatpush1.msra.mxu0 0.0
      %5517 = vmatprep.subr.mxu0 0.0
      %5518 = vmatpush1.msra.mxu0 0.0
      %5519 = vmatprep.subr.mxu0 0.0
      %5520 = vmatpush1.msra.mxu0 0.0
      %5521 = vmatprep.subr.mxu0 0.0
      %5522 = vmatpush1.msra.mxu0 0.0
      %5523 = vmatprep.subr.mxu0 0.0
      %5524 = vmatpush1.msra.mxu0 0.0
      %5525 = vmatprep.subr.mxu0 0.0
      %5526 = vmatpush1.msra.mxu0 0.0
      %5527 = vmatprep.subr.mxu0 0.0
      %5528 = vmatpush1.msra.mxu0 0.0
      %5529 = vmatprep.subr.mxu0 0.0
      %5530 = vmatpush1.msra.mxu0 0.0
      %5531 = vmatprep.subr.mxu0 0.0
      %5532 = vmatpush1.msra.mxu0 0.0
      %5533 = vmatprep.subr.mxu0 0.0
      %5534 = vmatpush1.msra.mxu0 0.0
      %5535 = vmatprep.mubr.f32.mxu0 0.0
      %5536 = vmatmul.mubr.f32.gmra.mrb[0].mxu0 %v5464
      %v5537 = vpop.f32.mrb[0].mxu0
      %v5538 = vadd.f32 0.0, %v5537
      %v5539 = vpop.f32.mrb[0].mxu0
      %5540 = vmatprep.mubr.f32.mxu0 0.0
      %5541 = vmatmul.mubr.f32.gmra.mrb[0].mxu0 %v5467
      %v5542 = vpop.f32.mrb[0].mxu0
      %v5543 = vadd.f32 0.0, %v5542
      %v5544 = vpop.f32.mrb[0].mxu0
      %5545 = vdwg.mxu0
      %v5547 = vsel %vm1188, %v5538, 0
      %v5550 = vsel %vm1188, %v5543, 0
      %5552 = vmatprep.subr.mxu0 0.0
      %5553 = vmatpush1.msra.mxu0 %v4126
      %5554 = vmatprep.subr.mxu0 0.0
      %5555 = vmatpush1.msra.mxu0 0.0
      %5556 = vmatprep.subr.mxu0 0.0
      %5557 = vmatpush1.msra.mxu0 0.0
      %5558 = vmatprep.subr.mxu0 0.0
      %5559 = vmatpush1.msra.mxu0 0.0
      %5560 = vmatprep.subr.mxu0 0.0
      %5561 = vmatpush1.msra.mxu0 0.0
      %5562 = vmatprep.subr.mxu0 0.0
      %5563 = vmatpush1.msra.mxu0 0.0
      %5564 = vmatprep.subr.mxu0 0.0
      %5565 = vmatpush1.msra.mxu0 0.0
      %5566 = vmatprep.subr.mxu0 0.0
      %5567 = vmatpush1.msra.mxu0 0.0
      %5568 = vmatprep.subr.mxu0 0.0
      %5569 = vmatpush1.msra.mxu0 0.0
      %5570 = vmatprep.subr.mxu0 0.0
      %5571 = vmatpush1.msra.mxu0 0.0
      %5572 = vmatprep.subr.mxu0 0.0
      %5573 = vmatpush1.msra.mxu0 0.0
      %5574 = vmatprep.subr.mxu0 0.0
      %5575 = vmatpush1.msra.mxu0 0.0
      %5576 = vmatprep.subr.mxu0 0.0
      %5577 = vmatpush1.msra.mxu0 0.0
      %5578 = vmatprep.subr.mxu0 0.0
      %5579 = vmatpush1.msra.mxu0 0.0
      %5580 = vmatprep.subr.mxu0 0.0
      %5581 = vmatpush1.msra.mxu0 0.0
      %5582 = vmatprep.subr.mxu0 0.0
      %5583 = vmatpush1.msra.mxu0 0.0
      %5584 = vmatprep.subr.mxu0 0.0
      %5585 = vmatpush1.msra.mxu0 0.0
      %5586 = vmatprep.subr.mxu0 0.0
      %5587 = vmatpush1.msra.mxu0 0.0
      %5588 = vmatprep.subr.mxu0 0.0
      %5589 = vmatpush1.msra.mxu0 0.0
      %5590 = vmatprep.subr.mxu0 0.0
      %5591 = vmatpush1.msra.mxu0 0.0
      %5592 = vmatprep.subr.mxu0 0.0
      %5593 = vmatpush1.msra.mxu0 0.0
      %5594 = vmatprep.subr.mxu0 0.0
      %5595 = vmatpush1.msra.mxu0 0.0
      %5596 = vmatprep.subr.mxu0 0.0
      %5597 = vmatpush1.msra.mxu0 0.0
      %5598 = vmatprep.subr.mxu0 0.0
      %5599 = vmatpush1.msra.mxu0 0.0
      %5600 = vmatprep.subr.mxu0 0.0
      %5601 = vmatpush1.msra.mxu0 0.0
      %5602 = vmatprep.subr.mxu0 0.0
      %5603 = vmatpush1.msra.mxu0 0.0
      %5604 = vmatprep.subr.mxu0 0.0
      %5605 = vmatpush1.msra.mxu0 0.0
      %5606 = vmatprep.subr.mxu0 0.0
      %5607 = vmatpush1.msra.mxu0 0.0
      %5608 = vmatprep.subr.mxu0 0.0
      %5609 = vmatpush1.msra.mxu0 0.0
      %5610 = vmatprep.subr.mxu0 0.0
      %5611 = vmatpush1.msra.mxu0 0.0
      %5612 = vmatprep.subr.mxu0 0.0
      %5613 = vmatpush1.msra.mxu0 0.0
      %5614 = vmatprep.subr.mxu0 0.0
      %5615 = vmatpush1.msra.mxu0 0.0
      %5616 = vmatprep.mubr.f32.mxu0 0.0
      %5617 = vmatmul.mubr.f32.gmra.mrb[0].mxu0 %v5547
      %v5618 = vpop.f32.mrb[0].mxu0
      %v5619 = vadd.f32 0.0, %v5618
      %v5620 = vpop.f32.mrb[0].mxu0
      %5621 = vmatprep.mubr.f32.mxu0 0.0
      %5622 = vmatmul.mubr.f32.gmra.mrb[0].mxu0 %v5550
      %v5623 = vpop.f32.mrb[0].mxu0
      %v5624 = vadd.f32 0.0, %v5623
      %v5625 = vpop.f32.mrb[0].mxu0
      %5626 = vdwg.mxu0
      %v5627 = vadd.f32 %v5162, %v5619
      %v5628 = vadd.f32 %v5167, %v5624
      %5629 = vrot.lane.b32.xlu0 %v4118, 24
      %v5630 = vpop.permute.xlu0 %5629
      %5631 = vrot.lane.b32.xlu0 %v4119, 24
      %v5632 = vpop.permute.xlu0 %5631
      %v5635 = vmul.f32 %v4237, %v5630
      %v5636 = vmul.f32 %v4242, %v5632
      %5639 = vrot.lane.b32.xlu0 %v5635, 124
      %v5640 = vpop.permute.xlu0 %5639
      %5641 = vrot.lane.b32.xlu0 %v5636, 124
      %v5642 = vpop.permute.xlu0 %5641
      %v5645 = vsub.f32 %v5635, %v5640
      %v5646 = vsub.f32 %v5636, %v5642
      %5649 = vrot.lane.b32.xlu0 %v5194, 4
      %v5650 = vpop.permute.xlu0 %5649
      %5651 = vrot.lane.b32.xlu0 %v5195, 4
      %v5652 = vpop.permute.xlu0 %5651
      %v5655 = vadd.f32 %v4317, %v5650
      %v5656 = vadd.f32 %v4318, %v5652
      %5657 = vrot.lane.b32.xlu0 %v4118, 56
      %v5658 = vpop.permute.xlu0 %5657
      %5659 = vrot.lane.b32.xlu0 %v4119, 56
      %v5660 = vpop.permute.xlu0 %5659
      %v5663 = vmul.f32 %v4237, %v5658
      %v5664 = vmul.f32 %v4242, %v5660
      %5667 = vrot.lane.b32.xlu0 %v5663, 124
      %v5668 = vpop.permute.xlu0 %5667
      %5669 = vrot.lane.b32.xlu0 %v5664, 124
      %v5670 = vpop.permute.xlu0 %5669
      %v5673 = vsub.f32 %v5663, %v5668
      %v5674 = vsub.f32 %v5664, %v5670
      %5675 = vrot.lane.b32.xlu0 %v4118, 60
      %v5676 = vpop.permute.xlu0 %5675
      %5677 = vrot.lane.b32.xlu0 %v4119, 60
      %v5678 = vpop.permute.xlu0 %5677
      %v5681 = vmul.f32 %v4237, %v5676
      %v5682 = vmul.f32 %v4242, %v5678
      %5685 = vrot.lane.b32.xlu0 %v5230, 4
      %v5686 = vpop.permute.xlu0 %5685
      %5687 = vrot.lane.b32.xlu0 %v5231, 4
      %v5688 = vpop.permute.xlu0 %5687
      %v5691 = vadd.f32 %v5681, %v5686
      %v5692 = vadd.f32 %v5682, %v5688
      %5695 = vrot.lane.b32.xlu0 %v5655, 100
      %v5696 = vpop.permute.xlu0 %5695
      %5697 = vrot.lane.b32.xlu0 %v5656, 100
      %v5698 = vpop.permute.xlu0 %5697
      %5701 = vrot.lane.b32.xlu0 %v5691, 68
      %v5702 = vpop.permute.xlu0 %5701
      %5703 = vrot.lane.b32.xlu0 %v5692, 68
      %v5704 = vpop.permute.xlu0 %5703
      %v5705 = vsel %vm960, %v5696, 0
      %v5707 = vsel %vm960, %v5698, 0
      %v5709 = vsel %vm960, %v5702, 0
      %v5711 = vsel %vm960, %v5704, 0
      %5713 = vmatprep.subr.mxu0 0.0
      %5714 = vmatpush1.xpose.msra.mxu0 %v5709
      %5715 = vmatprep.subr.mxu0 0.0
      %5716 = vmatpush1.xpose.msra.mxu0 %v5711
      %5717 = vmatprep.subr.mxu0 0.0
      %5718 = vmatpush1.xpose.msra.mxu0 0.0
      %5719 = vmatprep.subr.mxu0 0.0
      %5720 = vmatpush1.xpose.msra.mxu0 0.0
      %5721 = vmatprep.subr.mxu0 0.0
      %5722 = vmatpush1.xpose.msra.mxu0 0.0
      %5723 = vmatprep.subr.mxu0 0.0
      %5724 = vmatpush1.xpose.msra.mxu0 0.0
      %5725 = vmatprep.subr.mxu0 0.0
      %5726 = vmatpush1.xpose.msra.mxu0 0.0
      %5727 = vmatprep.subr.mxu0 0.0
      %5728 = vmatpush1.xpose.msra.mxu0 0.0
      %5729 = vmatprep.subr.mxu0 0.0
      %5730 = vmatpush1.xpose.msra.mxu0 0.0
      %5731 = vmatprep.subr.mxu0 0.0
      %5732 = vmatpush1.xpose.msra.mxu0 0.0
      %5733 = vmatprep.subr.mxu0 0.0
      %5734 = vmatpush1.xpose.msra.mxu0 0.0
      %5735 = vmatprep.subr.mxu0 0.0
      %5736 = vmatpush1.xpose.msra.mxu0 0.0
      %5737 = vmatprep.subr.mxu0 0.0
      %5738 = vmatpush1.xpose.msra.mxu0 0.0
      %5739 = vmatprep.subr.mxu0 0.0
      %5740 = vmatpush1.xpose.msra.mxu0 0.0
      %5741 = vmatprep.subr.mxu0 0.0
      %5742 = vmatpush1.xpose.msra.mxu0 0.0
      %5743 = vmatprep.subr.mxu0 0.0
      %5744 = vmatpush1.xpose.msra.mxu0 0.0
      %5745 = vmatprep.subr.mxu0 0.0
      %5746 = vmatpush1.xpose.msra.mxu0 0.0
      %5747 = vmatprep.subr.mxu0 0.0
      %5748 = vmatpush1.xpose.msra.mxu0 0.0
      %5749 = vmatprep.subr.mxu0 0.0
      %5750 = vmatpush1.xpose.msra.mxu0 0.0
      %5751 = vmatprep.subr.mxu0 0.0
      %5752 = vmatpush1.xpose.msra.mxu0 0.0
      %5753 = vmatprep.subr.mxu0 0.0
      %5754 = vmatpush1.xpose.msra.mxu0 0.0
      %5755 = vmatprep.subr.mxu0 0.0
      %5756 = vmatpush1.xpose.msra.mxu0 0.0
      %5757 = vmatprep.subr.mxu0 0.0
      %5758 = vmatpush1.xpose.msra.mxu0 0.0
      %5759 = vmatprep.subr.mxu0 0.0
      %5760 = vmatpush1.xpose.msra.mxu0 0.0
      %5761 = vmatprep.subr.mxu0 0.0
      %5762 = vmatpush1.xpose.msra.mxu0 0.0
      %5763 = vmatprep.subr.mxu0 0.0
      %5764 = vmatpush1.xpose.msra.mxu0 0.0
      %5765 = vmatprep.subr.mxu0 0.0
      %5766 = vmatpush1.xpose.msra.mxu0 0.0
      %5767 = vmatprep.subr.mxu0 0.0
      %5768 = vmatpush1.xpose.msra.mxu0 0.0
      %5769 = vmatprep.subr.mxu0 0.0
      %5770 = vmatpush1.xpose.msra.mxu0 0.0
      %5771 = vmatprep.subr.mxu0 0.0
      %5772 = vmatpush1.xpose.msra.mxu0 0.0
      %5773 = vmatprep.subr.mxu0 0.0
      %5774 = vmatpush1.xpose.msra.mxu0 0.0
      %5775 = vmatprep.subr.mxu0 0.0
      %5776 = vmatpush1.xpose.msra.mxu0 0.0
      %5777 = vmatprep.mubr.f32.mxu0 0.0
      %5778 = vmatmul.mubr.f32.gmra.mrb[0].mxu0 %v5705
      %v5779 = vpop.f32.mrb[0].mxu0
      %v5780 = vadd.f32 0.0, %v5779
      %v5781 = vpop.f32.mrb[0].mxu0
      %5782 = vmatprep.mubr.f32.mxu0 0.0
      %5783 = vmatmul.mubr.f32.gmra.mrb[0].mxu0 %v5707
      %v5784 = vpop.f32.mrb[0].mxu0
      %v5785 = vadd.f32 0.0, %v5784
      %v5786 = vpop.f32.mrb[0].mxu0
      %5787 = vdwg.mxu0
      %5790 = vrot.lane.b32.xlu0 %v5645, 104
      %v5791 = vpop.permute.xlu0 %5790
      %5792 = vrot.lane.b32.xlu0 %v5646, 104
      %v5793 = vpop.permute.xlu0 %5792
      %5796 = vrot.lane.b32.xlu0 %v5673, 72
      %v5797 = vpop.permute.xlu0 %5796
      %5798 = vrot.lane.b32.xlu0 %v5674, 72
      %v5799 = vpop.permute.xlu0 %5798
      %v5800 = vsel %vm960, %v5791, 0
      %v5802 = vsel %vm960, %v5793, 0
      %v5804 = vsel %vm960, %v5797, 0
      %v5806 = vsel %vm960, %v5799, 0
      %5808 = vmatprep.subr.mxu0 0.0
      %5809 = vmatpush1.xpose.msra.mxu0 %v5804
      %5810 = vmatprep.subr.mxu0 0.0
      %5811 = vmatpush1.xpose.msra.mxu0 %v5806
      %5812 = vmatprep.subr.mxu0 0.0
      %5813 = vmatpush1.xpose.msra.mxu0 0.0
      %5814 = vmatprep.subr.mxu0 0.0
      %5815 = vmatpush1.xpose.msra.mxu0 0.0
      %5816 = vmatprep.subr.mxu0 0.0
      %5817 = vmatpush1.xpose.msra.mxu0 0.0
      %5818 = vmatprep.subr.mxu0 0.0
      %5819 = vmatpush1.xpose.msra.mxu0 0.0
      %5820 = vmatprep.subr.mxu0 0.0
      %5821 = vmatpush1.xpose.msra.mxu0 0.0
      %5822 = vmatprep.subr.mxu0 0.0
      %5823 = vmatpush1.xpose.msra.mxu0 0.0
      %5824 = vmatprep.subr.mxu0 0.0
      %5825 = vmatpush1.xpose.msra.mxu0 0.0
      %5826 = vmatprep.subr.mxu0 0.0
      %5827 = vmatpush1.xpose.msra.mxu0 0.0
      %5828 = vmatprep.subr.mxu0 0.0
      %5829 = vmatpush1.xpose.msra.mxu0 0.0
      %5830 = vmatprep.subr.mxu0 0.0
      %5831 = vmatpush1.xpose.msra.mxu0 0.0
      %5832 = vmatprep.subr.mxu0 0.0
      %5833 = vmatpush1.xpose.msra.mxu0 0.0
      %5834 = vmatprep.subr.mxu0 0.0
      %5835 = vmatpush1.xpose.msra.mxu0 0.0
      %5836 = vmatprep.subr.mxu0 0.0
      %5837 = vmatpush1.xpose.msra.mxu0 0.0
      %5838 = vmatprep.subr.mxu0 0.0
      %5839 = vmatpush1.xpose.msra.mxu0 0.0
      %5840 = vmatprep.subr.mxu0 0.0
      %5841 = vmatpush1.xpose.msra.mxu0 0.0
      %5842 = vmatprep.subr.mxu0 0.0
      %5843 = vmatpush1.xpose.msra.mxu0 0.0
      %5844 = vmatprep.subr.mxu0 0.0
      %5845 = vmatpush1.xpose.msra.mxu0 0.0
      %5846 = vmatprep.subr.mxu0 0.0
      %5847 = vmatpush1.xpose.msra.mxu0 0.0
      %5848 = vmatprep.subr.mxu0 0.0
      %5849 = vmatpush1.xpose.msra.mxu0 0.0
      %5850 = vmatprep.subr.mxu0 0.0
      %5851 = vmatpush1.xpose.msra.mxu0 0.0
      %5852 = vmatprep.subr.mxu0 0.0
      %5853 = vmatpush1.xpose.msra.mxu0 0.0
      %5854 = vmatprep.subr.mxu0 0.0
      %5855 = vmatpush1.xpose.msra.mxu0 0.0
      %5856 = vmatprep.subr.mxu0 0.0
      %5857 = vmatpush1.xpose.msra.mxu0 0.0
      %5858 = vmatprep.subr.mxu0 0.0
      %5859 = vmatpush1.xpose.msra.mxu0 0.0
      %5860 = vmatprep.subr.mxu0 0.0
      %5861 = vmatpush1.xpose.msra.mxu0 0.0
      %5862 = vmatprep.subr.mxu0 0.0
      %5863 = vmatpush1.xpose.msra.mxu0 0.0
      %5864 = vmatprep.subr.mxu0 0.0
      %5865 = vmatpush1.xpose.msra.mxu0 0.0
      %5866 = vmatprep.subr.mxu0 0.0
      %5867 = vmatpush1.xpose.msra.mxu0 0.0
      %5868 = vmatprep.subr.mxu0 0.0
      %5869 = vmatpush1.xpose.msra.mxu0 0.0
      %5870 = vmatprep.subr.mxu0 0.0
      %5871 = vmatpush1.xpose.msra.mxu0 0.0
      %5872 = vmatprep.mubr.f32.mxu0 0.0
      %5873 = vmatmul.mubr.f32.gmra.mrb[0].mxu0 %v5800
      %v5874 = vpop.f32.mrb[0].mxu0
      %v5875 = vadd.f32 %v5780, %v5874
      %v5876 = vpop.f32.mrb[0].mxu0
      %5877 = vmatprep.mubr.f32.mxu0 0.0
      %5878 = vmatmul.mubr.f32.gmra.mrb[0].mxu0 %v5802
      %v5879 = vpop.f32.mrb[0].mxu0
      %v5880 = vadd.f32 %v5785, %v5879
      %v5881 = vpop.f32.mrb[0].mxu0
      %5882 = vdwg.mxu0
      %v5883 = vmul.f32 %v5875, 0.35355338
      %v5884 = vmul.f32 %v5880, 0.35355338
      %v5885 = vsel %vm3910, %v5883, -1e+09
      %v5886 = vsel %vm3911, %v5884, -1e+09
      %v5887 = vsel %vm3916, %v5885, -inf
      %5888 = vmax.xlane.f32.xlu0 %v5887
      %v5889 = vpop.xlane.xlu0 %5888
      %v5890 = vsel %vm4522, %v5886, -inf
      %5891 = vmax.xlane.f32.xlu0 %v5890
      %v5892 = vpop.xlane.xlu0 %5891
      %v5893 = vsub.f32 %v5885, %v5889
      %v5894 = vsub.f32 %v5886, %v5892
      %v5895 = vmul.f32 %v5893, 1.442695
      %v5896 = vpow.pop %v5895
      %v5897 = vmul.f32 %v5894, 1.442695
      %v5898 = vpow.pop %v5897
      %v5899 = vsel %vm3916, %v5896, 0.0
      %5900 = vadd.xlane.f32.xlu0 %v5899
      %v5901 = vpop.xlane.xlu0 %5900
      %v5902 = vsel %vm4522, %v5898, 0.0
      %5903 = vadd.xlane.f32.xlu0 %v5902
      %v5904 = vpop.xlane.xlu0 %5903
      %v5905 = vrcp.pop %v5901
      %v5906 = vmul.f32 %v5896, %v5905
      %v5907 = vrcp.pop %v5904
      %v5908 = vmul.f32 %v5898, %v5907
      %5909 = vrot.lane.b32.xlu0 %v4237, 40
      %v5910 = vpop.permute.xlu0 %5909
      %5911 = vrot.lane.b32.xlu0 %v4242, 40
      %v5912 = vpop.permute.xlu0 %5911
      %v5915 = vsel %vm3916, %v5906, 0
      %v5918 = vsel %vm3916, %v5908, 0
      %v5920 = vsel %vm737, %v5912, 0
      %5922 = vmatprep.subr.mxu0 0.0
      %5923 = vmatpush1.msra.mxu0 %v5910
      %5924 = vmatprep.subr.mxu0 0.0
      %5925 = vmatpush1.msra.mxu0 %v5920
      %5926 = vmatprep.subr.mxu0 0.0
      %5927 = vmatpush1.msra.mxu0 0.0
      %5928 = vmatprep.subr.mxu0 0.0
      %5929 = vmatpush1.msra.mxu0 0.0
      %5930 = vmatprep.subr.mxu0 0.0
      %5931 = vmatpush1.msra.mxu0 0.0
      %5932 = vmatprep.subr.mxu0 0.0
      %5933 = vmatpush1.msra.mxu0 0.0
      %5934 = vmatprep.subr.mxu0 0.0
      %5935 = vmatpush1.msra.mxu0 0.0
      %5936 = vmatprep.subr.mxu0 0.0
      %5937 = vmatpush1.msra.mxu0 0.0
      %5938 = vmatprep.subr.mxu0 0.0
      %5939 = vmatpush1.msra.mxu0 0.0
      %5940 = vmatprep.subr.mxu0 0.0
      %5941 = vmatpush1.msra.mxu0 0.0
      %5942 = vmatprep.subr.mxu0 0.0
      %5943 = vmatpush1.msra.mxu0 0.0
      %5944 = vmatprep.subr.mxu0 0.0
      %5945 = vmatpush1.msra.mxu0 0.0
      %5946 = vmatprep.subr.mxu0 0.0
      %5947 = vmatpush1.msra.mxu0 0.0
      %5948 = vmatprep.subr.mxu0 0.0
      %5949 = vmatpush1.msra.mxu0 0.0
      %5950 = vmatprep.subr.mxu0 0.0
      %5951 = vmatpush1.msra.mxu0 0.0
      %5952 = vmatprep.subr.mxu0 0.0
      %5953 = vmatpush1.msra.mxu0 0.0
      %5954 = vmatprep.subr.mxu0 0.0
      %5955 = vmatpush1.msra.mxu0 0.0
      %5956 = vmatprep.subr.mxu0 0.0
      %5957 = vmatpush1.msra.mxu0 0.0
      %5958 = vmatprep.subr.mxu0 0.0
      %5959 = vmatpush1.msra.mxu0 0.0
      %5960 = vmatprep.subr.mxu0 0.0
      %5961 = vmatpush1.msra.mxu0 0.0
      %5962 = vmatprep.subr.mxu0 0.0
      %5963 = vmatpush1.msra.mxu0 0.0
      %5964 = vmatprep.subr.mxu0 0.0
      %5965 = vmatpush1.msra.mxu0 0.0
      %5966 = vmatprep.subr.mxu0 0.0
      %5967 = vmatpush1.msra.mxu0 0.0
      %5968 = vmatprep.subr.mxu0 0.0
      %5969 = vmatpush1.msra.mxu0 0.0
      %5970 = vmatprep.subr.mxu0 0.0
      %5971 = vmatpush1.msra.mxu0 0.0
      %5972 = vmatprep.subr.mxu0 0.0
      %5973 = vmatpush1.msra.mxu0 0.0
      %5974 = vmatprep.subr.mxu0 0.0
      %5975 = vmatpush1.msra.mxu0 0.0
      %5976 = vmatprep.subr.mxu0 0.0
      %5977 = vmatpush1.msra.mxu0 0.0
      %5978 = vmatprep.subr.mxu0 0.0
      %5979 = vmatpush1.msra.mxu0 0.0
      %5980 = vmatprep.subr.mxu0 0.0
      %5981 = vmatpush1.msra.mxu0 0.0
      %5982 = vmatprep.subr.mxu0 0.0
      %5983 = vmatpush1.msra.mxu0 0.0
      %5984 = vmatprep.subr.mxu0 0.0
      %5985 = vmatpush1.msra.mxu0 0.0
      %5986 = vmatprep.mubr.f32.mxu0 0.0
      %5987 = vmatmul.mubr.f32.gmra.mrb[0].mxu0 %v5915
      %v5988 = vpop.f32.mrb[0].mxu0
      %v5989 = vadd.f32 0.0, %v5988
      %v5990 = vpop.f32.mrb[0].mxu0
      %5991 = vmatprep.mubr.f32.mxu0 0.0
      %5992 = vmatmul.mubr.f32.gmra.mrb[0].mxu0 %v5918
      %v5993 = vpop.f32.mrb[0].mxu0
      %v5994 = vadd.f32 0.0, %v5993
      %v5995 = vpop.f32.mrb[0].mxu0
      %5996 = vdwg.mxu0
      %v5998 = vsel %vm1188, %v5989, 0
      %v6001 = vsel %vm1188, %v5994, 0
      %6003 = vmatprep.subr.mxu0 0.0
      %6004 = vmatpush1.msra.mxu0 %v4127
      %6005 = vmatprep.subr.mxu0 0.0
      %6006 = vmatpush1.msra.mxu0 0.0
      %6007 = vmatprep.subr.mxu0 0.0
      %6008 = vmatpush1.msra.mxu0 0.0
      %6009 = vmatprep.subr.mxu0 0.0
      %6010 = vmatpush1.msra.mxu0 0.0
      %6011 = vmatprep.subr.mxu0 0.0
      %6012 = vmatpush1.msra.mxu0 0.0
      %6013 = vmatprep.subr.mxu0 0.0
      %6014 = vmatpush1.msra.mxu0 0.0
      %6015 = vmatprep.subr.mxu0 0.0
      %6016 = vmatpush1.msra.mxu0 0.0
      %6017 = vmatprep.subr.mxu0 0.0
      %6018 = vmatpush1.msra.mxu0 0.0
      %6019 = vmatprep.subr.mxu0 0.0
      %6020 = vmatpush1.msra.mxu0 0.0
      %6021 = vmatprep.subr.mxu0 0.0
      %6022 = vmatpush1.msra.mxu0 0.0
      %6023 = vmatprep.subr.mxu0 0.0
      %6024 = vmatpush1.msra.mxu0 0.0
      %6025 = vmatprep.subr.mxu0 0.0
      %6026 = vmatpush1.msra.mxu0 0.0
      %6027 = vmatprep.subr.mxu0 0.0
      %6028 = vmatpush1.msra.mxu0 0.0
      %6029 = vmatprep.subr.mxu0 0.0
      %6030 = vmatpush1.msra.mxu0 0.0
      %6031 = vmatprep.subr.mxu0 0.0
      %6032 = vmatpush1.msra.mxu0 0.0
      %6033 = vmatprep.subr.mxu0 0.0
      %6034 = vmatpush1.msra.mxu0 0.0
      %6035 = vmatprep.subr.mxu0 0.0
      %6036 = vmatpush1.msra.mxu0 0.0
      %6037 = vmatprep.subr.mxu0 0.0
      %6038 = vmatpush1.msra.mxu0 0.0
      %6039 = vmatprep.subr.mxu0 0.0
      %6040 = vmatpush1.msra.mxu0 0.0
      %6041 = vmatprep.subr.mxu0 0.0
      %6042 = vmatpush1.msra.mxu0 0.0
      %6043 = vmatprep.subr.mxu0 0.0
      %6044 = vmatpush1.msra.mxu0 0.0
      %6045 = vmatprep.subr.mxu0 0.0
      %6046 = vmatpush1.msra.mxu0 0.0
      %6047 = vmatprep.subr.mxu0 0.0
      %6048 = vmatpush1.msra.mxu0 0.0
      %6049 = vmatprep.subr.mxu0 0.0
      %6050 = vmatpush1.msra.mxu0 0.0
      %6051 = vmatprep.subr.mxu0 0.0
      %6052 = vmatpush1.msra.mxu0 0.0
      %6053 = vmatprep.subr.mxu0 0.0
      %6054 = vmatpush1.msra.mxu0 0.0
      %6055 = vmatprep.subr.mxu0 0.0
      %6056 = vmatpush1.msra.mxu0 0.0
      %6057 = vmatprep.subr.mxu0 0.0
      %6058 = vmatpush1.msra.mxu0 0.0
      %6059 = vmatprep.subr.mxu0 0.0
      %6060 = vmatpush1.msra.mxu0 0.0
      %6061 = vmatprep.subr.mxu0 0.0
      %6062 = vmatpush1.msra.mxu0 0.0
      %6063 = vmatprep.subr.mxu0 0.0
      %6064 = vmatpush1.msra.mxu0 0.0
      %6065 = vmatprep.subr.mxu0 0.0
      %6066 = vmatpush1.msra.mxu0 0.0
      %6067 = vmatprep.mubr.f32.mxu0 0.0
      %6068 = vmatmul.mubr.f32.gmra.mrb[0].mxu0 %v5998
      %v6069 = vpop.f32.mrb[0].mxu0
      %v6070 = vadd.f32 0.0, %v6069
      %v6071 = vpop.f32.mrb[0].mxu0
      %6072 = vmatprep.mubr.f32.mxu0 0.0
      %6073 = vmatmul.mubr.f32.gmra.mrb[0].mxu0 %v6001
      %v6074 = vpop.f32.mrb[0].mxu0
      %v6075 = vadd.f32 0.0, %v6074
      %v6076 = vpop.f32.mrb[0].mxu0
      %6077 = vdwg.mxu0
      %v6078 = vadd.f32 %v5627, %v6070
      %v6079 = vadd.f32 %v5628, %v6075
      %v6080 = vadd.f32 %v4116, %v6078
      %v6081 = vadd.f32 %v4117, %v6079
      %v6082 = vmul.f32 %v6080, %v6080
      %v6083 = vmul.f32 %v6081, %v6081
      %v6084 = vsel %vm1111, %v6082, 0.0
      %6085 = vadd.xlane.f32.xlu0 %v6084
      %v6086 = vpop.xlane.xlu0 %6085
      %v6087 = vsel %vm4146, %v6083, 0.0
      %6088 = vadd.xlane.f32.xlu0 %v6087
      %v6089 = vpop.xlane.xlu0 %6088
      %v6090 = vmul.f32 %v6086, %v1042
      %v6091 = vmul.f32 %v6089, %v1042
      %v6092 = vadd.f32 %v6090, 1e-06
      %v6093 = vadd.f32 %v6091, 1e-06
      %v6094 = vrsqrt.pop %v6092
      %v6095 = vrsqrt.pop %v6093
      %v6096 = vmul.f32 %v6080, %v6094
      %v6097 = vmul.f32 %v6081, %v6095
      %v6098 = vlaneseq
      %v6099 = vshrl.u32 %v6098, 7
      %v6100 = vsub.s32 1, %v6099
      %v6101 = vrot.slane %v4140, %v6100
      %v6102 = vmul.f32 %v6096, %v6101
      %v6103 = vmul.f32 %v6097, %v6101
      %v6105 = vsel %vm1111, %v6102, 0
      %v6108 = vsel %vm1111, %v6103, 0
      %6110 = vmatprep.subr.mxu0 0.0
      %6111 = vmatpush1.msra.mxu0 %v4128
      %6112 = vmatprep.subr.mxu0 0.0
      %6113 = vmatpush1.msra.mxu0 %v4129
      %6114 = vmatprep.subr.mxu0 0.0
      %6115 = vmatpush1.msra.mxu0 %v4130
      %6116 = vmatprep.subr.mxu0 0.0
      %6117 = vmatpush1.msra.mxu0 %v4131
      %6118 = vmatprep.subr.mxu0 0.0
      %6119 = vmatpush1.msra.mxu0 0.0
      %6120 = vmatprep.subr.mxu0 0.0
      %6121 = vmatpush1.msra.mxu0 0.0
      %6122 = vmatprep.subr.mxu0 0.0
      %6123 = vmatpush1.msra.mxu0 0.0
      %6124 = vmatprep.subr.mxu0 0.0
      %6125 = vmatpush1.msra.mxu0 0.0
      %6126 = vmatprep.subr.mxu0 0.0
      %6127 = vmatpush1.msra.mxu0 0.0
      %6128 = vmatprep.subr.mxu0 0.0
      %6129 = vmatpush1.msra.mxu0 0.0
      %6130 = vmatprep.subr.mxu0 0.0
      %6131 = vmatpush1.msra.mxu0 0.0
      %6132 = vmatprep.subr.mxu0 0.0
      %6133 = vmatpush1.msra.mxu0 0.0
      %6134 = vmatprep.subr.mxu0 0.0
      %6135 = vmatpush1.msra.mxu0 0.0
      %6136 = vmatprep.subr.mxu0 0.0
      %6137 = vmatpush1.msra.mxu0 0.0
      %6138 = vmatprep.subr.mxu0 0.0
      %6139 = vmatpush1.msra.mxu0 0.0
      %6140 = vmatprep.subr.mxu0 0.0
      %6141 = vmatpush1.msra.mxu0 0.0
      %6142 = vmatprep.subr.mxu0 0.0
      %6143 = vmatpush1.msra.mxu0 0.0
      %6144 = vmatprep.subr.mxu0 0.0
      %6145 = vmatpush1.msra.mxu0 0.0
      %6146 = vmatprep.subr.mxu0 0.0
      %6147 = vmatpush1.msra.mxu0 0.0
      %6148 = vmatprep.subr.mxu0 0.0
      %6149 = vmatpush1.msra.mxu0 0.0
      %6150 = vmatprep.subr.mxu0 0.0
      %6151 = vmatpush1.msra.mxu0 0.0
      %6152 = vmatprep.subr.mxu0 0.0
      %6153 = vmatpush1.msra.mxu0 0.0
      %6154 = vmatprep.subr.mxu0 0.0
      %6155 = vmatpush1.msra.mxu0 0.0
      %6156 = vmatprep.subr.mxu0 0.0
      %6157 = vmatpush1.msra.mxu0 0.0
      %6158 = vmatprep.subr.mxu0 0.0
      %6159 = vmatpush1.msra.mxu0 0.0
      %6160 = vmatprep.subr.mxu0 0.0
      %6161 = vmatpush1.msra.mxu0 0.0
      %6162 = vmatprep.subr.mxu0 0.0
      %6163 = vmatpush1.msra.mxu0 0.0
      %6164 = vmatprep.subr.mxu0 0.0
      %6165 = vmatpush1.msra.mxu0 0.0
      %6166 = vmatprep.subr.mxu0 0.0
      %6167 = vmatpush1.msra.mxu0 0.0
      %6168 = vmatprep.subr.mxu0 0.0
      %6169 = vmatpush1.msra.mxu0 0.0
      %6170 = vmatprep.subr.mxu0 0.0
      %6171 = vmatpush1.msra.mxu0 0.0
      %6172 = vmatprep.subr.mxu0 0.0
      %6173 = vmatpush1.msra.mxu0 0.0
      %6174 = vmatprep.mubr.f32.mxu0 0.0
      %6175 = vmatmul.mubr.f32.gmra.mrb[0].mxu0 %v6105
      %v6176 = vpop.f32.mrb[0].mxu0
      %v6177 = vadd.f32 0.0, %v6176
      %v6178 = vpop.f32.mrb[0].mxu0
      %6179 = vmatprep.mubr.f32.mxu0 0.0
      %6180 = vmatmul.mubr.f32.gmra.mrb[0].mxu0 %v6108
      %v6181 = vpop.f32.mrb[0].mxu0
      %v6182 = vadd.f32 0.0, %v6181
      %v6183 = vpop.f32.mrb[0].mxu0
      %6184 = vdwg.mxu0
      %v6185 = vxor.u32 %v6177, 2147483648
      %v6186 = vxor.u32 %v6182, 2147483648
      %v6187 = vmul.f32 %v6185, 1.442695
      %v6188 = vpow.pop %v6187
      %v6189 = vmul.f32 %v6186, 1.442695
      %v6190 = vpow.pop %v6189
      %v6191 = vadd.f32 %v6188, 1.0
      %v6192 = vadd.f32 %v6190, 1.0
      %v6193 = vrcp.pop %v6191
      %v6194 = vmul.f32 1.0, %v6193
      %v6195 = vrcp.pop %v6192
      %v6196 = vmul.f32 1.0, %v6195
      %v6197 = vmul.f32 %v6177, %v6194
      %v6198 = vmul.f32 %v6182, %v6196
      %6201 = vrot.lane.b32.xlu0 %v6177, 64
      %v6202 = vpop.permute.xlu0 %6201
      %6203 = vrot.lane.b32.xlu0 %v6182, 64
      %v6204 = vpop.permute.xlu0 %6203
      %v6207 = vmul.f32 %v6197, %v6202
      %v6208 = vmul.f32 %v6198, %v6204
      %v6210 = vsel %vm2264, %v6207, 0
      %v6213 = vsel %vm2264, %v6208, 0
      %6215 = vmatprep.subr.mxu0 0.0
      %6216 = vmatpush1.msra.mxu0 %v4132
      %6217 = vmatprep.subr.mxu0 0.0
      %6218 = vmatpush1.msra.mxu0 %v4133
      %6219 = vmatprep.subr.mxu0 0.0
      %6220 = vmatpush1.msra.mxu0 %v4134
      %6221 = vmatprep.subr.mxu0 0.0
      %6222 = vmatpush1.msra.mxu0 %v4135
      %6223 = vmatprep.subr.mxu0 0.0
      %6224 = vmatpush1.msra.mxu0 %v4136
      %6225 = vmatprep.subr.mxu0 0.0
      %6226 = vmatpush1.msra.mxu0 %v4137
      %6227 = vmatprep.subr.mxu0 0.0
      %6228 = vmatpush1.msra.mxu0 %v4138
      %6229 = vmatprep.subr.mxu0 0.0
      %6230 = vmatpush1.msra.mxu0 %v4139
      %6231 = vmatprep.subr.mxu0 0.0
      %6232 = vmatpush1.msra.mxu0 0.0
      %6233 = vmatprep.subr.mxu0 0.0
      %6234 = vmatpush1.msra.mxu0 0.0
      %6235 = vmatprep.subr.mxu0 0.0
      %6236 = vmatpush1.msra.mxu0 0.0
      %6237 = vmatprep.subr.mxu0 0.0
      %6238 = vmatpush1.msra.mxu0 0.0
      %6239 = vmatprep.subr.mxu0 0.0
      %6240 = vmatpush1.msra.mxu0 0.0
      %6241 = vmatprep.subr.mxu0 0.0
      %6242 = vmatpush1.msra.mxu0 0.0
      %6243 = vmatprep.subr.mxu0 0.0
      %6244 = vmatpush1.msra.mxu0 0.0
      %6245 = vmatprep.subr.mxu0 0.0
      %6246 = vmatpush1.msra.mxu0 0.0
      %6247 = vmatprep.subr.mxu0 0.0
      %6248 = vmatpush1.msra.mxu0 0.0
      %6249 = vmatprep.subr.mxu0 0.0
      %6250 = vmatpush1.msra.mxu0 0.0
      %6251 = vmatprep.subr.mxu0 0.0
      %6252 = vmatpush1.msra.mxu0 0.0
      %6253 = vmatprep.subr.mxu0 0.0
      %6254 = vmatpush1.msra.mxu0 0.0
      %6255 = vmatprep.subr.mxu0 0.0
      %6256 = vmatpush1.msra.mxu0 0.0
      %6257 = vmatprep.subr.mxu0 0.0
      %6258 = vmatpush1.msra.mxu0 0.0
      %6259 = vmatprep.subr.mxu0 0.0
      %6260 = vmatpush1.msra.mxu0 0.0
      %6261 = vmatprep.subr.mxu0 0.0
      %6262 = vmatpush1.msra.mxu0 0.0
      %6263 = vmatprep.subr.mxu0 0.0
      %6264 = vmatpush1.msra.mxu0 0.0
      %6265 = vmatprep.subr.mxu0 0.0
      %6266 = vmatpush1.msra.mxu0 0.0
      %6267 = vmatprep.subr.mxu0 0.0
      %6268 = vmatpush1.msra.mxu0 0.0
      %6269 = vmatprep.subr.mxu0 0.0
      %6270 = vmatpush1.msra.mxu0 0.0
      %6271 = vmatprep.subr.mxu0 0.0
      %6272 = vmatpush1.msra.mxu0 0.0
      %6273 = vmatprep.subr.mxu0 0.0
      %6274 = vmatpush1.msra.mxu0 0.0
      %6275 = vmatprep.subr.mxu0 0.0
      %6276 = vmatpush1.msra.mxu0 0.0
      %6277 = vmatprep.subr.mxu0 0.0
      %6278 = vmatpush1.msra.mxu0 0.0
      %6279 = vmatprep.mubr.f32.mxu0 0.0
      %6280 = vmatmul.mubr.f32.gmra.mrb[0].mxu0 %v6210
      %v6281 = vpop.f32.mrb[0].mxu0
      %v6282 = vadd.f32 0.0, %v6281
      %v6283 = vpop.f32.mrb[0].mxu0
      %6284 = vmatprep.mubr.f32.mxu0 0.0
      %6285 = vmatmul.mubr.f32.gmra.mrb[0].mxu0 %v6213
      %v6286 = vpop.f32.mrb[0].mxu0
      %v6287 = vadd.f32 0.0, %v6286
      %v6288 = vpop.f32.mrb[0].mxu0
      %6289 = vdwg.mxu0
      %v6290 = vadd.f32 %v6080, %v6282
      %v6291 = vadd.f32 %v6081, %v6287
      %s6292 = scalar_lea.vmem %s13, 32
      %v6293 = vld [vmem:[%s6292] sm:$0xff]
      %v6294 = vld [vmem:[%s6292 + $0x8] sm:$0xff]
      %v6295 = vld [vmem:[%s6292 + $0x10] sm:$0xff]
      %v6296 = vld [vmem:[%s6292 + $0x18] sm:$0xff]
      %s6297 = scalar_lea.vmem %s14, 32
      %v6298 = vld [vmem:[%s6297] sm:$0xff]
      %v6299 = vld [vmem:[%s6297 + $0x8] sm:$0xff]
      %v6300 = vld [vmem:[%s6297 + $0x10] sm:$0xff]
      %v6301 = vld [vmem:[%s6297 + $0x18] sm:$0xff]
      %s6302 = scalar_lea.vmem %s15, 32
      %v6303 = vld [vmem:[%s6302] sm:$0xff]
      %v6304 = vld [vmem:[%s6302 + $0x8] sm:$0xff]
      %v6305 = vld [vmem:[%s6302 + $0x10] sm:$0xff]
      %v6306 = vld [vmem:[%s6302 + $0x18] sm:$0xff]
      %s6307 = scalar_lea.vmem %s16, 64
      %v6308 = vld [vmem:[%s6307] sm:$0xff]
      %v6309 = vld [vmem:[%s6307 + $0x8] sm:$0xff]
      %v6310 = vld [vmem:[%s6307 + $0x10] sm:$0xff]
      %v6311 = vld [vmem:[%s6307 + $0x18] sm:$0xff]
      %v6312 = vld [vmem:[%s6307 + $0x20] sm:$0xff]
      %v6313 = vld [vmem:[%s6307 + $0x28] sm:$0xff]
      %v6314 = vld [vmem:[%s6307 + $0x30] sm:$0xff]
      %v6315 = vld [vmem:[%s6307 + $0x38] sm:$0xff]
      %s6316 = scalar_lea.vmem %s17, 2
      %v6317 = vld [vmem:[%s6316] sm:$0x3]
      %v6318 = vmul.f32 %v6290, %v6290
      %v6319 = vmul.f32 %v6291, %v6291
      %v6320 = vsel %vm1111, %v6318, 0.0
      %6321 = vadd.xlane.f32.xlu0 %v6320
      %v6322 = vpop.xlane.xlu0 %6321
      %v6323 = vsel %vm4146, %v6319, 0.0
      %6324 = vadd.xlane.f32.xlu0 %v6323
      %v6325 = vpop.xlane.xlu0 %6324
      %v6326 = vmul.f32 %v6322, %v1042
      %v6327 = vmul.f32 %v6325, %v1042
      %v6328 = vadd.f32 %v6326, 1e-06
      %v6329 = vadd.f32 %v6327, 1e-06
      %v6330 = vrsqrt.pop %v6328
      %v6331 = vrsqrt.pop %v6329
      %v6332 = vmul.f32 %v6290, %v6330
      %v6333 = vmul.f32 %v6291, %v6331
      %v6334 = vlaneseq
      %v6335 = vshrl.u32 %v6334, 7
      %v6336 = vsub.s32 0, %v6335
      %v6337 = vrot.slane %v6317, %v6336
      %v6338 = vmul.f32 %v6332, %v6337
      %v6339 = vmul.f32 %v6333, %v6337
      %v6341 = vsel %vm1111, %v6338, 0
      %v6344 = vsel %vm1111, %v6339, 0
      %6346 = vmatprep.subr.mxu0 0.0
      %6347 = vmatpush1.msra.mxu0 %v6293
      %6348 = vmatprep.subr.mxu0 0.0
      %6349 = vmatpush1.msra.mxu0 %v6294
      %6350 = vmatprep.subr.mxu0 0.0
      %6351 = vmatpush1.msra.mxu0 %v6295
      %6352 = vmatprep.subr.mxu0 0.0
      %6353 = vmatpush1.msra.mxu0 %v6296
      %6354 = vmatprep.subr.mxu0 0.0
      %6355 = vmatpush1.msra.mxu0 0.0
      %6356 = vmatprep.subr.mxu0 0.0
      %6357 = vmatpush1.msra.mxu0 0.0
      %6358 = vmatprep.subr.mxu0 0.0
      %6359 = vmatpush1.msra.mxu0 0.0
      %6360 = vmatprep.subr.mxu0 0.0
      %6361 = vmatpush1.msra.mxu0 0.0
      %6362 = vmatprep.subr.mxu0 0.0
      %6363 = vmatpush1.msra.mxu0 0.0
      %6364 = vmatprep.subr.mxu0 0.0
      %6365 = vmatpush1.msra.mxu0 0.0
      %6366 = vmatprep.subr.mxu0 0.0
      %6367 = vmatpush1.msra.mxu0 0.0
      %6368 = vmatprep.subr.mxu0 0.0
      %6369 = vmatpush1.msra.mxu0 0.0
      %6370 = vmatprep.subr.mxu0 0.0
      %6371 = vmatpush1.msra.mxu0 0.0
      %6372 = vmatprep.subr.mxu0 0.0
      %6373 = vmatpush1.msra.mxu0 0.0
      %6374 = vmatprep.subr.mxu0 0.0
      %6375 = vmatpush1.msra.mxu0 0.0
      %6376 = vmatprep.subr.mxu0 0.0
      %6377 = vmatpush1.msra.mxu0 0.0
      %6378 = vmatprep.subr.mxu0 0.0
      %6379 = vmatpush1.msra.mxu0 0.0
      %6380 = vmatprep.subr.mxu0 0.0
      %6381 = vmatpush1.msra.mxu0 0.0
      %6382 = vmatprep.subr.mxu0 0.0
      %6383 = vmatpush1.msra.mxu0 0.0
      %6384 = vmatprep.subr.mxu0 0.0
      %6385 = vmatpush1.msra.mxu0 0.0
      %6386 = vmatprep.subr.mxu0 0.0
      %6387 = vmatpush1.msra.mxu0 0.0
      %6388 = vmatprep.subr.mxu0 0.0
      %6389 = vmatpush1.msra.mxu0 0.0
      %6390 = vmatprep.subr.mxu0 0.0
      %6391 = vmatpush1.msra.mxu0 0.0
      %6392 = vmatprep.subr.mxu0 0.0
      %6393 = vmatpush1.msra.mxu0 0.0
      %6394 = vmatprep.subr.mxu0 0.0
      %6395 = vmatpush1.msra.mxu0 0.0
      %6396 = vmatprep.subr.mxu0 0.0
      %6397 = vmatpush1.msra.mxu0 0.0
      %6398 = vmatprep.subr.mxu0 0.0
      %6399 = vmatpush1.msra.mxu0 0.0
      %6400 = vmatprep.subr.mxu0 0.0
      %6401 = vmatpush1.msra.mxu0 0.0
      %6402 = vmatprep.subr.mxu0 0.0
      %6403 = vmatpush1.msra.mxu0 0.0
      %6404 = vmatprep.subr.mxu0 0.0
      %6405 = vmatpush1.msra.mxu0 0.0
      %6406 = vmatprep.subr.mxu0 0.0
      %6407 = vmatpush1.msra.mxu0 0.0
      %6408 = vmatprep.subr.mxu0 0.0
      %6409 = vmatpush1.msra.mxu0 0.0
      %6410 = vmatprep.mubr.f32.mxu0 0.0
      %6411 = vmatmul.mubr.f32.gmra.mrb[0].mxu0 %v6341
      %v6412 = vpop.f32.mrb[0].mxu0
      %v6413 = vadd.f32 0.0, %v6412
      %v6414 = vpop.f32.mrb[0].mxu0
      %6415 = vmatprep.mubr.f32.mxu0 0.0
      %6416 = vmatmul.mubr.f32.gmra.mrb[0].mxu0 %v6344
      %v6417 = vpop.f32.mrb[0].mxu0
      %v6418 = vadd.f32 0.0, %v6417
      %v6419 = vpop.f32.mrb[0].mxu0
      %6420 = vdwg.mxu0
      %v6421 = vmul.f32 %v6413, %v4118
      %v6422 = vmul.f32 %v6418, %v4119
      %6425 = vrot.lane.b32.xlu0 %v6421, 124
      %v6426 = vpop.permute.xlu0 %6425
      %6427 = vrot.lane.b32.xlu0 %v6422, 124
      %v6428 = vpop.permute.xlu0 %6427
      %v6431 = vsub.f32 %v6421, %v6426
      %v6432 = vsub.f32 %v6422, %v6428
      %v6433 = vmul.f32 %v6413, %v4260
      %v6434 = vmul.f32 %v6418, %v4262
      %v6435 = vmul.f32 %v6413, %v4268
      %v6436 = vmul.f32 %v6418, %v4270
      %6439 = vrot.lane.b32.xlu0 %v6435, 4
      %v6440 = vpop.permute.xlu0 %6439
      %6441 = vrot.lane.b32.xlu0 %v6436, 4
      %v6442 = vpop.permute.xlu0 %6441
      %v6445 = vadd.f32 %v6433, %v6440
      %v6446 = vadd.f32 %v6434, %v6442
      %v6447 = vmul.f32 %v6413, %v4286
      %v6448 = vmul.f32 %v6418, %v4288
      %6451 = vrot.lane.b32.xlu0 %v6447, 124
      %v6452 = vpop.permute.xlu0 %6451
      %6453 = vrot.lane.b32.xlu0 %v6448, 124
      %v6454 = vpop.permute.xlu0 %6453
      %v6457 = vsub.f32 %v6447, %v6452
      %v6458 = vsub.f32 %v6448, %v6454
      %v6459 = vmul.f32 %v6413, %v4304
      %v6460 = vmul.f32 %v6418, %v4306
      %v6461 = vmul.f32 %v6413, %v4312
      %v6462 = vmul.f32 %v6418, %v4314
      %6465 = vrot.lane.b32.xlu0 %v6461, 4
      %v6466 = vpop.permute.xlu0 %6465
      %6467 = vrot.lane.b32.xlu0 %v6462, 4
      %v6468 = vpop.permute.xlu0 %6467
      %v6471 = vadd.f32 %v6459, %v6466
      %v6472 = vadd.f32 %v6460, %v6468
      %6475 = vrot.lane.b32.xlu0 %v6445, 124
      %v6476 = vpop.permute.xlu0 %6475
      %6477 = vrot.lane.b32.xlu0 %v6446, 124
      %v6478 = vpop.permute.xlu0 %6477
      %6481 = vrot.lane.b32.xlu0 %v6471, 92
      %v6482 = vpop.permute.xlu0 %6481
      %6483 = vrot.lane.b32.xlu0 %v6472, 92
      %v6484 = vpop.permute.xlu0 %6483
      %v6485 = vsel %vm960, %v6476, 0
      %v6487 = vsel %vm960, %v6478, 0
      %v6489 = vsel %vm960, %v6482, 0
      %v6491 = vsel %vm960, %v6484, 0
      %6493 = vmatprep.subr.mxu0 0.0
      %6494 = vmatpush1.xpose.msra.mxu0 %v6489
      %6495 = vmatprep.subr.mxu0 0.0
      %6496 = vmatpush1.xpose.msra.mxu0 %v6491
      %6497 = vmatprep.subr.mxu0 0.0
      %6498 = vmatpush1.xpose.msra.mxu0 0.0
      %6499 = vmatprep.subr.mxu0 0.0
      %6500 = vmatpush1.xpose.msra.mxu0 0.0
      %6501 = vmatprep.subr.mxu0 0.0
      %6502 = vmatpush1.xpose.msra.mxu0 0.0
      %6503 = vmatprep.subr.mxu0 0.0
      %6504 = vmatpush1.xpose.msra.mxu0 0.0
      %6505 = vmatprep.subr.mxu0 0.0
      %6506 = vmatpush1.xpose.msra.mxu0 0.0
      %6507 = vmatprep.subr.mxu0 0.0
      %6508 = vmatpush1.xpose.msra.mxu0 0.0
      %6509 = vmatprep.subr.mxu0 0.0
      %6510 = vmatpush1.xpose.msra.mxu0 0.0
      %6511 = vmatprep.subr.mxu0 0.0
      %6512 = vmatpush1.xpose.msra.mxu0 0.0
      %6513 = vmatprep.subr.mxu0 0.0
      %6514 = vmatpush1.xpose.msra.mxu0 0.0
      %6515 = vmatprep.subr.mxu0 0.0
      %6516 = vmatpush1.xpose.msra.mxu0 0.0
      %6517 = vmatprep.subr.mxu0 0.0
      %6518 = vmatpush1.xpose.msra.mxu0 0.0
      %6519 = vmatprep.subr.mxu0 0.0
      %6520 = vmatpush1.xpose.msra.mxu0 0.0
      %6521 = vmatprep.subr.mxu0 0.0
      %6522 = vmatpush1.xpose.msra.mxu0 0.0
      %6523 = vmatprep.subr.mxu0 0.0
      %6524 = vmatpush1.xpose.msra.mxu0 0.0
      %6525 = vmatprep.subr.mxu0 0.0
      %6526 = vmatpush1.xpose.msra.mxu0 0.0
      %6527 = vmatprep.subr.mxu0 0.0
      %6528 = vmatpush1.xpose.msra.mxu0 0.0
      %6529 = vmatprep.subr.mxu0 0.0
      %6530 = vmatpush1.xpose.msra.mxu0 0.0
      %6531 = vmatprep.subr.mxu0 0.0
      %6532 = vmatpush1.xpose.msra.mxu0 0.0
      %6533 = vmatprep.subr.mxu0 0.0
      %6534 = vmatpush1.xpose.msra.mxu0 0.0
      %6535 = vmatprep.subr.mxu0 0.0
      %6536 = vmatpush1.xpose.msra.mxu0 0.0
      %6537 = vmatprep.subr.mxu0 0.0
      %6538 = vmatpush1.xpose.msra.mxu0 0.0
      %6539 = vmatprep.subr.mxu0 0.0
      %6540 = vmatpush1.xpose.msra.mxu0 0.0
      %6541 = vmatprep.subr.mxu0 0.0
      %6542 = vmatpush1.xpose.msra.mxu0 0.0
      %6543 = vmatprep.subr.mxu0 0.0
      %6544 = vmatpush1.xpose.msra.mxu0 0.0
      %6545 = vmatprep.subr.mxu0 0.0
      %6546 = vmatpush1.xpose.msra.mxu0 0.0
      %6547 = vmatprep.subr.mxu0 0.0
      %6548 = vmatpush1.xpose.msra.mxu0 0.0
      %6549 = vmatprep.subr.mxu0 0.0
      %6550 = vmatpush1.xpose.msra.mxu0 0.0
      %6551 = vmatprep.subr.mxu0 0.0
      %6552 = vmatpush1.xpose.msra.mxu0 0.0
      %6553 = vmatprep.subr.mxu0 0.0
      %6554 = vmatpush1.xpose.msra.mxu0 0.0
      %6555 = vmatprep.subr.mxu0 0.0
      %6556 = vmatpush1.xpose.msra.mxu0 0.0
      %6557 = vmatprep.mubr.f32.mxu0 0.0
      %6558 = vmatmul.mubr.f32.gmra.mrb[0].mxu0 %v6485
      %v6559 = vpop.f32.mrb[0].mxu0
      %v6560 = vadd.f32 0.0, %v6559
      %v6561 = vpop.f32.mrb[0].mxu0
      %6562 = vmatprep.mubr.f32.mxu0 0.0
      %6563 = vmatmul.mubr.f32.gmra.mrb[0].mxu0 %v6487
      %v6564 = vpop.f32.mrb[0].mxu0
      %v6565 = vadd.f32 0.0, %v6564
      %v6566 = vpop.f32.mrb[0].mxu0
      %6567 = vdwg.mxu0
      %6570 = vrot.lane.b32.xlu0 %v6457, 96
      %v6571 = vpop.permute.xlu0 %6570
      %6572 = vrot.lane.b32.xlu0 %v6458, 96
      %v6573 = vpop.permute.xlu0 %6572
      %v6575 = vsel %vm960, %v6431, 0
      %v6578 = vsel %vm960, %v6432, 0
      %v6580 = vsel %vm960, %v6571, 0
      %v6582 = vsel %vm960, %v6573, 0
      %6584 = vmatprep.subr.mxu0 0.0
      %6585 = vmatpush1.xpose.msra.mxu0 %v6580
      %6586 = vmatprep.subr.mxu0 0.0
      %6587 = vmatpush1.xpose.msra.mxu0 %v6582
      %6588 = vmatprep.subr.mxu0 0.0
      %6589 = vmatpush1.xpose.msra.mxu0 0.0
      %6590 = vmatprep.subr.mxu0 0.0
      %6591 = vmatpush1.xpose.msra.mxu0 0.0
      %6592 = vmatprep.subr.mxu0 0.0
      %6593 = vmatpush1.xpose.msra.mxu0 0.0
      %6594 = vmatprep.subr.mxu0 0.0
      %6595 = vmatpush1.xpose.msra.mxu0 0.0
      %6596 = vmatprep.subr.mxu0 0.0
      %6597 = vmatpush1.xpose.msra.mxu0 0.0
      %6598 = vmatprep.subr.mxu0 0.0
      %6599 = vmatpush1.xpose.msra.mxu0 0.0
      %6600 = vmatprep.subr.mxu0 0.0
      %6601 = vmatpush1.xpose.msra.mxu0 0.0
      %6602 = vmatprep.subr.mxu0 0.0
      %6603 = vmatpush1.xpose.msra.mxu0 0.0
      %6604 = vmatprep.subr.mxu0 0.0
      %6605 = vmatpush1.xpose.msra.mxu0 0.0
      %6606 = vmatprep.subr.mxu0 0.0
      %6607 = vmatpush1.xpose.msra.mxu0 0.0
      %6608 = vmatprep.subr.mxu0 0.0
      %6609 = vmatpush1.xpose.msra.mxu0 0.0
      %6610 = vmatprep.subr.mxu0 0.0
      %6611 = vmatpush1.xpose.msra.mxu0 0.0
      %6612 = vmatprep.subr.mxu0 0.0
      %6613 = vmatpush1.xpose.msra.mxu0 0.0
      %6614 = vmatprep.subr.mxu0 0.0
      %6615 = vmatpush1.xpose.msra.mxu0 0.0
      %6616 = vmatprep.subr.mxu0 0.0
      %6617 = vmatpush1.xpose.msra.mxu0 0.0
      %6618 = vmatprep.subr.mxu0 0.0
      %6619 = vmatpush1.xpose.msra.mxu0 0.0
      %6620 = vmatprep.subr.mxu0 0.0
      %6621 = vmatpush1.xpose.msra.mxu0 0.0
      %6622 = vmatprep.subr.mxu0 0.0
      %6623 = vmatpush1.xpose.msra.mxu0 0.0
      %6624 = vmatprep.subr.mxu0 0.0
      %6625 = vmatpush1.xpose.msra.mxu0 0.0
      %6626 = vmatprep.subr.mxu0 0.0
      %6627 = vmatpush1.xpose.msra.mxu0 0.0
      %6628 = vmatprep.subr.mxu0 0.0
      %6629 = vmatpush1.xpose.msra.mxu0 0.0
      %6630 = vmatprep.subr.mxu0 0.0
      %6631 = vmatpush1.xpose.msra.mxu0 0.0
      %6632 = vmatprep.subr.mxu0 0.0
      %6633 = vmatpush1.xpose.msra.mxu0 0.0
      %6634 = vmatprep.subr.mxu0 0.0
      %6635 = vmatpush1.xpose.msra.mxu0 0.0
      %6636 = vmatprep.subr.mxu0 0.0
      %6637 = vmatpush1.xpose.msra.mxu0 0.0
      %6638 = vmatprep.subr.mxu0 0.0
      %6639 = vmatpush1.xpose.msra.mxu0 0.0
      %6640 = vmatprep.subr.mxu0 0.0
      %6641 = vmatpush1.xpose.msra.mxu0 0.0
      %6642 = vmatprep.subr.mxu0 0.0
      %6643 = vmatpush1.xpose.msra.mxu0 0.0
      %6644 = vmatprep.subr.mxu0 0.0
      %6645 = vmatpush1.xpose.msra.mxu0 0.0
      %6646 = vmatprep.subr.mxu0 0.0
      %6647 = vmatpush1.xpose.msra.mxu0 0.0
      %6648 = vmatprep.mubr.f32.mxu0 0.0
      %6649 = vmatmul.mubr.f32.gmra.mrb[0].mxu0 %v6575
      %v6650 = vpop.f32.mrb[0].mxu0
      %v6651 = vadd.f32 %v6560, %v6650
      %v6652 = vpop.f32.mrb[0].mxu0
      %6653 = vmatprep.mubr.f32.mxu0 0.0
      %6654 = vmatmul.mubr.f32.gmra.mrb[0].mxu0 %v6578
      %v6655 = vpop.f32.mrb[0].mxu0
      %v6656 = vadd.f32 %v6565, %v6655
      %v6657 = vpop.f32.mrb[0].mxu0
      %6658 = vdwg.mxu0
      %v6659 = vmul.f32 %v6651, 0.35355338
      %v6660 = vmul.f32 %v6656, 0.35355338
      %v6661 = vsel %vm3910, %v6659, -1e+09
      %v6662 = vsel %vm3911, %v6660, -1e+09
      %v6663 = vsel %vm3916, %v6661, -inf
      %6664 = vmax.xlane.f32.xlu0 %v6663
      %v6665 = vpop.xlane.xlu0 %6664
      %v6666 = vsel %vm4522, %v6662, -inf
      %6667 = vmax.xlane.f32.xlu0 %v6666
      %v6668 = vpop.xlane.xlu0 %6667
      %v6669 = vsub.f32 %v6661, %v6665
      %v6670 = vsub.f32 %v6662, %v6668
      %v6671 = vmul.f32 %v6669, 1.442695
      %v6672 = vpow.pop %v6671
      %v6673 = vmul.f32 %v6670, 1.442695
      %v6674 = vpow.pop %v6673
      %v6675 = vsel %vm3916, %v6672, 0.0
      %6676 = vadd.xlane.f32.xlu0 %v6675
      %v6677 = vpop.xlane.xlu0 %6676
      %v6678 = vsel %vm4522, %v6674, 0.0
      %6679 = vadd.xlane.f32.xlu0 %v6678
      %v6680 = vpop.xlane.xlu0 %6679
      %v6681 = vrcp.pop %v6677
      %v6682 = vmul.f32 %v6672, %v6681
      %v6683 = vrcp.pop %v6680
      %v6684 = vmul.f32 %v6674, %v6683
      %6687 = vrot.lane.b32.xlu0 %v6413, 64
      %v6688 = vpop.permute.xlu0 %6687
      %6689 = vrot.lane.b32.xlu0 %v6418, 64
      %v6690 = vpop.permute.xlu0 %6689
      %v6693 = vsel %vm3916, %v6682, 0
      %v6696 = vsel %vm3916, %v6684, 0
      %v6698 = vsel %vm737, %v6690, 0
      %6700 = vmatprep.subr.mxu0 0.0
      %6701 = vmatpush1.msra.mxu0 %v6688
      %6702 = vmatprep.subr.mxu0 0.0
      %6703 = vmatpush1.msra.mxu0 %v6698
      %6704 = vmatprep.subr.mxu0 0.0
      %6705 = vmatpush1.msra.mxu0 0.0
      %6706 = vmatprep.subr.mxu0 0.0
      %6707 = vmatpush1.msra.mxu0 0.0
      %6708 = vmatprep.subr.mxu0 0.0
      %6709 = vmatpush1.msra.mxu0 0.0
      %6710 = vmatprep.subr.mxu0 0.0
      %6711 = vmatpush1.msra.mxu0 0.0
      %6712 = vmatprep.subr.mxu0 0.0
      %6713 = vmatpush1.msra.mxu0 0.0
      %6714 = vmatprep.subr.mxu0 0.0
      %6715 = vmatpush1.msra.mxu0 0.0
      %6716 = vmatprep.subr.mxu0 0.0
      %6717 = vmatpush1.msra.mxu0 0.0
      %6718 = vmatprep.subr.mxu0 0.0
      %6719 = vmatpush1.msra.mxu0 0.0
      %6720 = vmatprep.subr.mxu0 0.0
      %6721 = vmatpush1.msra.mxu0 0.0
      %6722 = vmatprep.subr.mxu0 0.0
      %6723 = vmatpush1.msra.mxu0 0.0
      %6724 = vmatprep.subr.mxu0 0.0
      %6725 = vmatpush1.msra.mxu0 0.0
      %6726 = vmatprep.subr.mxu0 0.0
      %6727 = vmatpush1.msra.mxu0 0.0
      %6728 = vmatprep.subr.mxu0 0.0
      %6729 = vmatpush1.msra.mxu0 0.0
      %6730 = vmatprep.subr.mxu0 0.0
      %6731 = vmatpush1.msra.mxu0 0.0
      %6732 = vmatprep.subr.mxu0 0.0
      %6733 = vmatpush1.msra.mxu0 0.0
      %6734 = vmatprep.subr.mxu0 0.0
      %6735 = vmatpush1.msra.mxu0 0.0
      %6736 = vmatprep.subr.mxu0 0.0
      %6737 = vmatpush1.msra.mxu0 0.0
      %6738 = vmatprep.subr.mxu0 0.0
      %6739 = vmatpush1.msra.mxu0 0.0
      %6740 = vmatprep.subr.mxu0 0.0
      %6741 = vmatpush1.msra.mxu0 0.0
      %6742 = vmatprep.subr.mxu0 0.0
      %6743 = vmatpush1.msra.mxu0 0.0
      %6744 = vmatprep.subr.mxu0 0.0
      %6745 = vmatpush1.msra.mxu0 0.0
      %6746 = vmatprep.subr.mxu0 0.0
      %6747 = vmatpush1.msra.mxu0 0.0
      %6748 = vmatprep.subr.mxu0 0.0
      %6749 = vmatpush1.msra.mxu0 0.0
      %6750 = vmatprep.subr.mxu0 0.0
      %6751 = vmatpush1.msra.mxu0 0.0
      %6752 = vmatprep.subr.mxu0 0.0
      %6753 = vmatpush1.msra.mxu0 0.0
      %6754 = vmatprep.subr.mxu0 0.0
      %6755 = vmatpush1.msra.mxu0 0.0
      %6756 = vmatprep.subr.mxu0 0.0
      %6757 = vmatpush1.msra.mxu0 0.0
      %6758 = vmatprep.subr.mxu0 0.0
      %6759 = vmatpush1.msra.mxu0 0.0
      %6760 = vmatprep.subr.mxu0 0.0
      %6761 = vmatpush1.msra.mxu0 0.0
      %6762 = vmatprep.subr.mxu0 0.0
      %6763 = vmatpush1.msra.mxu0 0.0
      %6764 = vmatprep.mubr.f32.mxu0 0.0
      %6765 = vmatmul.mubr.f32.gmra.mrb[0].mxu0 %v6693
      %v6766 = vpop.f32.mrb[0].mxu0
      %v6767 = vadd.f32 0.0, %v6766
      %v6768 = vpop.f32.mrb[0].mxu0
      %6769 = vmatprep.mubr.f32.mxu0 0.0
      %6770 = vmatmul.mubr.f32.gmra.mrb[0].mxu0 %v6696
      %v6771 = vpop.f32.mrb[0].mxu0
      %v6772 = vadd.f32 0.0, %v6771
      %v6773 = vpop.f32.mrb[0].mxu0
      %6774 = vdwg.mxu0
      %v6775 = vmul.f32 %v6413, %v4633
      %v6776 = vmul.f32 %v6418, %v4635
      %6779 = vrot.lane.b32.xlu0 %v6775, 124
      %v6780 = vpop.permute.xlu0 %6779
      %6781 = vrot.lane.b32.xlu0 %v6776, 124
      %v6782 = vpop.permute.xlu0 %6781
      %v6785 = vsub.f32 %v6775, %v6780
      %v6786 = vsub.f32 %v6776, %v6782
      %v6787 = vmul.f32 %v6413, %v4651
      %v6788 = vmul.f32 %v6418, %v4653
      %6791 = vrot.lane.b32.xlu0 %v6433, 4
      %v6792 = vpop.permute.xlu0 %6791
      %6793 = vrot.lane.b32.xlu0 %v6434, 4
      %v6794 = vpop.permute.xlu0 %6793
      %v6797 = vadd.f32 %v6787, %v6792
      %v6798 = vadd.f32 %v6788, %v6794
      %v6799 = vmul.f32 %v6413, %v4669
      %v6800 = vmul.f32 %v6418, %v4671
      %6803 = vrot.lane.b32.xlu0 %v6799, 124
      %v6804 = vpop.permute.xlu0 %6803
      %6805 = vrot.lane.b32.xlu0 %v6800, 124
      %v6806 = vpop.permute.xlu0 %6805
      %v6809 = vsub.f32 %v6799, %v6804
      %v6810 = vsub.f32 %v6800, %v6806
      %v6811 = vmul.f32 %v6413, %v4687
      %v6812 = vmul.f32 %v6418, %v4689
      %6815 = vrot.lane.b32.xlu0 %v6459, 4
      %v6816 = vpop.permute.xlu0 %6815
      %6817 = vrot.lane.b32.xlu0 %v6460, 4
      %v6818 = vpop.permute.xlu0 %6817
      %v6821 = vadd.f32 %v6811, %v6816
      %v6822 = vadd.f32 %v6812, %v6818
      %6825 = vrot.lane.b32.xlu0 %v6797, 116
      %v6826 = vpop.permute.xlu0 %6825
      %6827 = vrot.lane.b32.xlu0 %v6798, 116
      %v6828 = vpop.permute.xlu0 %6827
      %6831 = vrot.lane.b32.xlu0 %v6821, 84
      %v6832 = vpop.permute.xlu0 %6831
      %6833 = vrot.lane.b32.xlu0 %v6822, 84
      %v6834 = vpop.permute.xlu0 %6833
      %v6835 = vsel %vm960, %v6826, 0
      %v6837 = vsel %vm960, %v6828, 0
      %v6839 = vsel %vm960, %v6832, 0
      %v6841 = vsel %vm960, %v6834, 0
      %6843 = vmatprep.subr.mxu0 0.0
      %6844 = vmatpush1.xpose.msra.mxu0 %v6839
      %6845 = vmatprep.subr.mxu0 0.0
      %6846 = vmatpush1.xpose.msra.mxu0 %v6841
      %6847 = vmatprep.subr.mxu0 0.0
      %6848 = vmatpush1.xpose.msra.mxu0 0.0
      %6849 = vmatprep.subr.mxu0 0.0
      %6850 = vmatpush1.xpose.msra.mxu0 0.0
      %6851 = vmatprep.subr.mxu0 0.0
      %6852 = vmatpush1.xpose.msra.mxu0 0.0
      %6853 = vmatprep.subr.mxu0 0.0
      %6854 = vmatpush1.xpose.msra.mxu0 0.0
      %6855 = vmatprep.subr.mxu0 0.0
      %6856 = vmatpush1.xpose.msra.mxu0 0.0
      %6857 = vmatprep.subr.mxu0 0.0
      %6858 = vmatpush1.xpose.msra.mxu0 0.0
      %6859 = vmatprep.subr.mxu0 0.0
      %6860 = vmatpush1.xpose.msra.mxu0 0.0
      %6861 = vmatprep.subr.mxu0 0.0
      %6862 = vmatpush1.xpose.msra.mxu0 0.0
      %6863 = vmatprep.subr.mxu0 0.0
      %6864 = vmatpush1.xpose.msra.mxu0 0.0
      %6865 = vmatprep.subr.mxu0 0.0
      %6866 = vmatpush1.xpose.msra.mxu0 0.0
      %6867 = vmatprep.subr.mxu0 0.0
      %6868 = vmatpush1.xpose.msra.mxu0 0.0
      %6869 = vmatprep.subr.mxu0 0.0
      %6870 = vmatpush1.xpose.msra.mxu0 0.0
      %6871 = vmatprep.subr.mxu0 0.0
      %6872 = vmatpush1.xpose.msra.mxu0 0.0
      %6873 = vmatprep.subr.mxu0 0.0
      %6874 = vmatpush1.xpose.msra.mxu0 0.0
      %6875 = vmatprep.subr.mxu0 0.0
      %6876 = vmatpush1.xpose.msra.mxu0 0.0
      %6877 = vmatprep.subr.mxu0 0.0
      %6878 = vmatpush1.xpose.msra.mxu0 0.0
      %6879 = vmatprep.subr.mxu0 0.0
      %6880 = vmatpush1.xpose.msra.mxu0 0.0
      %6881 = vmatprep.subr.mxu0 0.0
      %6882 = vmatpush1.xpose.msra.mxu0 0.0
      %6883 = vmatprep.subr.mxu0 0.0
      %6884 = vmatpush1.xpose.msra.mxu0 0.0
      %6885 = vmatprep.subr.mxu0 0.0
      %6886 = vmatpush1.xpose.msra.mxu0 0.0
      %6887 = vmatprep.subr.mxu0 0.0
      %6888 = vmatpush1.xpose.msra.mxu0 0.0
      %6889 = vmatprep.subr.mxu0 0.0
      %6890 = vmatpush1.xpose.msra.mxu0 0.0
      %6891 = vmatprep.subr.mxu0 0.0
      %6892 = vmatpush1.xpose.msra.mxu0 0.0
      %6893 = vmatprep.subr.mxu0 0.0
      %6894 = vmatpush1.xpose.msra.mxu0 0.0
      %6895 = vmatprep.subr.mxu0 0.0
      %6896 = vmatpush1.xpose.msra.mxu0 0.0
      %6897 = vmatprep.subr.mxu0 0.0
      %6898 = vmatpush1.xpose.msra.mxu0 0.0
      %6899 = vmatprep.subr.mxu0 0.0
      %6900 = vmatpush1.xpose.msra.mxu0 0.0
      %6901 = vmatprep.subr.mxu0 0.0
      %6902 = vmatpush1.xpose.msra.mxu0 0.0
      %6903 = vmatprep.subr.mxu0 0.0
      %6904 = vmatpush1.xpose.msra.mxu0 0.0
      %6905 = vmatprep.subr.mxu0 0.0
      %6906 = vmatpush1.xpose.msra.mxu0 0.0
      %6907 = vmatprep.mubr.f32.mxu0 0.0
      %6908 = vmatmul.mubr.f32.gmra.mrb[0].mxu0 %v6835
      %v6909 = vpop.f32.mrb[0].mxu0
      %v6910 = vadd.f32 0.0, %v6909
      %v6911 = vpop.f32.mrb[0].mxu0
      %6912 = vmatprep.mubr.f32.mxu0 0.0
      %6913 = vmatmul.mubr.f32.gmra.mrb[0].mxu0 %v6837
      %v6914 = vpop.f32.mrb[0].mxu0
      %v6915 = vadd.f32 0.0, %v6914
      %v6916 = vpop.f32.mrb[0].mxu0
      %6917 = vdwg.mxu0
      %6920 = vrot.lane.b32.xlu0 %v6785, 120
      %v6921 = vpop.permute.xlu0 %6920
      %6922 = vrot.lane.b32.xlu0 %v6786, 120
      %v6923 = vpop.permute.xlu0 %6922
      %6926 = vrot.lane.b32.xlu0 %v6809, 88
      %v6927 = vpop.permute.xlu0 %6926
      %6928 = vrot.lane.b32.xlu0 %v6810, 88
      %v6929 = vpop.permute.xlu0 %6928
      %v6930 = vsel %vm960, %v6921, 0
      %v6932 = vsel %vm960, %v6923, 0
      %v6934 = vsel %vm960, %v6927, 0
      %v6936 = vsel %vm960, %v6929, 0
      %6938 = vmatprep.subr.mxu0 0.0
      %6939 = vmatpush1.xpose.msra.mxu0 %v6934
      %6940 = vmatprep.subr.mxu0 0.0
      %6941 = vmatpush1.xpose.msra.mxu0 %v6936
      %6942 = vmatprep.subr.mxu0 0.0
      %6943 = vmatpush1.xpose.msra.mxu0 0.0
      %6944 = vmatprep.subr.mxu0 0.0
      %6945 = vmatpush1.xpose.msra.mxu0 0.0
      %6946 = vmatprep.subr.mxu0 0.0
      %6947 = vmatpush1.xpose.msra.mxu0 0.0
      %6948 = vmatprep.subr.mxu0 0.0
      %6949 = vmatpush1.xpose.msra.mxu0 0.0
      %6950 = vmatprep.subr.mxu0 0.0
      %6951 = vmatpush1.xpose.msra.mxu0 0.0
      %6952 = vmatprep.subr.mxu0 0.0
      %6953 = vmatpush1.xpose.msra.mxu0 0.0
      %6954 = vmatprep.subr.mxu0 0.0
      %6955 = vmatpush1.xpose.msra.mxu0 0.0
      %6956 = vmatprep.subr.mxu0 0.0
      %6957 = vmatpush1.xpose.msra.mxu0 0.0
      %6958 = vmatprep.subr.mxu0 0.0
      %6959 = vmatpush1.xpose.msra.mxu0 0.0
      %6960 = vmatprep.subr.mxu0 0.0
      %6961 = vmatpush1.xpose.msra.mxu0 0.0
      %6962 = vmatprep.subr.mxu0 0.0
      %6963 = vmatpush1.xpose.msra.mxu0 0.0
      %6964 = vmatprep.subr.mxu0 0.0
      %6965 = vmatpush1.xpose.msra.mxu0 0.0
      %6966 = vmatprep.subr.mxu0 0.0
      %6967 = vmatpush1.xpose.msra.mxu0 0.0
      %6968 = vmatprep.subr.mxu0 0.0
      %6969 = vmatpush1.xpose.msra.mxu0 0.0
      %6970 = vmatprep.subr.mxu0 0.0
      %6971 = vmatpush1.xpose.msra.mxu0 0.0
      %6972 = vmatprep.subr.mxu0 0.0
      %6973 = vmatpush1.xpose.msra.mxu0 0.0
      %6974 = vmatprep.subr.mxu0 0.0
      %6975 = vmatpush1.xpose.msra.mxu0 0.0
      %6976 = vmatprep.subr.mxu0 0.0
      %6977 = vmatpush1.xpose.msra.mxu0 0.0
      %6978 = vmatprep.subr.mxu0 0.0
      %6979 = vmatpush1.xpose.msra.mxu0 0.0
      %6980 = vmatprep.subr.mxu0 0.0
      %6981 = vmatpush1.xpose.msra.mxu0 0.0
      %6982 = vmatprep.subr.mxu0 0.0
      %6983 = vmatpush1.xpose.msra.mxu0 0.0
      %6984 = vmatprep.subr.mxu0 0.0
      %6985 = vmatpush1.xpose.msra.mxu0 0.0
      %6986 = vmatprep.subr.mxu0 0.0
      %6987 = vmatpush1.xpose.msra.mxu0 0.0
      %6988 = vmatprep.subr.mxu0 0.0
      %6989 = vmatpush1.xpose.msra.mxu0 0.0
      %6990 = vmatprep.subr.mxu0 0.0
      %6991 = vmatpush1.xpose.msra.mxu0 0.0
      %6992 = vmatprep.subr.mxu0 0.0
      %6993 = vmatpush1.xpose.msra.mxu0 0.0
      %6994 = vmatprep.subr.mxu0 0.0
      %6995 = vmatpush1.xpose.msra.mxu0 0.0
      %6996 = vmatprep.subr.mxu0 0.0
      %6997 = vmatpush1.xpose.msra.mxu0 0.0
      %6998 = vmatprep.subr.mxu0 0.0
      %6999 = vmatpush1.xpose.msra.mxu0 0.0
      %7000 = vmatprep.subr.mxu0 0.0
      %7001 = vmatpush1.xpose.msra.mxu0 0.0
      %7002 = vmatprep.mubr.f32.mxu0 0.0
      %7003 = vmatmul.mubr.f32.gmra.mrb[0].mxu0 %v6930
      %v7004 = vpop.f32.mrb[0].mxu0
      %v7005 = vadd.f32 %v6910, %v7004
      %v7006 = vpop.f32.mrb[0].mxu0
      %7007 = vmatprep.mubr.f32.mxu0 0.0
      %7008 = vmatmul.mubr.f32.gmra.mrb[0].mxu0 %v6932
      %v7009 = vpop.f32.mrb[0].mxu0
      %v7010 = vadd.f32 %v6915, %v7009
      %v7011 = vpop.f32.mrb[0].mxu0
      %7012 = vdwg.mxu0
      %v7013 = vmul.f32 %v7005, 0.35355338
      %v7014 = vmul.f32 %v7010, 0.35355338
      %v7015 = vsel %vm3910, %v7013, -1e+09
      %v7016 = vsel %vm3911, %v7014, -1e+09
      %v7017 = vsel %vm3916, %v7015, -inf
      %7018 = vmax.xlane.f32.xlu0 %v7017
      %v7019 = vpop.xlane.xlu0 %7018
      %v7020 = vsel %vm4522, %v7016, -inf
      %7021 = vmax.xlane.f32.xlu0 %v7020
      %v7022 = vpop.xlane.xlu0 %7021
      %v7023 = vsub.f32 %v7015, %v7019
      %v7024 = vsub.f32 %v7016, %v7022
      %v7025 = vmul.f32 %v7023, 1.442695
      %v7026 = vpow.pop %v7025
      %v7027 = vmul.f32 %v7024, 1.442695
      %v7028 = vpow.pop %v7027
      %v7029 = vsel %vm3916, %v7026, 0.0
      %7030 = vadd.xlane.f32.xlu0 %v7029
      %v7031 = vpop.xlane.xlu0 %7030
      %v7032 = vsel %vm4522, %v7028, 0.0
      %7033 = vadd.xlane.f32.xlu0 %v7032
      %v7034 = vpop.xlane.xlu0 %7033
      %v7035 = vrcp.pop %v7031
      %v7036 = vmul.f32 %v7026, %v7035
      %v7037 = vrcp.pop %v7034
      %v7038 = vmul.f32 %v7028, %v7037
      %7039 = vrot.lane.b32.xlu0 %v6413, 56
      %v7040 = vpop.permute.xlu0 %7039
      %7041 = vrot.lane.b32.xlu0 %v6418, 56
      %v7042 = vpop.permute.xlu0 %7041
      %v7045 = vsel %vm3916, %v7036, 0
      %v7048 = vsel %vm3916, %v7038, 0
      %v7050 = vsel %vm737, %v7042, 0
      %7052 = vmatprep.subr.mxu0 0.0
      %7053 = vmatpush1.msra.mxu0 %v7040
      %7054 = vmatprep.subr.mxu0 0.0
      %7055 = vmatpush1.msra.mxu0 %v7050
      %7056 = vmatprep.subr.mxu0 0.0
      %7057 = vmatpush1.msra.mxu0 0.0
      %7058 = vmatprep.subr.mxu0 0.0
      %7059 = vmatpush1.msra.mxu0 0.0
      %7060 = vmatprep.subr.mxu0 0.0
      %7061 = vmatpush1.msra.mxu0 0.0
      %7062 = vmatprep.subr.mxu0 0.0
      %7063 = vmatpush1.msra.mxu0 0.0
      %7064 = vmatprep.subr.mxu0 0.0
      %7065 = vmatpush1.msra.mxu0 0.0
      %7066 = vmatprep.subr.mxu0 0.0
      %7067 = vmatpush1.msra.mxu0 0.0
      %7068 = vmatprep.subr.mxu0 0.0
      %7069 = vmatpush1.msra.mxu0 0.0
      %7070 = vmatprep.subr.mxu0 0.0
      %7071 = vmatpush1.msra.mxu0 0.0
      %7072 = vmatprep.subr.mxu0 0.0
      %7073 = vmatpush1.msra.mxu0 0.0
      %7074 = vmatprep.subr.mxu0 0.0
      %7075 = vmatpush1.msra.mxu0 0.0
      %7076 = vmatprep.subr.mxu0 0.0
      %7077 = vmatpush1.msra.mxu0 0.0
      %7078 = vmatprep.subr.mxu0 0.0
      %7079 = vmatpush1.msra.mxu0 0.0
      %7080 = vmatprep.subr.mxu0 0.0
      %7081 = vmatpush1.msra.mxu0 0.0
      %7082 = vmatprep.subr.mxu0 0.0
      %7083 = vmatpush1.msra.mxu0 0.0
      %7084 = vmatprep.subr.mxu0 0.0
      %7085 = vmatpush1.msra.mxu0 0.0
      %7086 = vmatprep.subr.mxu0 0.0
      %7087 = vmatpush1.msra.mxu0 0.0
      %7088 = vmatprep.subr.mxu0 0.0
      %7089 = vmatpush1.msra.mxu0 0.0
      %7090 = vmatprep.subr.mxu0 0.0
      %7091 = vmatpush1.msra.mxu0 0.0
      %7092 = vmatprep.subr.mxu0 0.0
      %7093 = vmatpush1.msra.mxu0 0.0
      %7094 = vmatprep.subr.mxu0 0.0
      %7095 = vmatpush1.msra.mxu0 0.0
      %7096 = vmatprep.subr.mxu0 0.0
      %7097 = vmatpush1.msra.mxu0 0.0
      %7098 = vmatprep.subr.mxu0 0.0
      %7099 = vmatpush1.msra.mxu0 0.0
      %7100 = vmatprep.subr.mxu0 0.0
      %7101 = vmatpush1.msra.mxu0 0.0
      %7102 = vmatprep.subr.mxu0 0.0
      %7103 = vmatpush1.msra.mxu0 0.0
      %7104 = vmatprep.subr.mxu0 0.0
      %7105 = vmatpush1.msra.mxu0 0.0
      %7106 = vmatprep.subr.mxu0 0.0
      %7107 = vmatpush1.msra.mxu0 0.0
      %7108 = vmatprep.subr.mxu0 0.0
      %7109 = vmatpush1.msra.mxu0 0.0
      %7110 = vmatprep.subr.mxu0 0.0
      %7111 = vmatpush1.msra.mxu0 0.0
      %7112 = vmatprep.subr.mxu0 0.0
      %7113 = vmatpush1.msra.mxu0 0.0
      %7114 = vmatprep.subr.mxu0 0.0
      %7115 = vmatpush1.msra.mxu0 0.0
      %7116 = vmatprep.mubr.f32.mxu0 0.0
      %7117 = vmatmul.mubr.f32.gmra.mrb[0].mxu0 %v7045
      %v7118 = vpop.f32.mrb[0].mxu0
      %v7119 = vadd.f32 0.0, %v7118
      %v7120 = vpop.f32.mrb[0].mxu0
      %7121 = vmatprep.mubr.f32.mxu0 0.0
      %7122 = vmatmul.mubr.f32.gmra.mrb[0].mxu0 %v7048
      %v7123 = vpop.f32.mrb[0].mxu0
      %v7124 = vadd.f32 0.0, %v7123
      %v7125 = vpop.f32.mrb[0].mxu0
      %7126 = vdwg.mxu0
      %v7128 = vsel %vm1188, %v7119, 0
      %v7131 = vsel %vm1188, %v7124, 0
      %7133 = vmatprep.subr.mxu0 0.0
      %7134 = vmatpush1.msra.mxu0 %v6299
      %7135 = vmatprep.subr.mxu0 0.0
      %7136 = vmatpush1.msra.mxu0 0.0
      %7137 = vmatprep.subr.mxu0 0.0
      %7138 = vmatpush1.msra.mxu0 0.0
      %7139 = vmatprep.subr.mxu0 0.0
      %7140 = vmatpush1.msra.mxu0 0.0
      %7141 = vmatprep.subr.mxu0 0.0
      %7142 = vmatpush1.msra.mxu0 0.0
      %7143 = vmatprep.subr.mxu0 0.0
      %7144 = vmatpush1.msra.mxu0 0.0
      %7145 = vmatprep.subr.mxu0 0.0
      %7146 = vmatpush1.msra.mxu0 0.0
      %7147 = vmatprep.subr.mxu0 0.0
      %7148 = vmatpush1.msra.mxu0 0.0
      %7149 = vmatprep.subr.mxu0 0.0
      %7150 = vmatpush1.msra.mxu0 0.0
      %7151 = vmatprep.subr.mxu0 0.0
      %7152 = vmatpush1.msra.mxu0 0.0
      %7153 = vmatprep.subr.mxu0 0.0
      %7154 = vmatpush1.msra.mxu0 0.0
      %7155 = vmatprep.subr.mxu0 0.0
      %7156 = vmatpush1.msra.mxu0 0.0
      %7157 = vmatprep.subr.mxu0 0.0
      %7158 = vmatpush1.msra.mxu0 0.0
      %7159 = vmatprep.subr.mxu0 0.0
      %7160 = vmatpush1.msra.mxu0 0.0
      %7161 = vmatprep.subr.mxu0 0.0
      %7162 = vmatpush1.msra.mxu0 0.0
      %7163 = vmatprep.subr.mxu0 0.0
      %7164 = vmatpush1.msra.mxu0 0.0
      %7165 = vmatprep.subr.mxu0 0.0
      %7166 = vmatpush1.msra.mxu0 0.0
      %7167 = vmatprep.subr.mxu0 0.0
      %7168 = vmatpush1.msra.mxu0 0.0
      %7169 = vmatprep.subr.mxu0 0.0
      %7170 = vmatpush1.msra.mxu0 0.0
      %7171 = vmatprep.subr.mxu0 0.0
      %7172 = vmatpush1.msra.mxu0 0.0
      %7173 = vmatprep.subr.mxu0 0.0
      %7174 = vmatpush1.msra.mxu0 0.0
      %7175 = vmatprep.subr.mxu0 0.0
      %7176 = vmatpush1.msra.mxu0 0.0
      %7177 = vmatprep.subr.mxu0 0.0
      %7178 = vmatpush1.msra.mxu0 0.0
      %7179 = vmatprep.subr.mxu0 0.0
      %7180 = vmatpush1.msra.mxu0 0.0
      %7181 = vmatprep.subr.mxu0 0.0
      %7182 = vmatpush1.msra.mxu0 0.0
      %7183 = vmatprep.subr.mxu0 0.0
      %7184 = vmatpush1.msra.mxu0 0.0
      %7185 = vmatprep.subr.mxu0 0.0
      %7186 = vmatpush1.msra.mxu0 0.0
      %7187 = vmatprep.subr.mxu0 0.0
      %7188 = vmatpush1.msra.mxu0 0.0
      %7189 = vmatprep.subr.mxu0 0.0
      %7190 = vmatpush1.msra.mxu0 0.0
      %7191 = vmatprep.subr.mxu0 0.0
      %7192 = vmatpush1.msra.mxu0 0.0
      %7193 = vmatprep.subr.mxu0 0.0
      %7194 = vmatpush1.msra.mxu0 0.0
      %7195 = vmatprep.subr.mxu0 0.0
      %7196 = vmatpush1.msra.mxu0 0.0
      %7197 = vmatprep.mubr.f32.mxu0 0.0
      %7198 = vmatmul.mubr.f32.gmra.mrb[0].mxu0 %v7128
      %v7199 = vpop.f32.mrb[0].mxu0
      %v7200 = vadd.f32 0.0, %v7199
      %v7201 = vpop.f32.mrb[0].mxu0
      %7202 = vmatprep.mubr.f32.mxu0 0.0
      %7203 = vmatmul.mubr.f32.gmra.mrb[0].mxu0 %v7131
      %v7204 = vpop.f32.mrb[0].mxu0
      %v7205 = vadd.f32 0.0, %v7204
      %v7206 = vpop.f32.mrb[0].mxu0
      %7207 = vdwg.mxu0
      %v7209 = vsel %vm1188, %v6767, 0
      %v7212 = vsel %vm1188, %v6772, 0
      %7214 = vmatprep.subr.mxu0 0.0
      %7215 = vmatpush1.msra.mxu0 %v6298
      %7216 = vmatprep.subr.mxu0 0.0
      %7217 = vmatpush1.msra.mxu0 0.0
      %7218 = vmatprep.subr.mxu0 0.0
      %7219 = vmatpush1.msra.mxu0 0.0
      %7220 = vmatprep.subr.mxu0 0.0
      %7221 = vmatpush1.msra.mxu0 0.0
      %7222 = vmatprep.subr.mxu0 0.0
      %7223 = vmatpush1.msra.mxu0 0.0
      %7224 = vmatprep.subr.mxu0 0.0
      %7225 = vmatpush1.msra.mxu0 0.0
      %7226 = vmatprep.subr.mxu0 0.0
      %7227 = vmatpush1.msra.mxu0 0.0
      %7228 = vmatprep.subr.mxu0 0.0
      %7229 = vmatpush1.msra.mxu0 0.0
      %7230 = vmatprep.subr.mxu0 0.0
      %7231 = vmatpush1.msra.mxu0 0.0
      %7232 = vmatprep.subr.mxu0 0.0
      %7233 = vmatpush1.msra.mxu0 0.0
      %7234 = vmatprep.subr.mxu0 0.0
      %7235 = vmatpush1.msra.mxu0 0.0
      %7236 = vmatprep.subr.mxu0 0.0
      %7237 = vmatpush1.msra.mxu0 0.0
      %7238 = vmatprep.subr.mxu0 0.0
      %7239 = vmatpush1.msra.mxu0 0.0
      %7240 = vmatprep.subr.mxu0 0.0
      %7241 = vmatpush1.msra.mxu0 0.0
      %7242 = vmatprep.subr.mxu0 0.0
      %7243 = vmatpush1.msra.mxu0 0.0
      %7244 = vmatprep.subr.mxu0 0.0
      %7245 = vmatpush1.msra.mxu0 0.0
      %7246 = vmatprep.subr.mxu0 0.0
      %7247 = vmatpush1.msra.mxu0 0.0
      %7248 = vmatprep.subr.mxu0 0.0
      %7249 = vmatpush1.msra.mxu0 0.0
      %7250 = vmatprep.subr.mxu0 0.0
      %7251 = vmatpush1.msra.mxu0 0.0
      %7252 = vmatprep.subr.mxu0 0.0
      %7253 = vmatpush1.msra.mxu0 0.0
      %7254 = vmatprep.subr.mxu0 0.0
      %7255 = vmatpush1.msra.mxu0 0.0
      %7256 = vmatprep.subr.mxu0 0.0
      %7257 = vmatpush1.msra.mxu0 0.0
      %7258 = vmatprep.subr.mxu0 0.0
      %7259 = vmatpush1.msra.mxu0 0.0
      %7260 = vmatprep.subr.mxu0 0.0
      %7261 = vmatpush1.msra.mxu0 0.0
      %7262 = vmatprep.subr.mxu0 0.0
      %7263 = vmatpush1.msra.mxu0 0.0
      %7264 = vmatprep.subr.mxu0 0.0
      %7265 = vmatpush1.msra.mxu0 0.0
      %7266 = vmatprep.subr.mxu0 0.0
      %7267 = vmatpush1.msra.mxu0 0.0
      %7268 = vmatprep.subr.mxu0 0.0
      %7269 = vmatpush1.msra.mxu0 0.0
      %7270 = vmatprep.subr.mxu0 0.0
      %7271 = vmatpush1.msra.mxu0 0.0
      %7272 = vmatprep.subr.mxu0 0.0
      %7273 = vmatpush1.msra.mxu0 0.0
      %7274 = vmatprep.subr.mxu0 0.0
      %7275 = vmatpush1.msra.mxu0 0.0
      %7276 = vmatprep.subr.mxu0 0.0
      %7277 = vmatpush1.msra.mxu0 0.0
      %7278 = vmatprep.mubr.f32.mxu0 0.0
      %7279 = vmatmul.mubr.f32.gmra.mrb[0].mxu0 %v7209
      %v7280 = vpop.f32.mrb[0].mxu0
      %v7281 = vadd.f32 %v7200, %v7280
      %v7282 = vpop.f32.mrb[0].mxu0
      %7283 = vmatprep.mubr.f32.mxu0 0.0
      %7284 = vmatmul.mubr.f32.gmra.mrb[0].mxu0 %v7212
      %v7285 = vpop.f32.mrb[0].mxu0
      %v7286 = vadd.f32 %v7205, %v7285
      %v7287 = vpop.f32.mrb[0].mxu0
      %7288 = vdwg.mxu0
      %v7289 = vmul.f32 %v6413, %v5171
      %v7290 = vmul.f32 %v6418, %v5173
      %7293 = vrot.lane.b32.xlu0 %v7289, 124
      %v7294 = vpop.permute.xlu0 %7293
      %7295 = vrot.lane.b32.xlu0 %v7290, 124
      %v7296 = vpop.permute.xlu0 %7295
      %v7299 = vsub.f32 %v7289, %v7294
      %v7300 = vsub.f32 %v7290, %v7296
      %v7301 = vmul.f32 %v6413, %v5189
      %v7302 = vmul.f32 %v6418, %v5191
      %7305 = vrot.lane.b32.xlu0 %v6787, 4
      %v7306 = vpop.permute.xlu0 %7305
      %7307 = vrot.lane.b32.xlu0 %v6788, 4
      %v7308 = vpop.permute.xlu0 %7307
      %v7311 = vadd.f32 %v7301, %v7306
      %v7312 = vadd.f32 %v7302, %v7308
      %v7313 = vmul.f32 %v6413, %v5207
      %v7314 = vmul.f32 %v6418, %v5209
      %7317 = vrot.lane.b32.xlu0 %v7313, 124
      %v7318 = vpop.permute.xlu0 %7317
      %7319 = vrot.lane.b32.xlu0 %v7314, 124
      %v7320 = vpop.permute.xlu0 %7319
      %v7323 = vsub.f32 %v7313, %v7318
      %v7324 = vsub.f32 %v7314, %v7320
      %v7325 = vmul.f32 %v6413, %v5225
      %v7326 = vmul.f32 %v6418, %v5227
      %7329 = vrot.lane.b32.xlu0 %v6811, 4
      %v7330 = vpop.permute.xlu0 %7329
      %7331 = vrot.lane.b32.xlu0 %v6812, 4
      %v7332 = vpop.permute.xlu0 %7331
      %v7335 = vadd.f32 %v7325, %v7330
      %v7336 = vadd.f32 %v7326, %v7332
      %7339 = vrot.lane.b32.xlu0 %v7311, 108
      %v7340 = vpop.permute.xlu0 %7339
      %7341 = vrot.lane.b32.xlu0 %v7312, 108
      %v7342 = vpop.permute.xlu0 %7341
      %7345 = vrot.lane.b32.xlu0 %v7335, 76
      %v7346 = vpop.permute.xlu0 %7345
      %7347 = vrot.lane.b32.xlu0 %v7336, 76
      %v7348 = vpop.permute.xlu0 %7347
      %v7349 = vsel %vm960, %v7340, 0
      %v7351 = vsel %vm960, %v7342, 0
      %v7353 = vsel %vm960, %v7346, 0
      %v7355 = vsel %vm960, %v7348, 0
      %7357 = vmatprep.subr.mxu0 0.0
      %7358 = vmatpush1.xpose.msra.mxu0 %v7353
      %7359 = vmatprep.subr.mxu0 0.0
      %7360 = vmatpush1.xpose.msra.mxu0 %v7355
      %7361 = vmatprep.subr.mxu0 0.0
      %7362 = vmatpush1.xpose.msra.mxu0 0.0
      %7363 = vmatprep.subr.mxu0 0.0
      %7364 = vmatpush1.xpose.msra.mxu0 0.0
      %7365 = vmatprep.subr.mxu0 0.0
      %7366 = vmatpush1.xpose.msra.mxu0 0.0
      %7367 = vmatprep.subr.mxu0 0.0
      %7368 = vmatpush1.xpose.msra.mxu0 0.0
      %7369 = vmatprep.subr.mxu0 0.0
      %7370 = vmatpush1.xpose.msra.mxu0 0.0
      %7371 = vmatprep.subr.mxu0 0.0
      %7372 = vmatpush1.xpose.msra.mxu0 0.0
      %7373 = vmatprep.subr.mxu0 0.0
      %7374 = vmatpush1.xpose.msra.mxu0 0.0
      %7375 = vmatprep.subr.mxu0 0.0
      %7376 = vmatpush1.xpose.msra.mxu0 0.0
      %7377 = vmatprep.subr.mxu0 0.0
      %7378 = vmatpush1.xpose.msra.mxu0 0.0
      %7379 = vmatprep.subr.mxu0 0.0
      %7380 = vmatpush1.xpose.msra.mxu0 0.0
      %7381 = vmatprep.subr.mxu0 0.0
      %7382 = vmatpush1.xpose.msra.mxu0 0.0
      %7383 = vmatprep.subr.mxu0 0.0
      %7384 = vmatpush1.xpose.msra.mxu0 0.0
      %7385 = vmatprep.subr.mxu0 0.0
      %7386 = vmatpush1.xpose.msra.mxu0 0.0
      %7387 = vmatprep.subr.mxu0 0.0
      %7388 = vmatpush1.xpose.msra.mxu0 0.0
      %7389 = vmatprep.subr.mxu0 0.0
      %7390 = vmatpush1.xpose.msra.mxu0 0.0
      %7391 = vmatprep.subr.mxu0 0.0
      %7392 = vmatpush1.xpose.msra.mxu0 0.0
      %7393 = vmatprep.subr.mxu0 0.0
      %7394 = vmatpush1.xpose.msra.mxu0 0.0
      %7395 = vmatprep.subr.mxu0 0.0
      %7396 = vmatpush1.xpose.msra.mxu0 0.0
      %7397 = vmatprep.subr.mxu0 0.0
      %7398 = vmatpush1.xpose.msra.mxu0 0.0
      %7399 = vmatprep.subr.mxu0 0.0
      %7400 = vmatpush1.xpose.msra.mxu0 0.0
      %7401 = vmatprep.subr.mxu0 0.0
      %7402 = vmatpush1.xpose.msra.mxu0 0.0
      %7403 = vmatprep.subr.mxu0 0.0
      %7404 = vmatpush1.xpose.msra.mxu0 0.0
      %7405 = vmatprep.subr.mxu0 0.0
      %7406 = vmatpush1.xpose.msra.mxu0 0.0
      %7407 = vmatprep.subr.mxu0 0.0
      %7408 = vmatpush1.xpose.msra.mxu0 0.0
      %7409 = vmatprep.subr.mxu0 0.0
      %7410 = vmatpush1.xpose.msra.mxu0 0.0
      %7411 = vmatprep.subr.mxu0 0.0
      %7412 = vmatpush1.xpose.msra.mxu0 0.0
      %7413 = vmatprep.subr.mxu0 0.0
      %7414 = vmatpush1.xpose.msra.mxu0 0.0
      %7415 = vmatprep.subr.mxu0 0.0
      %7416 = vmatpush1.xpose.msra.mxu0 0.0
      %7417 = vmatprep.subr.mxu0 0.0
      %7418 = vmatpush1.xpose.msra.mxu0 0.0
      %7419 = vmatprep.subr.mxu0 0.0
      %7420 = vmatpush1.xpose.msra.mxu0 0.0
      %7421 = vmatprep.mubr.f32.mxu0 0.0
      %7422 = vmatmul.mubr.f32.gmra.mrb[0].mxu0 %v7349
      %v7423 = vpop.f32.mrb[0].mxu0
      %v7424 = vadd.f32 0.0, %v7423
      %v7425 = vpop.f32.mrb[0].mxu0
      %7426 = vmatprep.mubr.f32.mxu0 0.0
      %7427 = vmatmul.mubr.f32.gmra.mrb[0].mxu0 %v7351
      %v7428 = vpop.f32.mrb[0].mxu0
      %v7429 = vadd.f32 0.0, %v7428
      %v7430 = vpop.f32.mrb[0].mxu0
      %7431 = vdwg.mxu0
      %7434 = vrot.lane.b32.xlu0 %v7299, 112
      %v7435 = vpop.permute.xlu0 %7434
      %7436 = vrot.lane.b32.xlu0 %v7300, 112
      %v7437 = vpop.permute.xlu0 %7436
      %7440 = vrot.lane.b32.xlu0 %v7323, 80
      %v7441 = vpop.permute.xlu0 %7440
      %7442 = vrot.lane.b32.xlu0 %v7324, 80
      %v7443 = vpop.permute.xlu0 %7442
      %v7444 = vsel %vm960, %v7435, 0
      %v7446 = vsel %vm960, %v7437, 0
      %v7448 = vsel %vm960, %v7441, 0
      %v7450 = vsel %vm960, %v7443, 0
      %7452 = vmatprep.subr.mxu0 0.0
      %7453 = vmatpush1.xpose.msra.mxu0 %v7448
      %7454 = vmatprep.subr.mxu0 0.0
      %7455 = vmatpush1.xpose.msra.mxu0 %v7450
      %7456 = vmatprep.subr.mxu0 0.0
      %7457 = vmatpush1.xpose.msra.mxu0 0.0
      %7458 = vmatprep.subr.mxu0 0.0
      %7459 = vmatpush1.xpose.msra.mxu0 0.0
      %7460 = vmatprep.subr.mxu0 0.0
      %7461 = vmatpush1.xpose.msra.mxu0 0.0
      %7462 = vmatprep.subr.mxu0 0.0
      %7463 = vmatpush1.xpose.msra.mxu0 0.0
      %7464 = vmatprep.subr.mxu0 0.0
      %7465 = vmatpush1.xpose.msra.mxu0 0.0
      %7466 = vmatprep.subr.mxu0 0.0
      %7467 = vmatpush1.xpose.msra.mxu0 0.0
      %7468 = vmatprep.subr.mxu0 0.0
      %7469 = vmatpush1.xpose.msra.mxu0 0.0
      %7470 = vmatprep.subr.mxu0 0.0
      %7471 = vmatpush1.xpose.msra.mxu0 0.0
      %7472 = vmatprep.subr.mxu0 0.0
      %7473 = vmatpush1.xpose.msra.mxu0 0.0
      %7474 = vmatprep.subr.mxu0 0.0
      %7475 = vmatpush1.xpose.msra.mxu0 0.0
      %7476 = vmatprep.subr.mxu0 0.0
      %7477 = vmatpush1.xpose.msra.mxu0 0.0
      %7478 = vmatprep.subr.mxu0 0.0
      %7479 = vmatpush1.xpose.msra.mxu0 0.0
      %7480 = vmatprep.subr.mxu0 0.0
      %7481 = vmatpush1.xpose.msra.mxu0 0.0
      %7482 = vmatprep.subr.mxu0 0.0
      %7483 = vmatpush1.xpose.msra.mxu0 0.0
      %7484 = vmatprep.subr.mxu0 0.0
      %7485 = vmatpush1.xpose.msra.mxu0 0.0
      %7486 = vmatprep.subr.mxu0 0.0
      %7487 = vmatpush1.xpose.msra.mxu0 0.0
      %7488 = vmatprep.subr.mxu0 0.0
      %7489 = vmatpush1.xpose.msra.mxu0 0.0
      %7490 = vmatprep.subr.mxu0 0.0
      %7491 = vmatpush1.xpose.msra.mxu0 0.0
      %7492 = vmatprep.subr.mxu0 0.0
      %7493 = vmatpush1.xpose.msra.mxu0 0.0
      %7494 = vmatprep.subr.mxu0 0.0
      %7495 = vmatpush1.xpose.msra.mxu0 0.0
      %7496 = vmatprep.subr.mxu0 0.0
      %7497 = vmatpush1.xpose.msra.mxu0 0.0
      %7498 = vmatprep.subr.mxu0 0.0
      %7499 = vmatpush1.xpose.msra.mxu0 0.0
      %7500 = vmatprep.subr.mxu0 0.0
      %7501 = vmatpush1.xpose.msra.mxu0 0.0
      %7502 = vmatprep.subr.mxu0 0.0
      %7503 = vmatpush1.xpose.msra.mxu0 0.0
      %7504 = vmatprep.subr.mxu0 0.0
      %7505 = vmatpush1.xpose.msra.mxu0 0.0
      %7506 = vmatprep.subr.mxu0 0.0
      %7507 = vmatpush1.xpose.msra.mxu0 0.0
      %7508 = vmatprep.subr.mxu0 0.0
      %7509 = vmatpush1.xpose.msra.mxu0 0.0
      %7510 = vmatprep.subr.mxu0 0.0
      %7511 = vmatpush1.xpose.msra.mxu0 0.0
      %7512 = vmatprep.subr.mxu0 0.0
      %7513 = vmatpush1.xpose.msra.mxu0 0.0
      %7514 = vmatprep.subr.mxu0 0.0
      %7515 = vmatpush1.xpose.msra.mxu0 0.0
      %7516 = vmatprep.mubr.f32.mxu0 0.0
      %7517 = vmatmul.mubr.f32.gmra.mrb[0].mxu0 %v7444
      %v7518 = vpop.f32.mrb[0].mxu0
      %v7519 = vadd.f32 %v7424, %v7518
      %v7520 = vpop.f32.mrb[0].mxu0
      %7521 = vmatprep.mubr.f32.mxu0 0.0
      %7522 = vmatmul.mubr.f32.gmra.mrb[0].mxu0 %v7446
      %v7523 = vpop.f32.mrb[0].mxu0
      %v7524 = vadd.f32 %v7429, %v7523
      %v7525 = vpop.f32.mrb[0].mxu0
      %7526 = vdwg.mxu0
      %v7527 = vmul.f32 %v7519, 0.35355338
      %v7528 = vmul.f32 %v7524, 0.35355338
      %v7529 = vsel %vm3910, %v7527, -1e+09
      %v7530 = vsel %vm3911, %v7528, -1e+09
      %v7531 = vsel %vm3916, %v7529, -inf
      %7532 = vmax.xlane.f32.xlu0 %v7531
      %v7533 = vpop.xlane.xlu0 %7532
      %v7534 = vsel %vm4522, %v7530, -inf
      %7535 = vmax.xlane.f32.xlu0 %v7534
      %v7536 = vpop.xlane.xlu0 %7535
      %v7537 = vsub.f32 %v7529, %v7533
      %v7538 = vsub.f32 %v7530, %v7536
      %v7539 = vmul.f32 %v7537, 1.442695
      %v7540 = vpow.pop %v7539
      %v7541 = vmul.f32 %v7538, 1.442695
      %v7542 = vpow.pop %v7541
      %v7543 = vsel %vm3916, %v7540, 0.0
      %7544 = vadd.xlane.f32.xlu0 %v7543
      %v7545 = vpop.xlane.xlu0 %7544
      %v7546 = vsel %vm4522, %v7542, 0.0
      %7547 = vadd.xlane.f32.xlu0 %v7546
      %v7548 = vpop.xlane.xlu0 %7547
      %v7549 = vrcp.pop %v7545
      %v7550 = vmul.f32 %v7540, %v7549
      %v7551 = vrcp.pop %v7548
      %v7552 = vmul.f32 %v7542, %v7551
      %7553 = vrot.lane.b32.xlu0 %v6413, 48
      %v7554 = vpop.permute.xlu0 %7553
      %7555 = vrot.lane.b32.xlu0 %v6418, 48
      %v7556 = vpop.permute.xlu0 %7555
      %v7559 = vsel %vm3916, %v7550, 0
      %v7562 = vsel %vm3916, %v7552, 0
      %v7564 = vsel %vm737, %v7556, 0
      %7566 = vmatprep.subr.mxu0 0.0
      %7567 = vmatpush1.msra.mxu0 %v7554
      %7568 = vmatprep.subr.mxu0 0.0
      %7569 = vmatpush1.msra.mxu0 %v7564
      %7570 = vmatprep.subr.mxu0 0.0
      %7571 = vmatpush1.msra.mxu0 0.0
      %7572 = vmatprep.subr.mxu0 0.0
      %7573 = vmatpush1.msra.mxu0 0.0
      %7574 = vmatprep.subr.mxu0 0.0
      %7575 = vmatpush1.msra.mxu0 0.0
      %7576 = vmatprep.subr.mxu0 0.0
      %7577 = vmatpush1.msra.mxu0 0.0
      %7578 = vmatprep.subr.mxu0 0.0
      %7579 = vmatpush1.msra.mxu0 0.0
      %7580 = vmatprep.subr.mxu0 0.0
      %7581 = vmatpush1.msra.mxu0 0.0
      %7582 = vmatprep.subr.mxu0 0.0
      %7583 = vmatpush1.msra.mxu0 0.0
      %7584 = vmatprep.subr.mxu0 0.0
      %7585 = vmatpush1.msra.mxu0 0.0
      %7586 = vmatprep.subr.mxu0 0.0
      %7587 = vmatpush1.msra.mxu0 0.0
      %7588 = vmatprep.subr.mxu0 0.0
      %7589 = vmatpush1.msra.mxu0 0.0
      %7590 = vmatprep.subr.mxu0 0.0
      %7591 = vmatpush1.msra.mxu0 0.0
      %7592 = vmatprep.subr.mxu0 0.0
      %7593 = vmatpush1.msra.mxu0 0.0
      %7594 = vmatprep.subr.mxu0 0.0
      %7595 = vmatpush1.msra.mxu0 0.0
      %7596 = vmatprep.subr.mxu0 0.0
      %7597 = vmatpush1.msra.mxu0 0.0
      %7598 = vmatprep.subr.mxu0 0.0
      %7599 = vmatpush1.msra.mxu0 0.0
      %7600 = vmatprep.subr.mxu0 0.0
      %7601 = vmatpush1.msra.mxu0 0.0
      %7602 = vmatprep.subr.mxu0 0.0
      %7603 = vmatpush1.msra.mxu0 0.0
      %7604 = vmatprep.subr.mxu0 0.0
      %7605 = vmatpush1.msra.mxu0 0.0
      %7606 = vmatprep.subr.mxu0 0.0
      %7607 = vmatpush1.msra.mxu0 0.0
      %7608 = vmatprep.subr.mxu0 0.0
      %7609 = vmatpush1.msra.mxu0 0.0
      %7610 = vmatprep.subr.mxu0 0.0
      %7611 = vmatpush1.msra.mxu0 0.0
      %7612 = vmatprep.subr.mxu0 0.0
      %7613 = vmatpush1.msra.mxu0 0.0
      %7614 = vmatprep.subr.mxu0 0.0
      %7615 = vmatpush1.msra.mxu0 0.0
      %7616 = vmatprep.subr.mxu0 0.0
      %7617 = vmatpush1.msra.mxu0 0.0
      %7618 = vmatprep.subr.mxu0 0.0
      %7619 = vmatpush1.msra.mxu0 0.0
      %7620 = vmatprep.subr.mxu0 0.0
      %7621 = vmatpush1.msra.mxu0 0.0
      %7622 = vmatprep.subr.mxu0 0.0
      %7623 = vmatpush1.msra.mxu0 0.0
      %7624 = vmatprep.subr.mxu0 0.0
      %7625 = vmatpush1.msra.mxu0 0.0
      %7626 = vmatprep.subr.mxu0 0.0
      %7627 = vmatpush1.msra.mxu0 0.0
      %7628 = vmatprep.subr.mxu0 0.0
      %7629 = vmatpush1.msra.mxu0 0.0
      %7630 = vmatprep.mubr.f32.mxu0 0.0
      %7631 = vmatmul.mubr.f32.gmra.mrb[0].mxu0 %v7559
      %v7632 = vpop.f32.mrb[0].mxu0
      %v7633 = vadd.f32 0.0, %v7632
      %v7634 = vpop.f32.mrb[0].mxu0
      %7635 = vmatprep.mubr.f32.mxu0 0.0
      %7636 = vmatmul.mubr.f32.gmra.mrb[0].mxu0 %v7562
      %v7637 = vpop.f32.mrb[0].mxu0
      %v7638 = vadd.f32 0.0, %v7637
      %v7639 = vpop.f32.mrb[0].mxu0
      %7640 = vdwg.mxu0
      %v7642 = vsel %vm1188, %v7633, 0
      %v7645 = vsel %vm1188, %v7638, 0
      %7647 = vmatprep.subr.mxu0 0.0
      %7648 = vmatpush1.msra.mxu0 %v6300
      %7649 = vmatprep.subr.mxu0 0.0
      %7650 = vmatpush1.msra.mxu0 0.0
      %7651 = vmatprep.subr.mxu0 0.0
      %7652 = vmatpush1.msra.mxu0 0.0
      %7653 = vmatprep.subr.mxu0 0.0
      %7654 = vmatpush1.msra.mxu0 0.0
      %7655 = vmatprep.subr.mxu0 0.0
      %7656 = vmatpush1.msra.mxu0 0.0
      %7657 = vmatprep.subr.mxu0 0.0
      %7658 = vmatpush1.msra.mxu0 0.0
      %7659 = vmatprep.subr.mxu0 0.0
      %7660 = vmatpush1.msra.mxu0 0.0
      %7661 = vmatprep.subr.mxu0 0.0
      %7662 = vmatpush1.msra.mxu0 0.0
      %7663 = vmatprep.subr.mxu0 0.0
      %7664 = vmatpush1.msra.mxu0 0.0
      %7665 = vmatprep.subr.mxu0 0.0
      %7666 = vmatpush1.msra.mxu0 0.0
      %7667 = vmatprep.subr.mxu0 0.0
      %7668 = vmatpush1.msra.mxu0 0.0
      %7669 = vmatprep.subr.mxu0 0.0
      %7670 = vmatpush1.msra.mxu0 0.0
      %7671 = vmatprep.subr.mxu0 0.0
      %7672 = vmatpush1.msra.mxu0 0.0
      %7673 = vmatprep.subr.mxu0 0.0
      %7674 = vmatpush1.msra.mxu0 0.0
      %7675 = vmatprep.subr.mxu0 0.0
      %7676 = vmatpush1.msra.mxu0 0.0
      %7677 = vmatprep.subr.mxu0 0.0
      %7678 = vmatpush1.msra.mxu0 0.0
      %7679 = vmatprep.subr.mxu0 0.0
      %7680 = vmatpush1.msra.mxu0 0.0
      %7681 = vmatprep.subr.mxu0 0.0
      %7682 = vmatpush1.msra.mxu0 0.0
      %7683 = vmatprep.subr.mxu0 0.0
      %7684 = vmatpush1.msra.mxu0 0.0
      %7685 = vmatprep.subr.mxu0 0.0
      %7686 = vmatpush1.msra.mxu0 0.0
      %7687 = vmatprep.subr.mxu0 0.0
      %7688 = vmatpush1.msra.mxu0 0.0
      %7689 = vmatprep.subr.mxu0 0.0
      %7690 = vmatpush1.msra.mxu0 0.0
      %7691 = vmatprep.subr.mxu0 0.0
      %7692 = vmatpush1.msra.mxu0 0.0
      %7693 = vmatprep.subr.mxu0 0.0
      %7694 = vmatpush1.msra.mxu0 0.0
      %7695 = vmatprep.subr.mxu0 0.0
      %7696 = vmatpush1.msra.mxu0 0.0
      %7697 = vmatprep.subr.mxu0 0.0
      %7698 = vmatpush1.msra.mxu0 0.0
      %7699 = vmatprep.subr.mxu0 0.0
      %7700 = vmatpush1.msra.mxu0 0.0
      %7701 = vmatprep.subr.mxu0 0.0
      %7702 = vmatpush1.msra.mxu0 0.0
      %7703 = vmatprep.subr.mxu0 0.0
      %7704 = vmatpush1.msra.mxu0 0.0
      %7705 = vmatprep.subr.mxu0 0.0
      %7706 = vmatpush1.msra.mxu0 0.0
      %7707 = vmatprep.subr.mxu0 0.0
      %7708 = vmatpush1.msra.mxu0 0.0
      %7709 = vmatprep.subr.mxu0 0.0
      %7710 = vmatpush1.msra.mxu0 0.0
      %7711 = vmatprep.mubr.f32.mxu0 0.0
      %7712 = vmatmul.mubr.f32.gmra.mrb[0].mxu0 %v7642
      %v7713 = vpop.f32.mrb[0].mxu0
      %v7714 = vadd.f32 0.0, %v7713
      %v7715 = vpop.f32.mrb[0].mxu0
      %7716 = vmatprep.mubr.f32.mxu0 0.0
      %7717 = vmatmul.mubr.f32.gmra.mrb[0].mxu0 %v7645
      %v7718 = vpop.f32.mrb[0].mxu0
      %v7719 = vadd.f32 0.0, %v7718
      %v7720 = vpop.f32.mrb[0].mxu0
      %7721 = vdwg.mxu0
      %v7722 = vadd.f32 %v7281, %v7714
      %v7723 = vadd.f32 %v7286, %v7719
      %v7724 = vmul.f32 %v6413, %v5630
      %v7725 = vmul.f32 %v6418, %v5632
      %7728 = vrot.lane.b32.xlu0 %v7724, 124
      %v7729 = vpop.permute.xlu0 %7728
      %7730 = vrot.lane.b32.xlu0 %v7725, 124
      %v7731 = vpop.permute.xlu0 %7730
      %v7734 = vsub.f32 %v7724, %v7729
      %v7735 = vsub.f32 %v7725, %v7731
      %7738 = vrot.lane.b32.xlu0 %v7301, 4
      %v7739 = vpop.permute.xlu0 %7738
      %7740 = vrot.lane.b32.xlu0 %v7302, 4
      %v7741 = vpop.permute.xlu0 %7740
      %v7744 = vadd.f32 %v6461, %v7739
      %v7745 = vadd.f32 %v6462, %v7741
      %v7746 = vmul.f32 %v6413, %v5658
      %v7747 = vmul.f32 %v6418, %v5660
      %7750 = vrot.lane.b32.xlu0 %v7746, 124
      %v7751 = vpop.permute.xlu0 %7750
      %7752 = vrot.lane.b32.xlu0 %v7747, 124
      %v7753 = vpop.permute.xlu0 %7752
      %v7756 = vsub.f32 %v7746, %v7751
      %v7757 = vsub.f32 %v7747, %v7753
      %v7758 = vmul.f32 %v6413, %v5676
      %v7759 = vmul.f32 %v6418, %v5678
      %7762 = vrot.lane.b32.xlu0 %v7325, 4
      %v7763 = vpop.permute.xlu0 %7762
      %7764 = vrot.lane.b32.xlu0 %v7326, 4
      %v7765 = vpop.permute.xlu0 %7764
      %v7768 = vadd.f32 %v7758, %v7763
      %v7769 = vadd.f32 %v7759, %v7765
      %7772 = vrot.lane.b32.xlu0 %v7744, 100
      %v7773 = vpop.permute.xlu0 %7772
      %7774 = vrot.lane.b32.xlu0 %v7745, 100
      %v7775 = vpop.permute.xlu0 %7774
      %7778 = vrot.lane.b32.xlu0 %v7768, 68
      %v7779 = vpop.permute.xlu0 %7778
      %7780 = vrot.lane.b32.xlu0 %v7769, 68
      %v7781 = vpop.permute.xlu0 %7780
      %v7782 = vsel %vm960, %v7773, 0
      %v7784 = vsel %vm960, %v7775, 0
      %v7786 = vsel %vm960, %v7779, 0
      %v7788 = vsel %vm960, %v7781, 0
      %7790 = vmatprep.subr.mxu0 0.0
      %7791 = vmatpush1.xpose.msra.mxu0 %v7786
      %7792 = vmatprep.subr.mxu0 0.0
      %7793 = vmatpush1.xpose.msra.mxu0 %v7788
      %7794 = vmatprep.subr.mxu0 0.0
      %7795 = vmatpush1.xpose.msra.mxu0 0.0
      %7796 = vmatprep.subr.mxu0 0.0
      %7797 = vmatpush1.xpose.msra.mxu0 0.0
      %7798 = vmatprep.subr.mxu0 0.0
      %7799 = vmatpush1.xpose.msra.mxu0 0.0
      %7800 = vmatprep.subr.mxu0 0.0
      %7801 = vmatpush1.xpose.msra.mxu0 0.0
      %7802 = vmatprep.subr.mxu0 0.0
      %7803 = vmatpush1.xpose.msra.mxu0 0.0
      %7804 = vmatprep.subr.mxu0 0.0
      %7805 = vmatpush1.xpose.msra.mxu0 0.0
      %7806 = vmatprep.subr.mxu0 0.0
      %7807 = vmatpush1.xpose.msra.mxu0 0.0
      %7808 = vmatprep.subr.mxu0 0.0
      %7809 = vmatpush1.xpose.msra.mxu0 0.0
      %7810 = vmatprep.subr.mxu0 0.0
      %7811 = vmatpush1.xpose.msra.mxu0 0.0
      %7812 = vmatprep.subr.mxu0 0.0
      %7813 = vmatpush1.xpose.msra.mxu0 0.0
      %7814 = vmatprep.subr.mxu0 0.0
      %7815 = vmatpush1.xpose.msra.mxu0 0.0
      %7816 = vmatprep.subr.mxu0 0.0
      %7817 = vmatpush1.xpose.msra.mxu0 0.0
      %7818 = vmatprep.subr.mxu0 0.0
      %7819 = vmatpush1.xpose.msra.mxu0 0.0
      %7820 = vmatprep.subr.mxu0 0.0
      %7821 = vmatpush1.xpose.msra.mxu0 0.0
      %7822 = vmatprep.subr.mxu0 0.0
      %7823 = vmatpush1.xpose.msra.mxu0 0.0
      %7824 = vmatprep.subr.mxu0 0.0
      %7825 = vmatpush1.xpose.msra.mxu0 0.0
      %7826 = vmatprep.subr.mxu0 0.0
      %7827 = vmatpush1.xpose.msra.mxu0 0.0
      %7828 = vmatprep.subr.mxu0 0.0
      %7829 = vmatpush1.xpose.msra.mxu0 0.0
      %7830 = vmatprep.subr.mxu0 0.0
      %7831 = vmatpush1.xpose.msra.mxu0 0.0
      %7832 = vmatprep.subr.mxu0 0.0
      %7833 = vmatpush1.xpose.msra.mxu0 0.0
      %7834 = vmatprep.subr.mxu0 0.0
      %7835 = vmatpush1.xpose.msra.mxu0 0.0
      %7836 = vmatprep.subr.mxu0 0.0
      %7837 = vmatpush1.xpose.msra.mxu0 0.0
      %7838 = vmatprep.subr.mxu0 0.0
      %7839 = vmatpush1.xpose.msra.mxu0 0.0
      %7840 = vmatprep.subr.mxu0 0.0
      %7841 = vmatpush1.xpose.msra.mxu0 0.0
      %7842 = vmatprep.subr.mxu0 0.0
      %7843 = vmatpush1.xpose.msra.mxu0 0.0
      %7844 = vmatprep.subr.mxu0 0.0
      %7845 = vmatpush1.xpose.msra.mxu0 0.0
      %7846 = vmatprep.subr.mxu0 0.0
      %7847 = vmatpush1.xpose.msra.mxu0 0.0
      %7848 = vmatprep.subr.mxu0 0.0
      %7849 = vmatpush1.xpose.msra.mxu0 0.0
      %7850 = vmatprep.subr.mxu0 0.0
      %7851 = vmatpush1.xpose.msra.mxu0 0.0
      %7852 = vmatprep.subr.mxu0 0.0
      %7853 = vmatpush1.xpose.msra.mxu0 0.0
      %7854 = vmatprep.mubr.f32.mxu0 0.0
      %7855 = vmatmul.mubr.f32.gmra.mrb[0].mxu0 %v7782
      %v7856 = vpop.f32.mrb[0].mxu0
      %v7857 = vadd.f32 0.0, %v7856
      %v7858 = vpop.f32.mrb[0].mxu0
      %7859 = vmatprep.mubr.f32.mxu0 0.0
      %7860 = vmatmul.mubr.f32.gmra.mrb[0].mxu0 %v7784
      %v7861 = vpop.f32.mrb[0].mxu0
      %v7862 = vadd.f32 0.0, %v7861
      %v7863 = vpop.f32.mrb[0].mxu0
      %7864 = vdwg.mxu0
      %7867 = vrot.lane.b32.xlu0 %v7734, 104
      %v7868 = vpop.permute.xlu0 %7867
      %7869 = vrot.lane.b32.xlu0 %v7735, 104
      %v7870 = vpop.permute.xlu0 %7869
      %7873 = vrot.lane.b32.xlu0 %v7756, 72
      %v7874 = vpop.permute.xlu0 %7873
      %7875 = vrot.lane.b32.xlu0 %v7757, 72
      %v7876 = vpop.permute.xlu0 %7875
      %v7877 = vsel %vm960, %v7868, 0
      %v7879 = vsel %vm960, %v7870, 0
      %v7881 = vsel %vm960, %v7874, 0
      %v7883 = vsel %vm960, %v7876, 0
      %7885 = vmatprep.subr.mxu0 0.0
      %7886 = vmatpush1.xpose.msra.mxu0 %v7881
      %7887 = vmatprep.subr.mxu0 0.0
      %7888 = vmatpush1.xpose.msra.mxu0 %v7883
      %7889 = vmatprep.subr.mxu0 0.0
      %7890 = vmatpush1.xpose.msra.mxu0 0.0
      %7891 = vmatprep.subr.mxu0 0.0
      %7892 = vmatpush1.xpose.msra.mxu0 0.0
      %7893 = vmatprep.subr.mxu0 0.0
      %7894 = vmatpush1.xpose.msra.mxu0 0.0
      %7895 = vmatprep.subr.mxu0 0.0
      %7896 = vmatpush1.xpose.msra.mxu0 0.0
      %7897 = vmatprep.subr.mxu0 0.0
      %7898 = vmatpush1.xpose.msra.mxu0 0.0
      %7899 = vmatprep.subr.mxu0 0.0
      %7900 = vmatpush1.xpose.msra.mxu0 0.0
      %7901 = vmatprep.subr.mxu0 0.0
      %7902 = vmatpush1.xpose.msra.mxu0 0.0
      %7903 = vmatprep.subr.mxu0 0.0
      %7904 = vmatpush1.xpose.msra.mxu0 0.0
      %7905 = vmatprep.subr.mxu0 0.0
      %7906 = vmatpush1.xpose.msra.mxu0 0.0
      %7907 = vmatprep.subr.mxu0 0.0
      %7908 = vmatpush1.xpose.msra.mxu0 0.0
      %7909 = vmatprep.subr.mxu0 0.0
      %7910 = vmatpush1.xpose.msra.mxu0 0.0
      %7911 = vmatprep.subr.mxu0 0.0
      %7912 = vmatpush1.xpose.msra.mxu0 0.0
      %7913 = vmatprep.subr.mxu0 0.0
      %7914 = vmatpush1.xpose.msra.mxu0 0.0
      %7915 = vmatprep.subr.mxu0 0.0
      %7916 = vmatpush1.xpose.msra.mxu0 0.0
      %7917 = vmatprep.subr.mxu0 0.0
      %7918 = vmatpush1.xpose.msra.mxu0 0.0
      %7919 = vmatprep.subr.mxu0 0.0
      %7920 = vmatpush1.xpose.msra.mxu0 0.0
      %7921 = vmatprep.subr.mxu0 0.0
      %7922 = vmatpush1.xpose.msra.mxu0 0.0
      %7923 = vmatprep.subr.mxu0 0.0
      %7924 = vmatpush1.xpose.msra.mxu0 0.0
      %7925 = vmatprep.subr.mxu0 0.0
      %7926 = vmatpush1.xpose.msra.mxu0 0.0
      %7927 = vmatprep.subr.mxu0 0.0
      %7928 = vmatpush1.xpose.msra.mxu0 0.0
      %7929 = vmatprep.subr.mxu0 0.0
      %7930 = vmatpush1.xpose.msra.mxu0 0.0
      %7931 = vmatprep.subr.mxu0 0.0
      %7932 = vmatpush1.xpose.msra.mxu0 0.0
      %7933 = vmatprep.subr.mxu0 0.0
      %7934 = vmatpush1.xpose.msra.mxu0 0.0
      %7935 = vmatprep.subr.mxu0 0.0
      %7936 = vmatpush1.xpose.msra.mxu0 0.0
      %7937 = vmatprep.subr.mxu0 0.0
      %7938 = vmatpush1.xpose.msra.mxu0 0.0
      %7939 = vmatprep.subr.mxu0 0.0
      %7940 = vmatpush1.xpose.msra.mxu0 0.0
      %7941 = vmatprep.subr.mxu0 0.0
      %7942 = vmatpush1.xpose.msra.mxu0 0.0
      %7943 = vmatprep.subr.mxu0 0.0
      %7944 = vmatpush1.xpose.msra.mxu0 0.0
      %7945 = vmatprep.subr.mxu0 0.0
      %7946 = vmatpush1.xpose.msra.mxu0 0.0
      %7947 = vmatprep.subr.mxu0 0.0
      %7948 = vmatpush1.xpose.msra.mxu0 0.0
      %7949 = vmatprep.mubr.f32.mxu0 0.0
      %7950 = vmatmul.mubr.f32.gmra.mrb[0].mxu0 %v7877
      %v7951 = vpop.f32.mrb[0].mxu0
      %v7952 = vadd.f32 %v7857, %v7951
      %v7953 = vpop.f32.mrb[0].mxu0
      %7954 = vmatprep.mubr.f32.mxu0 0.0
      %7955 = vmatmul.mubr.f32.gmra.mrb[0].mxu0 %v7879
      %v7956 = vpop.f32.mrb[0].mxu0
      %v7957 = vadd.f32 %v7862, %v7956
      %v7958 = vpop.f32.mrb[0].mxu0
      %7959 = vdwg.mxu0
      %v7960 = vmul.f32 %v7952, 0.35355338
      %v7961 = vmul.f32 %v7957, 0.35355338
      %v7962 = vsel %vm3910, %v7960, -1e+09
      %v7963 = vsel %vm3911, %v7961, -1e+09
      %v7964 = vsel %vm3916, %v7962, -inf
      %7965 = vmax.xlane.f32.xlu0 %v7964
      %v7966 = vpop.xlane.xlu0 %7965
      %v7967 = vsel %vm4522, %v7963, -inf
      %7968 = vmax.xlane.f32.xlu0 %v7967
      %v7969 = vpop.xlane.xlu0 %7968
      %v7970 = vsub.f32 %v7962, %v7966
      %v7971 = vsub.f32 %v7963, %v7969
      %v7972 = vmul.f32 %v7970, 1.442695
      %v7973 = vpow.pop %v7972
      %v7974 = vmul.f32 %v7971, 1.442695
      %v7975 = vpow.pop %v7974
      %v7976 = vsel %vm3916, %v7973, 0.0
      %7977 = vadd.xlane.f32.xlu0 %v7976
      %v7978 = vpop.xlane.xlu0 %7977
      %v7979 = vsel %vm4522, %v7975, 0.0
      %7980 = vadd.xlane.f32.xlu0 %v7979
      %v7981 = vpop.xlane.xlu0 %7980
      %v7982 = vrcp.pop %v7978
      %v7983 = vmul.f32 %v7973, %v7982
      %v7984 = vrcp.pop %v7981
      %v7985 = vmul.f32 %v7975, %v7984
      %7986 = vrot.lane.b32.xlu0 %v6413, 40
      %v7987 = vpop.permute.xlu0 %7986
      %7988 = vrot.lane.b32.xlu0 %v6418, 40
      %v7989 = vpop.permute.xlu0 %7988
      %v7992 = vsel %vm3916, %v7983, 0
      %v7995 = vsel %vm3916, %v7985, 0
      %v7997 = vsel %vm737, %v7989, 0
      %7999 = vmatprep.subr.mxu0 0.0
      %8000 = vmatpush1.msra.mxu0 %v7987
      %8001 = vmatprep.subr.mxu0 0.0
      %8002 = vmatpush1.msra.mxu0 %v7997
      %8003 = vmatprep.subr.mxu0 0.0
      %8004 = vmatpush1.msra.mxu0 0.0
      %8005 = vmatprep.subr.mxu0 0.0
      %8006 = vmatpush1.msra.mxu0 0.0
      %8007 = vmatprep.subr.mxu0 0.0
      %8008 = vmatpush1.msra.mxu0 0.0
      %8009 = vmatprep.subr.mxu0 0.0
      %8010 = vmatpush1.msra.mxu0 0.0
      %8011 = vmatprep.subr.mxu0 0.0
      %8012 = vmatpush1.msra.mxu0 0.0
      %8013 = vmatprep.subr.mxu0 0.0
      %8014 = vmatpush1.msra.mxu0 0.0
      %8015 = vmatprep.subr.mxu0 0.0
      %8016 = vmatpush1.msra.mxu0 0.0
      %8017 = vmatprep.subr.mxu0 0.0
      %8018 = vmatpush1.msra.mxu0 0.0
      %8019 = vmatprep.subr.mxu0 0.0
      %8020 = vmatpush1.msra.mxu0 0.0
      %8021 = vmatprep.subr.mxu0 0.0
      %8022 = vmatpush1.msra.mxu0 0.0
      %8023 = vmatprep.subr.mxu0 0.0
      %8024 = vmatpush1.msra.mxu0 0.0
      %8025 = vmatprep.subr.mxu0 0.0
      %8026 = vmatpush1.msra.mxu0 0.0
      %8027 = vmatprep.subr.mxu0 0.0
      %8028 = vmatpush1.msra.mxu0 0.0
      %8029 = vmatprep.subr.mxu0 0.0
      %8030 = vmatpush1.msra.mxu0 0.0
      %8031 = vmatprep.subr.mxu0 0.0
      %8032 = vmatpush1.msra.mxu0 0.0
      %8033 = vmatprep.subr.mxu0 0.0
      %8034 = vmatpush1.msra.mxu0 0.0
      %8035 = vmatprep.subr.mxu0 0.0
      %8036 = vmatpush1.msra.mxu0 0.0
      %8037 = vmatprep.subr.mxu0 0.0
      %8038 = vmatpush1.msra.mxu0 0.0
      %8039 = vmatprep.subr.mxu0 0.0
      %8040 = vmatpush1.msra.mxu0 0.0
      %8041 = vmatprep.subr.mxu0 0.0
      %8042 = vmatpush1.msra.mxu0 0.0
      %8043 = vmatprep.subr.mxu0 0.0
      %8044 = vmatpush1.msra.mxu0 0.0
      %8045 = vmatprep.subr.mxu0 0.0
      %8046 = vmatpush1.msra.mxu0 0.0
      %8047 = vmatprep.subr.mxu0 0.0
      %8048 = vmatpush1.msra.mxu0 0.0
      %8049 = vmatprep.subr.mxu0 0.0
      %8050 = vmatpush1.msra.mxu0 0.0
      %8051 = vmatprep.subr.mxu0 0.0
      %8052 = vmatpush1.msra.mxu0 0.0
      %8053 = vmatprep.subr.mxu0 0.0
      %8054 = vmatpush1.msra.mxu0 0.0
      %8055 = vmatprep.subr.mxu0 0.0
      %8056 = vmatpush1.msra.mxu0 0.0
      %8057 = vmatprep.subr.mxu0 0.0
      %8058 = vmatpush1.msra.mxu0 0.0
      %8059 = vmatprep.subr.mxu0 0.0
      %8060 = vmatpush1.msra.mxu0 0.0
      %8061 = vmatprep.subr.mxu0 0.0
      %8062 = vmatpush1.msra.mxu0 0.0
      %8063 = vmatprep.mubr.f32.mxu0 0.0
      %8064 = vmatmul.mubr.f32.gmra.mrb[0].mxu0 %v7992
      %v8065 = vpop.f32.mrb[0].mxu0
      %v8066 = vadd.f32 0.0, %v8065
      %v8067 = vpop.f32.mrb[0].mxu0
      %8068 = vmatprep.mubr.f32.mxu0 0.0
      %8069 = vmatmul.mubr.f32.gmra.mrb[0].mxu0 %v7995
      %v8070 = vpop.f32.mrb[0].mxu0
      %v8071 = vadd.f32 0.0, %v8070
      %v8072 = vpop.f32.mrb[0].mxu0
      %8073 = vdwg.mxu0
      %v8075 = vsel %vm1188, %v8066, 0
      %v8078 = vsel %vm1188, %v8071, 0
      %8080 = vmatprep.subr.mxu0 0.0
      %8081 = vmatpush1.msra.mxu0 %v6301
      %8082 = vmatprep.subr.mxu0 0.0
      %8083 = vmatpush1.msra.mxu0 0.0
      %8084 = vmatprep.subr.mxu0 0.0
      %8085 = vmatpush1.msra.mxu0 0.0
      %8086 = vmatprep.subr.mxu0 0.0
      %8087 = vmatpush1.msra.mxu0 0.0
      %8088 = vmatprep.subr.mxu0 0.0
      %8089 = vmatpush1.msra.mxu0 0.0
      %8090 = vmatprep.subr.mxu0 0.0
      %8091 = vmatpush1.msra.mxu0 0.0
      %8092 = vmatprep.subr.mxu0 0.0
      %8093 = vmatpush1.msra.mxu0 0.0
      %8094 = vmatprep.subr.mxu0 0.0
      %8095 = vmatpush1.msra.mxu0 0.0
      %8096 = vmatprep.subr.mxu0 0.0
      %8097 = vmatpush1.msra.mxu0 0.0
      %8098 = vmatprep.subr.mxu0 0.0
      %8099 = vmatpush1.msra.mxu0 0.0
      %8100 = vmatprep.subr.mxu0 0.0
      %8101 = vmatpush1.msra.mxu0 0.0
      %8102 = vmatprep.subr.mxu0 0.0
      %8103 = vmatpush1.msra.mxu0 0.0
      %8104 = vmatprep.subr.mxu0 0.0
      %8105 = vmatpush1.msra.mxu0 0.0
      %8106 = vmatprep.subr.mxu0 0.0
      %8107 = vmatpush1.msra.mxu0 0.0
      %8108 = vmatprep.subr.mxu0 0.0
      %8109 = vmatpush1.msra.mxu0 0.0
      %8110 = vmatprep.subr.mxu0 0.0
      %8111 = vmatpush1.msra.mxu0 0.0
      %8112 = vmatprep.subr.mxu0 0.0
      %8113 = vmatpush1.msra.mxu0 0.0
      %8114 = vmatprep.subr.mxu0 0.0
      %8115 = vmatpush1.msra.mxu0 0.0
      %8116 = vmatprep.subr.mxu0 0.0
      %8117 = vmatpush1.msra.mxu0 0.0
      %8118 = vmatprep.subr.mxu0 0.0
      %8119 = vmatpush1.msra.mxu0 0.0
      %8120 = vmatprep.subr.mxu0 0.0
      %8121 = vmatpush1.msra.mxu0 0.0
      %8122 = vmatprep.subr.mxu0 0.0
      %8123 = vmatpush1.msra.mxu0 0.0
      %8124 = vmatprep.subr.mxu0 0.0
      %8125 = vmatpush1.msra.mxu0 0.0
      %8126 = vmatprep.subr.mxu0 0.0
      %8127 = vmatpush1.msra.mxu0 0.0
      %8128 = vmatprep.subr.mxu0 0.0
      %8129 = vmatpush1.msra.mxu0 0.0
      %8130 = vmatprep.subr.mxu0 0.0
      %8131 = vmatpush1.msra.mxu0 0.0
      %8132 = vmatprep.subr.mxu0 0.0
      %8133 = vmatpush1.msra.mxu0 0.0
      %8134 = vmatprep.subr.mxu0 0.0
      %8135 = vmatpush1.msra.mxu0 0.0
      %8136 = vmatprep.subr.mxu0 0.0
      %8137 = vmatpush1.msra.mxu0 0.0
      %8138 = vmatprep.subr.mxu0 0.0
      %8139 = vmatpush1.msra.mxu0 0.0
      %8140 = vmatprep.subr.mxu0 0.0
      %8141 = vmatpush1.msra.mxu0 0.0
      %8142 = vmatprep.subr.mxu0 0.0
      %8143 = vmatpush1.msra.mxu0 0.0
      %8144 = vmatprep.mubr.f32.mxu0 0.0
      %8145 = vmatmul.mubr.f32.gmra.mrb[0].mxu0 %v8075
      %v8146 = vpop.f32.mrb[0].mxu0
      %v8147 = vadd.f32 0.0, %v8146
      %v8148 = vpop.f32.mrb[0].mxu0
      %8149 = vmatprep.mubr.f32.mxu0 0.0
      %8150 = vmatmul.mubr.f32.gmra.mrb[0].mxu0 %v8078
      %v8151 = vpop.f32.mrb[0].mxu0
      %v8152 = vadd.f32 0.0, %v8151
      %v8153 = vpop.f32.mrb[0].mxu0
      %8154 = vdwg.mxu0
      %v8155 = vadd.f32 %v7722, %v8147
      %v8156 = vadd.f32 %v7723, %v8152
      %v8157 = vadd.f32 %v6290, %v8155
      %v8158 = vadd.f32 %v6291, %v8156
      %v8159 = vmul.f32 %v8157, %v8157
      %v8160 = vmul.f32 %v8158, %v8158
      %v8161 = vsel %vm1111, %v8159, 0.0
      %8162 = vadd.xlane.f32.xlu0 %v8161
      %v8163 = vpop.xlane.xlu0 %8162
      %v8164 = vsel %vm4146, %v8160, 0.0
      %8165 = vadd.xlane.f32.xlu0 %v8164
      %v8166 = vpop.xlane.xlu0 %8165
      %v8167 = vmul.f32 %v8163, %v1042
      %v8168 = vmul.f32 %v8166, %v1042
      %v8169 = vadd.f32 %v8167, 1e-06
      %v8170 = vadd.f32 %v8168, 1e-06
      %v8171 = vrsqrt.pop %v8169
      %v8172 = vrsqrt.pop %v8170
      %v8173 = vmul.f32 %v8157, %v8171
      %v8174 = vmul.f32 %v8158, %v8172
      %v8175 = vlaneseq
      %v8176 = vshrl.u32 %v8175, 7
      %v8177 = vsub.s32 1, %v8176
      %v8178 = vrot.slane %v6317, %v8177
      %v8179 = vmul.f32 %v8173, %v8178
      %v8180 = vmul.f32 %v8174, %v8178
      %v8182 = vsel %vm1111, %v8179, 0
      %v8185 = vsel %vm1111, %v8180, 0
      %8187 = vmatprep.subr.mxu0 0.0
      %8188 = vmatpush1.msra.mxu0 %v6303
      %8189 = vmatprep.subr.mxu0 0.0
      %8190 = vmatpush1.msra.mxu0 %v6304
      %8191 = vmatprep.subr.mxu0 0.0
      %8192 = vmatpush1.msra.mxu0 %v6305
      %8193 = vmatprep.subr.mxu0 0.0
      %8194 = vmatpush1.msra.mxu0 %v6306
      %8195 = vmatprep.subr.mxu0 0.0
      %8196 = vmatpush1.msra.mxu0 0.0
      %8197 = vmatprep.subr.mxu0 0.0
      %8198 = vmatpush1.msra.mxu0 0.0
      %8199 = vmatprep.subr.mxu0 0.0
      %8200 = vmatpush1.msra.mxu0 0.0
      %8201 = vmatprep.subr.mxu0 0.0
      %8202 = vmatpush1.msra.mxu0 0.0
      %8203 = vmatprep.subr.mxu0 0.0
      %8204 = vmatpush1.msra.mxu0 0.0
      %8205 = vmatprep.subr.mxu0 0.0
      %8206 = vmatpush1.msra.mxu0 0.0
      %8207 = vmatprep.subr.mxu0 0.0
      %8208 = vmatpush1.msra.mxu0 0.0
      %8209 = vmatprep.subr.mxu0 0.0
      %8210 = vmatpush1.msra.mxu0 0.0
      %8211 = vmatprep.subr.mxu0 0.0
      %8212 = vmatpush1.msra.mxu0 0.0
      %8213 = vmatprep.subr.mxu0 0.0
      %8214 = vmatpush1.msra.mxu0 0.0
      %8215 = vmatprep.subr.mxu0 0.0
      %8216 = vmatpush1.msra.mxu0 0.0
      %8217 = vmatprep.subr.mxu0 0.0
      %8218 = vmatpush1.msra.mxu0 0.0
      %8219 = vmatprep.subr.mxu0 0.0
      %8220 = vmatpush1.msra.mxu0 0.0
      %8221 = vmatprep.subr.mxu0 0.0
      %8222 = vmatpush1.msra.mxu0 0.0
      %8223 = vmatprep.subr.mxu0 0.0
      %8224 = vmatpush1.msra.mxu0 0.0
      %8225 = vmatprep.subr.mxu0 0.0
      %8226 = vmatpush1.msra.mxu0 0.0
      %8227 = vmatprep.subr.mxu0 0.0
      %8228 = vmatpush1.msra.mxu0 0.0
      %8229 = vmatprep.subr.mxu0 0.0
      %8230 = vmatpush1.msra.mxu0 0.0
      %8231 = vmatprep.subr.mxu0 0.0
      %8232 = vmatpush1.msra.mxu0 0.0
      %8233 = vmatprep.subr.mxu0 0.0
      %8234 = vmatpush1.msra.mxu0 0.0
      %8235 = vmatprep.subr.mxu0 0.0
      %8236 = vmatpush1.msra.mxu0 0.0
      %8237 = vmatprep.subr.mxu0 0.0
      %8238 = vmatpush1.msra.mxu0 0.0
      %8239 = vmatprep.subr.mxu0 0.0
      %8240 = vmatpush1.msra.mxu0 0.0
      %8241 = vmatprep.subr.mxu0 0.0
      %8242 = vmatpush1.msra.mxu0 0.0
      %8243 = vmatprep.subr.mxu0 0.0
      %8244 = vmatpush1.msra.mxu0 0.0
      %8245 = vmatprep.subr.mxu0 0.0
      %8246 = vmatpush1.msra.mxu0 0.0
      %8247 = vmatprep.subr.mxu0 0.0
      %8248 = vmatpush1.msra.mxu0 0.0
      %8249 = vmatprep.subr.mxu0 0.0
      %8250 = vmatpush1.msra.mxu0 0.0
      %8251 = vmatprep.mubr.f32.mxu0 0.0
      %8252 = vmatmul.mubr.f32.gmra.mrb[0].mxu0 %v8182
      %v8253 = vpop.f32.mrb[0].mxu0
      %v8254 = vadd.f32 0.0, %v8253
      %v8255 = vpop.f32.mrb[0].mxu0
      %8256 = vmatprep.mubr.f32.mxu0 0.0
      %8257 = vmatmul.mubr.f32.gmra.mrb[0].mxu0 %v8185
      %v8258 = vpop.f32.mrb[0].mxu0
      %v8259 = vadd.f32 0.0, %v8258
      %v8260 = vpop.f32.mrb[0].mxu0
      %8261 = vdwg.mxu0
      %v8262 = vxor.u32 %v8254, 2147483648
      %v8263 = vxor.u32 %v8259, 2147483648
      %v8264 = vmul.f32 %v8262, 1.442695
      %v8265 = vpow.pop %v8264
      %v8266 = vmul.f32 %v8263, 1.442695
      %v8267 = vpow.pop %v8266
      %v8268 = vadd.f32 %v8265, 1.0
      %v8269 = vadd.f32 %v8267, 1.0
      %v8270 = vrcp.pop %v8268
      %v8271 = vmul.f32 1.0, %v8270
      %v8272 = vrcp.pop %v8269
      %v8273 = vmul.f32 1.0, %v8272
      %v8274 = vmul.f32 %v8254, %v8271
      %v8275 = vmul.f32 %v8259, %v8273
      %8278 = vrot.lane.b32.xlu0 %v8254, 64
      %v8279 = vpop.permute.xlu0 %8278
      %8280 = vrot.lane.b32.xlu0 %v8259, 64
      %v8281 = vpop.permute.xlu0 %8280
      %v8284 = vmul.f32 %v8274, %v8279
      %v8285 = vmul.f32 %v8275, %v8281
      %v8287 = vsel %vm2264, %v8284, 0
      %v8290 = vsel %vm2264, %v8285, 0
      %8292 = vmatprep.subr.mxu0 0.0
      %8293 = vmatpush1.msra.mxu0 %v6308
      %8294 = vmatprep.subr.mxu0 0.0
      %8295 = vmatpush1.msra.mxu0 %v6309
      %8296 = vmatprep.subr.mxu0 0.0
      %8297 = vmatpush1.msra.mxu0 %v6310
      %8298 = vmatprep.subr.mxu0 0.0
      %8299 = vmatpush1.msra.mxu0 %v6311
      %8300 = vmatprep.subr.mxu0 0.0
      %8301 = vmatpush1.msra.mxu0 %v6312
      %8302 = vmatprep.subr.mxu0 0.0
      %8303 = vmatpush1.msra.mxu0 %v6313
      %8304 = vmatprep.subr.mxu0 0.0
      %8305 = vmatpush1.msra.mxu0 %v6314
      %8306 = vmatprep.subr.mxu0 0.0
      %8307 = vmatpush1.msra.mxu0 %v6315
      %8308 = vmatprep.subr.mxu0 0.0
      %8309 = vmatpush1.msra.mxu0 0.0
      %8310 = vmatprep.subr.mxu0 0.0
      %8311 = vmatpush1.msra.mxu0 0.0
      %8312 = vmatprep.subr.mxu0 0.0
      %8313 = vmatpush1.msra.mxu0 0.0
      %8314 = vmatprep.subr.mxu0 0.0
      %8315 = vmatpush1.msra.mxu0 0.0
      %8316 = vmatprep.subr.mxu0 0.0
      %8317 = vmatpush1.msra.mxu0 0.0
      %8318 = vmatprep.subr.mxu0 0.0
      %8319 = vmatpush1.msra.mxu0 0.0
      %8320 = vmatprep.subr.mxu0 0.0
      %8321 = vmatpush1.msra.mxu0 0.0
      %8322 = vmatprep.subr.mxu0 0.0
      %8323 = vmatpush1.msra.mxu0 0.0
      %8324 = vmatprep.subr.mxu0 0.0
      %8325 = vmatpush1.msra.mxu0 0.0
      %8326 = vmatprep.subr.mxu0 0.0
      %8327 = vmatpush1.msra.mxu0 0.0
      %8328 = vmatprep.subr.mxu0 0.0
      %8329 = vmatpush1.msra.mxu0 0.0
      %8330 = vmatprep.subr.mxu0 0.0
      %8331 = vmatpush1.msra.mxu0 0.0
      %8332 = vmatprep.subr.mxu0 0.0
      %8333 = vmatpush1.msra.mxu0 0.0
      %8334 = vmatprep.subr.mxu0 0.0
      %8335 = vmatpush1.msra.mxu0 0.0
      %8336 = vmatprep.subr.mxu0 0.0
      %8337 = vmatpush1.msra.mxu0 0.0
      %8338 = vmatprep.subr.mxu0 0.0
      %8339 = vmatpush1.msra.mxu0 0.0
      %8340 = vmatprep.subr.mxu0 0.0
      %8341 = vmatpush1.msra.mxu0 0.0
      %8342 = vmatprep.subr.mxu0 0.0
      %8343 = vmatpush1.msra.mxu0 0.0
      %8344 = vmatprep.subr.mxu0 0.0
      %8345 = vmatpush1.msra.mxu0 0.0
      %8346 = vmatprep.subr.mxu0 0.0
      %8347 = vmatpush1.msra.mxu0 0.0
      %8348 = vmatprep.subr.mxu0 0.0
      %8349 = vmatpush1.msra.mxu0 0.0
      %8350 = vmatprep.subr.mxu0 0.0
      %8351 = vmatpush1.msra.mxu0 0.0
      %8352 = vmatprep.subr.mxu0 0.0
      %8353 = vmatpush1.msra.mxu0 0.0
      %8354 = vmatprep.subr.mxu0 0.0
      %8355 = vmatpush1.msra.mxu0 0.0
      %8356 = vmatprep.mubr.f32.mxu0 0.0
      %8357 = vmatmul.mubr.f32.gmra.mrb[0].mxu0 %v8287
      %v8358 = vpop.f32.mrb[0].mxu0
      %v8359 = vadd.f32 0.0, %v8358
      %v8360 = vpop.f32.mrb[0].mxu0
      %8361 = vmatprep.mubr.f32.mxu0 0.0
      %8362 = vmatmul.mubr.f32.gmra.mrb[0].mxu0 %v8290
      %v8363 = vpop.f32.mrb[0].mxu0
      %v8364 = vadd.f32 0.0, %v8363
      %v8365 = vpop.f32.mrb[0].mxu0
      %8366 = vdwg.mxu0
      %v8367 = vadd.f32 %v8157, %v8359
      %v8368 = vadd.f32 %v8158, %v8364
      %v8369 = vld [vmem:[%s18] sm:$0x1]
      %v8370 = vmul.f32 %v8367, %v8367
      %v8371 = vmul.f32 %v8368, %v8368
      %v8372 = vsel %vm1111, %v8370, 0.0
      %8373 = vadd.xlane.f32.xlu0 %v8372
      %v8374 = vpop.xlane.xlu0 %8373
      %v8375 = vsel %vm4146, %v8371, 0.0
      %8376 = vadd.xlane.f32.xlu0 %v8375
      %v8377 = vpop.xlane.xlu0 %8376
      %v8378 = vmul.f32 %v8374, %v1042
      %v8379 = vmul.f32 %v8377, %v1042
      %v8380 = vadd.f32 %v8378, 1e-06
      %v8381 = vadd.f32 %v8379, 1e-06
      %v8382 = vrsqrt.pop %v8380
      %v8383 = vrsqrt.pop %v8381
      %v8384 = vmul.f32 %v8367, %v8382
      %v8385 = vmul.f32 %v8368, %v8383
      %v8387 = vlaneseq
      %v8388 = vshrl.u32 %v8387, 7
      %v8389 = vsub.s32 0, %v8388
      %v8390 = vrot.slane %v8369, %v8389
      %v8392 = vmul.f32 %v8384, %v8390
      %v8393 = vmul.f32 %v8385, %v8390
      %v8394 = vld [vmem:[%s19] sm:$0xff]
      %v8395 = vld [vmem:[%s19 + $0x8] sm:$0xff]
      %v8396 = vld [vmem:[%s19 + $0x10] sm:$0xff]
      %v8397 = vld [vmem:[%s19 + $0x18] sm:$0xff]
      %v8399 = vsel %vm1111, %v8392, 0
      %v8402 = vsel %vm1111, %v8393, 0
      %8404 = vmatprep.subr.mxu0 0.0
      %8405 = vmatpush1.msra.mxu0 %v8394
      %8406 = vmatprep.subr.mxu0 0.0
      %8407 = vmatpush1.msra.mxu0 %v8395
      %8408 = vmatprep.subr.mxu0 0.0
      %8409 = vmatpush1.msra.mxu0 %v8396
      %8410 = vmatprep.subr.mxu0 0.0
      %8411 = vmatpush1.msra.mxu0 %v8397
      %8412 = vmatprep.subr.mxu0 0.0
      %8413 = vmatpush1.msra.mxu0 0.0
      %8414 = vmatprep.subr.mxu0 0.0
      %8415 = vmatpush1.msra.mxu0 0.0
      %8416 = vmatprep.subr.mxu0 0.0
      %8417 = vmatpush1.msra.mxu0 0.0
      %8418 = vmatprep.subr.mxu0 0.0
      %8419 = vmatpush1.msra.mxu0 0.0
      %8420 = vmatprep.subr.mxu0 0.0
      %8421 = vmatpush1.msra.mxu0 0.0
      %8422 = vmatprep.subr.mxu0 0.0
      %8423 = vmatpush1.msra.mxu0 0.0
      %8424 = vmatprep.subr.mxu0 0.0
      %8425 = vmatpush1.msra.mxu0 0.0
      %8426 = vmatprep.subr.mxu0 0.0
      %8427 = vmatpush1.msra.mxu0 0.0
      %8428 = vmatprep.subr.mxu0 0.0
      %8429 = vmatpush1.msra.mxu0 0.0
      %8430 = vmatprep.subr.mxu0 0.0
      %8431 = vmatpush1.msra.mxu0 0.0
      %8432 = vmatprep.subr.mxu0 0.0
      %8433 = vmatpush1.msra.mxu0 0.0
      %8434 = vmatprep.subr.mxu0 0.0
      %8435 = vmatpush1.msra.mxu0 0.0
      %8436 = vmatprep.subr.mxu0 0.0
      %8437 = vmatpush1.msra.mxu0 0.0
      %8438 = vmatprep.subr.mxu0 0.0
      %8439 = vmatpush1.msra.mxu0 0.0
      %8440 = vmatprep.subr.mxu0 0.0
      %8441 = vmatpush1.msra.mxu0 0.0
      %8442 = vmatprep.subr.mxu0 0.0
      %8443 = vmatpush1.msra.mxu0 0.0
      %8444 = vmatprep.subr.mxu0 0.0
      %8445 = vmatpush1.msra.mxu0 0.0
      %8446 = vmatprep.subr.mxu0 0.0
      %8447 = vmatpush1.msra.mxu0 0.0
      %8448 = vmatprep.subr.mxu0 0.0
      %8449 = vmatpush1.msra.mxu0 0.0
      %8450 = vmatprep.subr.mxu0 0.0
      %8451 = vmatpush1.msra.mxu0 0.0
      %8452 = vmatprep.subr.mxu0 0.0
      %8453 = vmatpush1.msra.mxu0 0.0
      %8454 = vmatprep.subr.mxu0 0.0
      %8455 = vmatpush1.msra.mxu0 0.0
      %8456 = vmatprep.subr.mxu0 0.0
      %8457 = vmatpush1.msra.mxu0 0.0
      %8458 = vmatprep.subr.mxu0 0.0
      %8459 = vmatpush1.msra.mxu0 0.0
      %8460 = vmatprep.subr.mxu0 0.0
      %8461 = vmatpush1.msra.mxu0 0.0
      %8462 = vmatprep.subr.mxu0 0.0
      %8463 = vmatpush1.msra.mxu0 0.0
      %8464 = vmatprep.subr.mxu0 0.0
      %8465 = vmatpush1.msra.mxu0 0.0
      %8466 = vmatprep.subr.mxu0 0.0
      %8467 = vmatpush1.msra.mxu0 0.0
      %8468 = vmatprep.mubr.f32.mxu0 0.0
      %8469 = vmatmul.mubr.f32.gmra.mrb[0].mxu0 %v8399
      %v8470 = vpop.f32.mrb[0].mxu0
      %v8471 = vadd.f32 0.0, %v8470
      %v8472 = vpop.f32.mrb[0].mxu0
      %8473 = vmatprep.mubr.f32.mxu0 0.0
      %8474 = vmatmul.mubr.f32.gmra.mrb[0].mxu0 %v8402
      %v8475 = vpop.f32.mrb[0].mxu0
      %v8476 = vadd.f32 0.0, %v8475
      %v8477 = vpop.f32.mrb[0].mxu0
      %8478 = vdwg.mxu0
      %8479 = vst [vmem:[%s649] sm:$0xff] %v8471
      %8480 = vst [vmem:[%s649 + $0x8] sm:$0xf] %v8476
      %p8481 = scmp.lt.s32.totalorder %s31, 1
      %s8482 = scalar_select %p8481, %s31, 1
      %s8483 = smul.addr %s8482, 2
      %s8484 = smul.addr %s8483, 8
      %s8485 = scalar_lea.vmem %s20, %s8484
      // Predicated region
      $region101: #{forward.1} parent=99 // pred_check
        %p8486 = pneg %p479
      $region102: #{forward.1} parent=99 // pred_check_branch
        %8488 = sbr.rel (%p8486) target = $region104
      $region103: #{forward.1} parent=99 // pred_region
        _
      $region104: #{forward.1} parent=99 // pred_fallthru
        _
    $region100: #{forward.1} parent=5 // pred_fallthru
      _
    %p8489 = scmp.le.s32.totalorder 2, %s26
    // Predicated region
    $region105: #{forward.1} parent=5 // pred_check
      %p8490 = pneg %p8489
    $region106: #{forward.1} parent=5 // pred_check_branch
      %8492 = sbr.rel (%p8490) target = $region108
    $region107: #{forward.1} parent=5 // pred_region
      %s8493 = ssub.s32 %s26, 2
      // Predicated region
      $region109: #{forward.1} parent=107 // pred_check
        %p8494 = pneg %p485
      $region110: #{forward.1} parent=107 // pred_check_branch
        %8496 = sbr.rel (%p8494) target = $region112
      $region111: #{forward.1} parent=107 // pred_region
        %p8497 = scmp.lt.s32.totalorder %s32, 1
        %s8498 = scalar_select %p8497, %s32, 1
        %s8499 = smul.addr %s8498, 2
        %s8500 = smul.addr %s8499, 8
        %s8501 = scalar_lea.vmem %s20, %s8500
      $region112: #{forward.1} parent=107 // pred_fallthru
        _
    $region108: #{forward.1} parent=5 // pred_fallthru
      _
  $region6: #{forward.1} parent=0 // loop_footer
    %s30 = sadd.s32 1, %s26
  $region7: #{forward.1} parent=0 // loop_footer_branch
    %25 = sbr.rel target = $region3
  $region8: #{forward.1} parent=0 // loop_exit
    _

</llo_original>
